<compile_context>
chip_gen: v5e
topology: v5e:2x2
jax: 0.10.0
libtpu: 0.0.40
codegen_flags: <defaults>
</compile_context>

<pallas_src>
import math
import functools

import jax
import jax.numpy as jnp
from jax.experimental import pallas as pl
from jax.experimental.pallas import tpu as pltpu


# ----------------------------------------------------------------------------
# Fused whole-model kernel (one grid step == one batch element)
# ----------------------------------------------------------------------------

def _tat_kernel(
    # per-batch activations / encodings
    emb_in_ref, time_ref, pe_enc_ref, pe_dec_ref,
    # shared input embedding: Linear -> ReLU -> Linear -> LayerNorm
    emb_w1_ref, emb_b1_ref, emb_w2_ref, emb_b2_ref, emb_g_ref, emb_beta_ref,
    # time encoding Linear(1, d_model)
    time_w_ref, time_b_ref,
    # encoder layers (stacked along a leading layer axis)
    e_n1g_ref, e_n1b_ref, e_qkvw_ref, e_qkvb_ref, e_ow_ref, e_ob_ref,
    e_n2g_ref, e_n2b_ref, e_f1w_ref, e_f1b_ref, e_f2w_ref, e_f2b_ref,
    # decoder layers (stacked along a leading layer axis)
    d_n1g_ref, d_n1b_ref, d_sqkvw_ref, d_sqkvb_ref, d_sow_ref, d_sob_ref,
    d_n2g_ref, d_n2b_ref, d_cqw_ref, d_cqb_ref, d_ckvw_ref, d_ckvb_ref,
    d_cow_ref, d_cob_ref,
    d_n3g_ref, d_n3b_ref, d_f1w_ref, d_f1b_ref, d_f2w_ref, d_f2b_ref,
    # output projection (zero-padded to a lane-dense width)
    outw_ref, outb_ref,
    # output
    o_ref,
    *, num_enc, num_dec, S_enc, S_dec, H, d_model, eps):

    dk = d_model // H
    scale = 1.0 / math.sqrt(dk)
    sqrt_dm = math.sqrt(d_model)

    def mm(a, b):
        return jnp.dot(a, b, preferred_element_type=jnp.float32)

    def layer_norm(x, g, b):
        mu = jnp.mean(x, axis=-1, keepdims=True)
        xc = x - mu
        var = jnp.mean(xc * xc, axis=-1, keepdims=True)
        return xc * jax.lax.rsqrt(var + eps) * g + b

    def split_heads(x, S):
        # (S, d_model) -> (H, S, dk), head-major along a new leading axis.
        return jnp.concatenate(
            [x[:, h * dk:(h + 1) * dk].reshape(1, S, dk) for h in range(H)],
            axis=0)

    def attention(q, k, v, Sq, Sk):
        qh = split_heads(q, Sq)                                    # (H, Sq, dk)
        kh = split_heads(k, Sk)                                    # (H, Sk, dk)
        vh = split_heads(v, Sk)                                    # (H, Sk, dk)
        s = jnp.einsum("hqd,hkd->hqk", qh, kh,
                       preferred_element_type=jnp.float32) * scale  # (H, Sq, Sk)
        m = jnp.max(s, axis=-1, keepdims=True)
        p = jnp.exp(s - m)
        p = p / jnp.sum(p, axis=-1, keepdims=True)                  # exact softmax
        ctx = jnp.einsum("hqk,hkd->hqd", p, vh,
                         preferred_element_type=jnp.float32)        # (H, Sq, dk)
        # merge heads back to (Sq, d_model) = [head0 | head1 | ...] columns
        return jnp.concatenate([ctx[h] for h in range(H)], axis=-1)

    def self_attention(x2, qkv_w, qkv_b, o_w, o_b, S):
        qkv = mm(x2, qkv_w) + qkv_b                       # fused Q/K/V matmul (96 lanes)
        ctx = attention(qkv[:, 0:d_model],
                        qkv[:, d_model:2 * d_model],
                        qkv[:, 2 * d_model:3 * d_model], S, S)
        return mm(ctx, o_w) + o_b

    def cross_attention(x2, mem, q_w, q_b, kv_w, kv_b, o_w, o_b, Sq, Sk):
        q = mm(x2, q_w) + q_b                             # Q from decoder
        kv = mm(mem, kv_w) + kv_b                         # fused K/V from encoder memory
        ctx = attention(q, kv[:, 0:d_model], kv[:, d_model:2 * d_model], Sq, Sk)
        return mm(ctx, o_w) + o_b

    def feed_forward(x2, w1, b1, w2, b2):
        h = jnp.maximum(mm(x2, w1) + b1, 0.0)
        return mm(h, w2) + b2

    # --------------- fused input embedding for src + tgt (shared weights) ----
    both = emb_in_ref[...]                                 # (S_enc + S_dec, input_dim)
    h = jnp.maximum(mm(both, emb_w1_ref[...]) + emb_b1_ref[...], 0.0)
    h = mm(h, emb_w2_ref[...]) + emb_b2_ref[...]
    h = layer_norm(h, emb_g_ref[...], emb_beta_ref[...]) * sqrt_dm
    x = h[0:S_enc, :]                                      # encoder stream
    y = h[S_enc:S_enc + S_dec, :]                          # decoder stream

    # ------------------------------ encoder ---------------------------------
    x = x + (time_ref[...] * time_w_ref[...] + time_b_ref[...])   # Linear(1, d_model)
    x = x + pe_enc_ref[...]
    for l in range(num_enc):
        x2 = layer_norm(x, e_n1g_ref[l], e_n1b_ref[l])
        x = x + self_attention(x2, e_qkvw_ref[l], e_qkvb_ref[l],
                               e_ow_ref[l], e_ob_ref[l], S_enc)
        x2 = layer_norm(x, e_n2g_ref[l], e_n2b_ref[l])
        x = x + feed_forward(x2, e_f1w_ref[l], e_f1b_ref[l],
                             e_f2w_ref[l], e_f2b_ref[l])
    enc_out = x

    # ------------------------------ decoder ---------------------------------
    y = y + pe_dec_ref[...]
    for l in range(num_dec):
        y2 = layer_norm(y, d_n1g_ref[l], d_n1b_ref[l])
        y = y + self_attention(y2, d_sqkvw_ref[l], d_sqkvb_ref[l],
                               d_sow_ref[l], d_sob_ref[l], S_dec)
        y2 = layer_norm(y, d_n2g_ref[l], d_n2b_ref[l])
        y = y + cross_attention(y2, enc_out, d_cqw_ref[l], d_cqb_ref[l],
                                d_ckvw_ref[l], d_ckvb_ref[l],
                                d_cow_ref[l], d_cob_ref[l], S_dec, S_enc)
        y2 = layer_norm(y, d_n3g_ref[l], d_n3b_ref[l])
        y = y + feed_forward(y2, d_f1w_ref[l], d_f1b_ref[l],
                             d_f2w_ref[l], d_f2b_ref[l])

    # lane-dense (128-wide, zero-padded) output projection store (unmasked vst)
    o_ref[...] = mm(y, outw_ref[...]) + outb_ref[...]


# ----------------------------------------------------------------------------
# Wrapper
# ----------------------------------------------------------------------------

def tat_forward(params, src, time_values, tgt):
    d_model = params["d_model"]
    H = params["num_heads"]
    L0, L1, input_dim = src.shape
    L0t, L1t, _ = tgt.shape
    assert L0 == L0t, "dim-0 ('batch') of src/tgt must match for cross-attention"
    assert d_model % H == 0
    S_tot = L1 + L1t

    out_dim = params["out"]["w"].shape[1]
    out_pad = ((out_dim + 127) // 128) * 128
    out_w = jnp.zeros((d_model, out_pad), jnp.float32).at[:, :out_dim].set(params["out"]["w"])
    out_b = jnp.zeros((1, out_pad), jnp.float32).at[:, :out_dim].set(params["out"]["b"])

    # PositionalEncoding: pe[:L0] broadcast along dim 1 (mirrors the reference).
    pe = params["pe"]                                      # (max_seq, 1, d_model)
    pe_enc = jnp.broadcast_to(pe[:L0], (L0, L1, d_model)).reshape(L0 * L1, d_model)
    pe_dec = jnp.broadcast_to(pe[:L0t], (L0t, L1t, d_model)).reshape(L0t * L1t, d_model)

    # Fuse src/tgt rows per batch element so the shared input embedding runs once.
    emb_in = jnp.concatenate(
        [src.astype(jnp.float32), tgt.astype(jnp.float32)], axis=1
    ).reshape(L0 * S_tot, input_dim)
    time_flat = time_values.reshape(L0 * L1, 1).astype(jnp.float32)

    emb, tme, enc, dec = params["emb"], params["time"], params["enc"], params["dec"]
    num_enc = int(enc["qkv_w"].shape[0])
    num_dec = int(dec["sqkv_w"].shape[0])

    weight_args = [
        emb["w1"], emb["b1"], emb["w2"], emb["b2"], emb["g"], emb["b"],
        tme["w"], tme["b"],
        enc["n1_g"], enc["n1_b"], enc["qkv_w"], enc["qkv_b"], enc["o_w"], enc["o_b"],
        enc["n2_g"], enc["n2_b"], enc["f1_w"], enc["f1_b"], enc["f2_w"], enc["f2_b"],
        dec["n1_g"], dec["n1_b"], dec["sqkv_w"], dec["sqkv_b"], dec["so_w"], dec["so_b"],
        dec["n2_g"], dec["n2_b"], dec["cq_w"], dec["cq_b"], dec["ckv_w"], dec["ckv_b"],
        dec["co_w"], dec["co_b"],
        dec["n3_g"], dec["n3_b"], dec["f1_w"], dec["f1_b"], dec["f2_w"], dec["f2_b"],
        out_w, out_b,
    ]

    def const_spec(a):
        nd = a.ndim
        return pl.BlockSpec(a.shape, lambda b, _nd=nd: (0,) * _nd)   # fetched once

    in_specs = [
        pl.BlockSpec((S_tot, input_dim), lambda b: (b, 0)),   # emb_in (src|tgt rows)
        pl.BlockSpec((L1, 1), lambda b: (b, 0)),              # time values
        pl.BlockSpec((L1, d_model), lambda b: (b, 0)),        # PE (encoder rows)
        pl.BlockSpec((L1t, d_model), lambda b: (b, 0)),       # PE (decoder rows)
    ] + [const_spec(a) for a in weight_args]

    out_spec = pl.BlockSpec((L1t, out_pad), lambda b: (b, 0))

    # Explicit VMEM budget: resident weights + per-batch activation blocks (+headroom).
    operand_bytes = sum(int(a.size) * a.dtype.itemsize for a in weight_args)
    act_bytes = int(emb_in.size + time_flat.size + pe_enc.size + pe_dec.size) * 4
    vmem_limit = int(min(64 * 1024 * 1024,
                         max(16 * 1024 * 1024,
                             4 * (operand_bytes + act_bytes) + (4 << 20))))

    kernel = functools.partial(
        _tat_kernel,
        num_enc=num_enc, num_dec=num_dec, S_enc=L1, S_dec=L1t,
        H=H, d_model=d_model, eps=1e-5)

    out_padded = pl.pallas_call(
        kernel,
        grid=(L0,),                                  # batch axis -> 2nd TC on v7x
        in_specs=in_specs,
        out_specs=out_spec,
        out_shape=jax.ShapeDtypeStruct((L0 * L1t, out_pad), jnp.float32),
        compiler_params=pltpu.CompilerParams(
            dimension_semantics=("parallel",),
            vmem_limit_bytes=vmem_limit),
    )(emb_in, time_flat, pe_enc, pe_dec, *weight_args)

    return out_padded[:, :out_dim].reshape(L0t, L1t, out_dim)


# ----------------------------------------------------------------------------
# Deterministic parameter construction (stacked / fused layout)
# ----------------------------------------------------------------------------

def _lin(key, d_in, d_out, scale=0.05):
    k1, k2 = jax.random.split(key)
    w = jax.random.normal(k1, (d_in, d_out), jnp.float32) * scale
    b = jax.random.normal(k2, (1, d_out), jnp.float32) * scale
    return w, b


def _make_pe(max_len, d_model):
    position = jnp.arange(max_len, dtype=jnp.float32)[:, None]
    div_term = jnp.exp(jnp.arange(0, d_model, 2, dtype=jnp.float32)
                       * (-math.log(10000.0) / d_model))
    pe = jnp.zeros((max_len, 1, d_model), jnp.float32)
    pe = pe.at[:, 0, 0::2].set(jnp.sin(position * div_term))
    pe = pe.at[:, 0, 1::2].set(jnp.cos(position * div_term))
    return pe


def init_params(key, input_dim, output_dim, d_model, num_heads,
                num_encoder_layers, num_decoder_layers, d_ff, max_seq_length):
    keys = jax.random.split(key, 4 + num_encoder_layers + num_decoder_layers)
    ke1, ke2, kt, kout = keys[0], keys[1], keys[2], keys[3]
    enc_keys = keys[4:4 + num_encoder_layers]
    dec_keys = keys[4 + num_encoder_layers:]

    emb_w1, emb_b1 = _lin(ke1, input_dim, d_model)
    emb_w2, emb_b2 = _lin(ke2, d_model, d_model)
    time_w, time_b = _lin(kt, 1, d_model)
    out_w, out_b = _lin(kout, d_model, output_dim)

    ones = jnp.ones((1, d_model), jnp.float32)
    zeros = jnp.zeros((1, d_model), jnp.float32)

    def mha(k):
        kq, kk, kv, ko = jax.random.split(k, 4)
        wq, bq = _lin(kq, d_model, d_model)
        wk, bk = _lin(kk, d_model, d_model)
        wv, bv = _lin(kv, d_model, d_model)
        wo, bo = _lin(ko, d_model, d_model)
        return wq, bq, wk, bk, wv, bv, wo, bo

    e = {k: [] for k in ["n1_g", "n1_b", "n2_g", "n2_b", "qkv_w", "qkv_b",
                         "o_w", "o_b", "f1_w", "f1_b", "f2_w", "f2_b"]}
    for lk in enc_keys:
        ka, kf = jax.random.split(lk)
        wq, bq, wk, bk, wv, bv, wo, bo = mha(ka)
        kf1, kf2 = jax.random.split(kf)
        f1w, f1b = _lin(kf1, d_model, d_ff)
        f2w, f2b = _lin(kf2, d_ff, d_model)
        e["n1_g"].append(ones); e["n1_b"].append(zeros)
        e["n2_g"].append(ones); e["n2_b"].append(zeros)
        e["qkv_w"].append(jnp.concatenate([wq, wk, wv], axis=1))
        e["qkv_b"].append(jnp.concatenate([bq, bk, bv], axis=1))
        e["o_w"].append(wo); e["o_b"].append(bo)
        e["f1_w"].append(f1w); e["f1_b"].append(f1b)
        e["f2_w"].append(f2w); e["f2_b"].append(f2b)
    enc = {k: jnp.stack(v, axis=0) for k, v in e.items()}

    d = {k: [] for k in ["n1_g", "n1_b", "n2_g", "n2_b", "n3_g", "n3_b",
                         "sqkv_w", "sqkv_b", "so_w", "so_b",
                         "cq_w", "cq_b", "ckv_w", "ckv_b", "co_w", "co_b",
                         "f1_w", "f1_b", "f2_w", "f2_b"]}
    for lk in dec_keys:
        ka, kb, kf = jax.random.split(lk, 3)
        wq, bq, wk, bk, wv, bv, wo, bo = mha(ka)
        cwq, cbq, cwk, cbk, cwv, cbv, cwo, cbo = mha(kb)
        kf1, kf2 = jax.random.split(kf)
        f1w, f1b = _lin(kf1, d_model, d_ff)
        f2w, f2b = _lin(kf2, d_ff, d_model)
        d["n1_g"].append(ones); d["n1_b"].append(zeros)
        d["n2_g"].append(ones); d["n2_b"].append(zeros)
        d["n3_g"].append(ones); d["n3_b"].append(zeros)
        d["sqkv_w"].append(jnp.concatenate([wq, wk, wv], axis=1))
        d["sqkv_b"].append(jnp.concatenate([bq, bk, bv], axis=1))
        d["so_w"].append(wo); d["so_b"].append(bo)
        d["cq_w"].append(cwq); d["cq_b"].append(cbq)
        d["ckv_w"].append(jnp.concatenate([cwk, cwv], axis=1))
        d["ckv_b"].append(jnp.concatenate([cbk, cbv], axis=1))
        d["co_w"].append(cwo); d["co_b"].append(cbo)
        d["f1_w"].append(f1w); d["f1_b"].append(f1b)
        d["f2_w"].append(f2w); d["f2_b"].append(f2b)
    dec = {k: jnp.stack(v, axis=0) for k, v in d.items()}

    return {
        "d_model": d_model, "num_heads": num_heads,
        "pe": _make_pe(max_seq_length, d_model),
        "emb": {"w1": emb_w1, "b1": emb_b1, "w2": emb_w2, "b2": emb_b2,
                "g": ones, "b": zeros},
        "time": {"w": time_w, "b": time_b},
        "out": {"w": out_w, "b": out_b},
        "enc": enc, "dec": dec,
    }


# ----------------------------------------------------------------------------
# Main
# ----------------------------------------------------------------------------

if __name__ == "__main__":
    INPUT_DIM, OUTPUT_DIM = 4, 3
    D_MODEL, NUM_HEADS = 32, 4
    NUM_ENC, NUM_DEC = 2, 2
    D_FF, MAX_SEQ = 64, 64
    L0, L1 = 2, 8   # (dim0, dim1) of the 3-D inputs

    key = jax.random.PRNGKey(0)
    kp, ks, kt, kg = jax.random.split(key, 4)

    params = init_params(kp, INPUT_DIM, OUTPUT_DIM, D_MODEL, NUM_HEADS,
                         NUM_ENC, NUM_DEC, D_FF, MAX_SEQ)

    src = jax.random.normal(ks, (L0, L1, INPUT_DIM), jnp.float32)
    tgt = jax.random.normal(kg, (L0, L1, INPUT_DIM), jnp.float32)
    time_values = jax.random.normal(kt, (L0, L1, 1), jnp.float32)

    out = tat_forward(params, src, time_values, tgt)
    out = jax.block_until_ready(out)
    assert out.shape == (L0, L1, OUTPUT_DIM)
    assert bool(jnp.all(jnp.isfinite(out)))
    print("KERNEL_OK")
</pallas_src>

<mosaic_0001>
module attributes {stable_mosaic.version = 11 : i64} {
  func.func @_tat_kernel(%arg0: i32, %arg1: memref<16x4xf32, #tpu.memory_space<vmem>>, %arg2: memref<8x1xf32, #tpu.memory_space<vmem>>, %arg3: memref<8x32xf32, #tpu.memory_space<vmem>>, %arg4: memref<8x32xf32, #tpu.memory_space<vmem>>, %arg5: memref<4x32xf32, #tpu.memory_space<vmem>>, %arg6: memref<1x32xf32, #tpu.memory_space<vmem>>, %arg7: memref<32x32xf32, #tpu.memory_space<vmem>>, %arg8: memref<1x32xf32, #tpu.memory_space<vmem>>, %arg9: memref<1x32xf32, #tpu.memory_space<vmem>>, %arg10: memref<1x32xf32, #tpu.memory_space<vmem>>, %arg11: memref<1x32xf32, #tpu.memory_space<vmem>>, %arg12: memref<1x32xf32, #tpu.memory_space<vmem>>, %arg13: memref<2x1x32xf32, #tpu.memory_space<vmem>>, %arg14: memref<2x1x32xf32, #tpu.memory_space<vmem>>, %arg15: memref<2x32x96xf32, #tpu.memory_space<vmem>>, %arg16: memref<2x1x96xf32, #tpu.memory_space<vmem>>, %arg17: memref<2x32x32xf32, #tpu.memory_space<vmem>>, %arg18: memref<2x1x32xf32, #tpu.memory_space<vmem>>, %arg19: memref<2x1x32xf32, #tpu.memory_space<vmem>>, %arg20: memref<2x1x32xf32, #tpu.memory_space<vmem>>, %arg21: memref<2x32x64xf32, #tpu.memory_space<vmem>>, %arg22: memref<2x1x64xf32, #tpu.memory_space<vmem>>, %arg23: memref<2x64x32xf32, #tpu.memory_space<vmem>>, %arg24: memref<2x1x32xf32, #tpu.memory_space<vmem>>, %arg25: memref<2x1x32xf32, #tpu.memory_space<vmem>>, %arg26: memref<2x1x32xf32, #tpu.memory_space<vmem>>, %arg27: memref<2x32x96xf32, #tpu.memory_space<vmem>>, %arg28: memref<2x1x96xf32, #tpu.memory_space<vmem>>, %arg29: memref<2x32x32xf32, #tpu.memory_space<vmem>>, %arg30: memref<2x1x32xf32, #tpu.memory_space<vmem>>, %arg31: memref<2x1x32xf32, #tpu.memory_space<vmem>>, %arg32: memref<2x1x32xf32, #tpu.memory_space<vmem>>, %arg33: memref<2x32x32xf32, #tpu.memory_space<vmem>>, %arg34: memref<2x1x32xf32, #tpu.memory_space<vmem>>, %arg35: memref<2x32x64xf32, #tpu.memory_space<vmem>>, %arg36: memref<2x1x64xf32, #tpu.memory_space<vmem>>, %arg37: memref<2x32x32xf32, #tpu.memory_space<vmem>>, %arg38: memref<2x1x32xf32, #tpu.memory_space<vmem>>, %arg39: memref<2x1x32xf32, #tpu.memory_space<vmem>>, %arg40: memref<2x1x32xf32, #tpu.memory_space<vmem>>, %arg41: memref<2x32x64xf32, #tpu.memory_space<vmem>>, %arg42: memref<2x1x64xf32, #tpu.memory_space<vmem>>, %arg43: memref<2x64x32xf32, #tpu.memory_space<vmem>>, %arg44: memref<2x1x32xf32, #tpu.memory_space<vmem>>, %arg45: memref<32x128xf32, #tpu.memory_space<vmem>>, %arg46: memref<1x128xf32, #tpu.memory_space<vmem>>, %arg47: memref<8x128xf32, #tpu.memory_space<vmem>>) attributes {dimension_semantics = [#tpu.dimension_semantics<parallel>], iteration_bounds = array<i64: 2>, scalar_prefetch = 0 : i64, scratch_operands = 0 : i64, tpu.core_type = #tpu.core_type<tc>, window_params = [{transform_indices = @transform_0, window_bounds = array<i64: 16, 4>}, {transform_indices = @transform_1, window_bounds = array<i64: 8, 1>}, {transform_indices = @transform_2, window_bounds = array<i64: 8, 32>}, {transform_indices = @transform_3, window_bounds = array<i64: 8, 32>}, {pipeline_mode = #tpu.pipeline_mode<synchronous>, transform_indices = @transform_4, window_bounds = array<i64: 4, 32>}, {pipeline_mode = #tpu.pipeline_mode<synchronous>, transform_indices = @transform_5, window_bounds = array<i64: 1, 32>}, {pipeline_mode = #tpu.pipeline_mode<synchronous>, transform_indices = @transform_6, window_bounds = array<i64: 32, 32>}, {pipeline_mode = #tpu.pipeline_mode<synchronous>, transform_indices = @transform_7, window_bounds = array<i64: 1, 32>}, {pipeline_mode = #tpu.pipeline_mode<synchronous>, transform_indices = @transform_8, window_bounds = array<i64: 1, 32>}, {pipeline_mode = #tpu.pipeline_mode<synchronous>, transform_indices = @transform_9, window_bounds = array<i64: 1, 32>}, {pipeline_mode = #tpu.pipeline_mode<synchronous>, transform_indices = @transform_10, window_bounds = array<i64: 1, 32>}, {pipeline_mode = #tpu.pipeline_mode<synchronous>, transform_indices = @transform_11, window_bounds = array<i64: 1, 32>}, {pipeline_mode = #tpu.pipeline_mode<synchronous>, transform_indices = @transform_12, window_bounds = array<i64: 2, 1, 32>}, {pipeline_mode = #tpu.pipeline_mode<synchronous>, transform_indices = @transform_13, window_bounds = array<i64: 2, 1, 32>}, {pipeline_mode = #tpu.pipeline_mode<synchronous>, transform_indices = @transform_14, window_bounds = array<i64: 2, 32, 96>}, {pipeline_mode = #tpu.pipeline_mode<synchronous>, transform_indices = @transform_15, window_bounds = array<i64: 2, 1, 96>}, {pipeline_mode = #tpu.pipeline_mode<synchronous>, transform_indices = @transform_16, window_bounds = array<i64: 2, 32, 32>}, {pipeline_mode = #tpu.pipeline_mode<synchronous>, transform_indices = @transform_17, window_bounds = array<i64: 2, 1, 32>}, {pipeline_mode = #tpu.pipeline_mode<synchronous>, transform_indices = @transform_18, window_bounds = array<i64: 2, 1, 32>}, {pipeline_mode = #tpu.pipeline_mode<synchronous>, transform_indices = @transform_19, window_bounds = array<i64: 2, 1, 32>}, {pipeline_mode = #tpu.pipeline_mode<synchronous>, transform_indices = @transform_20, window_bounds = array<i64: 2, 32, 64>}, {pipeline_mode = #tpu.pipeline_mode<synchronous>, transform_indices = @transform_21, window_bounds = array<i64: 2, 1, 64>}, {pipeline_mode = #tpu.pipeline_mode<synchronous>, transform_indices = @transform_22, window_bounds = array<i64: 2, 64, 32>}, {pipeline_mode = #tpu.pipeline_mode<synchronous>, transform_indices = @transform_23, window_bounds = array<i64: 2, 1, 32>}, {pipeline_mode = #tpu.pipeline_mode<synchronous>, transform_indices = @transform_24, window_bounds = array<i64: 2, 1, 32>}, {pipeline_mode = #tpu.pipeline_mode<synchronous>, transform_indices = @transform_25, window_bounds = array<i64: 2, 1, 32>}, {pipeline_mode = #tpu.pipeline_mode<synchronous>, transform_indices = @transform_26, window_bounds = array<i64: 2, 32, 96>}, {pipeline_mode = #tpu.pipeline_mode<synchronous>, transform_indices = @transform_27, window_bounds = array<i64: 2, 1, 96>}, {pipeline_mode = #tpu.pipeline_mode<synchronous>, transform_indices = @transform_28, window_bounds = array<i64: 2, 32, 32>}, {pipeline_mode = #tpu.pipeline_mode<synchronous>, transform_indices = @transform_29, window_bounds = array<i64: 2, 1, 32>}, {pipeline_mode = #tpu.pipeline_mode<synchronous>, transform_indices = @transform_30, window_bounds = array<i64: 2, 1, 32>}, {pipeline_mode = #tpu.pipeline_mode<synchronous>, transform_indices = @transform_31, window_bounds = array<i64: 2, 1, 32>}, {pipeline_mode = #tpu.pipeline_mode<synchronous>, transform_indices = @transform_32, window_bounds = array<i64: 2, 32, 32>}, {pipeline_mode = #tpu.pipeline_mode<synchronous>, transform_indices = @transform_33, window_bounds = array<i64: 2, 1, 32>}, {pipeline_mode = #tpu.pipeline_mode<synchronous>, transform_indices = @transform_34, window_bounds = array<i64: 2, 32, 64>}, {pipeline_mode = #tpu.pipeline_mode<synchronous>, transform_indices = @transform_35, window_bounds = array<i64: 2, 1, 64>}, {pipeline_mode = #tpu.pipeline_mode<synchronous>, transform_indices = @transform_36, window_bounds = array<i64: 2, 32, 32>}, {pipeline_mode = #tpu.pipeline_mode<synchronous>, transform_indices = @transform_37, window_bounds = array<i64: 2, 1, 32>}, {pipeline_mode = #tpu.pipeline_mode<synchronous>, transform_indices = @transform_38, window_bounds = array<i64: 2, 1, 32>}, {pipeline_mode = #tpu.pipeline_mode<synchronous>, transform_indices = @transform_39, window_bounds = array<i64: 2, 1, 32>}, {pipeline_mode = #tpu.pipeline_mode<synchronous>, transform_indices = @transform_40, window_bounds = array<i64: 2, 32, 64>}, {pipeline_mode = #tpu.pipeline_mode<synchronous>, transform_indices = @transform_41, window_bounds = array<i64: 2, 1, 64>}, {pipeline_mode = #tpu.pipeline_mode<synchronous>, transform_indices = @transform_42, window_bounds = array<i64: 2, 64, 32>}, {pipeline_mode = #tpu.pipeline_mode<synchronous>, transform_indices = @transform_43, window_bounds = array<i64: 2, 1, 32>}, {pipeline_mode = #tpu.pipeline_mode<synchronous>, transform_indices = @transform_44, window_bounds = array<i64: 32, 128>}, {pipeline_mode = #tpu.pipeline_mode<synchronous>, transform_indices = @transform_45, window_bounds = array<i64: 1, 128>}, {transform_indices = @transform_46, window_bounds = array<i64: 8, 128>}]} {
    %c0 = arith.constant 0 : index
    %c0_0 = arith.constant 0 : index
    %0 = vector.load %arg1[%c0, %c0_0] : memref<16x4xf32, #tpu.memory_space<vmem>>, vector<16x4xf32>
    %c0_1 = arith.constant 0 : index
    %c0_2 = arith.constant 0 : index
    %1 = vector.load %arg5[%c0_1, %c0_2] : memref<4x32xf32, #tpu.memory_space<vmem>>, vector<4x32xf32>
    %cst = arith.constant dense<0.000000e+00> : vector<16x32xf32>
    %2 = tpu.matmul %0, %1, %cst {dimension_numbers = #tpu.dot_dimension_numbers<[1], [0], [0], [1], [0, 0, 1, 1], [], []>} : vector<16x4xf32>, vector<4x32xf32>, vector<16x32xf32> -> vector<16x32xf32>
    %c0_3 = arith.constant 0 : index
    %c0_4 = arith.constant 0 : index
    %3 = vector.load %arg6[%c0_3, %c0_4] : memref<1x32xf32, #tpu.memory_space<vmem>>, vector<1x32xf32>
    %4 = vector.broadcast %3 : vector<1x32xf32> to vector<16x32xf32>
    %5 = arith.addf %2, %4 : vector<16x32xf32>
    %cst_5 = arith.constant 0.000000e+00 : f32
    %6 = vector.broadcast %cst_5 : f32 to vector<16x32xf32>
    %7 = arith.maximumf %5, %6 : vector<16x32xf32>
    %c0_6 = arith.constant 0 : index
    %c0_7 = arith.constant 0 : index
    %8 = vector.load %arg7[%c0_6, %c0_7] : memref<32x32xf32, #tpu.memory_space<vmem>>, vector<32x32xf32>
    %cst_8 = arith.constant dense<0.000000e+00> : vector<16x32xf32>
    %9 = tpu.matmul %7, %8, %cst_8 {dimension_numbers = #tpu.dot_dimension_numbers<[1], [0], [0], [1], [0, 0, 1, 1], [], []>} : vector<16x32xf32>, vector<32x32xf32>, vector<16x32xf32> -> vector<16x32xf32>
    %c0_9 = arith.constant 0 : index
    %c0_10 = arith.constant 0 : index
    %10 = vector.load %arg8[%c0_9, %c0_10] : memref<1x32xf32, #tpu.memory_space<vmem>>, vector<1x32xf32>
    %11 = vector.broadcast %10 : vector<1x32xf32> to vector<16x32xf32>
    %12 = arith.addf %9, %11 : vector<16x32xf32>
    %c0_11 = arith.constant 0 : index
    %c0_12 = arith.constant 0 : index
    %13 = vector.load %arg9[%c0_11, %c0_12] : memref<1x32xf32, #tpu.memory_space<vmem>>, vector<1x32xf32>
    %c0_13 = arith.constant 0 : index
    %c0_14 = arith.constant 0 : index
    %14 = vector.load %arg10[%c0_13, %c0_14] : memref<1x32xf32, #tpu.memory_space<vmem>>, vector<1x32xf32>
    %cst_15 = arith.constant dense<0.000000e+00> : vector<16xf32>
    %15 = vector.multi_reduction <add>, %12, %cst_15 [1] : vector<16x32xf32> to vector<16xf32>
    %16 = vector.shape_cast %15 : vector<16xf32> to vector<16x1xf32>
    %cst_16 = arith.constant 3.200000e+01 : f32
    %17 = vector.broadcast %cst_16 : f32 to vector<16x1xf32>
    %18 = arith.divf %16, %17 : vector<16x1xf32>
    %19 = vector.broadcast %18 : vector<16x1xf32> to vector<16x32xf32>
    %20 = arith.subf %12, %19 : vector<16x32xf32>
    %21 = arith.mulf %20, %20 : vector<16x32xf32>
    %cst_17 = arith.constant dense<0.000000e+00> : vector<16xf32>
    %22 = vector.multi_reduction <add>, %21, %cst_17 [1] : vector<16x32xf32> to vector<16xf32>
    %23 = vector.shape_cast %22 : vector<16xf32> to vector<16x1xf32>
    %cst_18 = arith.constant 3.200000e+01 : f32
    %24 = vector.broadcast %cst_18 : f32 to vector<16x1xf32>
    %25 = arith.divf %23, %24 : vector<16x1xf32>
    %cst_19 = arith.constant 9.99999974E-6 : f32
    %26 = vector.broadcast %cst_19 : f32 to vector<16x1xf32>
    %27 = arith.addf %25, %26 : vector<16x1xf32>
    %28 = math.rsqrt %27 : vector<16x1xf32>
    %29 = vector.broadcast %28 : vector<16x1xf32> to vector<16x32xf32>
    %30 = arith.mulf %20, %29 : vector<16x32xf32>
    %31 = vector.broadcast %13 : vector<1x32xf32> to vector<16x32xf32>
    %32 = arith.mulf %30, %31 : vector<16x32xf32>
    %33 = vector.broadcast %14 : vector<1x32xf32> to vector<16x32xf32>
    %34 = arith.addf %32, %33 : vector<16x32xf32>
    %cst_20 = arith.constant 5.65685415 : f32
    %35 = vector.broadcast %cst_20 : f32 to vector<16x32xf32>
    %36 = arith.mulf %34, %35 : vector<16x32xf32>
    %37 = vector.extract_strided_slice %36 {offsets = [0, 0], sizes = [8, 32], strides = [1, 1]} : vector<16x32xf32> to vector<8x32xf32>
    %38 = vector.extract_strided_slice %36 {offsets = [8, 0], sizes = [8, 32], strides = [1, 1]} : vector<16x32xf32> to vector<8x32xf32>
    %c0_21 = arith.constant 0 : index
    %c0_22 = arith.constant 0 : index
    %39 = vector.load %arg2[%c0_21, %c0_22] : memref<8x1xf32, #tpu.memory_space<vmem>>, vector<8x1xf32>
    %c0_23 = arith.constant 0 : index
    %c0_24 = arith.constant 0 : index
    %40 = vector.load %arg11[%c0_23, %c0_24] : memref<1x32xf32, #tpu.memory_space<vmem>>, vector<1x32xf32>
    %41 = vector.broadcast %39 : vector<8x1xf32> to vector<8x32xf32>
    %42 = vector.broadcast %40 : vector<1x32xf32> to vector<8x32xf32>
    %43 = arith.mulf %41, %42 : vector<8x32xf32>
    %c0_25 = arith.constant 0 : index
    %c0_26 = arith.constant 0 : index
    %44 = vector.load %arg12[%c0_25, %c0_26] : memref<1x32xf32, #tpu.memory_space<vmem>>, vector<1x32xf32>
    %45 = vector.broadcast %44 : vector<1x32xf32> to vector<8x32xf32>
    %46 = arith.addf %43, %45 : vector<8x32xf32>
    %47 = arith.addf %37, %46 : vector<8x32xf32>
    %c0_27 = arith.constant 0 : index
    %c0_28 = arith.constant 0 : index
    %48 = vector.load %arg3[%c0_27, %c0_28] : memref<8x32xf32, #tpu.memory_space<vmem>>, vector<8x32xf32>
    %49 = arith.addf %47, %48 : vector<8x32xf32>
    %c0_29 = arith.constant 0 : index
    %c0_30 = arith.constant 0 : index
    %c0_31 = arith.constant 0 : index
    %50 = vector.load %arg13[%c0_29, %c0_30, %c0_31] : memref<2x1x32xf32, #tpu.memory_space<vmem>>, vector<1x1x32xf32>
    %51 = vector.shape_cast %50 : vector<1x1x32xf32> to vector<1x32xf32>
    %c0_32 = arith.constant 0 : index
    %c0_33 = arith.constant 0 : index
    %c0_34 = arith.constant 0 : index
    %52 = vector.load %arg14[%c0_32, %c0_33, %c0_34] : memref<2x1x32xf32, #tpu.memory_space<vmem>>, vector<1x1x32xf32>
    %53 = vector.shape_cast %52 : vector<1x1x32xf32> to vector<1x32xf32>
    %cst_35 = arith.constant dense<0.000000e+00> : vector<8xf32>
    %54 = vector.multi_reduction <add>, %49, %cst_35 [1] : vector<8x32xf32> to vector<8xf32>
    %55 = vector.shape_cast %54 : vector<8xf32> to vector<8x1xf32>
    %cst_36 = arith.constant 3.200000e+01 : f32
    %56 = vector.broadcast %cst_36 : f32 to vector<8x1xf32>
    %57 = arith.divf %55, %56 : vector<8x1xf32>
    %58 = vector.broadcast %57 : vector<8x1xf32> to vector<8x32xf32>
    %59 = arith.subf %49, %58 : vector<8x32xf32>
    %60 = arith.mulf %59, %59 : vector<8x32xf32>
    %cst_37 = arith.constant dense<0.000000e+00> : vector<8xf32>
    %61 = vector.multi_reduction <add>, %60, %cst_37 [1] : vector<8x32xf32> to vector<8xf32>
    %62 = vector.shape_cast %61 : vector<8xf32> to vector<8x1xf32>
    %cst_38 = arith.constant 3.200000e+01 : f32
    %63 = vector.broadcast %cst_38 : f32 to vector<8x1xf32>
    %64 = arith.divf %62, %63 : vector<8x1xf32>
    %cst_39 = arith.constant 9.99999974E-6 : f32
    %65 = vector.broadcast %cst_39 : f32 to vector<8x1xf32>
    %66 = arith.addf %64, %65 : vector<8x1xf32>
    %67 = math.rsqrt %66 : vector<8x1xf32>
    %68 = vector.broadcast %67 : vector<8x1xf32> to vector<8x32xf32>
    %69 = arith.mulf %59, %68 : vector<8x32xf32>
    %70 = vector.broadcast %51 : vector<1x32xf32> to vector<8x32xf32>
    %71 = arith.mulf %69, %70 : vector<8x32xf32>
    %72 = vector.broadcast %53 : vector<1x32xf32> to vector<8x32xf32>
    %73 = arith.addf %71, %72 : vector<8x32xf32>
    %c0_40 = arith.constant 0 : index
    %c0_41 = arith.constant 0 : index
    %c0_42 = arith.constant 0 : index
    %74 = vector.load %arg15[%c0_40, %c0_41, %c0_42] : memref<2x32x96xf32, #tpu.memory_space<vmem>>, vector<1x32x96xf32>
    %75 = vector.shape_cast %74 : vector<1x32x96xf32> to vector<32x96xf32>
    %c0_43 = arith.constant 0 : index
    %c0_44 = arith.constant 0 : index
    %c0_45 = arith.constant 0 : index
    %76 = vector.load %arg16[%c0_43, %c0_44, %c0_45] : memref<2x1x96xf32, #tpu.memory_space<vmem>>, vector<1x1x96xf32>
    %77 = vector.shape_cast %76 : vector<1x1x96xf32> to vector<1x96xf32>
    %c0_46 = arith.constant 0 : index
    %c0_47 = arith.constant 0 : index
    %c0_48 = arith.constant 0 : index
    %78 = vector.load %arg17[%c0_46, %c0_47, %c0_48] : memref<2x32x32xf32, #tpu.memory_space<vmem>>, vector<1x32x32xf32>
    %79 = vector.shape_cast %78 : vector<1x32x32xf32> to vector<32x32xf32>
    %c0_49 = arith.constant 0 : index
    %c0_50 = arith.constant 0 : index
    %c0_51 = arith.constant 0 : index
    %80 = vector.load %arg18[%c0_49, %c0_50, %c0_51] : memref<2x1x32xf32, #tpu.memory_space<vmem>>, vector<1x1x32xf32>
    %81 = vector.shape_cast %80 : vector<1x1x32xf32> to vector<1x32xf32>
    %cst_52 = arith.constant dense<0.000000e+00> : vector<8x96xf32>
    %82 = tpu.matmul %73, %75, %cst_52 {dimension_numbers = #tpu.dot_dimension_numbers<[1], [0], [0], [1], [0, 0, 1, 1], [], []>} : vector<8x32xf32>, vector<32x96xf32>, vector<8x96xf32> -> vector<8x96xf32>
    %83 = vector.broadcast %77 : vector<1x96xf32> to vector<8x96xf32>
    %84 = arith.addf %82, %83 : vector<8x96xf32>
    %85 = vector.extract_strided_slice %84 {offsets = [0, 0], sizes = [8, 32], strides = [1, 1]} : vector<8x96xf32> to vector<8x32xf32>
    %86 = vector.extract_strided_slice %84 {offsets = [0, 32], sizes = [8, 32], strides = [1, 1]} : vector<8x96xf32> to vector<8x32xf32>
    %87 = vector.extract_strided_slice %84 {offsets = [0, 64], sizes = [8, 32], strides = [1, 1]} : vector<8x96xf32> to vector<8x32xf32>
    %88 = vector.extract_strided_slice %85 {offsets = [0, 0], sizes = [8, 8], strides = [1, 1]} : vector<8x32xf32> to vector<8x8xf32>
    %89 = vector.shape_cast %88 : vector<8x8xf32> to vector<1x8x8xf32>
    %90 = vector.extract_strided_slice %85 {offsets = [0, 8], sizes = [8, 8], strides = [1, 1]} : vector<8x32xf32> to vector<8x8xf32>
    %91 = vector.shape_cast %90 : vector<8x8xf32> to vector<1x8x8xf32>
    %92 = vector.extract_strided_slice %85 {offsets = [0, 16], sizes = [8, 8], strides = [1, 1]} : vector<8x32xf32> to vector<8x8xf32>
    %93 = vector.shape_cast %92 : vector<8x8xf32> to vector<1x8x8xf32>
    %94 = vector.extract_strided_slice %85 {offsets = [0, 24], sizes = [8, 8], strides = [1, 1]} : vector<8x32xf32> to vector<8x8xf32>
    %95 = vector.shape_cast %94 : vector<8x8xf32> to vector<1x8x8xf32>
    %96 = tpu.concatenate %89, %91, %93, %95 in 0 : vector<1x8x8xf32>, vector<1x8x8xf32>, vector<1x8x8xf32>, vector<1x8x8xf32> -> vector<4x8x8xf32>
    %97 = vector.extract_strided_slice %86 {offsets = [0, 0], sizes = [8, 8], strides = [1, 1]} : vector<8x32xf32> to vector<8x8xf32>
    %98 = vector.shape_cast %97 : vector<8x8xf32> to vector<1x8x8xf32>
    %99 = vector.extract_strided_slice %86 {offsets = [0, 8], sizes = [8, 8], strides = [1, 1]} : vector<8x32xf32> to vector<8x8xf32>
    %100 = vector.shape_cast %99 : vector<8x8xf32> to vector<1x8x8xf32>
    %101 = vector.extract_strided_slice %86 {offsets = [0, 16], sizes = [8, 8], strides = [1, 1]} : vector<8x32xf32> to vector<8x8xf32>
    %102 = vector.shape_cast %101 : vector<8x8xf32> to vector<1x8x8xf32>
    %103 = vector.extract_strided_slice %86 {offsets = [0, 24], sizes = [8, 8], strides = [1, 1]} : vector<8x32xf32> to vector<8x8xf32>
    %104 = vector.shape_cast %103 : vector<8x8xf32> to vector<1x8x8xf32>
    %105 = tpu.concatenate %98, %100, %102, %104 in 0 : vector<1x8x8xf32>, vector<1x8x8xf32>, vector<1x8x8xf32>, vector<1x8x8xf32> -> vector<4x8x8xf32>
    %106 = vector.extract_strided_slice %87 {offsets = [0, 0], sizes = [8, 8], strides = [1, 1]} : vector<8x32xf32> to vector<8x8xf32>
    %107 = vector.shape_cast %106 : vector<8x8xf32> to vector<1x8x8xf32>
    %108 = vector.extract_strided_slice %87 {offsets = [0, 8], sizes = [8, 8], strides = [1, 1]} : vector<8x32xf32> to vector<8x8xf32>
    %109 = vector.shape_cast %108 : vector<8x8xf32> to vector<1x8x8xf32>
    %110 = vector.extract_strided_slice %87 {offsets = [0, 16], sizes = [8, 8], strides = [1, 1]} : vector<8x32xf32> to vector<8x8xf32>
    %111 = vector.shape_cast %110 : vector<8x8xf32> to vector<1x8x8xf32>
    %112 = vector.extract_strided_slice %87 {offsets = [0, 24], sizes = [8, 8], strides = [1, 1]} : vector<8x32xf32> to vector<8x8xf32>
    %113 = vector.shape_cast %112 : vector<8x8xf32> to vector<1x8x8xf32>
    %114 = tpu.concatenate %107, %109, %111, %113 in 0 : vector<1x8x8xf32>, vector<1x8x8xf32>, vector<1x8x8xf32>, vector<1x8x8xf32> -> vector<4x8x8xf32>
    "tpu.trace_start"() <{level = 10 : i32, message = "hqd,hkd->hqk"}> : () -> ()
    %cst_53 = arith.constant dense<0.000000e+00> : vector<4x8x8xf32>
    %115 = tpu.matmul %96, %105, %cst_53 {dimension_numbers = #tpu.dot_dimension_numbers<[2], [2], [1], [1], [0, 0, 0, 1, 1, 1], [0], [0]>} : vector<4x8x8xf32>, vector<4x8x8xf32>, vector<4x8x8xf32> -> vector<4x8x8xf32>
    "tpu.trace_stop"() : () -> ()
    %cst_54 = arith.constant 0.353553385 : f32
    %116 = vector.broadcast %cst_54 : f32 to vector<4x8x8xf32>
    %117 = arith.mulf %115, %116 : vector<4x8x8xf32>
    %cst_55 = arith.constant dense<0xFF800000> : vector<4x8xf32>
    %118 = vector.multi_reduction <maximumf>, %117, %cst_55 [2] : vector<4x8x8xf32> to vector<4x8xf32>
    %119 = vector.shape_cast %118 : vector<4x8xf32> to vector<4x8x1xf32>
    %120 = vector.broadcast %119 : vector<4x8x1xf32> to vector<4x8x8xf32>
    %121 = arith.subf %117, %120 : vector<4x8x8xf32>
    %122 = math.exp %121 : vector<4x8x8xf32>
    %cst_56 = arith.constant dense<0.000000e+00> : vector<4x8xf32>
    %123 = vector.multi_reduction <add>, %122, %cst_56 [2] : vector<4x8x8xf32> to vector<4x8xf32>
    %124 = vector.shape_cast %123 : vector<4x8xf32> to vector<4x8x1xf32>
    %125 = vector.broadcast %124 : vector<4x8x1xf32> to vector<4x8x8xf32>
    %126 = arith.divf %122, %125 : vector<4x8x8xf32>
    "tpu.trace_start"() <{level = 10 : i32, message = "hqk,hkd->hqd"}> : () -> ()
    %cst_57 = arith.constant dense<0.000000e+00> : vector<4x8x8xf32>
    %127 = tpu.matmul %126, %114, %cst_57 {dimension_numbers = #tpu.dot_dimension_numbers<[2], [1], [1], [2], [0, 0, 0, 1, 1, 2], [0], [0]>} : vector<4x8x8xf32>, vector<4x8x8xf32>, vector<4x8x8xf32> -> vector<4x8x8xf32>
    "tpu.trace_stop"() : () -> ()
    %128 = vector.extract_strided_slice %127 {offsets = [0, 0, 0], sizes = [1, 8, 8], strides = [1, 1, 1]} : vector<4x8x8xf32> to vector<1x8x8xf32>
    %129 = vector.shape_cast %128 : vector<1x8x8xf32> to vector<8x8xf32>
    %130 = vector.extract_strided_slice %127 {offsets = [1, 0, 0], sizes = [1, 8, 8], strides = [1, 1, 1]} : vector<4x8x8xf32> to vector<1x8x8xf32>
    %131 = vector.shape_cast %130 : vector<1x8x8xf32> to vector<8x8xf32>
    %132 = vector.extract_strided_slice %127 {offsets = [2, 0, 0], sizes = [1, 8, 8], strides = [1, 1, 1]} : vector<4x8x8xf32> to vector<1x8x8xf32>
    %133 = vector.shape_cast %132 : vector<1x8x8xf32> to vector<8x8xf32>
    %134 = vector.extract_strided_slice %127 {offsets = [3, 0, 0], sizes = [1, 8, 8], strides = [1, 1, 1]} : vector<4x8x8xf32> to vector<1x8x8xf32>
    %135 = vector.shape_cast %134 : vector<1x8x8xf32> to vector<8x8xf32>
    %136 = tpu.concatenate %129, %131, %133, %135 in 1 : vector<8x8xf32>, vector<8x8xf32>, vector<8x8xf32>, vector<8x8xf32> -> vector<8x32xf32>
    %cst_58 = arith.constant dense<0.000000e+00> : vector<8x32xf32>
    %137 = tpu.matmul %136, %79, %cst_58 {dimension_numbers = #tpu.dot_dimension_numbers<[1], [0], [0], [1], [0, 0, 1, 1], [], []>} : vector<8x32xf32>, vector<32x32xf32>, vector<8x32xf32> -> vector<8x32xf32>
    %138 = vector.broadcast %81 : vector<1x32xf32> to vector<8x32xf32>
    %139 = arith.addf %137, %138 : vector<8x32xf32>
    %140 = arith.addf %49, %139 : vector<8x32xf32>
    %c0_59 = arith.constant 0 : index
    %c0_60 = arith.constant 0 : index
    %c0_61 = arith.constant 0 : index
    %141 = vector.load %arg19[%c0_59, %c0_60, %c0_61] : memref<2x1x32xf32, #tpu.memory_space<vmem>>, vector<1x1x32xf32>
    %142 = vector.shape_cast %141 : vector<1x1x32xf32> to vector<1x32xf32>
    %c0_62 = arith.constant 0 : index
    %c0_63 = arith.constant 0 : index
    %c0_64 = arith.constant 0 : index
    %143 = vector.load %arg20[%c0_62, %c0_63, %c0_64] : memref<2x1x32xf32, #tpu.memory_space<vmem>>, vector<1x1x32xf32>
    %144 = vector.shape_cast %143 : vector<1x1x32xf32> to vector<1x32xf32>
    %cst_65 = arith.constant dense<0.000000e+00> : vector<8xf32>
    %145 = vector.multi_reduction <add>, %140, %cst_65 [1] : vector<8x32xf32> to vector<8xf32>
    %146 = vector.shape_cast %145 : vector<8xf32> to vector<8x1xf32>
    %cst_66 = arith.constant 3.200000e+01 : f32
    %147 = vector.broadcast %cst_66 : f32 to vector<8x1xf32>
    %148 = arith.divf %146, %147 : vector<8x1xf32>
    %149 = vector.broadcast %148 : vector<8x1xf32> to vector<8x32xf32>
    %150 = arith.subf %140, %149 : vector<8x32xf32>
    %151 = arith.mulf %150, %150 : vector<8x32xf32>
    %cst_67 = arith.constant dense<0.000000e+00> : vector<8xf32>
    %152 = vector.multi_reduction <add>, %151, %cst_67 [1] : vector<8x32xf32> to vector<8xf32>
    %153 = vector.shape_cast %152 : vector<8xf32> to vector<8x1xf32>
    %cst_68 = arith.constant 3.200000e+01 : f32
    %154 = vector.broadcast %cst_68 : f32 to vector<8x1xf32>
    %155 = arith.divf %153, %154 : vector<8x1xf32>
    %cst_69 = arith.constant 9.99999974E-6 : f32
    %156 = vector.broadcast %cst_69 : f32 to vector<8x1xf32>
    %157 = arith.addf %155, %156 : vector<8x1xf32>
    %158 = math.rsqrt %157 : vector<8x1xf32>
    %159 = vector.broadcast %158 : vector<8x1xf32> to vector<8x32xf32>
    %160 = arith.mulf %150, %159 : vector<8x32xf32>
    %161 = vector.broadcast %142 : vector<1x32xf32> to vector<8x32xf32>
    %162 = arith.mulf %160, %161 : vector<8x32xf32>
    %163 = vector.broadcast %144 : vector<1x32xf32> to vector<8x32xf32>
    %164 = arith.addf %162, %163 : vector<8x32xf32>
    %c0_70 = arith.constant 0 : index
    %c0_71 = arith.constant 0 : index
    %c0_72 = arith.constant 0 : index
    %165 = vector.load %arg21[%c0_70, %c0_71, %c0_72] : memref<2x32x64xf32, #tpu.memory_space<vmem>>, vector<1x32x64xf32>
    %166 = vector.shape_cast %165 : vector<1x32x64xf32> to vector<32x64xf32>
    %c0_73 = arith.constant 0 : index
    %c0_74 = arith.constant 0 : index
    %c0_75 = arith.constant 0 : index
    %167 = vector.load %arg22[%c0_73, %c0_74, %c0_75] : memref<2x1x64xf32, #tpu.memory_space<vmem>>, vector<1x1x64xf32>
    %168 = vector.shape_cast %167 : vector<1x1x64xf32> to vector<1x64xf32>
    %c0_76 = arith.constant 0 : index
    %c0_77 = arith.constant 0 : index
    %c0_78 = arith.constant 0 : index
    %169 = vector.load %arg23[%c0_76, %c0_77, %c0_78] : memref<2x64x32xf32, #tpu.memory_space<vmem>>, vector<1x64x32xf32>
    %170 = vector.shape_cast %169 : vector<1x64x32xf32> to vector<64x32xf32>
    %c0_79 = arith.constant 0 : index
    %c0_80 = arith.constant 0 : index
    %c0_81 = arith.constant 0 : index
    %171 = vector.load %arg24[%c0_79, %c0_80, %c0_81] : memref<2x1x32xf32, #tpu.memory_space<vmem>>, vector<1x1x32xf32>
    %172 = vector.shape_cast %171 : vector<1x1x32xf32> to vector<1x32xf32>
    %cst_82 = arith.constant dense<0.000000e+00> : vector<8x64xf32>
    %173 = tpu.matmul %164, %166, %cst_82 {dimension_numbers = #tpu.dot_dimension_numbers<[1], [0], [0], [1], [0, 0, 1, 1], [], []>} : vector<8x32xf32>, vector<32x64xf32>, vector<8x64xf32> -> vector<8x64xf32>
    %174 = vector.broadcast %168 : vector<1x64xf32> to vector<8x64xf32>
    %175 = arith.addf %173, %174 : vector<8x64xf32>
    %cst_83 = arith.constant 0.000000e+00 : f32
    %176 = vector.broadcast %cst_83 : f32 to vector<8x64xf32>
    %177 = arith.maximumf %175, %176 : vector<8x64xf32>
    %cst_84 = arith.constant dense<0.000000e+00> : vector<8x32xf32>
    %178 = tpu.matmul %177, %170, %cst_84 {dimension_numbers = #tpu.dot_dimension_numbers<[1], [0], [0], [1], [0, 0, 1, 1], [], []>} : vector<8x64xf32>, vector<64x32xf32>, vector<8x32xf32> -> vector<8x32xf32>
    %179 = vector.broadcast %172 : vector<1x32xf32> to vector<8x32xf32>
    %180 = arith.addf %178, %179 : vector<8x32xf32>
    %181 = arith.addf %140, %180 : vector<8x32xf32>
    %c1 = arith.constant 1 : index
    %c0_85 = arith.constant 0 : index
    %c0_86 = arith.constant 0 : index
    %182 = vector.load %arg13[%c1, %c0_85, %c0_86] : memref<2x1x32xf32, #tpu.memory_space<vmem>>, vector<1x1x32xf32>
    %183 = vector.shape_cast %182 : vector<1x1x32xf32> to vector<1x32xf32>
    %c1_87 = arith.constant 1 : index
    %c0_88 = arith.constant 0 : index
    %c0_89 = arith.constant 0 : index
    %184 = vector.load %arg14[%c1_87, %c0_88, %c0_89] : memref<2x1x32xf32, #tpu.memory_space<vmem>>, vector<1x1x32xf32>
    %185 = vector.shape_cast %184 : vector<1x1x32xf32> to vector<1x32xf32>
    %cst_90 = arith.constant dense<0.000000e+00> : vector<8xf32>
    %186 = vector.multi_reduction <add>, %181, %cst_90 [1] : vector<8x32xf32> to vector<8xf32>
    %187 = vector.shape_cast %186 : vector<8xf32> to vector<8x1xf32>
    %cst_91 = arith.constant 3.200000e+01 : f32
    %188 = vector.broadcast %cst_91 : f32 to vector<8x1xf32>
    %189 = arith.divf %187, %188 : vector<8x1xf32>
    %190 = vector.broadcast %189 : vector<8x1xf32> to vector<8x32xf32>
    %191 = arith.subf %181, %190 : vector<8x32xf32>
    %192 = arith.mulf %191, %191 : vector<8x32xf32>
    %cst_92 = arith.constant dense<0.000000e+00> : vector<8xf32>
    %193 = vector.multi_reduction <add>, %192, %cst_92 [1] : vector<8x32xf32> to vector<8xf32>
    %194 = vector.shape_cast %193 : vector<8xf32> to vector<8x1xf32>
    %cst_93 = arith.constant 3.200000e+01 : f32
    %195 = vector.broadcast %cst_93 : f32 to vector<8x1xf32>
    %196 = arith.divf %194, %195 : vector<8x1xf32>
    %cst_94 = arith.constant 9.99999974E-6 : f32
    %197 = vector.broadcast %cst_94 : f32 to vector<8x1xf32>
    %198 = arith.addf %196, %197 : vector<8x1xf32>
    %199 = math.rsqrt %198 : vector<8x1xf32>
    %200 = vector.broadcast %199 : vector<8x1xf32> to vector<8x32xf32>
    %201 = arith.mulf %191, %200 : vector<8x32xf32>
    %202 = vector.broadcast %183 : vector<1x32xf32> to vector<8x32xf32>
    %203 = arith.mulf %201, %202 : vector<8x32xf32>
    %204 = vector.broadcast %185 : vector<1x32xf32> to vector<8x32xf32>
    %205 = arith.addf %203, %204 : vector<8x32xf32>
    %c1_95 = arith.constant 1 : index
    %c0_96 = arith.constant 0 : index
    %c0_97 = arith.constant 0 : index
    %206 = vector.load %arg15[%c1_95, %c0_96, %c0_97] : memref<2x32x96xf32, #tpu.memory_space<vmem>>, vector<1x32x96xf32>
    %207 = vector.shape_cast %206 : vector<1x32x96xf32> to vector<32x96xf32>
    %c1_98 = arith.constant 1 : index
    %c0_99 = arith.constant 0 : index
    %c0_100 = arith.constant 0 : index
    %208 = vector.load %arg16[%c1_98, %c0_99, %c0_100] : memref<2x1x96xf32, #tpu.memory_space<vmem>>, vector<1x1x96xf32>
    %209 = vector.shape_cast %208 : vector<1x1x96xf32> to vector<1x96xf32>
    %c1_101 = arith.constant 1 : index
    %c0_102 = arith.constant 0 : index
    %c0_103 = arith.constant 0 : index
    %210 = vector.load %arg17[%c1_101, %c0_102, %c0_103] : memref<2x32x32xf32, #tpu.memory_space<vmem>>, vector<1x32x32xf32>
    %211 = vector.shape_cast %210 : vector<1x32x32xf32> to vector<32x32xf32>
    %c1_104 = arith.constant 1 : index
    %c0_105 = arith.constant 0 : index
    %c0_106 = arith.constant 0 : index
    %212 = vector.load %arg18[%c1_104, %c0_105, %c0_106] : memref<2x1x32xf32, #tpu.memory_space<vmem>>, vector<1x1x32xf32>
    %213 = vector.shape_cast %212 : vector<1x1x32xf32> to vector<1x32xf32>
    %cst_107 = arith.constant dense<0.000000e+00> : vector<8x96xf32>
    %214 = tpu.matmul %205, %207, %cst_107 {dimension_numbers = #tpu.dot_dimension_numbers<[1], [0], [0], [1], [0, 0, 1, 1], [], []>} : vector<8x32xf32>, vector<32x96xf32>, vector<8x96xf32> -> vector<8x96xf32>
    %215 = vector.broadcast %209 : vector<1x96xf32> to vector<8x96xf32>
    %216 = arith.addf %214, %215 : vector<8x96xf32>
    %217 = vector.extract_strided_slice %216 {offsets = [0, 0], sizes = [8, 32], strides = [1, 1]} : vector<8x96xf32> to vector<8x32xf32>
    %218 = vector.extract_strided_slice %216 {offsets = [0, 32], sizes = [8, 32], strides = [1, 1]} : vector<8x96xf32> to vector<8x32xf32>
    %219 = vector.extract_strided_slice %216 {offsets = [0, 64], sizes = [8, 32], strides = [1, 1]} : vector<8x96xf32> to vector<8x32xf32>
    %220 = vector.extract_strided_slice %217 {offsets = [0, 0], sizes = [8, 8], strides = [1, 1]} : vector<8x32xf32> to vector<8x8xf32>
    %221 = vector.shape_cast %220 : vector<8x8xf32> to vector<1x8x8xf32>
    %222 = vector.extract_strided_slice %217 {offsets = [0, 8], sizes = [8, 8], strides = [1, 1]} : vector<8x32xf32> to vector<8x8xf32>
    %223 = vector.shape_cast %222 : vector<8x8xf32> to vector<1x8x8xf32>
    %224 = vector.extract_strided_slice %217 {offsets = [0, 16], sizes = [8, 8], strides = [1, 1]} : vector<8x32xf32> to vector<8x8xf32>
    %225 = vector.shape_cast %224 : vector<8x8xf32> to vector<1x8x8xf32>
    %226 = vector.extract_strided_slice %217 {offsets = [0, 24], sizes = [8, 8], strides = [1, 1]} : vector<8x32xf32> to vector<8x8xf32>
    %227 = vector.shape_cast %226 : vector<8x8xf32> to vector<1x8x8xf32>
    %228 = tpu.concatenate %221, %223, %225, %227 in 0 : vector<1x8x8xf32>, vector<1x8x8xf32>, vector<1x8x8xf32>, vector<1x8x8xf32> -> vector<4x8x8xf32>
    %229 = vector.extract_strided_slice %218 {offsets = [0, 0], sizes = [8, 8], strides = [1, 1]} : vector<8x32xf32> to vector<8x8xf32>
    %230 = vector.shape_cast %229 : vector<8x8xf32> to vector<1x8x8xf32>
    %231 = vector.extract_strided_slice %218 {offsets = [0, 8], sizes = [8, 8], strides = [1, 1]} : vector<8x32xf32> to vector<8x8xf32>
    %232 = vector.shape_cast %231 : vector<8x8xf32> to vector<1x8x8xf32>
    %233 = vector.extract_strided_slice %218 {offsets = [0, 16], sizes = [8, 8], strides = [1, 1]} : vector<8x32xf32> to vector<8x8xf32>
    %234 = vector.shape_cast %233 : vector<8x8xf32> to vector<1x8x8xf32>
    %235 = vector.extract_strided_slice %218 {offsets = [0, 24], sizes = [8, 8], strides = [1, 1]} : vector<8x32xf32> to vector<8x8xf32>
    %236 = vector.shape_cast %235 : vector<8x8xf32> to vector<1x8x8xf32>
    %237 = tpu.concatenate %230, %232, %234, %236 in 0 : vector<1x8x8xf32>, vector<1x8x8xf32>, vector<1x8x8xf32>, vector<1x8x8xf32> -> vector<4x8x8xf32>
    %238 = vector.extract_strided_slice %219 {offsets = [0, 0], sizes = [8, 8], strides = [1, 1]} : vector<8x32xf32> to vector<8x8xf32>
    %239 = vector.shape_cast %238 : vector<8x8xf32> to vector<1x8x8xf32>
    %240 = vector.extract_strided_slice %219 {offsets = [0, 8], sizes = [8, 8], strides = [1, 1]} : vector<8x32xf32> to vector<8x8xf32>
    %241 = vector.shape_cast %240 : vector<8x8xf32> to vector<1x8x8xf32>
    %242 = vector.extract_strided_slice %219 {offsets = [0, 16], sizes = [8, 8], strides = [1, 1]} : vector<8x32xf32> to vector<8x8xf32>
    %243 = vector.shape_cast %242 : vector<8x8xf32> to vector<1x8x8xf32>
    %244 = vector.extract_strided_slice %219 {offsets = [0, 24], sizes = [8, 8], strides = [1, 1]} : vector<8x32xf32> to vector<8x8xf32>
    %245 = vector.shape_cast %244 : vector<8x8xf32> to vector<1x8x8xf32>
    %246 = tpu.concatenate %239, %241, %243, %245 in 0 : vector<1x8x8xf32>, vector<1x8x8xf32>, vector<1x8x8xf32>, vector<1x8x8xf32> -> vector<4x8x8xf32>
    "tpu.trace_start"() <{level = 10 : i32, message = "hqd,hkd->hqk"}> : () -> ()
    %cst_108 = arith.constant dense<0.000000e+00> : vector<4x8x8xf32>
    %247 = tpu.matmul %228, %237, %cst_108 {dimension_numbers = #tpu.dot_dimension_numbers<[2], [2], [1], [1], [0, 0, 0, 1, 1, 1], [0], [0]>} : vector<4x8x8xf32>, vector<4x8x8xf32>, vector<4x8x8xf32> -> vector<4x8x8xf32>
    "tpu.trace_stop"() : () -> ()
    %cst_109 = arith.constant 0.353553385 : f32
    %248 = vector.broadcast %cst_109 : f32 to vector<4x8x8xf32>
    %249 = arith.mulf %247, %248 : vector<4x8x8xf32>
    %cst_110 = arith.constant dense<0xFF800000> : vector<4x8xf32>
    %250 = vector.multi_reduction <maximumf>, %249, %cst_110 [2] : vector<4x8x8xf32> to vector<4x8xf32>
    %251 = vector.shape_cast %250 : vector<4x8xf32> to vector<4x8x1xf32>
    %252 = vector.broadcast %251 : vector<4x8x1xf32> to vector<4x8x8xf32>
    %253 = arith.subf %249, %252 : vector<4x8x8xf32>
    %254 = math.exp %253 : vector<4x8x8xf32>
    %cst_111 = arith.constant dense<0.000000e+00> : vector<4x8xf32>
    %255 = vector.multi_reduction <add>, %254, %cst_111 [2] : vector<4x8x8xf32> to vector<4x8xf32>
    %256 = vector.shape_cast %255 : vector<4x8xf32> to vector<4x8x1xf32>
    %257 = vector.broadcast %256 : vector<4x8x1xf32> to vector<4x8x8xf32>
    %258 = arith.divf %254, %257 : vector<4x8x8xf32>
    "tpu.trace_start"() <{level = 10 : i32, message = "hqk,hkd->hqd"}> : () -> ()
    %cst_112 = arith.constant dense<0.000000e+00> : vector<4x8x8xf32>
    %259 = tpu.matmul %258, %246, %cst_112 {dimension_numbers = #tpu.dot_dimension_numbers<[2], [1], [1], [2], [0, 0, 0, 1, 1, 2], [0], [0]>} : vector<4x8x8xf32>, vector<4x8x8xf32>, vector<4x8x8xf32> -> vector<4x8x8xf32>
    "tpu.trace_stop"() : () -> ()
    %260 = vector.extract_strided_slice %259 {offsets = [0, 0, 0], sizes = [1, 8, 8], strides = [1, 1, 1]} : vector<4x8x8xf32> to vector<1x8x8xf32>
    %261 = vector.shape_cast %260 : vector<1x8x8xf32> to vector<8x8xf32>
    %262 = vector.extract_strided_slice %259 {offsets = [1, 0, 0], sizes = [1, 8, 8], strides = [1, 1, 1]} : vector<4x8x8xf32> to vector<1x8x8xf32>
    %263 = vector.shape_cast %262 : vector<1x8x8xf32> to vector<8x8xf32>
    %264 = vector.extract_strided_slice %259 {offsets = [2, 0, 0], sizes = [1, 8, 8], strides = [1, 1, 1]} : vector<4x8x8xf32> to vector<1x8x8xf32>
    %265 = vector.shape_cast %264 : vector<1x8x8xf32> to vector<8x8xf32>
    %266 = vector.extract_strided_slice %259 {offsets = [3, 0, 0], sizes = [1, 8, 8], strides = [1, 1, 1]} : vector<4x8x8xf32> to vector<1x8x8xf32>
    %267 = vector.shape_cast %266 : vector<1x8x8xf32> to vector<8x8xf32>
    %268 = tpu.concatenate %261, %263, %265, %267 in 1 : vector<8x8xf32>, vector<8x8xf32>, vector<8x8xf32>, vector<8x8xf32> -> vector<8x32xf32>
    %cst_113 = arith.constant dense<0.000000e+00> : vector<8x32xf32>
    %269 = tpu.matmul %268, %211, %cst_113 {dimension_numbers = #tpu.dot_dimension_numbers<[1], [0], [0], [1], [0, 0, 1, 1], [], []>} : vector<8x32xf32>, vector<32x32xf32>, vector<8x32xf32> -> vector<8x32xf32>
    %270 = vector.broadcast %213 : vector<1x32xf32> to vector<8x32xf32>
    %271 = arith.addf %269, %270 : vector<8x32xf32>
    %272 = arith.addf %181, %271 : vector<8x32xf32>
    %c1_114 = arith.constant 1 : index
    %c0_115 = arith.constant 0 : index
    %c0_116 = arith.constant 0 : index
    %273 = vector.load %arg19[%c1_114, %c0_115, %c0_116] : memref<2x1x32xf32, #tpu.memory_space<vmem>>, vector<1x1x32xf32>
    %274 = vector.shape_cast %273 : vector<1x1x32xf32> to vector<1x32xf32>
    %c1_117 = arith.constant 1 : index
    %c0_118 = arith.constant 0 : index
    %c0_119 = arith.constant 0 : index
    %275 = vector.load %arg20[%c1_117, %c0_118, %c0_119] : memref<2x1x32xf32, #tpu.memory_space<vmem>>, vector<1x1x32xf32>
    %276 = vector.shape_cast %275 : vector<1x1x32xf32> to vector<1x32xf32>
    %cst_120 = arith.constant dense<0.000000e+00> : vector<8xf32>
    %277 = vector.multi_reduction <add>, %272, %cst_120 [1] : vector<8x32xf32> to vector<8xf32>
    %278 = vector.shape_cast %277 : vector<8xf32> to vector<8x1xf32>
    %cst_121 = arith.constant 3.200000e+01 : f32
    %279 = vector.broadcast %cst_121 : f32 to vector<8x1xf32>
    %280 = arith.divf %278, %279 : vector<8x1xf32>
    %281 = vector.broadcast %280 : vector<8x1xf32> to vector<8x32xf32>
    %282 = arith.subf %272, %281 : vector<8x32xf32>
    %283 = arith.mulf %282, %282 : vector<8x32xf32>
    %cst_122 = arith.constant dense<0.000000e+00> : vector<8xf32>
    %284 = vector.multi_reduction <add>, %283, %cst_122 [1] : vector<8x32xf32> to vector<8xf32>
    %285 = vector.shape_cast %284 : vector<8xf32> to vector<8x1xf32>
    %cst_123 = arith.constant 3.200000e+01 : f32
    %286 = vector.broadcast %cst_123 : f32 to vector<8x1xf32>
    %287 = arith.divf %285, %286 : vector<8x1xf32>
    %cst_124 = arith.constant 9.99999974E-6 : f32
    %288 = vector.broadcast %cst_124 : f32 to vector<8x1xf32>
    %289 = arith.addf %287, %288 : vector<8x1xf32>
    %290 = math.rsqrt %289 : vector<8x1xf32>
    %291 = vector.broadcast %290 : vector<8x1xf32> to vector<8x32xf32>
    %292 = arith.mulf %282, %291 : vector<8x32xf32>
    %293 = vector.broadcast %274 : vector<1x32xf32> to vector<8x32xf32>
    %294 = arith.mulf %292, %293 : vector<8x32xf32>
    %295 = vector.broadcast %276 : vector<1x32xf32> to vector<8x32xf32>
    %296 = arith.addf %294, %295 : vector<8x32xf32>
    %c1_125 = arith.constant 1 : index
    %c0_126 = arith.constant 0 : index
    %c0_127 = arith.constant 0 : index
    %297 = vector.load %arg21[%c1_125, %c0_126, %c0_127] : memref<2x32x64xf32, #tpu.memory_space<vmem>>, vector<1x32x64xf32>
    %298 = vector.shape_cast %297 : vector<1x32x64xf32> to vector<32x64xf32>
    %c1_128 = arith.constant 1 : index
    %c0_129 = arith.constant 0 : index
    %c0_130 = arith.constant 0 : index
    %299 = vector.load %arg22[%c1_128, %c0_129, %c0_130] : memref<2x1x64xf32, #tpu.memory_space<vmem>>, vector<1x1x64xf32>
    %300 = vector.shape_cast %299 : vector<1x1x64xf32> to vector<1x64xf32>
    %c1_131 = arith.constant 1 : index
    %c0_132 = arith.constant 0 : index
    %c0_133 = arith.constant 0 : index
    %301 = vector.load %arg23[%c1_131, %c0_132, %c0_133] : memref<2x64x32xf32, #tpu.memory_space<vmem>>, vector<1x64x32xf32>
    %302 = vector.shape_cast %301 : vector<1x64x32xf32> to vector<64x32xf32>
    %c1_134 = arith.constant 1 : index
    %c0_135 = arith.constant 0 : index
    %c0_136 = arith.constant 0 : index
    %303 = vector.load %arg24[%c1_134, %c0_135, %c0_136] : memref<2x1x32xf32, #tpu.memory_space<vmem>>, vector<1x1x32xf32>
    %304 = vector.shape_cast %303 : vector<1x1x32xf32> to vector<1x32xf32>
    %cst_137 = arith.constant dense<0.000000e+00> : vector<8x64xf32>
    %305 = tpu.matmul %296, %298, %cst_137 {dimension_numbers = #tpu.dot_dimension_numbers<[1], [0], [0], [1], [0, 0, 1, 1], [], []>} : vector<8x32xf32>, vector<32x64xf32>, vector<8x64xf32> -> vector<8x64xf32>
    %306 = vector.broadcast %300 : vector<1x64xf32> to vector<8x64xf32>
    %307 = arith.addf %305, %306 : vector<8x64xf32>
    %cst_138 = arith.constant 0.000000e+00 : f32
    %308 = vector.broadcast %cst_138 : f32 to vector<8x64xf32>
    %309 = arith.maximumf %307, %308 : vector<8x64xf32>
    %cst_139 = arith.constant dense<0.000000e+00> : vector<8x32xf32>
    %310 = tpu.matmul %309, %302, %cst_139 {dimension_numbers = #tpu.dot_dimension_numbers<[1], [0], [0], [1], [0, 0, 1, 1], [], []>} : vector<8x64xf32>, vector<64x32xf32>, vector<8x32xf32> -> vector<8x32xf32>
    %311 = vector.broadcast %304 : vector<1x32xf32> to vector<8x32xf32>
    %312 = arith.addf %310, %311 : vector<8x32xf32>
    %313 = arith.addf %272, %312 : vector<8x32xf32>
    %c0_140 = arith.constant 0 : index
    %c0_141 = arith.constant 0 : index
    %314 = vector.load %arg4[%c0_140, %c0_141] : memref<8x32xf32, #tpu.memory_space<vmem>>, vector<8x32xf32>
    %315 = arith.addf %38, %314 : vector<8x32xf32>
    %c0_142 = arith.constant 0 : index
    %c0_143 = arith.constant 0 : index
    %c0_144 = arith.constant 0 : index
    %316 = vector.load %arg25[%c0_142, %c0_143, %c0_144] : memref<2x1x32xf32, #tpu.memory_space<vmem>>, vector<1x1x32xf32>
    %317 = vector.shape_cast %316 : vector<1x1x32xf32> to vector<1x32xf32>
    %c0_145 = arith.constant 0 : index
    %c0_146 = arith.constant 0 : index
    %c0_147 = arith.constant 0 : index
    %318 = vector.load %arg26[%c0_145, %c0_146, %c0_147] : memref<2x1x32xf32, #tpu.memory_space<vmem>>, vector<1x1x32xf32>
    %319 = vector.shape_cast %318 : vector<1x1x32xf32> to vector<1x32xf32>
    %cst_148 = arith.constant dense<0.000000e+00> : vector<8xf32>
    %320 = vector.multi_reduction <add>, %315, %cst_148 [1] : vector<8x32xf32> to vector<8xf32>
    %321 = vector.shape_cast %320 : vector<8xf32> to vector<8x1xf32>
    %cst_149 = arith.constant 3.200000e+01 : f32
    %322 = vector.broadcast %cst_149 : f32 to vector<8x1xf32>
    %323 = arith.divf %321, %322 : vector<8x1xf32>
    %324 = vector.broadcast %323 : vector<8x1xf32> to vector<8x32xf32>
    %325 = arith.subf %315, %324 : vector<8x32xf32>
    %326 = arith.mulf %325, %325 : vector<8x32xf32>
    %cst_150 = arith.constant dense<0.000000e+00> : vector<8xf32>
    %327 = vector.multi_reduction <add>, %326, %cst_150 [1] : vector<8x32xf32> to vector<8xf32>
    %328 = vector.shape_cast %327 : vector<8xf32> to vector<8x1xf32>
    %cst_151 = arith.constant 3.200000e+01 : f32
    %329 = vector.broadcast %cst_151 : f32 to vector<8x1xf32>
    %330 = arith.divf %328, %329 : vector<8x1xf32>
    %cst_152 = arith.constant 9.99999974E-6 : f32
    %331 = vector.broadcast %cst_152 : f32 to vector<8x1xf32>
    %332 = arith.addf %330, %331 : vector<8x1xf32>
    %333 = math.rsqrt %332 : vector<8x1xf32>
    %334 = vector.broadcast %333 : vector<8x1xf32> to vector<8x32xf32>
    %335 = arith.mulf %325, %334 : vector<8x32xf32>
    %336 = vector.broadcast %317 : vector<1x32xf32> to vector<8x32xf32>
    %337 = arith.mulf %335, %336 : vector<8x32xf32>
    %338 = vector.broadcast %319 : vector<1x32xf32> to vector<8x32xf32>
    %339 = arith.addf %337, %338 : vector<8x32xf32>
    %c0_153 = arith.constant 0 : index
    %c0_154 = arith.constant 0 : index
    %c0_155 = arith.constant 0 : index
    %340 = vector.load %arg27[%c0_153, %c0_154, %c0_155] : memref<2x32x96xf32, #tpu.memory_space<vmem>>, vector<1x32x96xf32>
    %341 = vector.shape_cast %340 : vector<1x32x96xf32> to vector<32x96xf32>
    %c0_156 = arith.constant 0 : index
    %c0_157 = arith.constant 0 : index
    %c0_158 = arith.constant 0 : index
    %342 = vector.load %arg28[%c0_156, %c0_157, %c0_158] : memref<2x1x96xf32, #tpu.memory_space<vmem>>, vector<1x1x96xf32>
    %343 = vector.shape_cast %342 : vector<1x1x96xf32> to vector<1x96xf32>
    %c0_159 = arith.constant 0 : index
    %c0_160 = arith.constant 0 : index
    %c0_161 = arith.constant 0 : index
    %344 = vector.load %arg29[%c0_159, %c0_160, %c0_161] : memref<2x32x32xf32, #tpu.memory_space<vmem>>, vector<1x32x32xf32>
    %345 = vector.shape_cast %344 : vector<1x32x32xf32> to vector<32x32xf32>
    %c0_162 = arith.constant 0 : index
    %c0_163 = arith.constant 0 : index
    %c0_164 = arith.constant 0 : index
    %346 = vector.load %arg30[%c0_162, %c0_163, %c0_164] : memref<2x1x32xf32, #tpu.memory_space<vmem>>, vector<1x1x32xf32>
    %347 = vector.shape_cast %346 : vector<1x1x32xf32> to vector<1x32xf32>
    %cst_165 = arith.constant dense<0.000000e+00> : vector<8x96xf32>
    %348 = tpu.matmul %339, %341, %cst_165 {dimension_numbers = #tpu.dot_dimension_numbers<[1], [0], [0], [1], [0, 0, 1, 1], [], []>} : vector<8x32xf32>, vector<32x96xf32>, vector<8x96xf32> -> vector<8x96xf32>
    %349 = vector.broadcast %343 : vector<1x96xf32> to vector<8x96xf32>
    %350 = arith.addf %348, %349 : vector<8x96xf32>
    %351 = vector.extract_strided_slice %350 {offsets = [0, 0], sizes = [8, 32], strides = [1, 1]} : vector<8x96xf32> to vector<8x32xf32>
    %352 = vector.extract_strided_slice %350 {offsets = [0, 32], sizes = [8, 32], strides = [1, 1]} : vector<8x96xf32> to vector<8x32xf32>
    %353 = vector.extract_strided_slice %350 {offsets = [0, 64], sizes = [8, 32], strides = [1, 1]} : vector<8x96xf32> to vector<8x32xf32>
    %354 = vector.extract_strided_slice %351 {offsets = [0, 0], sizes = [8, 8], strides = [1, 1]} : vector<8x32xf32> to vector<8x8xf32>
    %355 = vector.shape_cast %354 : vector<8x8xf32> to vector<1x8x8xf32>
    %356 = vector.extract_strided_slice %351 {offsets = [0, 8], sizes = [8, 8], strides = [1, 1]} : vector<8x32xf32> to vector<8x8xf32>
    %357 = vector.shape_cast %356 : vector<8x8xf32> to vector<1x8x8xf32>
    %358 = vector.extract_strided_slice %351 {offsets = [0, 16], sizes = [8, 8], strides = [1, 1]} : vector<8x32xf32> to vector<8x8xf32>
    %359 = vector.shape_cast %358 : vector<8x8xf32> to vector<1x8x8xf32>
    %360 = vector.extract_strided_slice %351 {offsets = [0, 24], sizes = [8, 8], strides = [1, 1]} : vector<8x32xf32> to vector<8x8xf32>
    %361 = vector.shape_cast %360 : vector<8x8xf32> to vector<1x8x8xf32>
    %362 = tpu.concatenate %355, %357, %359, %361 in 0 : vector<1x8x8xf32>, vector<1x8x8xf32>, vector<1x8x8xf32>, vector<1x8x8xf32> -> vector<4x8x8xf32>
    %363 = vector.extract_strided_slice %352 {offsets = [0, 0], sizes = [8, 8], strides = [1, 1]} : vector<8x32xf32> to vector<8x8xf32>
    %364 = vector.shape_cast %363 : vector<8x8xf32> to vector<1x8x8xf32>
    %365 = vector.extract_strided_slice %352 {offsets = [0, 8], sizes = [8, 8], strides = [1, 1]} : vector<8x32xf32> to vector<8x8xf32>
    %366 = vector.shape_cast %365 : vector<8x8xf32> to vector<1x8x8xf32>
    %367 = vector.extract_strided_slice %352 {offsets = [0, 16], sizes = [8, 8], strides = [1, 1]} : vector<8x32xf32> to vector<8x8xf32>
    %368 = vector.shape_cast %367 : vector<8x8xf32> to vector<1x8x8xf32>
    %369 = vector.extract_strided_slice %352 {offsets = [0, 24], sizes = [8, 8], strides = [1, 1]} : vector<8x32xf32> to vector<8x8xf32>
    %370 = vector.shape_cast %369 : vector<8x8xf32> to vector<1x8x8xf32>
    %371 = tpu.concatenate %364, %366, %368, %370 in 0 : vector<1x8x8xf32>, vector<1x8x8xf32>, vector<1x8x8xf32>, vector<1x8x8xf32> -> vector<4x8x8xf32>
    %372 = vector.extract_strided_slice %353 {offsets = [0, 0], sizes = [8, 8], strides = [1, 1]} : vector<8x32xf32> to vector<8x8xf32>
    %373 = vector.shape_cast %372 : vector<8x8xf32> to vector<1x8x8xf32>
    %374 = vector.extract_strided_slice %353 {offsets = [0, 8], sizes = [8, 8], strides = [1, 1]} : vector<8x32xf32> to vector<8x8xf32>
    %375 = vector.shape_cast %374 : vector<8x8xf32> to vector<1x8x8xf32>
    %376 = vector.extract_strided_slice %353 {offsets = [0, 16], sizes = [8, 8], strides = [1, 1]} : vector<8x32xf32> to vector<8x8xf32>
    %377 = vector.shape_cast %376 : vector<8x8xf32> to vector<1x8x8xf32>
    %378 = vector.extract_strided_slice %353 {offsets = [0, 24], sizes = [8, 8], strides = [1, 1]} : vector<8x32xf32> to vector<8x8xf32>
    %379 = vector.shape_cast %378 : vector<8x8xf32> to vector<1x8x8xf32>
    %380 = tpu.concatenate %373, %375, %377, %379 in 0 : vector<1x8x8xf32>, vector<1x8x8xf32>, vector<1x8x8xf32>, vector<1x8x8xf32> -> vector<4x8x8xf32>
    "tpu.trace_start"() <{level = 10 : i32, message = "hqd,hkd->hqk"}> : () -> ()
    %cst_166 = arith.constant dense<0.000000e+00> : vector<4x8x8xf32>
    %381 = tpu.matmul %362, %371, %cst_166 {dimension_numbers = #tpu.dot_dimension_numbers<[2], [2], [1], [1], [0, 0, 0, 1, 1, 1], [0], [0]>} : vector<4x8x8xf32>, vector<4x8x8xf32>, vector<4x8x8xf32> -> vector<4x8x8xf32>
    "tpu.trace_stop"() : () -> ()
    %cst_167 = arith.constant 0.353553385 : f32
    %382 = vector.broadcast %cst_167 : f32 to vector<4x8x8xf32>
    %383 = arith.mulf %381, %382 : vector<4x8x8xf32>
    %cst_168 = arith.constant dense<0xFF800000> : vector<4x8xf32>
    %384 = vector.multi_reduction <maximumf>, %383, %cst_168 [2] : vector<4x8x8xf32> to vector<4x8xf32>
    %385 = vector.shape_cast %384 : vector<4x8xf32> to vector<4x8x1xf32>
    %386 = vector.broadcast %385 : vector<4x8x1xf32> to vector<4x8x8xf32>
    %387 = arith.subf %383, %386 : vector<4x8x8xf32>
    %388 = math.exp %387 : vector<4x8x8xf32>
    %cst_169 = arith.constant dense<0.000000e+00> : vector<4x8xf32>
    %389 = vector.multi_reduction <add>, %388, %cst_169 [2] : vector<4x8x8xf32> to vector<4x8xf32>
    %390 = vector.shape_cast %389 : vector<4x8xf32> to vector<4x8x1xf32>
    %391 = vector.broadcast %390 : vector<4x8x1xf32> to vector<4x8x8xf32>
    %392 = arith.divf %388, %391 : vector<4x8x8xf32>
    "tpu.trace_start"() <{level = 10 : i32, message = "hqk,hkd->hqd"}> : () -> ()
    %cst_170 = arith.constant dense<0.000000e+00> : vector<4x8x8xf32>
    %393 = tpu.matmul %392, %380, %cst_170 {dimension_numbers = #tpu.dot_dimension_numbers<[2], [1], [1], [2], [0, 0, 0, 1, 1, 2], [0], [0]>} : vector<4x8x8xf32>, vector<4x8x8xf32>, vector<4x8x8xf32> -> vector<4x8x8xf32>
    "tpu.trace_stop"() : () -> ()
    %394 = vector.extract_strided_slice %393 {offsets = [0, 0, 0], sizes = [1, 8, 8], strides = [1, 1, 1]} : vector<4x8x8xf32> to vector<1x8x8xf32>
    %395 = vector.shape_cast %394 : vector<1x8x8xf32> to vector<8x8xf32>
    %396 = vector.extract_strided_slice %393 {offsets = [1, 0, 0], sizes = [1, 8, 8], strides = [1, 1, 1]} : vector<4x8x8xf32> to vector<1x8x8xf32>
    %397 = vector.shape_cast %396 : vector<1x8x8xf32> to vector<8x8xf32>
    %398 = vector.extract_strided_slice %393 {offsets = [2, 0, 0], sizes = [1, 8, 8], strides = [1, 1, 1]} : vector<4x8x8xf32> to vector<1x8x8xf32>
    %399 = vector.shape_cast %398 : vector<1x8x8xf32> to vector<8x8xf32>
    %400 = vector.extract_strided_slice %393 {offsets = [3, 0, 0], sizes = [1, 8, 8], strides = [1, 1, 1]} : vector<4x8x8xf32> to vector<1x8x8xf32>
    %401 = vector.shape_cast %400 : vector<1x8x8xf32> to vector<8x8xf32>
    %402 = tpu.concatenate %395, %397, %399, %401 in 1 : vector<8x8xf32>, vector<8x8xf32>, vector<8x8xf32>, vector<8x8xf32> -> vector<8x32xf32>
    %cst_171 = arith.constant dense<0.000000e+00> : vector<8x32xf32>
    %403 = tpu.matmul %402, %345, %cst_171 {dimension_numbers = #tpu.dot_dimension_numbers<[1], [0], [0], [1], [0, 0, 1, 1], [], []>} : vector<8x32xf32>, vector<32x32xf32>, vector<8x32xf32> -> vector<8x32xf32>
    %404 = vector.broadcast %347 : vector<1x32xf32> to vector<8x32xf32>
    %405 = arith.addf %403, %404 : vector<8x32xf32>
    %406 = arith.addf %315, %405 : vector<8x32xf32>
    %c0_172 = arith.constant 0 : index
    %c0_173 = arith.constant 0 : index
    %c0_174 = arith.constant 0 : index
    %407 = vector.load %arg31[%c0_172, %c0_173, %c0_174] : memref<2x1x32xf32, #tpu.memory_space<vmem>>, vector<1x1x32xf32>
    %408 = vector.shape_cast %407 : vector<1x1x32xf32> to vector<1x32xf32>
    %c0_175 = arith.constant 0 : index
    %c0_176 = arith.constant 0 : index
    %c0_177 = arith.constant 0 : index
    %409 = vector.load %arg32[%c0_175, %c0_176, %c0_177] : memref<2x1x32xf32, #tpu.memory_space<vmem>>, vector<1x1x32xf32>
    %410 = vector.shape_cast %409 : vector<1x1x32xf32> to vector<1x32xf32>
    %cst_178 = arith.constant dense<0.000000e+00> : vector<8xf32>
    %411 = vector.multi_reduction <add>, %406, %cst_178 [1] : vector<8x32xf32> to vector<8xf32>
    %412 = vector.shape_cast %411 : vector<8xf32> to vector<8x1xf32>
    %cst_179 = arith.constant 3.200000e+01 : f32
    %413 = vector.broadcast %cst_179 : f32 to vector<8x1xf32>
    %414 = arith.divf %412, %413 : vector<8x1xf32>
    %415 = vector.broadcast %414 : vector<8x1xf32> to vector<8x32xf32>
    %416 = arith.subf %406, %415 : vector<8x32xf32>
    %417 = arith.mulf %416, %416 : vector<8x32xf32>
    %cst_180 = arith.constant dense<0.000000e+00> : vector<8xf32>
    %418 = vector.multi_reduction <add>, %417, %cst_180 [1] : vector<8x32xf32> to vector<8xf32>
    %419 = vector.shape_cast %418 : vector<8xf32> to vector<8x1xf32>
    %cst_181 = arith.constant 3.200000e+01 : f32
    %420 = vector.broadcast %cst_181 : f32 to vector<8x1xf32>
    %421 = arith.divf %419, %420 : vector<8x1xf32>
    %cst_182 = arith.constant 9.99999974E-6 : f32
    %422 = vector.broadcast %cst_182 : f32 to vector<8x1xf32>
    %423 = arith.addf %421, %422 : vector<8x1xf32>
    %424 = math.rsqrt %423 : vector<8x1xf32>
    %425 = vector.broadcast %424 : vector<8x1xf32> to vector<8x32xf32>
    %426 = arith.mulf %416, %425 : vector<8x32xf32>
    %427 = vector.broadcast %408 : vector<1x32xf32> to vector<8x32xf32>
    %428 = arith.mulf %426, %427 : vector<8x32xf32>
    %429 = vector.broadcast %410 : vector<1x32xf32> to vector<8x32xf32>
    %430 = arith.addf %428, %429 : vector<8x32xf32>
    %c0_183 = arith.constant 0 : index
    %c0_184 = arith.constant 0 : index
    %c0_185 = arith.constant 0 : index
    %431 = vector.load %arg33[%c0_183, %c0_184, %c0_185] : memref<2x32x32xf32, #tpu.memory_space<vmem>>, vector<1x32x32xf32>
    %432 = vector.shape_cast %431 : vector<1x32x32xf32> to vector<32x32xf32>
    %c0_186 = arith.constant 0 : index
    %c0_187 = arith.constant 0 : index
    %c0_188 = arith.constant 0 : index
    %433 = vector.load %arg34[%c0_186, %c0_187, %c0_188] : memref<2x1x32xf32, #tpu.memory_space<vmem>>, vector<1x1x32xf32>
    %434 = vector.shape_cast %433 : vector<1x1x32xf32> to vector<1x32xf32>
    %c0_189 = arith.constant 0 : index
    %c0_190 = arith.constant 0 : index
    %c0_191 = arith.constant 0 : index
    %435 = vector.load %arg35[%c0_189, %c0_190, %c0_191] : memref<2x32x64xf32, #tpu.memory_space<vmem>>, vector<1x32x64xf32>
    %436 = vector.shape_cast %435 : vector<1x32x64xf32> to vector<32x64xf32>
    %c0_192 = arith.constant 0 : index
    %c0_193 = arith.constant 0 : index
    %c0_194 = arith.constant 0 : index
    %437 = vector.load %arg36[%c0_192, %c0_193, %c0_194] : memref<2x1x64xf32, #tpu.memory_space<vmem>>, vector<1x1x64xf32>
    %438 = vector.shape_cast %437 : vector<1x1x64xf32> to vector<1x64xf32>
    %c0_195 = arith.constant 0 : index
    %c0_196 = arith.constant 0 : index
    %c0_197 = arith.constant 0 : index
    %439 = vector.load %arg37[%c0_195, %c0_196, %c0_197] : memref<2x32x32xf32, #tpu.memory_space<vmem>>, vector<1x32x32xf32>
    %440 = vector.shape_cast %439 : vector<1x32x32xf32> to vector<32x32xf32>
    %c0_198 = arith.constant 0 : index
    %c0_199 = arith.constant 0 : index
    %c0_200 = arith.constant 0 : index
    %441 = vector.load %arg38[%c0_198, %c0_199, %c0_200] : memref<2x1x32xf32, #tpu.memory_space<vmem>>, vector<1x1x32xf32>
    %442 = vector.shape_cast %441 : vector<1x1x32xf32> to vector<1x32xf32>
    %cst_201 = arith.constant dense<0.000000e+00> : vector<8x32xf32>
    %443 = tpu.matmul %430, %432, %cst_201 {dimension_numbers = #tpu.dot_dimension_numbers<[1], [0], [0], [1], [0, 0, 1, 1], [], []>} : vector<8x32xf32>, vector<32x32xf32>, vector<8x32xf32> -> vector<8x32xf32>
    %444 = vector.broadcast %434 : vector<1x32xf32> to vector<8x32xf32>
    %445 = arith.addf %443, %444 : vector<8x32xf32>
    %cst_202 = arith.constant dense<0.000000e+00> : vector<8x64xf32>
    %446 = tpu.matmul %313, %436, %cst_202 {dimension_numbers = #tpu.dot_dimension_numbers<[1], [0], [0], [1], [0, 0, 1, 1], [], []>} : vector<8x32xf32>, vector<32x64xf32>, vector<8x64xf32> -> vector<8x64xf32>
    %447 = vector.broadcast %438 : vector<1x64xf32> to vector<8x64xf32>
    %448 = arith.addf %446, %447 : vector<8x64xf32>
    %449 = vector.extract_strided_slice %448 {offsets = [0, 0], sizes = [8, 32], strides = [1, 1]} : vector<8x64xf32> to vector<8x32xf32>
    %450 = vector.extract_strided_slice %448 {offsets = [0, 32], sizes = [8, 32], strides = [1, 1]} : vector<8x64xf32> to vector<8x32xf32>
    %451 = vector.extract_strided_slice %445 {offsets = [0, 0], sizes = [8, 8], strides = [1, 1]} : vector<8x32xf32> to vector<8x8xf32>
    %452 = vector.shape_cast %451 : vector<8x8xf32> to vector<1x8x8xf32>
    %453 = vector.extract_strided_slice %445 {offsets = [0, 8], sizes = [8, 8], strides = [1, 1]} : vector<8x32xf32> to vector<8x8xf32>
    %454 = vector.shape_cast %453 : vector<8x8xf32> to vector<1x8x8xf32>
    %455 = vector.extract_strided_slice %445 {offsets = [0, 16], sizes = [8, 8], strides = [1, 1]} : vector<8x32xf32> to vector<8x8xf32>
    %456 = vector.shape_cast %455 : vector<8x8xf32> to vector<1x8x8xf32>
    %457 = vector.extract_strided_slice %445 {offsets = [0, 24], sizes = [8, 8], strides = [1, 1]} : vector<8x32xf32> to vector<8x8xf32>
    %458 = vector.shape_cast %457 : vector<8x8xf32> to vector<1x8x8xf32>
    %459 = tpu.concatenate %452, %454, %456, %458 in 0 : vector<1x8x8xf32>, vector<1x8x8xf32>, vector<1x8x8xf32>, vector<1x8x8xf32> -> vector<4x8x8xf32>
    %460 = vector.extract_strided_slice %449 {offsets = [0, 0], sizes = [8, 8], strides = [1, 1]} : vector<8x32xf32> to vector<8x8xf32>
    %461 = vector.shape_cast %460 : vector<8x8xf32> to vector<1x8x8xf32>
    %462 = vector.extract_strided_slice %449 {offsets = [0, 8], sizes = [8, 8], strides = [1, 1]} : vector<8x32xf32> to vector<8x8xf32>
    %463 = vector.shape_cast %462 : vector<8x8xf32> to vector<1x8x8xf32>
    %464 = vector.extract_strided_slice %449 {offsets = [0, 16], sizes = [8, 8], strides = [1, 1]} : vector<8x32xf32> to vector<8x8xf32>
    %465 = vector.shape_cast %464 : vector<8x8xf32> to vector<1x8x8xf32>
    %466 = vector.extract_strided_slice %449 {offsets = [0, 24], sizes = [8, 8], strides = [1, 1]} : vector<8x32xf32> to vector<8x8xf32>
    %467 = vector.shape_cast %466 : vector<8x8xf32> to vector<1x8x8xf32>
    %468 = tpu.concatenate %461, %463, %465, %467 in 0 : vector<1x8x8xf32>, vector<1x8x8xf32>, vector<1x8x8xf32>, vector<1x8x8xf32> -> vector<4x8x8xf32>
    %469 = vector.extract_strided_slice %450 {offsets = [0, 0], sizes = [8, 8], strides = [1, 1]} : vector<8x32xf32> to vector<8x8xf32>
    %470 = vector.shape_cast %469 : vector<8x8xf32> to vector<1x8x8xf32>
    %471 = vector.extract_strided_slice %450 {offsets = [0, 8], sizes = [8, 8], strides = [1, 1]} : vector<8x32xf32> to vector<8x8xf32>
    %472 = vector.shape_cast %471 : vector<8x8xf32> to vector<1x8x8xf32>
    %473 = vector.extract_strided_slice %450 {offsets = [0, 16], sizes = [8, 8], strides = [1, 1]} : vector<8x32xf32> to vector<8x8xf32>
    %474 = vector.shape_cast %473 : vector<8x8xf32> to vector<1x8x8xf32>
    %475 = vector.extract_strided_slice %450 {offsets = [0, 24], sizes = [8, 8], strides = [1, 1]} : vector<8x32xf32> to vector<8x8xf32>
    %476 = vector.shape_cast %475 : vector<8x8xf32> to vector<1x8x8xf32>
    %477 = tpu.concatenate %470, %472, %474, %476 in 0 : vector<1x8x8xf32>, vector<1x8x8xf32>, vector<1x8x8xf32>, vector<1x8x8xf32> -> vector<4x8x8xf32>
    "tpu.trace_start"() <{level = 10 : i32, message = "hqd,hkd->hqk"}> : () -> ()
    %cst_203 = arith.constant dense<0.000000e+00> : vector<4x8x8xf32>
    %478 = tpu.matmul %459, %468, %cst_203 {dimension_numbers = #tpu.dot_dimension_numbers<[2], [2], [1], [1], [0, 0, 0, 1, 1, 1], [0], [0]>} : vector<4x8x8xf32>, vector<4x8x8xf32>, vector<4x8x8xf32> -> vector<4x8x8xf32>
    "tpu.trace_stop"() : () -> ()
    %cst_204 = arith.constant 0.353553385 : f32
    %479 = vector.broadcast %cst_204 : f32 to vector<4x8x8xf32>
    %480 = arith.mulf %478, %479 : vector<4x8x8xf32>
    %cst_205 = arith.constant dense<0xFF800000> : vector<4x8xf32>
    %481 = vector.multi_reduction <maximumf>, %480, %cst_205 [2] : vector<4x8x8xf32> to vector<4x8xf32>
    %482 = vector.shape_cast %481 : vector<4x8xf32> to vector<4x8x1xf32>
    %483 = vector.broadcast %482 : vector<4x8x1xf32> to vector<4x8x8xf32>
    %484 = arith.subf %480, %483 : vector<4x8x8xf32>
    %485 = math.exp %484 : vector<4x8x8xf32>
    %cst_206 = arith.constant dense<0.000000e+00> : vector<4x8xf32>
    %486 = vector.multi_reduction <add>, %485, %cst_206 [2] : vector<4x8x8xf32> to vector<4x8xf32>
    %487 = vector.shape_cast %486 : vector<4x8xf32> to vector<4x8x1xf32>
    %488 = vector.broadcast %487 : vector<4x8x1xf32> to vector<4x8x8xf32>
    %489 = arith.divf %485, %488 : vector<4x8x8xf32>
    "tpu.trace_start"() <{level = 10 : i32, message = "hqk,hkd->hqd"}> : () -> ()
    %cst_207 = arith.constant dense<0.000000e+00> : vector<4x8x8xf32>
    %490 = tpu.matmul %489, %477, %cst_207 {dimension_numbers = #tpu.dot_dimension_numbers<[2], [1], [1], [2], [0, 0, 0, 1, 1, 2], [0], [0]>} : vector<4x8x8xf32>, vector<4x8x8xf32>, vector<4x8x8xf32> -> vector<4x8x8xf32>
    "tpu.trace_stop"() : () -> ()
    %491 = vector.extract_strided_slice %490 {offsets = [0, 0, 0], sizes = [1, 8, 8], strides = [1, 1, 1]} : vector<4x8x8xf32> to vector<1x8x8xf32>
    %492 = vector.shape_cast %491 : vector<1x8x8xf32> to vector<8x8xf32>
    %493 = vector.extract_strided_slice %490 {offsets = [1, 0, 0], sizes = [1, 8, 8], strides = [1, 1, 1]} : vector<4x8x8xf32> to vector<1x8x8xf32>
    %494 = vector.shape_cast %493 : vector<1x8x8xf32> to vector<8x8xf32>
    %495 = vector.extract_strided_slice %490 {offsets = [2, 0, 0], sizes = [1, 8, 8], strides = [1, 1, 1]} : vector<4x8x8xf32> to vector<1x8x8xf32>
    %496 = vector.shape_cast %495 : vector<1x8x8xf32> to vector<8x8xf32>
    %497 = vector.extract_strided_slice %490 {offsets = [3, 0, 0], sizes = [1, 8, 8], strides = [1, 1, 1]} : vector<4x8x8xf32> to vector<1x8x8xf32>
    %498 = vector.shape_cast %497 : vector<1x8x8xf32> to vector<8x8xf32>
    %499 = tpu.concatenate %492, %494, %496, %498 in 1 : vector<8x8xf32>, vector<8x8xf32>, vector<8x8xf32>, vector<8x8xf32> -> vector<8x32xf32>
    %cst_208 = arith.constant dense<0.000000e+00> : vector<8x32xf32>
    %500 = tpu.matmul %499, %440, %cst_208 {dimension_numbers = #tpu.dot_dimension_numbers<[1], [0], [0], [1], [0, 0, 1, 1], [], []>} : vector<8x32xf32>, vector<32x32xf32>, vector<8x32xf32> -> vector<8x32xf32>
    %501 = vector.broadcast %442 : vector<1x32xf32> to vector<8x32xf32>
    %502 = arith.addf %500, %501 : vector<8x32xf32>
    %503 = arith.addf %406, %502 : vector<8x32xf32>
    %c0_209 = arith.constant 0 : index
    %c0_210 = arith.constant 0 : index
    %c0_211 = arith.constant 0 : index
    %504 = vector.load %arg39[%c0_209, %c0_210, %c0_211] : memref<2x1x32xf32, #tpu.memory_space<vmem>>, vector<1x1x32xf32>
    %505 = vector.shape_cast %504 : vector<1x1x32xf32> to vector<1x32xf32>
    %c0_212 = arith.constant 0 : index
    %c0_213 = arith.constant 0 : index
    %c0_214 = arith.constant 0 : index
    %506 = vector.load %arg40[%c0_212, %c0_213, %c0_214] : memref<2x1x32xf32, #tpu.memory_space<vmem>>, vector<1x1x32xf32>
    %507 = vector.shape_cast %506 : vector<1x1x32xf32> to vector<1x32xf32>
    %cst_215 = arith.constant dense<0.000000e+00> : vector<8xf32>
    %508 = vector.multi_reduction <add>, %503, %cst_215 [1] : vector<8x32xf32> to vector<8xf32>
    %509 = vector.shape_cast %508 : vector<8xf32> to vector<8x1xf32>
    %cst_216 = arith.constant 3.200000e+01 : f32
    %510 = vector.broadcast %cst_216 : f32 to vector<8x1xf32>
    %511 = arith.divf %509, %510 : vector<8x1xf32>
    %512 = vector.broadcast %511 : vector<8x1xf32> to vector<8x32xf32>
    %513 = arith.subf %503, %512 : vector<8x32xf32>
    %514 = arith.mulf %513, %513 : vector<8x32xf32>
    %cst_217 = arith.constant dense<0.000000e+00> : vector<8xf32>
    %515 = vector.multi_reduction <add>, %514, %cst_217 [1] : vector<8x32xf32> to vector<8xf32>
    %516 = vector.shape_cast %515 : vector<8xf32> to vector<8x1xf32>
    %cst_218 = arith.constant 3.200000e+01 : f32
    %517 = vector.broadcast %cst_218 : f32 to vector<8x1xf32>
    %518 = arith.divf %516, %517 : vector<8x1xf32>
    %cst_219 = arith.constant 9.99999974E-6 : f32
    %519 = vector.broadcast %cst_219 : f32 to vector<8x1xf32>
    %520 = arith.addf %518, %519 : vector<8x1xf32>
    %521 = math.rsqrt %520 : vector<8x1xf32>
    %522 = vector.broadcast %521 : vector<8x1xf32> to vector<8x32xf32>
    %523 = arith.mulf %513, %522 : vector<8x32xf32>
    %524 = vector.broadcast %505 : vector<1x32xf32> to vector<8x32xf32>
    %525 = arith.mulf %523, %524 : vector<8x32xf32>
    %526 = vector.broadcast %507 : vector<1x32xf32> to vector<8x32xf32>
    %527 = arith.addf %525, %526 : vector<8x32xf32>
    %c0_220 = arith.constant 0 : index
    %c0_221 = arith.constant 0 : index
    %c0_222 = arith.constant 0 : index
    %528 = vector.load %arg41[%c0_220, %c0_221, %c0_222] : memref<2x32x64xf32, #tpu.memory_space<vmem>>, vector<1x32x64xf32>
    %529 = vector.shape_cast %528 : vector<1x32x64xf32> to vector<32x64xf32>
    %c0_223 = arith.constant 0 : index
    %c0_224 = arith.constant 0 : index
    %c0_225 = arith.constant 0 : index
    %530 = vector.load %arg42[%c0_223, %c0_224, %c0_225] : memref<2x1x64xf32, #tpu.memory_space<vmem>>, vector<1x1x64xf32>
    %531 = vector.shape_cast %530 : vector<1x1x64xf32> to vector<1x64xf32>
    %c0_226 = arith.constant 0 : index
    %c0_227 = arith.constant 0 : index
    %c0_228 = arith.constant 0 : index
    %532 = vector.load %arg43[%c0_226, %c0_227, %c0_228] : memref<2x64x32xf32, #tpu.memory_space<vmem>>, vector<1x64x32xf32>
    %533 = vector.shape_cast %532 : vector<1x64x32xf32> to vector<64x32xf32>
    %c0_229 = arith.constant 0 : index
    %c0_230 = arith.constant 0 : index
    %c0_231 = arith.constant 0 : index
    %534 = vector.load %arg44[%c0_229, %c0_230, %c0_231] : memref<2x1x32xf32, #tpu.memory_space<vmem>>, vector<1x1x32xf32>
    %535 = vector.shape_cast %534 : vector<1x1x32xf32> to vector<1x32xf32>
    %cst_232 = arith.constant dense<0.000000e+00> : vector<8x64xf32>
    %536 = tpu.matmul %527, %529, %cst_232 {dimension_numbers = #tpu.dot_dimension_numbers<[1], [0], [0], [1], [0, 0, 1, 1], [], []>} : vector<8x32xf32>, vector<32x64xf32>, vector<8x64xf32> -> vector<8x64xf32>
    %537 = vector.broadcast %531 : vector<1x64xf32> to vector<8x64xf32>
    %538 = arith.addf %536, %537 : vector<8x64xf32>
    %cst_233 = arith.constant 0.000000e+00 : f32
    %539 = vector.broadcast %cst_233 : f32 to vector<8x64xf32>
    %540 = arith.maximumf %538, %539 : vector<8x64xf32>
    %cst_234 = arith.constant dense<0.000000e+00> : vector<8x32xf32>
    %541 = tpu.matmul %540, %533, %cst_234 {dimension_numbers = #tpu.dot_dimension_numbers<[1], [0], [0], [1], [0, 0, 1, 1], [], []>} : vector<8x64xf32>, vector<64x32xf32>, vector<8x32xf32> -> vector<8x32xf32>
    %542 = vector.broadcast %535 : vector<1x32xf32> to vector<8x32xf32>
    %543 = arith.addf %541, %542 : vector<8x32xf32>
    %544 = arith.addf %503, %543 : vector<8x32xf32>
    %c1_235 = arith.constant 1 : index
    %c0_236 = arith.constant 0 : index
    %c0_237 = arith.constant 0 : index
    %545 = vector.load %arg25[%c1_235, %c0_236, %c0_237] : memref<2x1x32xf32, #tpu.memory_space<vmem>>, vector<1x1x32xf32>
    %546 = vector.shape_cast %545 : vector<1x1x32xf32> to vector<1x32xf32>
    %c1_238 = arith.constant 1 : index
    %c0_239 = arith.constant 0 : index
    %c0_240 = arith.constant 0 : index
    %547 = vector.load %arg26[%c1_238, %c0_239, %c0_240] : memref<2x1x32xf32, #tpu.memory_space<vmem>>, vector<1x1x32xf32>
    %548 = vector.shape_cast %547 : vector<1x1x32xf32> to vector<1x32xf32>
    %cst_241 = arith.constant dense<0.000000e+00> : vector<8xf32>
    %549 = vector.multi_reduction <add>, %544, %cst_241 [1] : vector<8x32xf32> to vector<8xf32>
    %550 = vector.shape_cast %549 : vector<8xf32> to vector<8x1xf32>
    %cst_242 = arith.constant 3.200000e+01 : f32
    %551 = vector.broadcast %cst_242 : f32 to vector<8x1xf32>
    %552 = arith.divf %550, %551 : vector<8x1xf32>
    %553 = vector.broadcast %552 : vector<8x1xf32> to vector<8x32xf32>
    %554 = arith.subf %544, %553 : vector<8x32xf32>
    %555 = arith.mulf %554, %554 : vector<8x32xf32>
    %cst_243 = arith.constant dense<0.000000e+00> : vector<8xf32>
    %556 = vector.multi_reduction <add>, %555, %cst_243 [1] : vector<8x32xf32> to vector<8xf32>
    %557 = vector.shape_cast %556 : vector<8xf32> to vector<8x1xf32>
    %cst_244 = arith.constant 3.200000e+01 : f32
    %558 = vector.broadcast %cst_244 : f32 to vector<8x1xf32>
    %559 = arith.divf %557, %558 : vector<8x1xf32>
    %cst_245 = arith.constant 9.99999974E-6 : f32
    %560 = vector.broadcast %cst_245 : f32 to vector<8x1xf32>
    %561 = arith.addf %559, %560 : vector<8x1xf32>
    %562 = math.rsqrt %561 : vector<8x1xf32>
    %563 = vector.broadcast %562 : vector<8x1xf32> to vector<8x32xf32>
    %564 = arith.mulf %554, %563 : vector<8x32xf32>
    %565 = vector.broadcast %546 : vector<1x32xf32> to vector<8x32xf32>
    %566 = arith.mulf %564, %565 : vector<8x32xf32>
    %567 = vector.broadcast %548 : vector<1x32xf32> to vector<8x32xf32>
    %568 = arith.addf %566, %567 : vector<8x32xf32>
    %c1_246 = arith.constant 1 : index
    %c0_247 = arith.constant 0 : index
    %c0_248 = arith.constant 0 : index
    %569 = vector.load %arg27[%c1_246, %c0_247, %c0_248] : memref<2x32x96xf32, #tpu.memory_space<vmem>>, vector<1x32x96xf32>
    %570 = vector.shape_cast %569 : vector<1x32x96xf32> to vector<32x96xf32>
    %c1_249 = arith.constant 1 : index
    %c0_250 = arith.constant 0 : index
    %c0_251 = arith.constant 0 : index
    %571 = vector.load %arg28[%c1_249, %c0_250, %c0_251] : memref<2x1x96xf32, #tpu.memory_space<vmem>>, vector<1x1x96xf32>
    %572 = vector.shape_cast %571 : vector<1x1x96xf32> to vector<1x96xf32>
    %c1_252 = arith.constant 1 : index
    %c0_253 = arith.constant 0 : index
    %c0_254 = arith.constant 0 : index
    %573 = vector.load %arg29[%c1_252, %c0_253, %c0_254] : memref<2x32x32xf32, #tpu.memory_space<vmem>>, vector<1x32x32xf32>
    %574 = vector.shape_cast %573 : vector<1x32x32xf32> to vector<32x32xf32>
    %c1_255 = arith.constant 1 : index
    %c0_256 = arith.constant 0 : index
    %c0_257 = arith.constant 0 : index
    %575 = vector.load %arg30[%c1_255, %c0_256, %c0_257] : memref<2x1x32xf32, #tpu.memory_space<vmem>>, vector<1x1x32xf32>
    %576 = vector.shape_cast %575 : vector<1x1x32xf32> to vector<1x32xf32>
    %cst_258 = arith.constant dense<0.000000e+00> : vector<8x96xf32>
    %577 = tpu.matmul %568, %570, %cst_258 {dimension_numbers = #tpu.dot_dimension_numbers<[1], [0], [0], [1], [0, 0, 1, 1], [], []>} : vector<8x32xf32>, vector<32x96xf32>, vector<8x96xf32> -> vector<8x96xf32>
    %578 = vector.broadcast %572 : vector<1x96xf32> to vector<8x96xf32>
    %579 = arith.addf %577, %578 : vector<8x96xf32>
    %580 = vector.extract_strided_slice %579 {offsets = [0, 0], sizes = [8, 32], strides = [1, 1]} : vector<8x96xf32> to vector<8x32xf32>
    %581 = vector.extract_strided_slice %579 {offsets = [0, 32], sizes = [8, 32], strides = [1, 1]} : vector<8x96xf32> to vector<8x32xf32>
    %582 = vector.extract_strided_slice %579 {offsets = [0, 64], sizes = [8, 32], strides = [1, 1]} : vector<8x96xf32> to vector<8x32xf32>
    %583 = vector.extract_strided_slice %580 {offsets = [0, 0], sizes = [8, 8], strides = [1, 1]} : vector<8x32xf32> to vector<8x8xf32>
    %584 = vector.shape_cast %583 : vector<8x8xf32> to vector<1x8x8xf32>
    %585 = vector.extract_strided_slice %580 {offsets = [0, 8], sizes = [8, 8], strides = [1, 1]} : vector<8x32xf32> to vector<8x8xf32>
    %586 = vector.shape_cast %585 : vector<8x8xf32> to vector<1x8x8xf32>
    %587 = vector.extract_strided_slice %580 {offsets = [0, 16], sizes = [8, 8], strides = [1, 1]} : vector<8x32xf32> to vector<8x8xf32>
    %588 = vector.shape_cast %587 : vector<8x8xf32> to vector<1x8x8xf32>
    %589 = vector.extract_strided_slice %580 {offsets = [0, 24], sizes = [8, 8], strides = [1, 1]} : vector<8x32xf32> to vector<8x8xf32>
    %590 = vector.shape_cast %589 : vector<8x8xf32> to vector<1x8x8xf32>
    %591 = tpu.concatenate %584, %586, %588, %590 in 0 : vector<1x8x8xf32>, vector<1x8x8xf32>, vector<1x8x8xf32>, vector<1x8x8xf32> -> vector<4x8x8xf32>
    %592 = vector.extract_strided_slice %581 {offsets = [0, 0], sizes = [8, 8], strides = [1, 1]} : vector<8x32xf32> to vector<8x8xf32>
    %593 = vector.shape_cast %592 : vector<8x8xf32> to vector<1x8x8xf32>
    %594 = vector.extract_strided_slice %581 {offsets = [0, 8], sizes = [8, 8], strides = [1, 1]} : vector<8x32xf32> to vector<8x8xf32>
    %595 = vector.shape_cast %594 : vector<8x8xf32> to vector<1x8x8xf32>
    %596 = vector.extract_strided_slice %581 {offsets = [0, 16], sizes = [8, 8], strides = [1, 1]} : vector<8x32xf32> to vector<8x8xf32>
    %597 = vector.shape_cast %596 : vector<8x8xf32> to vector<1x8x8xf32>
    %598 = vector.extract_strided_slice %581 {offsets = [0, 24], sizes = [8, 8], strides = [1, 1]} : vector<8x32xf32> to vector<8x8xf32>
    %599 = vector.shape_cast %598 : vector<8x8xf32> to vector<1x8x8xf32>
    %600 = tpu.concatenate %593, %595, %597, %599 in 0 : vector<1x8x8xf32>, vector<1x8x8xf32>, vector<1x8x8xf32>, vector<1x8x8xf32> -> vector<4x8x8xf32>
    %601 = vector.extract_strided_slice %582 {offsets = [0, 0], sizes = [8, 8], strides = [1, 1]} : vector<8x32xf32> to vector<8x8xf32>
    %602 = vector.shape_cast %601 : vector<8x8xf32> to vector<1x8x8xf32>
    %603 = vector.extract_strided_slice %582 {offsets = [0, 8], sizes = [8, 8], strides = [1, 1]} : vector<8x32xf32> to vector<8x8xf32>
    %604 = vector.shape_cast %603 : vector<8x8xf32> to vector<1x8x8xf32>
    %605 = vector.extract_strided_slice %582 {offsets = [0, 16], sizes = [8, 8], strides = [1, 1]} : vector<8x32xf32> to vector<8x8xf32>
    %606 = vector.shape_cast %605 : vector<8x8xf32> to vector<1x8x8xf32>
    %607 = vector.extract_strided_slice %582 {offsets = [0, 24], sizes = [8, 8], strides = [1, 1]} : vector<8x32xf32> to vector<8x8xf32>
    %608 = vector.shape_cast %607 : vector<8x8xf32> to vector<1x8x8xf32>
    %609 = tpu.concatenate %602, %604, %606, %608 in 0 : vector<1x8x8xf32>, vector<1x8x8xf32>, vector<1x8x8xf32>, vector<1x8x8xf32> -> vector<4x8x8xf32>
    "tpu.trace_start"() <{level = 10 : i32, message = "hqd,hkd->hqk"}> : () -> ()
    %cst_259 = arith.constant dense<0.000000e+00> : vector<4x8x8xf32>
    %610 = tpu.matmul %591, %600, %cst_259 {dimension_numbers = #tpu.dot_dimension_numbers<[2], [2], [1], [1], [0, 0, 0, 1, 1, 1], [0], [0]>} : vector<4x8x8xf32>, vector<4x8x8xf32>, vector<4x8x8xf32> -> vector<4x8x8xf32>
    "tpu.trace_stop"() : () -> ()
    %cst_260 = arith.constant 0.353553385 : f32
    %611 = vector.broadcast %cst_260 : f32 to vector<4x8x8xf32>
    %612 = arith.mulf %610, %611 : vector<4x8x8xf32>
    %cst_261 = arith.constant dense<0xFF800000> : vector<4x8xf32>
    %613 = vector.multi_reduction <maximumf>, %612, %cst_261 [2] : vector<4x8x8xf32> to vector<4x8xf32>
    %614 = vector.shape_cast %613 : vector<4x8xf32> to vector<4x8x1xf32>
    %615 = vector.broadcast %614 : vector<4x8x1xf32> to vector<4x8x8xf32>
    %616 = arith.subf %612, %615 : vector<4x8x8xf32>
    %617 = math.exp %616 : vector<4x8x8xf32>
    %cst_262 = arith.constant dense<0.000000e+00> : vector<4x8xf32>
    %618 = vector.multi_reduction <add>, %617, %cst_262 [2] : vector<4x8x8xf32> to vector<4x8xf32>
    %619 = vector.shape_cast %618 : vector<4x8xf32> to vector<4x8x1xf32>
    %620 = vector.broadcast %619 : vector<4x8x1xf32> to vector<4x8x8xf32>
    %621 = arith.divf %617, %620 : vector<4x8x8xf32>
    "tpu.trace_start"() <{level = 10 : i32, message = "hqk,hkd->hqd"}> : () -> ()
    %cst_263 = arith.constant dense<0.000000e+00> : vector<4x8x8xf32>
    %622 = tpu.matmul %621, %609, %cst_263 {dimension_numbers = #tpu.dot_dimension_numbers<[2], [1], [1], [2], [0, 0, 0, 1, 1, 2], [0], [0]>} : vector<4x8x8xf32>, vector<4x8x8xf32>, vector<4x8x8xf32> -> vector<4x8x8xf32>
    "tpu.trace_stop"() : () -> ()
    %623 = vector.extract_strided_slice %622 {offsets = [0, 0, 0], sizes = [1, 8, 8], strides = [1, 1, 1]} : vector<4x8x8xf32> to vector<1x8x8xf32>
    %624 = vector.shape_cast %623 : vector<1x8x8xf32> to vector<8x8xf32>
    %625 = vector.extract_strided_slice %622 {offsets = [1, 0, 0], sizes = [1, 8, 8], strides = [1, 1, 1]} : vector<4x8x8xf32> to vector<1x8x8xf32>
    %626 = vector.shape_cast %625 : vector<1x8x8xf32> to vector<8x8xf32>
    %627 = vector.extract_strided_slice %622 {offsets = [2, 0, 0], sizes = [1, 8, 8], strides = [1, 1, 1]} : vector<4x8x8xf32> to vector<1x8x8xf32>
    %628 = vector.shape_cast %627 : vector<1x8x8xf32> to vector<8x8xf32>
    %629 = vector.extract_strided_slice %622 {offsets = [3, 0, 0], sizes = [1, 8, 8], strides = [1, 1, 1]} : vector<4x8x8xf32> to vector<1x8x8xf32>
    %630 = vector.shape_cast %629 : vector<1x8x8xf32> to vector<8x8xf32>
    %631 = tpu.concatenate %624, %626, %628, %630 in 1 : vector<8x8xf32>, vector<8x8xf32>, vector<8x8xf32>, vector<8x8xf32> -> vector<8x32xf32>
    %cst_264 = arith.constant dense<0.000000e+00> : vector<8x32xf32>
    %632 = tpu.matmul %631, %574, %cst_264 {dimension_numbers = #tpu.dot_dimension_numbers<[1], [0], [0], [1], [0, 0, 1, 1], [], []>} : vector<8x32xf32>, vector<32x32xf32>, vector<8x32xf32> -> vector<8x32xf32>
    %633 = vector.broadcast %576 : vector<1x32xf32> to vector<8x32xf32>
    %634 = arith.addf %632, %633 : vector<8x32xf32>
    %635 = arith.addf %544, %634 : vector<8x32xf32>
    %c1_265 = arith.constant 1 : index
    %c0_266 = arith.constant 0 : index
    %c0_267 = arith.constant 0 : index
    %636 = vector.load %arg31[%c1_265, %c0_266, %c0_267] : memref<2x1x32xf32, #tpu.memory_space<vmem>>, vector<1x1x32xf32>
    %637 = vector.shape_cast %636 : vector<1x1x32xf32> to vector<1x32xf32>
    %c1_268 = arith.constant 1 : index
    %c0_269 = arith.constant 0 : index
    %c0_270 = arith.constant 0 : index
    %638 = vector.load %arg32[%c1_268, %c0_269, %c0_270] : memref<2x1x32xf32, #tpu.memory_space<vmem>>, vector<1x1x32xf32>
    %639 = vector.shape_cast %638 : vector<1x1x32xf32> to vector<1x32xf32>
    %cst_271 = arith.constant dense<0.000000e+00> : vector<8xf32>
    %640 = vector.multi_reduction <add>, %635, %cst_271 [1] : vector<8x32xf32> to vector<8xf32>
    %641 = vector.shape_cast %640 : vector<8xf32> to vector<8x1xf32>
    %cst_272 = arith.constant 3.200000e+01 : f32
    %642 = vector.broadcast %cst_272 : f32 to vector<8x1xf32>
    %643 = arith.divf %641, %642 : vector<8x1xf32>
    %644 = vector.broadcast %643 : vector<8x1xf32> to vector<8x32xf32>
    %645 = arith.subf %635, %644 : vector<8x32xf32>
    %646 = arith.mulf %645, %645 : vector<8x32xf32>
    %cst_273 = arith.constant dense<0.000000e+00> : vector<8xf32>
    %647 = vector.multi_reduction <add>, %646, %cst_273 [1] : vector<8x32xf32> to vector<8xf32>
    %648 = vector.shape_cast %647 : vector<8xf32> to vector<8x1xf32>
    %cst_274 = arith.constant 3.200000e+01 : f32
    %649 = vector.broadcast %cst_274 : f32 to vector<8x1xf32>
    %650 = arith.divf %648, %649 : vector<8x1xf32>
    %cst_275 = arith.constant 9.99999974E-6 : f32
    %651 = vector.broadcast %cst_275 : f32 to vector<8x1xf32>
    %652 = arith.addf %650, %651 : vector<8x1xf32>
    %653 = math.rsqrt %652 : vector<8x1xf32>
    %654 = vector.broadcast %653 : vector<8x1xf32> to vector<8x32xf32>
    %655 = arith.mulf %645, %654 : vector<8x32xf32>
    %656 = vector.broadcast %637 : vector<1x32xf32> to vector<8x32xf32>
    %657 = arith.mulf %655, %656 : vector<8x32xf32>
    %658 = vector.broadcast %639 : vector<1x32xf32> to vector<8x32xf32>
    %659 = arith.addf %657, %658 : vector<8x32xf32>
    %c1_276 = arith.constant 1 : index
    %c0_277 = arith.constant 0 : index
    %c0_278 = arith.constant 0 : index
    %660 = vector.load %arg33[%c1_276, %c0_277, %c0_278] : memref<2x32x32xf32, #tpu.memory_space<vmem>>, vector<1x32x32xf32>
    %661 = vector.shape_cast %660 : vector<1x32x32xf32> to vector<32x32xf32>
    %c1_279 = arith.constant 1 : index
    %c0_280 = arith.constant 0 : index
    %c0_281 = arith.constant 0 : index
    %662 = vector.load %arg34[%c1_279, %c0_280, %c0_281] : memref<2x1x32xf32, #tpu.memory_space<vmem>>, vector<1x1x32xf32>
    %663 = vector.shape_cast %662 : vector<1x1x32xf32> to vector<1x32xf32>
    %c1_282 = arith.constant 1 : index
    %c0_283 = arith.constant 0 : index
    %c0_284 = arith.constant 0 : index
    %664 = vector.load %arg35[%c1_282, %c0_283, %c0_284] : memref<2x32x64xf32, #tpu.memory_space<vmem>>, vector<1x32x64xf32>
    %665 = vector.shape_cast %664 : vector<1x32x64xf32> to vector<32x64xf32>
    %c1_285 = arith.constant 1 : index
    %c0_286 = arith.constant 0 : index
    %c0_287 = arith.constant 0 : index
    %666 = vector.load %arg36[%c1_285, %c0_286, %c0_287] : memref<2x1x64xf32, #tpu.memory_space<vmem>>, vector<1x1x64xf32>
    %667 = vector.shape_cast %666 : vector<1x1x64xf32> to vector<1x64xf32>
    %c1_288 = arith.constant 1 : index
    %c0_289 = arith.constant 0 : index
    %c0_290 = arith.constant 0 : index
    %668 = vector.load %arg37[%c1_288, %c0_289, %c0_290] : memref<2x32x32xf32, #tpu.memory_space<vmem>>, vector<1x32x32xf32>
    %669 = vector.shape_cast %668 : vector<1x32x32xf32> to vector<32x32xf32>
    %c1_291 = arith.constant 1 : index
    %c0_292 = arith.constant 0 : index
    %c0_293 = arith.constant 0 : index
    %670 = vector.load %arg38[%c1_291, %c0_292, %c0_293] : memref<2x1x32xf32, #tpu.memory_space<vmem>>, vector<1x1x32xf32>
    %671 = vector.shape_cast %670 : vector<1x1x32xf32> to vector<1x32xf32>
    %cst_294 = arith.constant dense<0.000000e+00> : vector<8x32xf32>
    %672 = tpu.matmul %659, %661, %cst_294 {dimension_numbers = #tpu.dot_dimension_numbers<[1], [0], [0], [1], [0, 0, 1, 1], [], []>} : vector<8x32xf32>, vector<32x32xf32>, vector<8x32xf32> -> vector<8x32xf32>
    %673 = vector.broadcast %663 : vector<1x32xf32> to vector<8x32xf32>
    %674 = arith.addf %672, %673 : vector<8x32xf32>
    %cst_295 = arith.constant dense<0.000000e+00> : vector<8x64xf32>
    %675 = tpu.matmul %313, %665, %cst_295 {dimension_numbers = #tpu.dot_dimension_numbers<[1], [0], [0], [1], [0, 0, 1, 1], [], []>} : vector<8x32xf32>, vector<32x64xf32>, vector<8x64xf32> -> vector<8x64xf32>
    %676 = vector.broadcast %667 : vector<1x64xf32> to vector<8x64xf32>
    %677 = arith.addf %675, %676 : vector<8x64xf32>
    %678 = vector.extract_strided_slice %677 {offsets = [0, 0], sizes = [8, 32], strides = [1, 1]} : vector<8x64xf32> to vector<8x32xf32>
    %679 = vector.extract_strided_slice %677 {offsets = [0, 32], sizes = [8, 32], strides = [1, 1]} : vector<8x64xf32> to vector<8x32xf32>
    %680 = vector.extract_strided_slice %674 {offsets = [0, 0], sizes = [8, 8], strides = [1, 1]} : vector<8x32xf32> to vector<8x8xf32>
    %681 = vector.shape_cast %680 : vector<8x8xf32> to vector<1x8x8xf32>
    %682 = vector.extract_strided_slice %674 {offsets = [0, 8], sizes = [8, 8], strides = [1, 1]} : vector<8x32xf32> to vector<8x8xf32>
    %683 = vector.shape_cast %682 : vector<8x8xf32> to vector<1x8x8xf32>
    %684 = vector.extract_strided_slice %674 {offsets = [0, 16], sizes = [8, 8], strides = [1, 1]} : vector<8x32xf32> to vector<8x8xf32>
    %685 = vector.shape_cast %684 : vector<8x8xf32> to vector<1x8x8xf32>
    %686 = vector.extract_strided_slice %674 {offsets = [0, 24], sizes = [8, 8], strides = [1, 1]} : vector<8x32xf32> to vector<8x8xf32>
    %687 = vector.shape_cast %686 : vector<8x8xf32> to vector<1x8x8xf32>
    %688 = tpu.concatenate %681, %683, %685, %687 in 0 : vector<1x8x8xf32>, vector<1x8x8xf32>, vector<1x8x8xf32>, vector<1x8x8xf32> -> vector<4x8x8xf32>
    %689 = vector.extract_strided_slice %678 {offsets = [0, 0], sizes = [8, 8], strides = [1, 1]} : vector<8x32xf32> to vector<8x8xf32>
    %690 = vector.shape_cast %689 : vector<8x8xf32> to vector<1x8x8xf32>
    %691 = vector.extract_strided_slice %678 {offsets = [0, 8], sizes = [8, 8], strides = [1, 1]} : vector<8x32xf32> to vector<8x8xf32>
    %692 = vector.shape_cast %691 : vector<8x8xf32> to vector<1x8x8xf32>
    %693 = vector.extract_strided_slice %678 {offsets = [0, 16], sizes = [8, 8], strides = [1, 1]} : vector<8x32xf32> to vector<8x8xf32>
    %694 = vector.shape_cast %693 : vector<8x8xf32> to vector<1x8x8xf32>
    %695 = vector.extract_strided_slice %678 {offsets = [0, 24], sizes = [8, 8], strides = [1, 1]} : vector<8x32xf32> to vector<8x8xf32>
    %696 = vector.shape_cast %695 : vector<8x8xf32> to vector<1x8x8xf32>
    %697 = tpu.concatenate %690, %692, %694, %696 in 0 : vector<1x8x8xf32>, vector<1x8x8xf32>, vector<1x8x8xf32>, vector<1x8x8xf32> -> vector<4x8x8xf32>
    %698 = vector.extract_strided_slice %679 {offsets = [0, 0], sizes = [8, 8], strides = [1, 1]} : vector<8x32xf32> to vector<8x8xf32>
    %699 = vector.shape_cast %698 : vector<8x8xf32> to vector<1x8x8xf32>
    %700 = vector.extract_strided_slice %679 {offsets = [0, 8], sizes = [8, 8], strides = [1, 1]} : vector<8x32xf32> to vector<8x8xf32>
    %701 = vector.shape_cast %700 : vector<8x8xf32> to vector<1x8x8xf32>
    %702 = vector.extract_strided_slice %679 {offsets = [0, 16], sizes = [8, 8], strides = [1, 1]} : vector<8x32xf32> to vector<8x8xf32>
    %703 = vector.shape_cast %702 : vector<8x8xf32> to vector<1x8x8xf32>
    %704 = vector.extract_strided_slice %679 {offsets = [0, 24], sizes = [8, 8], strides = [1, 1]} : vector<8x32xf32> to vector<8x8xf32>
    %705 = vector.shape_cast %704 : vector<8x8xf32> to vector<1x8x8xf32>
    %706 = tpu.concatenate %699, %701, %703, %705 in 0 : vector<1x8x8xf32>, vector<1x8x8xf32>, vector<1x8x8xf32>, vector<1x8x8xf32> -> vector<4x8x8xf32>
    "tpu.trace_start"() <{level = 10 : i32, message = "hqd,hkd->hqk"}> : () -> ()
    %cst_296 = arith.constant dense<0.000000e+00> : vector<4x8x8xf32>
    %707 = tpu.matmul %688, %697, %cst_296 {dimension_numbers = #tpu.dot_dimension_numbers<[2], [2], [1], [1], [0, 0, 0, 1, 1, 1], [0], [0]>} : vector<4x8x8xf32>, vector<4x8x8xf32>, vector<4x8x8xf32> -> vector<4x8x8xf32>
    "tpu.trace_stop"() : () -> ()
    %cst_297 = arith.constant 0.353553385 : f32
    %708 = vector.broadcast %cst_297 : f32 to vector<4x8x8xf32>
    %709 = arith.mulf %707, %708 : vector<4x8x8xf32>
    %cst_298 = arith.constant dense<0xFF800000> : vector<4x8xf32>
    %710 = vector.multi_reduction <maximumf>, %709, %cst_298 [2] : vector<4x8x8xf32> to vector<4x8xf32>
    %711 = vector.shape_cast %710 : vector<4x8xf32> to vector<4x8x1xf32>
    %712 = vector.broadcast %711 : vector<4x8x1xf32> to vector<4x8x8xf32>
    %713 = arith.subf %709, %712 : vector<4x8x8xf32>
    %714 = math.exp %713 : vector<4x8x8xf32>
    %cst_299 = arith.constant dense<0.000000e+00> : vector<4x8xf32>
    %715 = vector.multi_reduction <add>, %714, %cst_299 [2] : vector<4x8x8xf32> to vector<4x8xf32>
    %716 = vector.shape_cast %715 : vector<4x8xf32> to vector<4x8x1xf32>
    %717 = vector.broadcast %716 : vector<4x8x1xf32> to vector<4x8x8xf32>
    %718 = arith.divf %714, %717 : vector<4x8x8xf32>
    "tpu.trace_start"() <{level = 10 : i32, message = "hqk,hkd->hqd"}> : () -> ()
    %cst_300 = arith.constant dense<0.000000e+00> : vector<4x8x8xf32>
    %719 = tpu.matmul %718, %706, %cst_300 {dimension_numbers = #tpu.dot_dimension_numbers<[2], [1], [1], [2], [0, 0, 0, 1, 1, 2], [0], [0]>} : vector<4x8x8xf32>, vector<4x8x8xf32>, vector<4x8x8xf32> -> vector<4x8x8xf32>
    "tpu.trace_stop"() : () -> ()
    %720 = vector.extract_strided_slice %719 {offsets = [0, 0, 0], sizes = [1, 8, 8], strides = [1, 1, 1]} : vector<4x8x8xf32> to vector<1x8x8xf32>
    %721 = vector.shape_cast %720 : vector<1x8x8xf32> to vector<8x8xf32>
    %722 = vector.extract_strided_slice %719 {offsets = [1, 0, 0], sizes = [1, 8, 8], strides = [1, 1, 1]} : vector<4x8x8xf32> to vector<1x8x8xf32>
    %723 = vector.shape_cast %722 : vector<1x8x8xf32> to vector<8x8xf32>
    %724 = vector.extract_strided_slice %719 {offsets = [2, 0, 0], sizes = [1, 8, 8], strides = [1, 1, 1]} : vector<4x8x8xf32> to vector<1x8x8xf32>
    %725 = vector.shape_cast %724 : vector<1x8x8xf32> to vector<8x8xf32>
    %726 = vector.extract_strided_slice %719 {offsets = [3, 0, 0], sizes = [1, 8, 8], strides = [1, 1, 1]} : vector<4x8x8xf32> to vector<1x8x8xf32>
    %727 = vector.shape_cast %726 : vector<1x8x8xf32> to vector<8x8xf32>
    %728 = tpu.concatenate %721, %723, %725, %727 in 1 : vector<8x8xf32>, vector<8x8xf32>, vector<8x8xf32>, vector<8x8xf32> -> vector<8x32xf32>
    %cst_301 = arith.constant dense<0.000000e+00> : vector<8x32xf32>
    %729 = tpu.matmul %728, %669, %cst_301 {dimension_numbers = #tpu.dot_dimension_numbers<[1], [0], [0], [1], [0, 0, 1, 1], [], []>} : vector<8x32xf32>, vector<32x32xf32>, vector<8x32xf32> -> vector<8x32xf32>
    %730 = vector.broadcast %671 : vector<1x32xf32> to vector<8x32xf32>
    %731 = arith.addf %729, %730 : vector<8x32xf32>
    %732 = arith.addf %635, %731 : vector<8x32xf32>
    %c1_302 = arith.constant 1 : index
    %c0_303 = arith.constant 0 : index
    %c0_304 = arith.constant 0 : index
    %733 = vector.load %arg39[%c1_302, %c0_303, %c0_304] : memref<2x1x32xf32, #tpu.memory_space<vmem>>, vector<1x1x32xf32>
    %734 = vector.shape_cast %733 : vector<1x1x32xf32> to vector<1x32xf32>
    %c1_305 = arith.constant 1 : index
    %c0_306 = arith.constant 0 : index
    %c0_307 = arith.constant 0 : index
    %735 = vector.load %arg40[%c1_305, %c0_306, %c0_307] : memref<2x1x32xf32, #tpu.memory_space<vmem>>, vector<1x1x32xf32>
    %736 = vector.shape_cast %735 : vector<1x1x32xf32> to vector<1x32xf32>
    %cst_308 = arith.constant dense<0.000000e+00> : vector<8xf32>
    %737 = vector.multi_reduction <add>, %732, %cst_308 [1] : vector<8x32xf32> to vector<8xf32>
    %738 = vector.shape_cast %737 : vector<8xf32> to vector<8x1xf32>
    %cst_309 = arith.constant 3.200000e+01 : f32
    %739 = vector.broadcast %cst_309 : f32 to vector<8x1xf32>
    %740 = arith.divf %738, %739 : vector<8x1xf32>
    %741 = vector.broadcast %740 : vector<8x1xf32> to vector<8x32xf32>
    %742 = arith.subf %732, %741 : vector<8x32xf32>
    %743 = arith.mulf %742, %742 : vector<8x32xf32>
    %cst_310 = arith.constant dense<0.000000e+00> : vector<8xf32>
    %744 = vector.multi_reduction <add>, %743, %cst_310 [1] : vector<8x32xf32> to vector<8xf32>
    %745 = vector.shape_cast %744 : vector<8xf32> to vector<8x1xf32>
    %cst_311 = arith.constant 3.200000e+01 : f32
    %746 = vector.broadcast %cst_311 : f32 to vector<8x1xf32>
    %747 = arith.divf %745, %746 : vector<8x1xf32>
    %cst_312 = arith.constant 9.99999974E-6 : f32
    %748 = vector.broadcast %cst_312 : f32 to vector<8x1xf32>
    %749 = arith.addf %747, %748 : vector<8x1xf32>
    %750 = math.rsqrt %749 : vector<8x1xf32>
    %751 = vector.broadcast %750 : vector<8x1xf32> to vector<8x32xf32>
    %752 = arith.mulf %742, %751 : vector<8x32xf32>
    %753 = vector.broadcast %734 : vector<1x32xf32> to vector<8x32xf32>
    %754 = arith.mulf %752, %753 : vector<8x32xf32>
    %755 = vector.broadcast %736 : vector<1x32xf32> to vector<8x32xf32>
    %756 = arith.addf %754, %755 : vector<8x32xf32>
    %c1_313 = arith.constant 1 : index
    %c0_314 = arith.constant 0 : index
    %c0_315 = arith.constant 0 : index
    %757 = vector.load %arg41[%c1_313, %c0_314, %c0_315] : memref<2x32x64xf32, #tpu.memory_space<vmem>>, vector<1x32x64xf32>
    %758 = vector.shape_cast %757 : vector<1x32x64xf32> to vector<32x64xf32>
    %c1_316 = arith.constant 1 : index
    %c0_317 = arith.constant 0 : index
    %c0_318 = arith.constant 0 : index
    %759 = vector.load %arg42[%c1_316, %c0_317, %c0_318] : memref<2x1x64xf32, #tpu.memory_space<vmem>>, vector<1x1x64xf32>
    %760 = vector.shape_cast %759 : vector<1x1x64xf32> to vector<1x64xf32>
    %c1_319 = arith.constant 1 : index
    %c0_320 = arith.constant 0 : index
    %c0_321 = arith.constant 0 : index
    %761 = vector.load %arg43[%c1_319, %c0_320, %c0_321] : memref<2x64x32xf32, #tpu.memory_space<vmem>>, vector<1x64x32xf32>
    %762 = vector.shape_cast %761 : vector<1x64x32xf32> to vector<64x32xf32>
    %c1_322 = arith.constant 1 : index
    %c0_323 = arith.constant 0 : index
    %c0_324 = arith.constant 0 : index
    %763 = vector.load %arg44[%c1_322, %c0_323, %c0_324] : memref<2x1x32xf32, #tpu.memory_space<vmem>>, vector<1x1x32xf32>
    %764 = vector.shape_cast %763 : vector<1x1x32xf32> to vector<1x32xf32>
    %cst_325 = arith.constant dense<0.000000e+00> : vector<8x64xf32>
    %765 = tpu.matmul %756, %758, %cst_325 {dimension_numbers = #tpu.dot_dimension_numbers<[1], [0], [0], [1], [0, 0, 1, 1], [], []>} : vector<8x32xf32>, vector<32x64xf32>, vector<8x64xf32> -> vector<8x64xf32>
    %766 = vector.broadcast %760 : vector<1x64xf32> to vector<8x64xf32>
    %767 = arith.addf %765, %766 : vector<8x64xf32>
    %cst_326 = arith.constant 0.000000e+00 : f32
    %768 = vector.broadcast %cst_326 : f32 to vector<8x64xf32>
    %769 = arith.maximumf %767, %768 : vector<8x64xf32>
    %cst_327 = arith.constant dense<0.000000e+00> : vector<8x32xf32>
    %770 = tpu.matmul %769, %762, %cst_327 {dimension_numbers = #tpu.dot_dimension_numbers<[1], [0], [0], [1], [0, 0, 1, 1], [], []>} : vector<8x64xf32>, vector<64x32xf32>, vector<8x32xf32> -> vector<8x32xf32>
    %771 = vector.broadcast %764 : vector<1x32xf32> to vector<8x32xf32>
    %772 = arith.addf %770, %771 : vector<8x32xf32>
    %773 = arith.addf %732, %772 : vector<8x32xf32>
    %c0_328 = arith.constant 0 : index
    %c0_329 = arith.constant 0 : index
    %774 = vector.load %arg45[%c0_328, %c0_329] : memref<32x128xf32, #tpu.memory_space<vmem>>, vector<32x128xf32>
    %cst_330 = arith.constant dense<0.000000e+00> : vector<8x128xf32>
    %775 = tpu.matmul %773, %774, %cst_330 {dimension_numbers = #tpu.dot_dimension_numbers<[1], [0], [0], [1], [0, 0, 1, 1], [], []>} : vector<8x32xf32>, vector<32x128xf32>, vector<8x128xf32> -> vector<8x128xf32>
    %c0_331 = arith.constant 0 : index
    %c0_332 = arith.constant 0 : index
    %776 = vector.load %arg46[%c0_331, %c0_332] : memref<1x128xf32, #tpu.memory_space<vmem>>, vector<1x128xf32>
    %777 = vector.broadcast %776 : vector<1x128xf32> to vector<8x128xf32>
    %778 = arith.addf %775, %777 : vector<8x128xf32>
    %c0_333 = arith.constant 0 : index
    %c0_334 = arith.constant 0 : index
    %779 = vector.load %arg47[%c0_333, %c0_334] : memref<8x128xf32, #tpu.memory_space<vmem>>, vector<8x128xf32>
    tpu.vector_store %arg47[%c0_333, %c0_334], %778 {strides = array<i32>} : memref<8x128xf32, #tpu.memory_space<vmem>>, vector<8x128xf32>,
    return
  }
  func.func @transform_0(%arg0: i32) -> (i32, i32) {
    %c0_i32 = arith.constant 0 : i32
    %c0_i32_0 = arith.constant 0 : i32
    return %arg0, %c0_i32 : i32, i32
  }
  func.func @transform_1(%arg0: i32) -> (i32, i32) {
    %c0_i32 = arith.constant 0 : i32
    %c0_i32_0 = arith.constant 0 : i32
    return %arg0, %c0_i32 : i32, i32
  }
  func.func @transform_2(%arg0: i32) -> (i32, i32) {
    %c0_i32 = arith.constant 0 : i32
    %c0_i32_0 = arith.constant 0 : i32
    return %arg0, %c0_i32 : i32, i32
  }
  func.func @transform_3(%arg0: i32) -> (i32, i32) {
    %c0_i32 = arith.constant 0 : i32
    %c0_i32_0 = arith.constant 0 : i32
    return %arg0, %c0_i32 : i32, i32
  }
  func.func @transform_4(%arg0: i32) -> (i32, i32) {
    %c0_i32 = arith.constant 0 : i32
    %c0_i32_0 = arith.constant 0 : i32
    %c0_i32_1 = arith.constant 0 : i32
    return %c0_i32, %c0_i32_0 : i32, i32
  }
  func.func @transform_5(%arg0: i32) -> (i32, i32) {
    %c0_i32 = arith.constant 0 : i32
    %c0_i32_0 = arith.constant 0 : i32
    %c0_i32_1 = arith.constant 0 : i32
    return %c0_i32, %c0_i32_0 : i32, i32
  }
  func.func @transform_6(%arg0: i32) -> (i32, i32) {
    %c0_i32 = arith.constant 0 : i32
    %c0_i32_0 = arith.constant 0 : i32
    %c0_i32_1 = arith.constant 0 : i32
    return %c0_i32, %c0_i32_0 : i32, i32
  }
  func.func @transform_7(%arg0: i32) -> (i32, i32) {
    %c0_i32 = arith.constant 0 : i32
    %c0_i32_0 = arith.constant 0 : i32
    %c0_i32_1 = arith.constant 0 : i32
    return %c0_i32, %c0_i32_0 : i32, i32
  }
  func.func @transform_8(%arg0: i32) -> (i32, i32) {
    %c0_i32 = arith.constant 0 : i32
    %c0_i32_0 = arith.constant 0 : i32
    %c0_i32_1 = arith.constant 0 : i32
    return %c0_i32, %c0_i32_0 : i32, i32
  }
  func.func @transform_9(%arg0: i32) -> (i32, i32) {
    %c0_i32 = arith.constant 0 : i32
    %c0_i32_0 = arith.constant 0 : i32
    %c0_i32_1 = arith.constant 0 : i32
    return %c0_i32, %c0_i32_0 : i32, i32
  }
  func.func @transform_10(%arg0: i32) -> (i32, i32) {
    %c0_i32 = arith.constant 0 : i32
    %c0_i32_0 = arith.constant 0 : i32
    %c0_i32_1 = arith.constant 0 : i32
    return %c0_i32, %c0_i32_0 : i32, i32
  }
  func.func @transform_11(%arg0: i32) -> (i32, i32) {
    %c0_i32 = arith.constant 0 : i32
    %c0_i32_0 = arith.constant 0 : i32
    %c0_i32_1 = arith.constant 0 : i32
    return %c0_i32, %c0_i32_0 : i32, i32
  }
  func.func @transform_12(%arg0: i32) -> (i32, i32, i32) {
    %c0_i32 = arith.constant 0 : i32
    %c0_i32_0 = arith.constant 0 : i32
    %c0_i32_1 = arith.constant 0 : i32
    %c0_i32_2 = arith.constant 0 : i32
    return %c0_i32, %c0_i32_0, %c0_i32_1 : i32, i32, i32
  }
  func.func @transform_13(%arg0: i32) -> (i32, i32, i32) {
    %c0_i32 = arith.constant 0 : i32
    %c0_i32_0 = arith.constant 0 : i32
    %c0_i32_1 = arith.constant 0 : i32
    %c0_i32_2 = arith.constant 0 : i32
    return %c0_i32, %c0_i32_0, %c0_i32_1 : i32, i32, i32
  }
  func.func @transform_14(%arg0: i32) -> (i32, i32, i32) {
    %c0_i32 = arith.constant 0 : i32
    %c0_i32_0 = arith.constant 0 : i32
    %c0_i32_1 = arith.constant 0 : i32
    %c0_i32_2 = arith.constant 0 : i32
    return %c0_i32, %c0_i32_0, %c0_i32_1 : i32, i32, i32
  }
  func.func @transform_15(%arg0: i32) -> (i32, i32, i32) {
    %c0_i32 = arith.constant 0 : i32
    %c0_i32_0 = arith.constant 0 : i32
    %c0_i32_1 = arith.constant 0 : i32
    %c0_i32_2 = arith.constant 0 : i32
    return %c0_i32, %c0_i32_0, %c0_i32_1 : i32, i32, i32
  }
  func.func @transform_16(%arg0: i32) -> (i32, i32, i32) {
    %c0_i32 = arith.constant 0 : i32
    %c0_i32_0 = arith.constant 0 : i32
    %c0_i32_1 = arith.constant 0 : i32
    %c0_i32_2 = arith.constant 0 : i32
    return %c0_i32, %c0_i32_0, %c0_i32_1 : i32, i32, i32
  }
  func.func @transform_17(%arg0: i32) -> (i32, i32, i32) {
    %c0_i32 = arith.constant 0 : i32
    %c0_i32_0 = arith.constant 0 : i32
    %c0_i32_1 = arith.constant 0 : i32
    %c0_i32_2 = arith.constant 0 : i32
    return %c0_i32, %c0_i32_0, %c0_i32_1 : i32, i32, i32
  }
  func.func @transform_18(%arg0: i32) -> (i32, i32, i32) {
    %c0_i32 = arith.constant 0 : i32
    %c0_i32_0 = arith.constant 0 : i32
    %c0_i32_1 = arith.constant 0 : i32
    %c0_i32_2 = arith.constant 0 : i32
    return %c0_i32, %c0_i32_0, %c0_i32_1 : i32, i32, i32
  }
  func.func @transform_19(%arg0: i32) -> (i32, i32, i32) {
    %c0_i32 = arith.constant 0 : i32
    %c0_i32_0 = arith.constant 0 : i32
    %c0_i32_1 = arith.constant 0 : i32
    %c0_i32_2 = arith.constant 0 : i32
    return %c0_i32, %c0_i32_0, %c0_i32_1 : i32, i32, i32
  }
  func.func @transform_20(%arg0: i32) -> (i32, i32, i32) {
    %c0_i32 = arith.constant 0 : i32
    %c0_i32_0 = arith.constant 0 : i32
    %c0_i32_1 = arith.constant 0 : i32
    %c0_i32_2 = arith.constant 0 : i32
    return %c0_i32, %c0_i32_0, %c0_i32_1 : i32, i32, i32
  }
  func.func @transform_21(%arg0: i32) -> (i32, i32, i32) {
    %c0_i32 = arith.constant 0 : i32
    %c0_i32_0 = arith.constant 0 : i32
    %c0_i32_1 = arith.constant 0 : i32
    %c0_i32_2 = arith.constant 0 : i32
    return %c0_i32, %c0_i32_0, %c0_i32_1 : i32, i32, i32
  }
  func.func @transform_22(%arg0: i32) -> (i32, i32, i32) {
    %c0_i32 = arith.constant 0 : i32
    %c0_i32_0 = arith.constant 0 : i32
    %c0_i32_1 = arith.constant 0 : i32
    %c0_i32_2 = arith.constant 0 : i32
    return %c0_i32, %c0_i32_0, %c0_i32_1 : i32, i32, i32
  }
  func.func @transform_23(%arg0: i32) -> (i32, i32, i32) {
    %c0_i32 = arith.constant 0 : i32
    %c0_i32_0 = arith.constant 0 : i32
    %c0_i32_1 = arith.constant 0 : i32
    %c0_i32_2 = arith.constant 0 : i32
    return %c0_i32, %c0_i32_0, %c0_i32_1 : i32, i32, i32
  }
  func.func @transform_24(%arg0: i32) -> (i32, i32, i32) {
    %c0_i32 = arith.constant 0 : i32
    %c0_i32_0 = arith.constant 0 : i32
    %c0_i32_1 = arith.constant 0 : i32
    %c0_i32_2 = arith.constant 0 : i32
    return %c0_i32, %c0_i32_0, %c0_i32_1 : i32, i32, i32
  }
  func.func @transform_25(%arg0: i32) -> (i32, i32, i32) {
    %c0_i32 = arith.constant 0 : i32
    %c0_i32_0 = arith.constant 0 : i32
    %c0_i32_1 = arith.constant 0 : i32
    %c0_i32_2 = arith.constant 0 : i32
    return %c0_i32, %c0_i32_0, %c0_i32_1 : i32, i32, i32
  }
  func.func @transform_26(%arg0: i32) -> (i32, i32, i32) {
    %c0_i32 = arith.constant 0 : i32
    %c0_i32_0 = arith.constant 0 : i32
    %c0_i32_1 = arith.constant 0 : i32
    %c0_i32_2 = arith.constant 0 : i32
    return %c0_i32, %c0_i32_0, %c0_i32_1 : i32, i32, i32
  }
  func.func @transform_27(%arg0: i32) -> (i32, i32, i32) {
    %c0_i32 = arith.constant 0 : i32
    %c0_i32_0 = arith.constant 0 : i32
    %c0_i32_1 = arith.constant 0 : i32
    %c0_i32_2 = arith.constant 0 : i32
    return %c0_i32, %c0_i32_0, %c0_i32_1 : i32, i32, i32
  }
  func.func @transform_28(%arg0: i32) -> (i32, i32, i32) {
    %c0_i32 = arith.constant 0 : i32
    %c0_i32_0 = arith.constant 0 : i32
    %c0_i32_1 = arith.constant 0 : i32
    %c0_i32_2 = arith.constant 0 : i32
    return %c0_i32, %c0_i32_0, %c0_i32_1 : i32, i32, i32
  }
  func.func @transform_29(%arg0: i32) -> (i32, i32, i32) {
    %c0_i32 = arith.constant 0 : i32
    %c0_i32_0 = arith.constant 0 : i32
    %c0_i32_1 = arith.constant 0 : i32
    %c0_i32_2 = arith.constant 0 : i32
    return %c0_i32, %c0_i32_0, %c0_i32_1 : i32, i32, i32
  }
  func.func @transform_30(%arg0: i32) -> (i32, i32, i32) {
    %c0_i32 = arith.constant 0 : i32
    %c0_i32_0 = arith.constant 0 : i32
    %c0_i32_1 = arith.constant 0 : i32
    %c0_i32_2 = arith.constant 0 : i32
    return %c0_i32, %c0_i32_0, %c0_i32_1 : i32, i32, i32
  }
  func.func @transform_31(%arg0: i32) -> (i32, i32, i32) {
    %c0_i32 = arith.constant 0 : i32
    %c0_i32_0 = arith.constant 0 : i32
    %c0_i32_1 = arith.constant 0 : i32
    %c0_i32_2 = arith.constant 0 : i32
    return %c0_i32, %c0_i32_0, %c0_i32_1 : i32, i32, i32
  }
  func.func @transform_32(%arg0: i32) -> (i32, i32, i32) {
    %c0_i32 = arith.constant 0 : i32
    %c0_i32_0 = arith.constant 0 : i32
    %c0_i32_1 = arith.constant 0 : i32
    %c0_i32_2 = arith.constant 0 : i32
    return %c0_i32, %c0_i32_0, %c0_i32_1 : i32, i32, i32
  }
  func.func @transform_33(%arg0: i32) -> (i32, i32, i32) {
    %c0_i32 = arith.constant 0 : i32
    %c0_i32_0 = arith.constant 0 : i32
    %c0_i32_1 = arith.constant 0 : i32
    %c0_i32_2 = arith.constant 0 : i32
    return %c0_i32, %c0_i32_0, %c0_i32_1 : i32, i32, i32
  }
  func.func @transform_34(%arg0: i32) -> (i32, i32, i32) {
    %c0_i32 = arith.constant 0 : i32
    %c0_i32_0 = arith.constant 0 : i32
    %c0_i32_1 = arith.constant 0 : i32
    %c0_i32_2 = arith.constant 0 : i32
    return %c0_i32, %c0_i32_0, %c0_i32_1 : i32, i32, i32
  }
  func.func @transform_35(%arg0: i32) -> (i32, i32, i32) {
    %c0_i32 = arith.constant 0 : i32
    %c0_i32_0 = arith.constant 0 : i32
    %c0_i32_1 = arith.constant 0 : i32
    %c0_i32_2 = arith.constant 0 : i32
    return %c0_i32, %c0_i32_0, %c0_i32_1 : i32, i32, i32
  }
  func.func @transform_36(%arg0: i32) -> (i32, i32, i32) {
    %c0_i32 = arith.constant 0 : i32
    %c0_i32_0 = arith.constant 0 : i32
    %c0_i32_1 = arith.constant 0 : i32
    %c0_i32_2 = arith.constant 0 : i32
    return %c0_i32, %c0_i32_0, %c0_i32_1 : i32, i32, i32
  }
  func.func @transform_37(%arg0: i32) -> (i32, i32, i32) {
    %c0_i32 = arith.constant 0 : i32
    %c0_i32_0 = arith.constant 0 : i32
    %c0_i32_1 = arith.constant 0 : i32
    %c0_i32_2 = arith.constant 0 : i32
    return %c0_i32, %c0_i32_0, %c0_i32_1 : i32, i32, i32
  }
  func.func @transform_38(%arg0: i32) -> (i32, i32, i32) {
    %c0_i32 = arith.constant 0 : i32
    %c0_i32_0 = arith.constant 0 : i32
    %c0_i32_1 = arith.constant 0 : i32
    %c0_i32_2 = arith.constant 0 : i32
    return %c0_i32, %c0_i32_0, %c0_i32_1 : i32, i32, i32
  }
  func.func @transform_39(%arg0: i32) -> (i32, i32, i32) {
    %c0_i32 = arith.constant 0 : i32
    %c0_i32_0 = arith.constant 0 : i32
    %c0_i32_1 = arith.constant 0 : i32
    %c0_i32_2 = arith.constant 0 : i32
    return %c0_i32, %c0_i32_0, %c0_i32_1 : i32, i32, i32
  }
  func.func @transform_40(%arg0: i32) -> (i32, i32, i32) {
    %c0_i32 = arith.constant 0 : i32
    %c0_i32_0 = arith.constant 0 : i32
    %c0_i32_1 = arith.constant 0 : i32
    %c0_i32_2 = arith.constant 0 : i32
    return %c0_i32, %c0_i32_0, %c0_i32_1 : i32, i32, i32
  }
  func.func @transform_41(%arg0: i32) -> (i32, i32, i32) {
    %c0_i32 = arith.constant 0 : i32
    %c0_i32_0 = arith.constant 0 : i32
    %c0_i32_1 = arith.constant 0 : i32
    %c0_i32_2 = arith.constant 0 : i32
    return %c0_i32, %c0_i32_0, %c0_i32_1 : i32, i32, i32
  }
  func.func @transform_42(%arg0: i32) -> (i32, i32, i32) {
    %c0_i32 = arith.constant 0 : i32
    %c0_i32_0 = arith.constant 0 : i32
    %c0_i32_1 = arith.constant 0 : i32
    %c0_i32_2 = arith.constant 0 : i32
    return %c0_i32, %c0_i32_0, %c0_i32_1 : i32, i32, i32
  }
  func.func @transform_43(%arg0: i32) -> (i32, i32, i32) {
    %c0_i32 = arith.constant 0 : i32
    %c0_i32_0 = arith.constant 0 : i32
    %c0_i32_1 = arith.constant 0 : i32
    %c0_i32_2 = arith.constant 0 : i32
    return %c0_i32, %c0_i32_0, %c0_i32_1 : i32, i32, i32
  }
  func.func @transform_44(%arg0: i32) -> (i32, i32) {
    %c0_i32 = arith.constant 0 : i32
    %c0_i32_0 = arith.constant 0 : i32
    %c0_i32_1 = arith.constant 0 : i32
    return %c0_i32, %c0_i32_0 : i32, i32
  }
  func.func @transform_45(%arg0: i32) -> (i32, i32) {
    %c0_i32 = arith.constant 0 : i32
    %c0_i32_0 = arith.constant 0 : i32
    %c0_i32_1 = arith.constant 0 : i32
    return %c0_i32, %c0_i32_0 : i32, i32
  }
  func.func @transform_46(%arg0: i32) -> (i32, i32) {
    %c0_i32 = arith.constant 0 : i32
    %c0_i32_0 = arith.constant 0 : i32
    return %arg0, %c0_i32 : i32, i32
  }
}

</mosaic_0001>

<llo_original>
// kernel: tpu_custom_call.1
$region0: #{tpu_custom_call.1}
  #allocation0 [shape = 'u32[]', space=smem, size = 0x4, offset = 0x4, fixed_abs, tag = 'smem constant byte address 0x4 - core index']
  #allocation1 [shape = 'u32[72,128]{1,0:T(1,128)}', space=vmem, size = 0x9000, scoped, tag = 'internal scratch']
  %s0 = inlined_call_operand.smem [shape: u32[47], index: -1, kind: input, shape index: {}]
  %s1 = sld [smem:[%s0]]
  %s2 = scalar_lea.smem %s0, 1
  %s3 = sld [smem:[%s2]]
  %s4 = scalar_lea.smem %s0, 2
  %s5 = sld [smem:[%s4]]
  %s6 = scalar_lea.smem %s0, 3
  %s7 = sld [smem:[%s6]]
  %s8 = scalar_lea.smem %s0, 4
  %s9 = sld [smem:[%s8]]
  %s10 = scalar_lea.smem %s0, 5
  %s11 = sld [smem:[%s10]]
  %s12 = scalar_lea.smem %s0, 6
  %s13 = sld [smem:[%s12]]
  %s14 = scalar_lea.smem %s0, 7
  %s15 = sld [smem:[%s14]]
  %s16 = scalar_lea.smem %s0, 8
  %s17 = sld [smem:[%s16]]
  %s18 = scalar_lea.smem %s0, 9
  %s19 = sld [smem:[%s18]]
  %s20 = scalar_lea.smem %s0, 10
  %s21 = sld [smem:[%s20]]
  %s22 = scalar_lea.smem %s0, 11
  %s23 = sld [smem:[%s22]]
  %s24 = scalar_lea.smem %s0, 12
  %s25 = sld [smem:[%s24]]
  %s26 = scalar_lea.smem %s0, 13
  %s27 = sld [smem:[%s26]]
  %s28 = scalar_lea.smem %s0, 14
  %s29 = sld [smem:[%s28]]
  %s30 = scalar_lea.smem %s0, 15
  %s31 = sld [smem:[%s30]]
  %s32 = scalar_lea.smem %s0, 16
  %s33 = sld [smem:[%s32]]
  %s34 = scalar_lea.smem %s0, 17
  %s35 = sld [smem:[%s34]]
  %s36 = scalar_lea.smem %s0, 18
  %s37 = sld [smem:[%s36]]
  %s38 = scalar_lea.smem %s0, 19
  %s39 = sld [smem:[%s38]]
  %s40 = scalar_lea.smem %s0, 20
  %s41 = sld [smem:[%s40]]
  %s42 = scalar_lea.smem %s0, 21
  %s43 = sld [smem:[%s42]]
  %s44 = scalar_lea.smem %s0, 22
  %s45 = sld [smem:[%s44]]
  %s46 = scalar_lea.smem %s0, 23
  %s47 = sld [smem:[%s46]]
  %s48 = scalar_lea.smem %s0, 24
  %s49 = sld [smem:[%s48]]
  %s50 = scalar_lea.smem %s0, 25
  %s51 = sld [smem:[%s50]]
  %s52 = scalar_lea.smem %s0, 26
  %s53 = sld [smem:[%s52]]
  %s54 = scalar_lea.smem %s0, 27
  %s55 = sld [smem:[%s54]]
  %s56 = scalar_lea.smem %s0, 28
  %s57 = sld [smem:[%s56]]
  %s58 = scalar_lea.smem %s0, 29
  %s59 = sld [smem:[%s58]]
  %s60 = scalar_lea.smem %s0, 30
  %s61 = sld [smem:[%s60]]
  %s62 = scalar_lea.smem %s0, 31
  %s63 = sld [smem:[%s62]]
  %s64 = scalar_lea.smem %s0, 32
  %s65 = sld [smem:[%s64]]
  %s66 = scalar_lea.smem %s0, 33
  %s67 = sld [smem:[%s66]]
  %s68 = scalar_lea.smem %s0, 34
  %s69 = sld [smem:[%s68]]
  %s70 = scalar_lea.smem %s0, 35
  %s71 = sld [smem:[%s70]]
  %s72 = scalar_lea.smem %s0, 36
  %s73 = sld [smem:[%s72]]
  %s74 = scalar_lea.smem %s0, 37
  %s75 = sld [smem:[%s74]]
  %s76 = scalar_lea.smem %s0, 38
  %s77 = sld [smem:[%s76]]
  %s78 = scalar_lea.smem %s0, 39
  %s79 = sld [smem:[%s78]]
  %s80 = scalar_lea.smem %s0, 40
  %s81 = sld [smem:[%s80]]
  %s82 = scalar_lea.smem %s0, 41
  %s83 = sld [smem:[%s82]]
  %s84 = scalar_lea.smem %s0, 42
  %s85 = sld [smem:[%s84]]
  %s86 = scalar_lea.smem %s0, 43
  %s87 = sld [smem:[%s86]]
  %s88 = scalar_lea.smem %s0, 44
  %s89 = sld [smem:[%s88]]
  %s90 = scalar_lea.smem %s0, 45
  %s91 = sld [smem:[%s90]]
  %s92 = scalar_lea.smem %s0, 46
  %s93 = sld [smem:[%s92]]
  %s94 = sld [smem:[#allocation0]]
  $region313: #{tpu_custom_call.1} parent=0
    _
  %s96 = ssub.s32 1, %s94
  %s97 = scalar_select 0, %s96, %s94
  $region1: #{tpu_custom_call.1} parent=0
    #allocation2 [shape = 'u8[8192]{0}', space=vmem, size = 0x2000, scoped, tag = 'input window, operand 2']
    #allocation3 [shape = 's32[2]{0}', space=sflag, size = 0x8, scoped, tag = 'scoped memory for tpu_custom_call.1']
    #allocation4 [shape = 's32[2]{0}', space=sflag, size = 0x8, scoped, tag = 'scoped memory for tpu_custom_call.1']
    #allocation5 [shape = 'u8[8192]{0}', space=vmem, size = 0x2000, scoped, tag = 'input window, operand 3']
    #allocation6 [shape = 's32[2]{0}', space=sflag, size = 0x8, scoped, tag = 'scoped memory for tpu_custom_call.1']
    #allocation7 [shape = 'u8[512]{0}', space=vmem, size = 0x400, scoped, tag = 'input window, operand 5, single buffered']
    #allocation8 [shape = 'u8[16384]{0}', space=vmem, size = 0x4000, scoped, tag = 'input window, operand 6, single buffered']
    #allocation9 [shape = 's32[1]{0}', space=sflag, size = 0x4, scoped, tag = 'scoped memory for tpu_custom_call.1']
    #allocation10 [shape = 'u8[512]{0}', space=vmem, size = 0x400, scoped, tag = 'input window, operand 7, single buffered']
    #allocation11 [shape = 'u8[512]{0}', space=vmem, size = 0x400, scoped, tag = 'input window, operand 8, single buffered']
    #allocation12 [shape = 's32[1]{0}', space=sflag, size = 0x4, scoped, tag = 'scoped memory for tpu_custom_call.1']
    #allocation13 [shape = 'u8[512]{0}', space=vmem, size = 0x400, scoped, tag = 'input window, operand 9, single buffered']
    #allocation14 [shape = 'u8[512]{0}', space=vmem, size = 0x400, scoped, tag = 'input window, operand 10, single buffered']
    #allocation15 [shape = 's32[1]{0}', space=sflag, size = 0x4, scoped, tag = 'scoped memory for tpu_custom_call.1']
    #allocation16 [shape = 'u8[512]{0}', space=vmem, size = 0x400, scoped, tag = 'input window, operand 11, single buffered']
    #allocation17 [shape = 'u8[1024]{0}', space=vmem, size = 0x400, scoped, tag = 'input window, operand 17, single buffered']
    #allocation18 [shape = 's32[1]{0}', space=sflag, size = 0x4, scoped, tag = 'scoped memory for tpu_custom_call.1']
    #allocation19 [shape = 'u8[1024]{0}', space=vmem, size = 0x400, scoped, tag = 'input window, operand 18, single buffered']
    #allocation20 [shape = 'u8[1024]{0}', space=vmem, size = 0x400, scoped, tag = 'input window, operand 19, single buffered']
    #allocation21 [shape = 's32[1]{0}', space=sflag, size = 0x4, scoped, tag = 'scoped memory for tpu_custom_call.1']
    #allocation22 [shape = 'u8[1024]{0}', space=vmem, size = 0x400, scoped, tag = 'input window, operand 21, single buffered']
    #allocation23 [shape = 'u8[1024]{0}', space=vmem, size = 0x400, scoped, tag = 'input window, operand 23, single buffered']
    #allocation24 [shape = 's32[1]{0}', space=sflag, size = 0x4, scoped, tag = 'scoped memory for tpu_custom_call.1']
    #allocation25 [shape = 'u8[1024]{0}', space=vmem, size = 0x400, scoped, tag = 'input window, operand 24, single buffered']
    #allocation26 [shape = 'u8[1024]{0}', space=vmem, size = 0x400, scoped, tag = 'input window, operand 27, single buffered']
    #allocation27 [shape = 's32[1]{0}', space=sflag, size = 0x4, scoped, tag = 'scoped memory for tpu_custom_call.1']
    #allocation28 [shape = 'u8[1024]{0}', space=vmem, size = 0x400, scoped, tag = 'input window, operand 29, single buffered']
    #allocation29 [shape = 'u8[32768]{0}', space=vmem, size = 0x8000, scoped, tag = 'input window, operand 32, single buffered']
    #allocation30 [shape = 's32[1]{0}', space=sflag, size = 0x4, scoped, tag = 'scoped memory for tpu_custom_call.1']
    #allocation31 [shape = 'u8[1024]{0}', space=vmem, size = 0x400, scoped, tag = 'input window, operand 33, single buffered']
    #allocation32 [shape = 'u8[32768]{0}', space=vmem, size = 0x8000, scoped, tag = 'input window, operand 34, single buffered']
    #allocation33 [shape = 's32[1]{0}', space=sflag, size = 0x4, scoped, tag = 'scoped memory for tpu_custom_call.1']
    #allocation34 [shape = 'u8[32768]{0}', space=vmem, size = 0x8000, scoped, tag = 'input window, operand 36, single buffered']
    #allocation35 [shape = 'u8[1024]{0}', space=vmem, size = 0x400, scoped, tag = 'input window, operand 39, single buffered']
    #allocation36 [shape = 's32[1]{0}', space=sflag, size = 0x4, scoped, tag = 'scoped memory for tpu_custom_call.1']
    #allocation37 [shape = 'u8[32768]{0}', space=vmem, size = 0x8000, scoped, tag = 'input window, operand 40, single buffered']
    #allocation38 [shape = 'u8[16384]{0}', space=vmem, size = 0x4000, scoped, tag = 'input window, operand 44, single buffered']
    #allocation39 [shape = 's32[1]{0}', space=sflag, size = 0x4, scoped, tag = 'scoped memory for tpu_custom_call.1']
    #allocation40 [shape = 'u8[8192]{0}', space=vmem, size = 0x2000, scoped, tag = 'output window, operand 0']
    %98 = vsyncpa [#allocation3], 0
    %s99 = scalar_lea.sflag [#allocation3], 1
    %100 = vsyncpa %s99, 0
    %101 = vsyncpa [#allocation6], 0
    %s102 = scalar_lea.sflag [#allocation6], 1
    %103 = vsyncpa %s102, 0
    %104 = vsyncpa [#allocation9], 0
    %105 = vsyncpa [#allocation12], 0
    %106 = vsyncpa [#allocation15], 0
    %107 = vsyncpa [#allocation18], 0
    %108 = vsyncpa [#allocation21], 0
    %109 = vsyncpa [#allocation24], 0
    %110 = vsyncpa [#allocation27], 0
    %111 = vsyncpa [#allocation30], 0
    %112 = vsyncpa [#allocation33], 0
    %113 = vsyncpa [#allocation36], 0
    %114 = vsyncpa [#allocation39], 0
    %115 = vsyncpa [#allocation4], 0
    %s116 = scalar_lea.sflag [#allocation4], 1
    %117 = vsyncpa %s116, 0
    loop: start=0, step=1, limit=4
    $region2: #{tpu_custom_call.1} parent=1 // loop_pre_header
      _
    $region3: #{tpu_custom_call.1} parent=1 // loop_header
      %s119 = sphi 0, %s123
      %p120 = scmp.ge.s32.totalorder %s119, 4
      %s129 = sphi 0, %s131
      %s132 = sphi 0, %s129
      %s133 = sphi 0, %s132
      %s149 = sphi 0, %s133
      %s155 = sphi 0, %s157
      %s158 = sphi 0, %s155
      %s159 = sphi 0, %s158
      %s175 = sphi 0, %s159
      %s181 = sphi 0, %s183
      %s184 = sphi 0, %s181
      %s185 = sphi 0, %s184
      %s201 = sphi 0, %s185
      %s207 = sphi 0, %s209
      %s210 = sphi 0, %s207
      %s211 = sphi 0, %s210
      %s227 = sphi 0, %s211
      %s231 = sphi 0, %s231
      %s233 = sphi 0, %s231
      %s234 = sphi 0, %s233
      %s248 = sphi 0, %s234
      %s252 = sphi 0, %s252
      %s254 = sphi 0, %s252
      %s255 = sphi 0, %s254
      %s269 = sphi 0, %s255
      %s273 = sphi 0, %s273
      %s275 = sphi 0, %s273
      %s276 = sphi 0, %s275
      %s290 = sphi 0, %s276
      %s294 = sphi 0, %s294
      %s296 = sphi 0, %s294
      %s297 = sphi 0, %s296
      %s311 = sphi 0, %s297
      %s315 = sphi 0, %s315
      %s317 = sphi 0, %s315
      %s318 = sphi 0, %s317
      %s332 = sphi 0, %s318
      %s336 = sphi 0, %s336
      %s338 = sphi 0, %s336
      %s339 = sphi 0, %s338
      %s353 = sphi 0, %s339
      %s357 = sphi 0, %s357
      %s359 = sphi 0, %s357
      %s360 = sphi 0, %s359
      %s374 = sphi 0, %s360
      %s378 = sphi 0, %s378
      %s380 = sphi 0, %s378
      %s381 = sphi 0, %s380
      %s395 = sphi 0, %s381
      %s399 = sphi 0, %s399
      %s401 = sphi 0, %s399
      %s402 = sphi 0, %s401
      %s416 = sphi 0, %s402
      %s420 = sphi 0, %s420
      %s422 = sphi 0, %s420
      %s423 = sphi 0, %s422
      %s437 = sphi 0, %s423
      %s441 = sphi 0, %s441
      %s443 = sphi 0, %s441
      %s444 = sphi 0, %s443
      %s458 = sphi 0, %s444
      %s462 = sphi 0, %s462
      %s464 = sphi 0, %s462
      %s465 = sphi 0, %s464
      %s479 = sphi 0, %s465
      %s483 = sphi 0, %s483
      %s485 = sphi 0, %s483
      %s486 = sphi 0, %s485
      %s500 = sphi 0, %s486
      %s504 = sphi 0, %s504
      %s506 = sphi 0, %s504
      %s507 = sphi 0, %s506
      %s521 = sphi 0, %s507
      %s525 = sphi 0, %s525
      %s527 = sphi 0, %s525
      %s528 = sphi 0, %s527
      %s542 = sphi 0, %s528
      %s546 = sphi 0, %s546
      %s548 = sphi 0, %s546
      %s549 = sphi 0, %s548
      %s563 = sphi 0, %s549
      %s567 = sphi 0, %s567
      %s569 = sphi 0, %s567
      %s570 = sphi 0, %s569
      %s584 = sphi 0, %s570
      %s588 = sphi 0, %s588
      %s590 = sphi 0, %s588
      %s591 = sphi 0, %s590
      %s605 = sphi 0, %s591
      %s609 = sphi 0, %s609
      %s611 = sphi 0, %s609
      %s612 = sphi 0, %s611
      %s626 = sphi 0, %s612
      %s630 = sphi 0, %s630
      %s632 = sphi 0, %s630
      %s633 = sphi 0, %s632
      %s647 = sphi 0, %s633
      %s651 = sphi 0, %s651
      %s653 = sphi 0, %s651
      %s654 = sphi 0, %s653
      %s668 = sphi 0, %s654
      %s672 = sphi 0, %s672
      %s674 = sphi 0, %s672
      %s675 = sphi 0, %s674
      %s689 = sphi 0, %s675
      %s693 = sphi 0, %s693
      %s695 = sphi 0, %s693
      %s696 = sphi 0, %s695
      %s710 = sphi 0, %s696
      %s714 = sphi 0, %s714
      %s716 = sphi 0, %s714
      %s717 = sphi 0, %s716
      %s731 = sphi 0, %s717
      %s735 = sphi 0, %s735
      %s737 = sphi 0, %s735
      %s738 = sphi 0, %s737
      %s752 = sphi 0, %s738
      %s756 = sphi 0, %s756
      %s758 = sphi 0, %s756
      %s759 = sphi 0, %s758
      %s773 = sphi 0, %s759
      %s777 = sphi 0, %s777
      %s779 = sphi 0, %s777
      %s780 = sphi 0, %s779
      %s794 = sphi 0, %s780
      %s798 = sphi 0, %s798
      %s800 = sphi 0, %s798
      %s801 = sphi 0, %s800
      %s815 = sphi 0, %s801
      %s819 = sphi 0, %s819
      %s821 = sphi 0, %s819
      %s822 = sphi 0, %s821
      %s836 = sphi 0, %s822
      %s840 = sphi 0, %s840
      %s842 = sphi 0, %s840
      %s843 = sphi 0, %s842
      %s857 = sphi 0, %s843
      %s861 = sphi 0, %s861
      %s863 = sphi 0, %s861
      %s864 = sphi 0, %s863
      %s878 = sphi 0, %s864
      %s882 = sphi 0, %s882
      %s884 = sphi 0, %s882
      %s885 = sphi 0, %s884
      %s899 = sphi 0, %s885
      %s903 = sphi 0, %s903
      %s905 = sphi 0, %s903
      %s906 = sphi 0, %s905
      %s920 = sphi 0, %s906
      %s924 = sphi 0, %s924
      %s926 = sphi 0, %s924
      %s927 = sphi 0, %s926
      %s941 = sphi 0, %s927
      %s945 = sphi 0, %s945
      %s947 = sphi 0, %s945
      %s948 = sphi 0, %s947
      %s962 = sphi 0, %s948
      %s966 = sphi 0, %s966
      %s968 = sphi 0, %s966
      %s969 = sphi 0, %s968
      %s983 = sphi 0, %s969
      %s987 = sphi 0, %s987
      %s989 = sphi 0, %s987
      %s990 = sphi 0, %s989
      %s1004 = sphi 0, %s990
      %s1008 = sphi 0, %s1008
      %s1010 = sphi 0, %s1008
      %s1011 = sphi 0, %s1010
      %s1025 = sphi 0, %s1011
      %s1029 = sphi 0, %s1029
      %s1031 = sphi 0, %s1029
      %s1032 = sphi 0, %s1031
      %s1046 = sphi 0, %s1032
      %s1050 = sphi 0, %s1050
      %s1052 = sphi 0, %s1050
      %s1053 = sphi 0, %s1052
      %s1067 = sphi 0, %s1053
      %s1071 = sphi 0, %s1071
      %s1073 = sphi 0, %s1071
      %s1074 = sphi 0, %s1073
      %s1088 = sphi 0, %s1074
      %s1092 = sphi 0, %s1092
      %s1094 = sphi 0, %s1092
      %s1095 = sphi 0, %s1094
      %s1109 = sphi 0, %s1095
      %s1115 = sphi 0, %s1117
      %s1118 = sphi 0, %s1115
      %s1119 = sphi 0, %s1118
      %s1135 = sphi 0, %s1119
    $region4: #{tpu_custom_call.1} parent=1 // loop_header_branch
      %122 = sbr.rel (%p120) target = $region8
    $region5: #{tpu_custom_call.1} parent=1 // loop_body
      %s124 = ssub.s32 %s119, 1
      %s125 = ssub.s32 %s119, 2
      %s126 = sadd.s32 %s119, 1
      %s127 = ssub.s32 %s119, %s126
      %p128 = scmp.eq.s32.totalorder %s127, 0
      %s130 = sadd.s32 %s129, 1
      %s131 = scalar_select %p128, %s129, %s130
      %p134 = pneg %p128
      %p135 = scmp.eq.s32.totalorder %s119, 1
      %p136 = por %p134, %p135
      %p137 = scmp.ne.s32.totalorder %s129, %s132
      %p138 = scmp.eq.s32.totalorder %s119, 0
      %p139 = por %p137, %p138
      %p140 = scmp.ne.s32.totalorder %s129, %s132
      %p141 = scmp.eq.s32.totalorder %s124, 1
      %p142 = por %p140, %p141
      %p143 = scmp.ne.s32.totalorder %s132, %s133
      %p144 = scmp.eq.s32.totalorder %s124, 0
      %p145 = por %p143, %p144
      %p146 = scmp.ne.s32.totalorder %s132, %s133
      %p147 = scmp.eq.s32.totalorder %s125, 1
      %p148 = por %p146, %p147
      %p150 = scmp.ne.s32.totalorder %s133, %s149
      %p151 = scmp.eq.s32.totalorder %s125, 0
      %p152 = por %p150, %p151
      %s153 = ssub.s32 %s119, %s126
      %p154 = scmp.eq.s32.totalorder %s153, 0
      %s156 = sadd.s32 %s155, 1
      %s157 = scalar_select %p154, %s155, %s156
      %p160 = pneg %p154
      %p161 = scmp.eq.s32.totalorder %s119, 1
      %p162 = por %p160, %p161
      %p163 = scmp.ne.s32.totalorder %s155, %s158
      %p164 = scmp.eq.s32.totalorder %s119, 0
      %p165 = por %p163, %p164
      %p166 = scmp.ne.s32.totalorder %s155, %s158
      %p167 = scmp.eq.s32.totalorder %s124, 1
      %p168 = por %p166, %p167
      %p169 = scmp.ne.s32.totalorder %s158, %s159
      %p170 = scmp.eq.s32.totalorder %s124, 0
      %p171 = por %p169, %p170
      %p172 = scmp.ne.s32.totalorder %s158, %s159
      %p173 = scmp.eq.s32.totalorder %s125, 1
      %p174 = por %p172, %p173
      %p176 = scmp.ne.s32.totalorder %s159, %s175
      %p177 = scmp.eq.s32.totalorder %s125, 0
      %p178 = por %p176, %p177
      %s179 = ssub.s32 %s119, %s126
      %p180 = scmp.eq.s32.totalorder %s179, 0
      %s182 = sadd.s32 %s181, 1
      %s183 = scalar_select %p180, %s181, %s182
      %p186 = pneg %p180
      %p187 = scmp.eq.s32.totalorder %s119, 1
      %p188 = por %p186, %p187
      %p189 = scmp.ne.s32.totalorder %s181, %s184
      %p190 = scmp.eq.s32.totalorder %s119, 0
      %p191 = por %p189, %p190
      %p192 = scmp.ne.s32.totalorder %s181, %s184
      %p193 = scmp.eq.s32.totalorder %s124, 1
      %p194 = por %p192, %p193
      %p195 = scmp.ne.s32.totalorder %s184, %s185
      %p196 = scmp.eq.s32.totalorder %s124, 0
      %p197 = por %p195, %p196
      %p198 = scmp.ne.s32.totalorder %s184, %s185
      %p199 = scmp.eq.s32.totalorder %s125, 1
      %p200 = por %p198, %p199
      %p202 = scmp.ne.s32.totalorder %s185, %s201
      %p203 = scmp.eq.s32.totalorder %s125, 0
      %p204 = por %p202, %p203
      %s205 = ssub.s32 %s119, %s126
      %p206 = scmp.eq.s32.totalorder %s205, 0
      %s208 = sadd.s32 %s207, 1
      %s209 = scalar_select %p206, %s207, %s208
      %p212 = pneg %p206
      %p213 = scmp.eq.s32.totalorder %s119, 1
      %p214 = por %p212, %p213
      %p215 = scmp.ne.s32.totalorder %s207, %s210
      %p216 = scmp.eq.s32.totalorder %s119, 0
      %p217 = por %p215, %p216
      %p218 = scmp.ne.s32.totalorder %s207, %s210
      %p219 = scmp.eq.s32.totalorder %s124, 1
      %p220 = por %p218, %p219
      %p221 = scmp.ne.s32.totalorder %s210, %s211
      %p222 = scmp.eq.s32.totalorder %s124, 0
      %p223 = por %p221, %p222
      %p224 = scmp.ne.s32.totalorder %s210, %s211
      %p225 = scmp.eq.s32.totalorder %s125, 1
      %p226 = por %p224, %p225
      %p228 = scmp.ne.s32.totalorder %s211, %s227
      %p229 = scmp.eq.s32.totalorder %s125, 0
      %p230 = por %p228, %p229
      %s232 = sadd.s32 %s231, 1
      %p235 = scmp.eq.s32.totalorder %s119, 1
      %p236 = scmp.ne.s32.totalorder %s231, %s233
      %p237 = scmp.eq.s32.totalorder %s119, 0
      %p238 = por %p236, %p237
      %p239 = scmp.ne.s32.totalorder %s231, %s233
      %p240 = scmp.eq.s32.totalorder %s124, 1
      %p241 = por %p239, %p240
      %p242 = scmp.ne.s32.totalorder %s233, %s234
      %p243 = scmp.eq.s32.totalorder %s124, 0
      %p244 = por %p242, %p243
      %p245 = scmp.ne.s32.totalorder %s233, %s234
      %p246 = scmp.eq.s32.totalorder %s125, 1
      %p247 = por %p245, %p246
      %p249 = scmp.ne.s32.totalorder %s234, %s248
      %p250 = scmp.eq.s32.totalorder %s125, 0
      %p251 = por %p249, %p250
      %s253 = sadd.s32 %s252, 1
      %p256 = scmp.eq.s32.totalorder %s119, 1
      %p257 = scmp.ne.s32.totalorder %s252, %s254
      %p258 = scmp.eq.s32.totalorder %s119, 0
      %p259 = por %p257, %p258
      %p260 = scmp.ne.s32.totalorder %s252, %s254
      %p261 = scmp.eq.s32.totalorder %s124, 1
      %p262 = por %p260, %p261
      %p263 = scmp.ne.s32.totalorder %s254, %s255
      %p264 = scmp.eq.s32.totalorder %s124, 0
      %p265 = por %p263, %p264
      %p266 = scmp.ne.s32.totalorder %s254, %s255
      %p267 = scmp.eq.s32.totalorder %s125, 1
      %p268 = por %p266, %p267
      %p270 = scmp.ne.s32.totalorder %s255, %s269
      %p271 = scmp.eq.s32.totalorder %s125, 0
      %p272 = por %p270, %p271
      %s274 = sadd.s32 %s273, 1
      %p277 = scmp.eq.s32.totalorder %s119, 1
      %p278 = scmp.ne.s32.totalorder %s273, %s275
      %p279 = scmp.eq.s32.totalorder %s119, 0
      %p280 = por %p278, %p279
      %p281 = scmp.ne.s32.totalorder %s273, %s275
      %p282 = scmp.eq.s32.totalorder %s124, 1
      %p283 = por %p281, %p282
      %p284 = scmp.ne.s32.totalorder %s275, %s276
      %p285 = scmp.eq.s32.totalorder %s124, 0
      %p286 = por %p284, %p285
      %p287 = scmp.ne.s32.totalorder %s275, %s276
      %p288 = scmp.eq.s32.totalorder %s125, 1
      %p289 = por %p287, %p288
      %p291 = scmp.ne.s32.totalorder %s276, %s290
      %p292 = scmp.eq.s32.totalorder %s125, 0
      %p293 = por %p291, %p292
      %s295 = sadd.s32 %s294, 1
      %p298 = scmp.eq.s32.totalorder %s119, 1
      %p299 = scmp.ne.s32.totalorder %s294, %s296
      %p300 = scmp.eq.s32.totalorder %s119, 0
      %p301 = por %p299, %p300
      %p302 = scmp.ne.s32.totalorder %s294, %s296
      %p303 = scmp.eq.s32.totalorder %s124, 1
      %p304 = por %p302, %p303
      %p305 = scmp.ne.s32.totalorder %s296, %s297
      %p306 = scmp.eq.s32.totalorder %s124, 0
      %p307 = por %p305, %p306
      %p308 = scmp.ne.s32.totalorder %s296, %s297
      %p309 = scmp.eq.s32.totalorder %s125, 1
      %p310 = por %p308, %p309
      %p312 = scmp.ne.s32.totalorder %s297, %s311
      %p313 = scmp.eq.s32.totalorder %s125, 0
      %p314 = por %p312, %p313
      %s316 = sadd.s32 %s315, 1
      %p319 = scmp.eq.s32.totalorder %s119, 1
      %p320 = scmp.ne.s32.totalorder %s315, %s317
      %p321 = scmp.eq.s32.totalorder %s119, 0
      %p322 = por %p320, %p321
      %p323 = scmp.ne.s32.totalorder %s315, %s317
      %p324 = scmp.eq.s32.totalorder %s124, 1
      %p325 = por %p323, %p324
      %p326 = scmp.ne.s32.totalorder %s317, %s318
      %p327 = scmp.eq.s32.totalorder %s124, 0
      %p328 = por %p326, %p327
      %p329 = scmp.ne.s32.totalorder %s317, %s318
      %p330 = scmp.eq.s32.totalorder %s125, 1
      %p331 = por %p329, %p330
      %p333 = scmp.ne.s32.totalorder %s318, %s332
      %p334 = scmp.eq.s32.totalorder %s125, 0
      %p335 = por %p333, %p334
      %s337 = sadd.s32 %s336, 1
      %p340 = scmp.eq.s32.totalorder %s119, 1
      %p341 = scmp.ne.s32.totalorder %s336, %s338
      %p342 = scmp.eq.s32.totalorder %s119, 0
      %p343 = por %p341, %p342
      %p344 = scmp.ne.s32.totalorder %s336, %s338
      %p345 = scmp.eq.s32.totalorder %s124, 1
      %p346 = por %p344, %p345
      %p347 = scmp.ne.s32.totalorder %s338, %s339
      %p348 = scmp.eq.s32.totalorder %s124, 0
      %p349 = por %p347, %p348
      %p350 = scmp.ne.s32.totalorder %s338, %s339
      %p351 = scmp.eq.s32.totalorder %s125, 1
      %p352 = por %p350, %p351
      %p354 = scmp.ne.s32.totalorder %s339, %s353
      %p355 = scmp.eq.s32.totalorder %s125, 0
      %p356 = por %p354, %p355
      %s358 = sadd.s32 %s357, 1
      %p361 = scmp.eq.s32.totalorder %s119, 1
      %p362 = scmp.ne.s32.totalorder %s357, %s359
      %p363 = scmp.eq.s32.totalorder %s119, 0
      %p364 = por %p362, %p363
      %p365 = scmp.ne.s32.totalorder %s357, %s359
      %p366 = scmp.eq.s32.totalorder %s124, 1
      %p367 = por %p365, %p366
      %p368 = scmp.ne.s32.totalorder %s359, %s360
      %p369 = scmp.eq.s32.totalorder %s124, 0
      %p370 = por %p368, %p369
      %p371 = scmp.ne.s32.totalorder %s359, %s360
      %p372 = scmp.eq.s32.totalorder %s125, 1
      %p373 = por %p371, %p372
      %p375 = scmp.ne.s32.totalorder %s360, %s374
      %p376 = scmp.eq.s32.totalorder %s125, 0
      %p377 = por %p375, %p376
      %s379 = sadd.s32 %s378, 1
      %p382 = scmp.eq.s32.totalorder %s119, 1
      %p383 = scmp.ne.s32.totalorder %s378, %s380
      %p384 = scmp.eq.s32.totalorder %s119, 0
      %p385 = por %p383, %p384
      %p386 = scmp.ne.s32.totalorder %s378, %s380
      %p387 = scmp.eq.s32.totalorder %s124, 1
      %p388 = por %p386, %p387
      %p389 = scmp.ne.s32.totalorder %s380, %s381
      %p390 = scmp.eq.s32.totalorder %s124, 0
      %p391 = por %p389, %p390
      %p392 = scmp.ne.s32.totalorder %s380, %s381
      %p393 = scmp.eq.s32.totalorder %s125, 1
      %p394 = por %p392, %p393
      %p396 = scmp.ne.s32.totalorder %s381, %s395
      %p397 = scmp.eq.s32.totalorder %s125, 0
      %p398 = por %p396, %p397
      %s400 = sadd.s32 %s399, 1
      %p403 = scmp.eq.s32.totalorder %s119, 1
      %p404 = scmp.ne.s32.totalorder %s399, %s401
      %p405 = scmp.eq.s32.totalorder %s119, 0
      %p406 = por %p404, %p405
      %p407 = scmp.ne.s32.totalorder %s399, %s401
      %p408 = scmp.eq.s32.totalorder %s124, 1
      %p409 = por %p407, %p408
      %p410 = scmp.ne.s32.totalorder %s401, %s402
      %p411 = scmp.eq.s32.totalorder %s124, 0
      %p412 = por %p410, %p411
      %p413 = scmp.ne.s32.totalorder %s401, %s402
      %p414 = scmp.eq.s32.totalorder %s125, 1
      %p415 = por %p413, %p414
      %p417 = scmp.ne.s32.totalorder %s402, %s416
      %p418 = scmp.eq.s32.totalorder %s125, 0
      %p419 = por %p417, %p418
      %s421 = sadd.s32 %s420, 1
      %p424 = scmp.eq.s32.totalorder %s119, 1
      %p425 = scmp.ne.s32.totalorder %s420, %s422
      %p426 = scmp.eq.s32.totalorder %s119, 0
      %p427 = por %p425, %p426
      %p428 = scmp.ne.s32.totalorder %s420, %s422
      %p429 = scmp.eq.s32.totalorder %s124, 1
      %p430 = por %p428, %p429
      %p431 = scmp.ne.s32.totalorder %s422, %s423
      %p432 = scmp.eq.s32.totalorder %s124, 0
      %p433 = por %p431, %p432
      %p434 = scmp.ne.s32.totalorder %s422, %s423
      %p435 = scmp.eq.s32.totalorder %s125, 1
      %p436 = por %p434, %p435
      %p438 = scmp.ne.s32.totalorder %s423, %s437
      %p439 = scmp.eq.s32.totalorder %s125, 0
      %p440 = por %p438, %p439
      %s442 = sadd.s32 %s441, 1
      %p445 = scmp.eq.s32.totalorder %s119, 1
      %p446 = scmp.ne.s32.totalorder %s441, %s443
      %p447 = scmp.eq.s32.totalorder %s119, 0
      %p448 = por %p446, %p447
      %p449 = scmp.ne.s32.totalorder %s441, %s443
      %p450 = scmp.eq.s32.totalorder %s124, 1
      %p451 = por %p449, %p450
      %p452 = scmp.ne.s32.totalorder %s443, %s444
      %p453 = scmp.eq.s32.totalorder %s124, 0
      %p454 = por %p452, %p453
      %p455 = scmp.ne.s32.totalorder %s443, %s444
      %p456 = scmp.eq.s32.totalorder %s125, 1
      %p457 = por %p455, %p456
      %p459 = scmp.ne.s32.totalorder %s444, %s458
      %p460 = scmp.eq.s32.totalorder %s125, 0
      %p461 = por %p459, %p460
      %s463 = sadd.s32 %s462, 1
      %p466 = scmp.eq.s32.totalorder %s119, 1
      %p467 = scmp.ne.s32.totalorder %s462, %s464
      %p468 = scmp.eq.s32.totalorder %s119, 0
      %p469 = por %p467, %p468
      %p470 = scmp.ne.s32.totalorder %s462, %s464
      %p471 = scmp.eq.s32.totalorder %s124, 1
      %p472 = por %p470, %p471
      %p473 = scmp.ne.s32.totalorder %s464, %s465
      %p474 = scmp.eq.s32.totalorder %s124, 0
      %p475 = por %p473, %p474
      %p476 = scmp.ne.s32.totalorder %s464, %s465
      %p477 = scmp.eq.s32.totalorder %s125, 1
      %p478 = por %p476, %p477
      %p480 = scmp.ne.s32.totalorder %s465, %s479
      %p481 = scmp.eq.s32.totalorder %s125, 0
      %p482 = por %p480, %p481
      %s484 = sadd.s32 %s483, 1
      %p487 = scmp.eq.s32.totalorder %s119, 1
      %p488 = scmp.ne.s32.totalorder %s483, %s485
      %p489 = scmp.eq.s32.totalorder %s119, 0
      %p490 = por %p488, %p489
      %p491 = scmp.ne.s32.totalorder %s483, %s485
      %p492 = scmp.eq.s32.totalorder %s124, 1
      %p493 = por %p491, %p492
      %p494 = scmp.ne.s32.totalorder %s485, %s486
      %p495 = scmp.eq.s32.totalorder %s124, 0
      %p496 = por %p494, %p495
      %p497 = scmp.ne.s32.totalorder %s485, %s486
      %p498 = scmp.eq.s32.totalorder %s125, 1
      %p499 = por %p497, %p498
      %p501 = scmp.ne.s32.totalorder %s486, %s500
      %p502 = scmp.eq.s32.totalorder %s125, 0
      %p503 = por %p501, %p502
      %s505 = sadd.s32 %s504, 1
      %p508 = scmp.eq.s32.totalorder %s119, 1
      %p509 = scmp.ne.s32.totalorder %s504, %s506
      %p510 = scmp.eq.s32.totalorder %s119, 0
      %p511 = por %p509, %p510
      %p512 = scmp.ne.s32.totalorder %s504, %s506
      %p513 = scmp.eq.s32.totalorder %s124, 1
      %p514 = por %p512, %p513
      %p515 = scmp.ne.s32.totalorder %s506, %s507
      %p516 = scmp.eq.s32.totalorder %s124, 0
      %p517 = por %p515, %p516
      %p518 = scmp.ne.s32.totalorder %s506, %s507
      %p519 = scmp.eq.s32.totalorder %s125, 1
      %p520 = por %p518, %p519
      %p522 = scmp.ne.s32.totalorder %s507, %s521
      %p523 = scmp.eq.s32.totalorder %s125, 0
      %p524 = por %p522, %p523
      %s526 = sadd.s32 %s525, 1
      %p529 = scmp.eq.s32.totalorder %s119, 1
      %p530 = scmp.ne.s32.totalorder %s525, %s527
      %p531 = scmp.eq.s32.totalorder %s119, 0
      %p532 = por %p530, %p531
      %p533 = scmp.ne.s32.totalorder %s525, %s527
      %p534 = scmp.eq.s32.totalorder %s124, 1
      %p535 = por %p533, %p534
      %p536 = scmp.ne.s32.totalorder %s527, %s528
      %p537 = scmp.eq.s32.totalorder %s124, 0
      %p538 = por %p536, %p537
      %p539 = scmp.ne.s32.totalorder %s527, %s528
      %p540 = scmp.eq.s32.totalorder %s125, 1
      %p541 = por %p539, %p540
      %p543 = scmp.ne.s32.totalorder %s528, %s542
      %p544 = scmp.eq.s32.totalorder %s125, 0
      %p545 = por %p543, %p544
      %s547 = sadd.s32 %s546, 1
      %p550 = scmp.eq.s32.totalorder %s119, 1
      %p551 = scmp.ne.s32.totalorder %s546, %s548
      %p552 = scmp.eq.s32.totalorder %s119, 0
      %p553 = por %p551, %p552
      %p554 = scmp.ne.s32.totalorder %s546, %s548
      %p555 = scmp.eq.s32.totalorder %s124, 1
      %p556 = por %p554, %p555
      %p557 = scmp.ne.s32.totalorder %s548, %s549
      %p558 = scmp.eq.s32.totalorder %s124, 0
      %p559 = por %p557, %p558
      %p560 = scmp.ne.s32.totalorder %s548, %s549
      %p561 = scmp.eq.s32.totalorder %s125, 1
      %p562 = por %p560, %p561
      %p564 = scmp.ne.s32.totalorder %s549, %s563
      %p565 = scmp.eq.s32.totalorder %s125, 0
      %p566 = por %p564, %p565
      %s568 = sadd.s32 %s567, 1
      %p571 = scmp.eq.s32.totalorder %s119, 1
      %p572 = scmp.ne.s32.totalorder %s567, %s569
      %p573 = scmp.eq.s32.totalorder %s119, 0
      %p574 = por %p572, %p573
      %p575 = scmp.ne.s32.totalorder %s567, %s569
      %p576 = scmp.eq.s32.totalorder %s124, 1
      %p577 = por %p575, %p576
      %p578 = scmp.ne.s32.totalorder %s569, %s570
      %p579 = scmp.eq.s32.totalorder %s124, 0
      %p580 = por %p578, %p579
      %p581 = scmp.ne.s32.totalorder %s569, %s570
      %p582 = scmp.eq.s32.totalorder %s125, 1
      %p583 = por %p581, %p582
      %p585 = scmp.ne.s32.totalorder %s570, %s584
      %p586 = scmp.eq.s32.totalorder %s125, 0
      %p587 = por %p585, %p586
      %s589 = sadd.s32 %s588, 1
      %p592 = scmp.eq.s32.totalorder %s119, 1
      %p593 = scmp.ne.s32.totalorder %s588, %s590
      %p594 = scmp.eq.s32.totalorder %s119, 0
      %p595 = por %p593, %p594
      %p596 = scmp.ne.s32.totalorder %s588, %s590
      %p597 = scmp.eq.s32.totalorder %s124, 1
      %p598 = por %p596, %p597
      %p599 = scmp.ne.s32.totalorder %s590, %s591
      %p600 = scmp.eq.s32.totalorder %s124, 0
      %p601 = por %p599, %p600
      %p602 = scmp.ne.s32.totalorder %s590, %s591
      %p603 = scmp.eq.s32.totalorder %s125, 1
      %p604 = por %p602, %p603
      %p606 = scmp.ne.s32.totalorder %s591, %s605
      %p607 = scmp.eq.s32.totalorder %s125, 0
      %p608 = por %p606, %p607
      %s610 = sadd.s32 %s609, 1
      %p613 = scmp.eq.s32.totalorder %s119, 1
      %p614 = scmp.ne.s32.totalorder %s609, %s611
      %p615 = scmp.eq.s32.totalorder %s119, 0
      %p616 = por %p614, %p615
      %p617 = scmp.ne.s32.totalorder %s609, %s611
      %p618 = scmp.eq.s32.totalorder %s124, 1
      %p619 = por %p617, %p618
      %p620 = scmp.ne.s32.totalorder %s611, %s612
      %p621 = scmp.eq.s32.totalorder %s124, 0
      %p622 = por %p620, %p621
      %p623 = scmp.ne.s32.totalorder %s611, %s612
      %p624 = scmp.eq.s32.totalorder %s125, 1
      %p625 = por %p623, %p624
      %p627 = scmp.ne.s32.totalorder %s612, %s626
      %p628 = scmp.eq.s32.totalorder %s125, 0
      %p629 = por %p627, %p628
      %s631 = sadd.s32 %s630, 1
      %p634 = scmp.eq.s32.totalorder %s119, 1
      %p635 = scmp.ne.s32.totalorder %s630, %s632
      %p636 = scmp.eq.s32.totalorder %s119, 0
      %p637 = por %p635, %p636
      %p638 = scmp.ne.s32.totalorder %s630, %s632
      %p639 = scmp.eq.s32.totalorder %s124, 1
      %p640 = por %p638, %p639
      %p641 = scmp.ne.s32.totalorder %s632, %s633
      %p642 = scmp.eq.s32.totalorder %s124, 0
      %p643 = por %p641, %p642
      %p644 = scmp.ne.s32.totalorder %s632, %s633
      %p645 = scmp.eq.s32.totalorder %s125, 1
      %p646 = por %p644, %p645
      %p648 = scmp.ne.s32.totalorder %s633, %s647
      %p649 = scmp.eq.s32.totalorder %s125, 0
      %p650 = por %p648, %p649
      %s652 = sadd.s32 %s651, 1
      %p655 = scmp.eq.s32.totalorder %s119, 1
      %p656 = scmp.ne.s32.totalorder %s651, %s653
      %p657 = scmp.eq.s32.totalorder %s119, 0
      %p658 = por %p656, %p657
      %p659 = scmp.ne.s32.totalorder %s651, %s653
      %p660 = scmp.eq.s32.totalorder %s124, 1
      %p661 = por %p659, %p660
      %p662 = scmp.ne.s32.totalorder %s653, %s654
      %p663 = scmp.eq.s32.totalorder %s124, 0
      %p664 = por %p662, %p663
      %p665 = scmp.ne.s32.totalorder %s653, %s654
      %p666 = scmp.eq.s32.totalorder %s125, 1
      %p667 = por %p665, %p666
      %p669 = scmp.ne.s32.totalorder %s654, %s668
      %p670 = scmp.eq.s32.totalorder %s125, 0
      %p671 = por %p669, %p670
      %s673 = sadd.s32 %s672, 1
      %p676 = scmp.eq.s32.totalorder %s119, 1
      %p677 = scmp.ne.s32.totalorder %s672, %s674
      %p678 = scmp.eq.s32.totalorder %s119, 0
      %p679 = por %p677, %p678
      %p680 = scmp.ne.s32.totalorder %s672, %s674
      %p681 = scmp.eq.s32.totalorder %s124, 1
      %p682 = por %p680, %p681
      %p683 = scmp.ne.s32.totalorder %s674, %s675
      %p684 = scmp.eq.s32.totalorder %s124, 0
      %p685 = por %p683, %p684
      %p686 = scmp.ne.s32.totalorder %s674, %s675
      %p687 = scmp.eq.s32.totalorder %s125, 1
      %p688 = por %p686, %p687
      %p690 = scmp.ne.s32.totalorder %s675, %s689
      %p691 = scmp.eq.s32.totalorder %s125, 0
      %p692 = por %p690, %p691
      %s694 = sadd.s32 %s693, 1
      %p697 = scmp.eq.s32.totalorder %s119, 1
      %p698 = scmp.ne.s32.totalorder %s693, %s695
      %p699 = scmp.eq.s32.totalorder %s119, 0
      %p700 = por %p698, %p699
      %p701 = scmp.ne.s32.totalorder %s693, %s695
      %p702 = scmp.eq.s32.totalorder %s124, 1
      %p703 = por %p701, %p702
      %p704 = scmp.ne.s32.totalorder %s695, %s696
      %p705 = scmp.eq.s32.totalorder %s124, 0
      %p706 = por %p704, %p705
      %p707 = scmp.ne.s32.totalorder %s695, %s696
      %p708 = scmp.eq.s32.totalorder %s125, 1
      %p709 = por %p707, %p708
      %p711 = scmp.ne.s32.totalorder %s696, %s710
      %p712 = scmp.eq.s32.totalorder %s125, 0
      %p713 = por %p711, %p712
      %s715 = sadd.s32 %s714, 1
      %p718 = scmp.eq.s32.totalorder %s119, 1
      %p719 = scmp.ne.s32.totalorder %s714, %s716
      %p720 = scmp.eq.s32.totalorder %s119, 0
      %p721 = por %p719, %p720
      %p722 = scmp.ne.s32.totalorder %s714, %s716
      %p723 = scmp.eq.s32.totalorder %s124, 1
      %p724 = por %p722, %p723
      %p725 = scmp.ne.s32.totalorder %s716, %s717
      %p726 = scmp.eq.s32.totalorder %s124, 0
      %p727 = por %p725, %p726
      %p728 = scmp.ne.s32.totalorder %s716, %s717
      %p729 = scmp.eq.s32.totalorder %s125, 1
      %p730 = por %p728, %p729
      %p732 = scmp.ne.s32.totalorder %s717, %s731
      %p733 = scmp.eq.s32.totalorder %s125, 0
      %p734 = por %p732, %p733
      %s736 = sadd.s32 %s735, 1
      %p739 = scmp.eq.s32.totalorder %s119, 1
      %p740 = scmp.ne.s32.totalorder %s735, %s737
      %p741 = scmp.eq.s32.totalorder %s119, 0
      %p742 = por %p740, %p741
      %p743 = scmp.ne.s32.totalorder %s735, %s737
      %p744 = scmp.eq.s32.totalorder %s124, 1
      %p745 = por %p743, %p744
      %p746 = scmp.ne.s32.totalorder %s737, %s738
      %p747 = scmp.eq.s32.totalorder %s124, 0
      %p748 = por %p746, %p747
      %p749 = scmp.ne.s32.totalorder %s737, %s738
      %p750 = scmp.eq.s32.totalorder %s125, 1
      %p751 = por %p749, %p750
      %p753 = scmp.ne.s32.totalorder %s738, %s752
      %p754 = scmp.eq.s32.totalorder %s125, 0
      %p755 = por %p753, %p754
      %s757 = sadd.s32 %s756, 1
      %p760 = scmp.eq.s32.totalorder %s119, 1
      %p761 = scmp.ne.s32.totalorder %s756, %s758
      %p762 = scmp.eq.s32.totalorder %s119, 0
      %p763 = por %p761, %p762
      %p764 = scmp.ne.s32.totalorder %s756, %s758
      %p765 = scmp.eq.s32.totalorder %s124, 1
      %p766 = por %p764, %p765
      %p767 = scmp.ne.s32.totalorder %s758, %s759
      %p768 = scmp.eq.s32.totalorder %s124, 0
      %p769 = por %p767, %p768
      %p770 = scmp.ne.s32.totalorder %s758, %s759
      %p771 = scmp.eq.s32.totalorder %s125, 1
      %p772 = por %p770, %p771
      %p774 = scmp.ne.s32.totalorder %s759, %s773
      %p775 = scmp.eq.s32.totalorder %s125, 0
      %p776 = por %p774, %p775
      %s778 = sadd.s32 %s777, 1
      %p781 = scmp.eq.s32.totalorder %s119, 1
      %p782 = scmp.ne.s32.totalorder %s777, %s779
      %p783 = scmp.eq.s32.totalorder %s119, 0
      %p784 = por %p782, %p783
      %p785 = scmp.ne.s32.totalorder %s777, %s779
      %p786 = scmp.eq.s32.totalorder %s124, 1
      %p787 = por %p785, %p786
      %p788 = scmp.ne.s32.totalorder %s779, %s780
      %p789 = scmp.eq.s32.totalorder %s124, 0
      %p790 = por %p788, %p789
      %p791 = scmp.ne.s32.totalorder %s779, %s780
      %p792 = scmp.eq.s32.totalorder %s125, 1
      %p793 = por %p791, %p792
      %p795 = scmp.ne.s32.totalorder %s780, %s794
      %p796 = scmp.eq.s32.totalorder %s125, 0
      %p797 = por %p795, %p796
      %s799 = sadd.s32 %s798, 1
      %p802 = scmp.eq.s32.totalorder %s119, 1
      %p803 = scmp.ne.s32.totalorder %s798, %s800
      %p804 = scmp.eq.s32.totalorder %s119, 0
      %p805 = por %p803, %p804
      %p806 = scmp.ne.s32.totalorder %s798, %s800
      %p807 = scmp.eq.s32.totalorder %s124, 1
      %p808 = por %p806, %p807
      %p809 = scmp.ne.s32.totalorder %s800, %s801
      %p810 = scmp.eq.s32.totalorder %s124, 0
      %p811 = por %p809, %p810
      %p812 = scmp.ne.s32.totalorder %s800, %s801
      %p813 = scmp.eq.s32.totalorder %s125, 1
      %p814 = por %p812, %p813
      %p816 = scmp.ne.s32.totalorder %s801, %s815
      %p817 = scmp.eq.s32.totalorder %s125, 0
      %p818 = por %p816, %p817
      %s820 = sadd.s32 %s819, 1
      %p823 = scmp.eq.s32.totalorder %s119, 1
      %p824 = scmp.ne.s32.totalorder %s819, %s821
      %p825 = scmp.eq.s32.totalorder %s119, 0
      %p826 = por %p824, %p825
      %p827 = scmp.ne.s32.totalorder %s819, %s821
      %p828 = scmp.eq.s32.totalorder %s124, 1
      %p829 = por %p827, %p828
      %p830 = scmp.ne.s32.totalorder %s821, %s822
      %p831 = scmp.eq.s32.totalorder %s124, 0
      %p832 = por %p830, %p831
      %p833 = scmp.ne.s32.totalorder %s821, %s822
      %p834 = scmp.eq.s32.totalorder %s125, 1
      %p835 = por %p833, %p834
      %p837 = scmp.ne.s32.totalorder %s822, %s836
      %p838 = scmp.eq.s32.totalorder %s125, 0
      %p839 = por %p837, %p838
      %s841 = sadd.s32 %s840, 1
      %p844 = scmp.eq.s32.totalorder %s119, 1
      %p845 = scmp.ne.s32.totalorder %s840, %s842
      %p846 = scmp.eq.s32.totalorder %s119, 0
      %p847 = por %p845, %p846
      %p848 = scmp.ne.s32.totalorder %s840, %s842
      %p849 = scmp.eq.s32.totalorder %s124, 1
      %p850 = por %p848, %p849
      %p851 = scmp.ne.s32.totalorder %s842, %s843
      %p852 = scmp.eq.s32.totalorder %s124, 0
      %p853 = por %p851, %p852
      %p854 = scmp.ne.s32.totalorder %s842, %s843
      %p855 = scmp.eq.s32.totalorder %s125, 1
      %p856 = por %p854, %p855
      %p858 = scmp.ne.s32.totalorder %s843, %s857
      %p859 = scmp.eq.s32.totalorder %s125, 0
      %p860 = por %p858, %p859
      %s862 = sadd.s32 %s861, 1
      %p865 = scmp.eq.s32.totalorder %s119, 1
      %p866 = scmp.ne.s32.totalorder %s861, %s863
      %p867 = scmp.eq.s32.totalorder %s119, 0
      %p868 = por %p866, %p867
      %p869 = scmp.ne.s32.totalorder %s861, %s863
      %p870 = scmp.eq.s32.totalorder %s124, 1
      %p871 = por %p869, %p870
      %p872 = scmp.ne.s32.totalorder %s863, %s864
      %p873 = scmp.eq.s32.totalorder %s124, 0
      %p874 = por %p872, %p873
      %p875 = scmp.ne.s32.totalorder %s863, %s864
      %p876 = scmp.eq.s32.totalorder %s125, 1
      %p877 = por %p875, %p876
      %p879 = scmp.ne.s32.totalorder %s864, %s878
      %p880 = scmp.eq.s32.totalorder %s125, 0
      %p881 = por %p879, %p880
      %s883 = sadd.s32 %s882, 1
      %p886 = scmp.eq.s32.totalorder %s119, 1
      %p887 = scmp.ne.s32.totalorder %s882, %s884
      %p888 = scmp.eq.s32.totalorder %s119, 0
      %p889 = por %p887, %p888
      %p890 = scmp.ne.s32.totalorder %s882, %s884
      %p891 = scmp.eq.s32.totalorder %s124, 1
      %p892 = por %p890, %p891
      %p893 = scmp.ne.s32.totalorder %s884, %s885
      %p894 = scmp.eq.s32.totalorder %s124, 0
      %p895 = por %p893, %p894
      %p896 = scmp.ne.s32.totalorder %s884, %s885
      %p897 = scmp.eq.s32.totalorder %s125, 1
      %p898 = por %p896, %p897
      %p900 = scmp.ne.s32.totalorder %s885, %s899
      %p901 = scmp.eq.s32.totalorder %s125, 0
      %p902 = por %p900, %p901
      %s904 = sadd.s32 %s903, 1
      %p907 = scmp.eq.s32.totalorder %s119, 1
      %p908 = scmp.ne.s32.totalorder %s903, %s905
      %p909 = scmp.eq.s32.totalorder %s119, 0
      %p910 = por %p908, %p909
      %p911 = scmp.ne.s32.totalorder %s903, %s905
      %p912 = scmp.eq.s32.totalorder %s124, 1
      %p913 = por %p911, %p912
      %p914 = scmp.ne.s32.totalorder %s905, %s906
      %p915 = scmp.eq.s32.totalorder %s124, 0
      %p916 = por %p914, %p915
      %p917 = scmp.ne.s32.totalorder %s905, %s906
      %p918 = scmp.eq.s32.totalorder %s125, 1
      %p919 = por %p917, %p918
      %p921 = scmp.ne.s32.totalorder %s906, %s920
      %p922 = scmp.eq.s32.totalorder %s125, 0
      %p923 = por %p921, %p922
      %s925 = sadd.s32 %s924, 1
      %p928 = scmp.eq.s32.totalorder %s119, 1
      %p929 = scmp.ne.s32.totalorder %s924, %s926
      %p930 = scmp.eq.s32.totalorder %s119, 0
      %p931 = por %p929, %p930
      %p932 = scmp.ne.s32.totalorder %s924, %s926
      %p933 = scmp.eq.s32.totalorder %s124, 1
      %p934 = por %p932, %p933
      %p935 = scmp.ne.s32.totalorder %s926, %s927
      %p936 = scmp.eq.s32.totalorder %s124, 0
      %p937 = por %p935, %p936
      %p938 = scmp.ne.s32.totalorder %s926, %s927
      %p939 = scmp.eq.s32.totalorder %s125, 1
      %p940 = por %p938, %p939
      %p942 = scmp.ne.s32.totalorder %s927, %s941
      %p943 = scmp.eq.s32.totalorder %s125, 0
      %p944 = por %p942, %p943
      %s946 = sadd.s32 %s945, 1
      %p949 = scmp.eq.s32.totalorder %s119, 1
      %p950 = scmp.ne.s32.totalorder %s945, %s947
      %p951 = scmp.eq.s32.totalorder %s119, 0
      %p952 = por %p950, %p951
      %p953 = scmp.ne.s32.totalorder %s945, %s947
      %p954 = scmp.eq.s32.totalorder %s124, 1
      %p955 = por %p953, %p954
      %p956 = scmp.ne.s32.totalorder %s947, %s948
      %p957 = scmp.eq.s32.totalorder %s124, 0
      %p958 = por %p956, %p957
      %p959 = scmp.ne.s32.totalorder %s947, %s948
      %p960 = scmp.eq.s32.totalorder %s125, 1
      %p961 = por %p959, %p960
      %p963 = scmp.ne.s32.totalorder %s948, %s962
      %p964 = scmp.eq.s32.totalorder %s125, 0
      %p965 = por %p963, %p964
      %s967 = sadd.s32 %s966, 1
      %p970 = scmp.eq.s32.totalorder %s119, 1
      %p971 = scmp.ne.s32.totalorder %s966, %s968
      %p972 = scmp.eq.s32.totalorder %s119, 0
      %p973 = por %p971, %p972
      %p974 = scmp.ne.s32.totalorder %s966, %s968
      %p975 = scmp.eq.s32.totalorder %s124, 1
      %p976 = por %p974, %p975
      %p977 = scmp.ne.s32.totalorder %s968, %s969
      %p978 = scmp.eq.s32.totalorder %s124, 0
      %p979 = por %p977, %p978
      %p980 = scmp.ne.s32.totalorder %s968, %s969
      %p981 = scmp.eq.s32.totalorder %s125, 1
      %p982 = por %p980, %p981
      %p984 = scmp.ne.s32.totalorder %s969, %s983
      %p985 = scmp.eq.s32.totalorder %s125, 0
      %p986 = por %p984, %p985
      %s988 = sadd.s32 %s987, 1
      %p991 = scmp.eq.s32.totalorder %s119, 1
      %p992 = scmp.ne.s32.totalorder %s987, %s989
      %p993 = scmp.eq.s32.totalorder %s119, 0
      %p994 = por %p992, %p993
      %p995 = scmp.ne.s32.totalorder %s987, %s989
      %p996 = scmp.eq.s32.totalorder %s124, 1
      %p997 = por %p995, %p996
      %p998 = scmp.ne.s32.totalorder %s989, %s990
      %p999 = scmp.eq.s32.totalorder %s124, 0
      %p1000 = por %p998, %p999
      %p1001 = scmp.ne.s32.totalorder %s989, %s990
      %p1002 = scmp.eq.s32.totalorder %s125, 1
      %p1003 = por %p1001, %p1002
      %p1005 = scmp.ne.s32.totalorder %s990, %s1004
      %p1006 = scmp.eq.s32.totalorder %s125, 0
      %p1007 = por %p1005, %p1006
      %s1009 = sadd.s32 %s1008, 1
      %p1012 = scmp.eq.s32.totalorder %s119, 1
      %p1013 = scmp.ne.s32.totalorder %s1008, %s1010
      %p1014 = scmp.eq.s32.totalorder %s119, 0
      %p1015 = por %p1013, %p1014
      %p1016 = scmp.ne.s32.totalorder %s1008, %s1010
      %p1017 = scmp.eq.s32.totalorder %s124, 1
      %p1018 = por %p1016, %p1017
      %p1019 = scmp.ne.s32.totalorder %s1010, %s1011
      %p1020 = scmp.eq.s32.totalorder %s124, 0
      %p1021 = por %p1019, %p1020
      %p1022 = scmp.ne.s32.totalorder %s1010, %s1011
      %p1023 = scmp.eq.s32.totalorder %s125, 1
      %p1024 = por %p1022, %p1023
      %p1026 = scmp.ne.s32.totalorder %s1011, %s1025
      %p1027 = scmp.eq.s32.totalorder %s125, 0
      %p1028 = por %p1026, %p1027
      %s1030 = sadd.s32 %s1029, 1
      %p1033 = scmp.eq.s32.totalorder %s119, 1
      %p1034 = scmp.ne.s32.totalorder %s1029, %s1031
      %p1035 = scmp.eq.s32.totalorder %s119, 0
      %p1036 = por %p1034, %p1035
      %p1037 = scmp.ne.s32.totalorder %s1029, %s1031
      %p1038 = scmp.eq.s32.totalorder %s124, 1
      %p1039 = por %p1037, %p1038
      %p1040 = scmp.ne.s32.totalorder %s1031, %s1032
      %p1041 = scmp.eq.s32.totalorder %s124, 0
      %p1042 = por %p1040, %p1041
      %p1043 = scmp.ne.s32.totalorder %s1031, %s1032
      %p1044 = scmp.eq.s32.totalorder %s125, 1
      %p1045 = por %p1043, %p1044
      %p1047 = scmp.ne.s32.totalorder %s1032, %s1046
      %p1048 = scmp.eq.s32.totalorder %s125, 0
      %p1049 = por %p1047, %p1048
      %s1051 = sadd.s32 %s1050, 1
      %p1054 = scmp.eq.s32.totalorder %s119, 1
      %p1055 = scmp.ne.s32.totalorder %s1050, %s1052
      %p1056 = scmp.eq.s32.totalorder %s119, 0
      %p1057 = por %p1055, %p1056
      %p1058 = scmp.ne.s32.totalorder %s1050, %s1052
      %p1059 = scmp.eq.s32.totalorder %s124, 1
      %p1060 = por %p1058, %p1059
      %p1061 = scmp.ne.s32.totalorder %s1052, %s1053
      %p1062 = scmp.eq.s32.totalorder %s124, 0
      %p1063 = por %p1061, %p1062
      %p1064 = scmp.ne.s32.totalorder %s1052, %s1053
      %p1065 = scmp.eq.s32.totalorder %s125, 1
      %p1066 = por %p1064, %p1065
      %p1068 = scmp.ne.s32.totalorder %s1053, %s1067
      %p1069 = scmp.eq.s32.totalorder %s125, 0
      %p1070 = por %p1068, %p1069
      %s1072 = sadd.s32 %s1071, 1
      %p1075 = scmp.eq.s32.totalorder %s119, 1
      %p1076 = scmp.ne.s32.totalorder %s1071, %s1073
      %p1077 = scmp.eq.s32.totalorder %s119, 0
      %p1078 = por %p1076, %p1077
      %p1079 = scmp.ne.s32.totalorder %s1071, %s1073
      %p1080 = scmp.eq.s32.totalorder %s124, 1
      %p1081 = por %p1079, %p1080
      %p1082 = scmp.ne.s32.totalorder %s1073, %s1074
      %p1083 = scmp.eq.s32.totalorder %s124, 0
      %p1084 = por %p1082, %p1083
      %p1085 = scmp.ne.s32.totalorder %s1073, %s1074
      %p1086 = scmp.eq.s32.totalorder %s125, 1
      %p1087 = por %p1085, %p1086
      %p1089 = scmp.ne.s32.totalorder %s1074, %s1088
      %p1090 = scmp.eq.s32.totalorder %s125, 0
      %p1091 = por %p1089, %p1090
      %s1093 = sadd.s32 %s1092, 1
      %p1096 = scmp.eq.s32.totalorder %s119, 1
      %p1097 = scmp.ne.s32.totalorder %s1092, %s1094
      %p1098 = scmp.eq.s32.totalorder %s119, 0
      %p1099 = por %p1097, %p1098
      %p1100 = scmp.ne.s32.totalorder %s1092, %s1094
      %p1101 = scmp.eq.s32.totalorder %s124, 1
      %p1102 = por %p1100, %p1101
      %p1103 = scmp.ne.s32.totalorder %s1094, %s1095
      %p1104 = scmp.eq.s32.totalorder %s124, 0
      %p1105 = por %p1103, %p1104
      %p1106 = scmp.ne.s32.totalorder %s1094, %s1095
      %p1107 = scmp.eq.s32.totalorder %s125, 1
      %p1108 = por %p1106, %p1107
      %p1110 = scmp.ne.s32.totalorder %s1095, %s1109
      %p1111 = scmp.eq.s32.totalorder %s125, 0
      %p1112 = por %p1110, %p1111
      %s1113 = ssub.s32 %s119, %s126
      %p1114 = scmp.eq.s32.totalorder %s1113, 0
      %s1116 = sadd.s32 %s1115, 1
      %s1117 = scalar_select %p1114, %s1115, %s1116
      %p1120 = pneg %p1114
      %p1121 = scmp.eq.s32.totalorder %s119, 1
      %p1122 = por %p1120, %p1121
      %p1123 = scmp.ne.s32.totalorder %s1115, %s1118
      %p1124 = scmp.eq.s32.totalorder %s119, 0
      %p1125 = por %p1123, %p1124
      %p1126 = scmp.ne.s32.totalorder %s1115, %s1118
      %p1127 = scmp.eq.s32.totalorder %s124, 1
      %p1128 = por %p1126, %p1127
      %p1129 = scmp.ne.s32.totalorder %s1118, %s1119
      %p1130 = scmp.eq.s32.totalorder %s124, 0
      %p1131 = por %p1129, %p1130
      %p1132 = scmp.ne.s32.totalorder %s1118, %s1119
      %p1133 = scmp.eq.s32.totalorder %s125, 1
      %p1134 = por %p1132, %p1133
      %p1136 = scmp.ne.s32.totalorder %s1119, %s1135
      %p1137 = scmp.eq.s32.totalorder %s125, 0
      %p1138 = por %p1136, %p1137
      %p1139 = scmp.le.s32.totalorder 1, %s119
      %p1140 = scmp.lt.s32.totalorder %s119, 3
      %p1141 = pnand %p1139, %p1140
      %p1142 = pneg %p1141
      // Predicated region
      $region9: #{tpu_custom_call.1} parent=5 // pred_check
        _
      $region10: #{tpu_custom_call.1} parent=5 // pred_check_branch
        %1144 = sbr.rel (%p1141) target = $region12
      $region11: #{tpu_custom_call.1} parent=5 // pred_region
        %s1145 = ssub.s32 %s119, 1
        // Predicated region
        $region13: #{tpu_custom_call.1} parent=11 // pred_check
          %p1146 = pneg %p244
        $region14: #{tpu_custom_call.1} parent=11 // pred_check_branch
          %1148 = sbr.rel (%p1146) target = $region16
        $region15: #{tpu_custom_call.1} parent=11 // pred_region
          _
        $region16: #{tpu_custom_call.1} parent=11 // pred_fallthru
          _
        // Predicated region
        $region17: #{tpu_custom_call.1} parent=11 // pred_check
          %p1149 = pneg %p265
        $region18: #{tpu_custom_call.1} parent=11 // pred_check_branch
          %1151 = sbr.rel (%p1149) target = $region20
        $region19: #{tpu_custom_call.1} parent=11 // pred_region
          %1153 = vsyncadd [#allocation6], 0
          %s1155 = sshll.u32 %s11, 4
          %s1156 = int_to_ptr.hbm [resolvable:$true] %s1155
          %s1157 = sshll.u32 [#allocation7], 4
          %s1158 = int_to_ptr.vmem [resolvable:$true] %s1157
          %1160 = dma.hbm_to_vmem [thread:$0]  %s1156, 16, %s1158, [#allocation6]
        $region20: #{tpu_custom_call.1} parent=11 // pred_fallthru
          _
        // Predicated region
        $region21: #{tpu_custom_call.1} parent=11 // pred_check
          %p1161 = pneg %p286
        $region22: #{tpu_custom_call.1} parent=11 // pred_check_branch
          %1163 = sbr.rel (%p1161) target = $region24
        $region23: #{tpu_custom_call.1} parent=11 // pred_region
          %1165 = vsyncadd [#allocation9], 0
          %s1166 = sshll.u32 %s13, 4
          %s1167 = int_to_ptr.hbm [resolvable:$true] %s1166
          %s1168 = sshll.u32 [#allocation8], 4
          %s1169 = int_to_ptr.vmem [resolvable:$true] %s1168
          %1174 = dma.hbm_to_vmem [thread:$0]  %s1167, 512, %s1169, [#allocation9], 128, 128, 8
        $region24: #{tpu_custom_call.1} parent=11 // pred_fallthru
          _
        // Predicated region
        $region25: #{tpu_custom_call.1} parent=11 // pred_check
          %p1175 = pneg %p307
        $region26: #{tpu_custom_call.1} parent=11 // pred_check_branch
          %1177 = sbr.rel (%p1175) target = $region28
        $region27: #{tpu_custom_call.1} parent=11 // pred_region
          %1179 = vsyncadd [#allocation9], 0
          %s1181 = sshll.u32 %s15, 4
          %s1182 = int_to_ptr.hbm [resolvable:$true] %s1181
          %s1183 = sshll.u32 [#allocation10], 4
          %s1184 = int_to_ptr.vmem [resolvable:$true] %s1183
          %1186 = dma.hbm_to_vmem [thread:$0]  %s1182, 16, %s1184, [#allocation9]
        $region28: #{tpu_custom_call.1} parent=11 // pred_fallthru
          _
        // Predicated region
        $region29: #{tpu_custom_call.1} parent=11 // pred_check
          %p1187 = pneg %p328
        $region30: #{tpu_custom_call.1} parent=11 // pred_check_branch
          %1189 = sbr.rel (%p1187) target = $region32
        $region31: #{tpu_custom_call.1} parent=11 // pred_region
          %1191 = vsyncadd [#allocation12], 0
          %s1193 = sshll.u32 %s17, 4
          %s1194 = int_to_ptr.hbm [resolvable:$true] %s1193
          %s1195 = sshll.u32 [#allocation11], 4
          %s1196 = int_to_ptr.vmem [resolvable:$true] %s1195
          %1198 = dma.hbm_to_vmem [thread:$0]  %s1194, 16, %s1196, [#allocation12]
        $region32: #{tpu_custom_call.1} parent=11 // pred_fallthru
          _
        // Predicated region
        $region33: #{tpu_custom_call.1} parent=11 // pred_check
          %p1199 = pneg %p349
        $region34: #{tpu_custom_call.1} parent=11 // pred_check_branch
          %1201 = sbr.rel (%p1199) target = $region36
        $region35: #{tpu_custom_call.1} parent=11 // pred_region
          %1203 = vsyncadd [#allocation12], 0
          %s1205 = sshll.u32 %s19, 4
          %s1206 = int_to_ptr.hbm [resolvable:$true] %s1205
          %s1207 = sshll.u32 [#allocation13], 4
          %s1208 = int_to_ptr.vmem [resolvable:$true] %s1207
          %1210 = dma.hbm_to_vmem [thread:$0]  %s1206, 16, %s1208, [#allocation12]
        $region36: #{tpu_custom_call.1} parent=11 // pred_fallthru
          _
        // Predicated region
        $region37: #{tpu_custom_call.1} parent=11 // pred_check
          %p1211 = pneg %p370
        $region38: #{tpu_custom_call.1} parent=11 // pred_check_branch
          %1213 = sbr.rel (%p1211) target = $region40
        $region39: #{tpu_custom_call.1} parent=11 // pred_region
          %1215 = vsyncadd [#allocation15], 0
          %s1217 = sshll.u32 %s21, 4
          %s1218 = int_to_ptr.hbm [resolvable:$true] %s1217
          %s1219 = sshll.u32 [#allocation14], 4
          %s1220 = int_to_ptr.vmem [resolvable:$true] %s1219
          %1222 = dma.hbm_to_vmem [thread:$0]  %s1218, 16, %s1220, [#allocation15]
        $region40: #{tpu_custom_call.1} parent=11 // pred_fallthru
          _
        // Predicated region
        $region41: #{tpu_custom_call.1} parent=11 // pred_check
          %p1223 = pneg %p391
        $region42: #{tpu_custom_call.1} parent=11 // pred_check_branch
          %1225 = sbr.rel (%p1223) target = $region44
        $region43: #{tpu_custom_call.1} parent=11 // pred_region
          %1227 = vsyncadd [#allocation15], 0
          %s1229 = sshll.u32 %s23, 4
          %s1230 = int_to_ptr.hbm [resolvable:$true] %s1229
          %s1231 = sshll.u32 [#allocation16], 4
          %s1232 = int_to_ptr.vmem [resolvable:$true] %s1231
          %1234 = dma.hbm_to_vmem [thread:$0]  %s1230, 16, %s1232, [#allocation15]
        $region44: #{tpu_custom_call.1} parent=11 // pred_fallthru
          _
        // Predicated region
        $region45: #{tpu_custom_call.1} parent=11 // pred_check
          %p1235 = pneg %p412
        $region46: #{tpu_custom_call.1} parent=11 // pred_check_branch
          %1237 = sbr.rel (%p1235) target = $region48
        $region47: #{tpu_custom_call.1} parent=11 // pred_region
          _
        $region48: #{tpu_custom_call.1} parent=11 // pred_fallthru
          _
        // Predicated region
        $region49: #{tpu_custom_call.1} parent=11 // pred_check
          %p1238 = pneg %p433
        $region50: #{tpu_custom_call.1} parent=11 // pred_check_branch
          %1240 = sbr.rel (%p1238) target = $region52
        $region51: #{tpu_custom_call.1} parent=11 // pred_region
          _
        $region52: #{tpu_custom_call.1} parent=11 // pred_fallthru
          _
        // Predicated region
        $region53: #{tpu_custom_call.1} parent=11 // pred_check
          %p1241 = pneg %p454
        $region54: #{tpu_custom_call.1} parent=11 // pred_check_branch
          %1243 = sbr.rel (%p1241) target = $region56
        $region55: #{tpu_custom_call.1} parent=11 // pred_region
          _
        $region56: #{tpu_custom_call.1} parent=11 // pred_fallthru
          _
        // Predicated region
        $region57: #{tpu_custom_call.1} parent=11 // pred_check
          %p1244 = pneg %p475
        $region58: #{tpu_custom_call.1} parent=11 // pred_check_branch
          %1246 = sbr.rel (%p1244) target = $region60
        $region59: #{tpu_custom_call.1} parent=11 // pred_region
          _
        $region60: #{tpu_custom_call.1} parent=11 // pred_fallthru
          _
        // Predicated region
        $region61: #{tpu_custom_call.1} parent=11 // pred_check
          %p1247 = pneg %p496
        $region62: #{tpu_custom_call.1} parent=11 // pred_check_branch
          %1249 = sbr.rel (%p1247) target = $region64
        $region63: #{tpu_custom_call.1} parent=11 // pred_region
          _
        $region64: #{tpu_custom_call.1} parent=11 // pred_fallthru
          _
        // Predicated region
        $region65: #{tpu_custom_call.1} parent=11 // pred_check
          %p1250 = pneg %p517
        $region66: #{tpu_custom_call.1} parent=11 // pred_check_branch
          %1252 = sbr.rel (%p1250) target = $region68
        $region67: #{tpu_custom_call.1} parent=11 // pred_region
          %1254 = vsyncadd [#allocation18], 0
          %s1255 = sshll.u32 %s35, 4
          %s1256 = int_to_ptr.hbm [resolvable:$true] %s1255
          %s1257 = sshll.u32 [#allocation17], 4
          %s1258 = int_to_ptr.vmem [resolvable:$true] %s1257
          %1263 = dma.hbm_to_vmem [thread:$0]  %s1256, 32, %s1258, [#allocation18], 16, 16, 1
        $region68: #{tpu_custom_call.1} parent=11 // pred_fallthru
          _
        // Predicated region
        $region69: #{tpu_custom_call.1} parent=11 // pred_check
          %p1264 = pneg %p538
        $region70: #{tpu_custom_call.1} parent=11 // pred_check_branch
          %1266 = sbr.rel (%p1264) target = $region72
        $region71: #{tpu_custom_call.1} parent=11 // pred_region
          %1268 = vsyncadd [#allocation18], 0
          %s1269 = sshll.u32 %s37, 4
          %s1270 = int_to_ptr.hbm [resolvable:$true] %s1269
          %s1271 = sshll.u32 [#allocation19], 4
          %s1272 = int_to_ptr.vmem [resolvable:$true] %s1271
          %1277 = dma.hbm_to_vmem [thread:$0]  %s1270, 32, %s1272, [#allocation18], 16, 16, 1
        $region72: #{tpu_custom_call.1} parent=11 // pred_fallthru
          _
        // Predicated region
        $region73: #{tpu_custom_call.1} parent=11 // pred_check
          %p1278 = pneg %p559
        $region74: #{tpu_custom_call.1} parent=11 // pred_check_branch
          %1280 = sbr.rel (%p1278) target = $region76
        $region75: #{tpu_custom_call.1} parent=11 // pred_region
          %1282 = vsyncadd [#allocation21], 0
          %s1283 = sshll.u32 %s39, 4
          %s1284 = int_to_ptr.hbm [resolvable:$true] %s1283
          %s1285 = sshll.u32 [#allocation20], 4
          %s1286 = int_to_ptr.vmem [resolvable:$true] %s1285
          %1291 = dma.hbm_to_vmem [thread:$0]  %s1284, 32, %s1286, [#allocation21], 16, 16, 1
        $region76: #{tpu_custom_call.1} parent=11 // pred_fallthru
          _
        // Predicated region
        $region77: #{tpu_custom_call.1} parent=11 // pred_check
          %p1292 = pneg %p580
        $region78: #{tpu_custom_call.1} parent=11 // pred_check_branch
          %1294 = sbr.rel (%p1292) target = $region80
        $region79: #{tpu_custom_call.1} parent=11 // pred_region
          _
        $region80: #{tpu_custom_call.1} parent=11 // pred_fallthru
          _
        // Predicated region
        $region81: #{tpu_custom_call.1} parent=11 // pred_check
          %p1295 = pneg %p601
        $region82: #{tpu_custom_call.1} parent=11 // pred_check_branch
          %1297 = sbr.rel (%p1295) target = $region84
        $region83: #{tpu_custom_call.1} parent=11 // pred_region
          %1299 = vsyncadd [#allocation21], 0
          %s1300 = sshll.u32 %s43, 4
          %s1301 = int_to_ptr.hbm [resolvable:$true] %s1300
          %s1302 = sshll.u32 [#allocation22], 4
          %s1303 = int_to_ptr.vmem [resolvable:$true] %s1302
          %1308 = dma.hbm_to_vmem [thread:$0]  %s1301, 32, %s1303, [#allocation21], 16, 16, 1
        $region84: #{tpu_custom_call.1} parent=11 // pred_fallthru
          _
        // Predicated region
        $region85: #{tpu_custom_call.1} parent=11 // pred_check
          %p1309 = pneg %p622
        $region86: #{tpu_custom_call.1} parent=11 // pred_check_branch
          %1311 = sbr.rel (%p1309) target = $region88
        $region87: #{tpu_custom_call.1} parent=11 // pred_region
          _
        $region88: #{tpu_custom_call.1} parent=11 // pred_fallthru
          _
        // Predicated region
        $region89: #{tpu_custom_call.1} parent=11 // pred_check
          %p1312 = pneg %p643
        $region90: #{tpu_custom_call.1} parent=11 // pred_check_branch
          %1314 = sbr.rel (%p1312) target = $region92
        $region91: #{tpu_custom_call.1} parent=11 // pred_region
          %1316 = vsyncadd [#allocation24], 0
          %s1317 = sshll.u32 %s47, 4
          %s1318 = int_to_ptr.hbm [resolvable:$true] %s1317
          %s1319 = sshll.u32 [#allocation23], 4
          %s1320 = int_to_ptr.vmem [resolvable:$true] %s1319
          %1325 = dma.hbm_to_vmem [thread:$0]  %s1318, 32, %s1320, [#allocation24], 16, 16, 1
        $region92: #{tpu_custom_call.1} parent=11 // pred_fallthru
          _
        // Predicated region
        $region93: #{tpu_custom_call.1} parent=11 // pred_check
          %p1326 = pneg %p664
        $region94: #{tpu_custom_call.1} parent=11 // pred_check_branch
          %1328 = sbr.rel (%p1326) target = $region96
        $region95: #{tpu_custom_call.1} parent=11 // pred_region
          %1330 = vsyncadd [#allocation24], 0
          %s1331 = sshll.u32 %s49, 4
          %s1332 = int_to_ptr.hbm [resolvable:$true] %s1331
          %s1333 = sshll.u32 [#allocation25], 4
          %s1334 = int_to_ptr.vmem [resolvable:$true] %s1333
          %1339 = dma.hbm_to_vmem [thread:$0]  %s1332, 32, %s1334, [#allocation24], 16, 16, 1
        $region96: #{tpu_custom_call.1} parent=11 // pred_fallthru
          _
        // Predicated region
        $region97: #{tpu_custom_call.1} parent=11 // pred_check
          %p1340 = pneg %p685
        $region98: #{tpu_custom_call.1} parent=11 // pred_check_branch
          %1342 = sbr.rel (%p1340) target = $region100
        $region99: #{tpu_custom_call.1} parent=11 // pred_region
          _
        $region100: #{tpu_custom_call.1} parent=11 // pred_fallthru
          _
        // Predicated region
        $region101: #{tpu_custom_call.1} parent=11 // pred_check
          %p1343 = pneg %p706
        $region102: #{tpu_custom_call.1} parent=11 // pred_check_branch
          %1345 = sbr.rel (%p1343) target = $region104
        $region103: #{tpu_custom_call.1} parent=11 // pred_region
          _
        $region104: #{tpu_custom_call.1} parent=11 // pred_fallthru
          _
        // Predicated region
        $region105: #{tpu_custom_call.1} parent=11 // pred_check
          %p1346 = pneg %p727
        $region106: #{tpu_custom_call.1} parent=11 // pred_check_branch
          %1348 = sbr.rel (%p1346) target = $region108
        $region107: #{tpu_custom_call.1} parent=11 // pred_region
          %1350 = vsyncadd [#allocation27], 0
          %s1351 = sshll.u32 %s55, 4
          %s1352 = int_to_ptr.hbm [resolvable:$true] %s1351
          %s1353 = sshll.u32 [#allocation26], 4
          %s1354 = int_to_ptr.vmem [resolvable:$true] %s1353
          %1359 = dma.hbm_to_vmem [thread:$0]  %s1352, 32, %s1354, [#allocation27], 16, 16, 1
        $region108: #{tpu_custom_call.1} parent=11 // pred_fallthru
          _
        // Predicated region
        $region109: #{tpu_custom_call.1} parent=11 // pred_check
          %p1360 = pneg %p748
        $region110: #{tpu_custom_call.1} parent=11 // pred_check_branch
          %1362 = sbr.rel (%p1360) target = $region112
        $region111: #{tpu_custom_call.1} parent=11 // pred_region
          _
        $region112: #{tpu_custom_call.1} parent=11 // pred_fallthru
          _
        // Predicated region
        $region113: #{tpu_custom_call.1} parent=11 // pred_check
          %p1363 = pneg %p769
        $region114: #{tpu_custom_call.1} parent=11 // pred_check_branch
          %1365 = sbr.rel (%p1363) target = $region116
        $region115: #{tpu_custom_call.1} parent=11 // pred_region
          %1367 = vsyncadd [#allocation27], 0
          %s1368 = sshll.u32 %s59, 4
          %s1369 = int_to_ptr.hbm [resolvable:$true] %s1368
          %s1370 = sshll.u32 [#allocation28], 4
          %s1371 = int_to_ptr.vmem [resolvable:$true] %s1370
          %1376 = dma.hbm_to_vmem [thread:$0]  %s1369, 32, %s1371, [#allocation27], 16, 16, 1
        $region116: #{tpu_custom_call.1} parent=11 // pred_fallthru
          _
        // Predicated region
        $region117: #{tpu_custom_call.1} parent=11 // pred_check
          %p1377 = pneg %p790
        $region118: #{tpu_custom_call.1} parent=11 // pred_check_branch
          %1379 = sbr.rel (%p1377) target = $region120
        $region119: #{tpu_custom_call.1} parent=11 // pred_region
          _
        $region120: #{tpu_custom_call.1} parent=11 // pred_fallthru
          _
        // Predicated region
        $region121: #{tpu_custom_call.1} parent=11 // pred_check
          %p1380 = pneg %p811
        $region122: #{tpu_custom_call.1} parent=11 // pred_check_branch
          %1382 = sbr.rel (%p1380) target = $region124
        $region123: #{tpu_custom_call.1} parent=11 // pred_region
          _
        $region124: #{tpu_custom_call.1} parent=11 // pred_fallthru
          _
        // Predicated region
        $region125: #{tpu_custom_call.1} parent=11 // pred_check
          %p1383 = pneg %p832
        $region126: #{tpu_custom_call.1} parent=11 // pred_check_branch
          %1385 = sbr.rel (%p1383) target = $region128
        $region127: #{tpu_custom_call.1} parent=11 // pred_region
          %1387 = vsyncadd [#allocation30], 0
          %s1388 = sshll.u32 %s65, 4
          %s1389 = int_to_ptr.hbm [resolvable:$true] %s1388
          %s1390 = sshll.u32 [#allocation29], 4
          %s1391 = int_to_ptr.vmem [resolvable:$true] %s1390
          %1396 = dma.hbm_to_vmem [thread:$0]  %s1389, 1024, %s1391, [#allocation30], 128, 128, 8
        $region128: #{tpu_custom_call.1} parent=11 // pred_fallthru
          _
        // Predicated region
        $region129: #{tpu_custom_call.1} parent=11 // pred_check
          %p1397 = pneg %p853
        $region130: #{tpu_custom_call.1} parent=11 // pred_check_branch
          %1399 = sbr.rel (%p1397) target = $region132
        $region131: #{tpu_custom_call.1} parent=11 // pred_region
          %1401 = vsyncadd [#allocation30], 0
          %s1402 = sshll.u32 %s67, 4
          %s1403 = int_to_ptr.hbm [resolvable:$true] %s1402
          %s1404 = sshll.u32 [#allocation31], 4
          %s1405 = int_to_ptr.vmem [resolvable:$true] %s1404
          %1410 = dma.hbm_to_vmem [thread:$0]  %s1403, 32, %s1405, [#allocation30], 16, 16, 1
        $region132: #{tpu_custom_call.1} parent=11 // pred_fallthru
          _
        // Predicated region
        $region133: #{tpu_custom_call.1} parent=11 // pred_check
          %p1411 = pneg %p874
        $region134: #{tpu_custom_call.1} parent=11 // pred_check_branch
          %1413 = sbr.rel (%p1411) target = $region136
        $region135: #{tpu_custom_call.1} parent=11 // pred_region
          %1415 = vsyncadd [#allocation33], 0
          %s1416 = sshll.u32 %s69, 4
          %s1417 = int_to_ptr.hbm [resolvable:$true] %s1416
          %s1418 = sshll.u32 [#allocation32], 4
          %s1419 = int_to_ptr.vmem [resolvable:$true] %s1418
          %1424 = dma.hbm_to_vmem [thread:$0]  %s1417, 1024, %s1419, [#allocation33], 128, 128, 8
        $region136: #{tpu_custom_call.1} parent=11 // pred_fallthru
          _
        // Predicated region
        $region137: #{tpu_custom_call.1} parent=11 // pred_check
          %p1425 = pneg %p895
        $region138: #{tpu_custom_call.1} parent=11 // pred_check_branch
          %1427 = sbr.rel (%p1425) target = $region140
        $region139: #{tpu_custom_call.1} parent=11 // pred_region
          _
        $region140: #{tpu_custom_call.1} parent=11 // pred_fallthru
          _
        // Predicated region
        $region141: #{tpu_custom_call.1} parent=11 // pred_check
          %p1428 = pneg %p916
        $region142: #{tpu_custom_call.1} parent=11 // pred_check_branch
          %1430 = sbr.rel (%p1428) target = $region144
        $region143: #{tpu_custom_call.1} parent=11 // pred_region
          %1432 = vsyncadd [#allocation33], 0
          %s1433 = sshll.u32 %s73, 4
          %s1434 = int_to_ptr.hbm [resolvable:$true] %s1433
          %s1435 = sshll.u32 [#allocation34], 4
          %s1436 = int_to_ptr.vmem [resolvable:$true] %s1435
          %1441 = dma.hbm_to_vmem [thread:$0]  %s1434, 1024, %s1436, [#allocation33], 128, 128, 8
        $region144: #{tpu_custom_call.1} parent=11 // pred_fallthru
          _
        // Predicated region
        $region145: #{tpu_custom_call.1} parent=11 // pred_check
          %p1442 = pneg %p937
        $region146: #{tpu_custom_call.1} parent=11 // pred_check_branch
          %1444 = sbr.rel (%p1442) target = $region148
        $region147: #{tpu_custom_call.1} parent=11 // pred_region
          _
        $region148: #{tpu_custom_call.1} parent=11 // pred_fallthru
          _
        // Predicated region
        $region149: #{tpu_custom_call.1} parent=11 // pred_check
          %p1445 = pneg %p958
        $region150: #{tpu_custom_call.1} parent=11 // pred_check_branch
          %1447 = sbr.rel (%p1445) target = $region152
        $region151: #{tpu_custom_call.1} parent=11 // pred_region
          _
        $region152: #{tpu_custom_call.1} parent=11 // pred_fallthru
          _
        // Predicated region
        $region153: #{tpu_custom_call.1} parent=11 // pred_check
          %p1448 = pneg %p979
        $region154: #{tpu_custom_call.1} parent=11 // pred_check_branch
          %1450 = sbr.rel (%p1448) target = $region156
        $region155: #{tpu_custom_call.1} parent=11 // pred_region
          %1452 = vsyncadd [#allocation36], 0
          %s1453 = sshll.u32 %s79, 4
          %s1454 = int_to_ptr.hbm [resolvable:$true] %s1453
          %s1455 = sshll.u32 [#allocation35], 4
          %s1456 = int_to_ptr.vmem [resolvable:$true] %s1455
          %1461 = dma.hbm_to_vmem [thread:$0]  %s1454, 32, %s1456, [#allocation36], 16, 16, 1
        $region156: #{tpu_custom_call.1} parent=11 // pred_fallthru
          _
        // Predicated region
        $region157: #{tpu_custom_call.1} parent=11 // pred_check
          %p1462 = pneg %p1000
        $region158: #{tpu_custom_call.1} parent=11 // pred_check_branch
          %1464 = sbr.rel (%p1462) target = $region160
        $region159: #{tpu_custom_call.1} parent=11 // pred_region
          %1466 = vsyncadd [#allocation36], 0
          %s1467 = sshll.u32 %s81, 4
          %s1468 = int_to_ptr.hbm [resolvable:$true] %s1467
          %s1469 = sshll.u32 [#allocation37], 4
          %s1470 = int_to_ptr.vmem [resolvable:$true] %s1469
          %1475 = dma.hbm_to_vmem [thread:$0]  %s1468, 1024, %s1470, [#allocation36], 128, 128, 8
        $region160: #{tpu_custom_call.1} parent=11 // pred_fallthru
          _
        // Predicated region
        $region161: #{tpu_custom_call.1} parent=11 // pred_check
          %p1476 = pneg %p1021
        $region162: #{tpu_custom_call.1} parent=11 // pred_check_branch
          %1478 = sbr.rel (%p1476) target = $region164
        $region163: #{tpu_custom_call.1} parent=11 // pred_region
          _
        $region164: #{tpu_custom_call.1} parent=11 // pred_fallthru
          _
        // Predicated region
        $region165: #{tpu_custom_call.1} parent=11 // pred_check
          %p1479 = pneg %p1042
        $region166: #{tpu_custom_call.1} parent=11 // pred_check_branch
          %1481 = sbr.rel (%p1479) target = $region168
        $region167: #{tpu_custom_call.1} parent=11 // pred_region
          _
        $region168: #{tpu_custom_call.1} parent=11 // pred_fallthru
          _
        // Predicated region
        $region169: #{tpu_custom_call.1} parent=11 // pred_check
          %p1482 = pneg %p1063
        $region170: #{tpu_custom_call.1} parent=11 // pred_check_branch
          %1484 = sbr.rel (%p1482) target = $region172
        $region171: #{tpu_custom_call.1} parent=11 // pred_region
          _
        $region172: #{tpu_custom_call.1} parent=11 // pred_fallthru
          _
        // Predicated region
        $region173: #{tpu_custom_call.1} parent=11 // pred_check
          %p1485 = pneg %p1084
        $region174: #{tpu_custom_call.1} parent=11 // pred_check_branch
          %1487 = sbr.rel (%p1485) target = $region176
        $region175: #{tpu_custom_call.1} parent=11 // pred_region
          %1489 = vsyncadd [#allocation39], 0
          %s1490 = sshll.u32 %s89, 4
          %s1491 = int_to_ptr.hbm [resolvable:$true] %s1490
          %s1492 = sshll.u32 [#allocation38], 4
          %s1493 = int_to_ptr.vmem [resolvable:$true] %s1492
          %1498 = dma.hbm_to_vmem [thread:$0]  %s1491, 512, %s1493, [#allocation39], 128, 128, 8
        $region176: #{tpu_custom_call.1} parent=11 // pred_fallthru
          _
        // Predicated region
        $region177: #{tpu_custom_call.1} parent=11 // pred_check
          %p1499 = pneg %p1105
        $region178: #{tpu_custom_call.1} parent=11 // pred_check_branch
          %1501 = sbr.rel (%p1499) target = $region180
        $region179: #{tpu_custom_call.1} parent=11 // pred_region
          _
        $region180: #{tpu_custom_call.1} parent=11 // pred_fallthru
          _
      $region12: #{tpu_custom_call.1} parent=5 // pred_fallthru
        _
      %p1502 = scmp.lt.s32.totalorder %s119, 2
      // Predicated region
      $region181: #{tpu_custom_call.1} parent=5 // pred_check
        %p1503 = pneg %p1502
      $region182: #{tpu_custom_call.1} parent=5 // pred_check_branch
        %1505 = sbr.rel (%p1503) target = $region184
      $region183: #{tpu_custom_call.1} parent=5 // pred_region
        // Predicated region
        $region185: #{tpu_custom_call.1} parent=183 // pred_check
          %p1506 = pneg %p139
        $region186: #{tpu_custom_call.1} parent=183 // pred_check_branch
          %1508 = sbr.rel (%p1506) target = $region188
        $region187: #{tpu_custom_call.1} parent=183 // pred_region
          %s1509 = smul.u32 2, %s119
          %p1510 = scmp.lt.s32.totalorder %s1509, 3
          %s1511 = scalar_select %p1510, %s1509, 3
          %s1512 = smul.addr %s1511, 8
          %s1513 = scalar_lea.vmem %s1, %s1512
          %s1514 = smul.u32 2, %s119
        $region188: #{tpu_custom_call.1} parent=183 // pred_fallthru
          _
        // Predicated region
        $region189: #{tpu_custom_call.1} parent=183 // pred_check
          %p1515 = pneg %p165
        $region190: #{tpu_custom_call.1} parent=183 // pred_check_branch
          %1517 = sbr.rel (%p1515) target = $region192
        $region191: #{tpu_custom_call.1} parent=183 // pred_region
          %p1518 = scmp.lt.s32.totalorder %s119, 1
          %s1519 = scalar_select %p1518, %s119, 1
          %s1520 = smul.addr %s1519, 8
          %s1521 = scalar_lea.vmem %s3, %s1520
        $region192: #{tpu_custom_call.1} parent=183 // pred_fallthru
          _
        // Predicated region
        $region193: #{tpu_custom_call.1} parent=183 // pred_check
          %p1522 = pneg %p191
        $region194: #{tpu_custom_call.1} parent=183 // pred_check_branch
          %1524 = sbr.rel (%p1522) target = $region196
        $region195: #{tpu_custom_call.1} parent=183 // pred_region
          %s1525 = sand.u32 %s181, 1
          %s1526 = scalar_lea.sflag [#allocation3], %s1525
          %s1527 = sand.u32 %s181, 1
          %s1528 = smul.addr %s1527, 8
          %s1529 = scalar_lea.vmem [#allocation2], %s1528
          %1531 = vsyncadd %s1526, 0
          %s1532 = smul.addr %s119, 8
          %s1533 = scalar_lea.hbm %s5, %s1532
          %s1535 = sshll.u32 %s1533, 4
          %s1536 = int_to_ptr.hbm [resolvable:$true] %s1535
          %s1537 = sshll.u32 %s1529, 4
          %s1538 = int_to_ptr.vmem [resolvable:$true] %s1537
          %1540 = dma.hbm_to_vmem [thread:$0]  %s1536, 128, %s1538, %s1526
        $region196: #{tpu_custom_call.1} parent=183 // pred_fallthru
          _
        // Predicated region
        $region197: #{tpu_custom_call.1} parent=183 // pred_check
          %p1541 = pneg %p217
        $region198: #{tpu_custom_call.1} parent=183 // pred_check_branch
          %1543 = sbr.rel (%p1541) target = $region200
        $region199: #{tpu_custom_call.1} parent=183 // pred_region
          %s1544 = sand.u32 %s119, 1
          %s1545 = scalar_lea.sflag [#allocation6], %s1544
          %s1546 = sand.u32 %s207, 1
          %s1547 = smul.addr %s1546, 8
          %s1548 = scalar_lea.vmem [#allocation5], %s1547
          %1550 = vsyncadd %s1545, 0
          %s1551 = smul.addr %s119, 8
          %s1552 = scalar_lea.hbm %s7, %s1551
          %s1554 = sshll.u32 %s1552, 4
          %s1555 = int_to_ptr.hbm [resolvable:$true] %s1554
          %s1556 = sshll.u32 %s1548, 4
          %s1557 = int_to_ptr.vmem [resolvable:$true] %s1556
          %1559 = dma.hbm_to_vmem [thread:$0]  %s1555, 128, %s1557, %s1545
        $region200: #{tpu_custom_call.1} parent=183 // pred_fallthru
          _
      $region184: #{tpu_custom_call.1} parent=5 // pred_fallthru
        _
      %p1560 = scmp.le.s32.totalorder 1, %s119
      %p1561 = scmp.lt.s32.totalorder %s119, 3
      %p1562 = pnand %p1560, %p1561
      %p1563 = pneg %p1562
      // Predicated region
      $region201: #{tpu_custom_call.1} parent=5 // pred_check
        _
      $region202: #{tpu_custom_call.1} parent=5 // pred_check_branch
        %1565 = sbr.rel (%p1562) target = $region204
      $region203: #{tpu_custom_call.1} parent=5 // pred_region
        %s1566 = ssub.s32 %s119, 1
        %s1567 = sand.u32 %s184, 1
        %s1568 = scalar_lea.sflag [#allocation3], %s1567
        %s1569 = sand.u32 %s184, 1
        %s1570 = smul.addr %s1569, 8
        %s1571 = scalar_lea.vmem [#allocation2], %s1570
        // Predicated region
        $region205: #{tpu_custom_call.1} parent=203 // pred_check
          %p1572 = pneg %p197
        $region206: #{tpu_custom_call.1} parent=203 // pred_check_branch
          %1574 = sbr.rel (%p1572) target = $region208
        $region207: #{tpu_custom_call.1} parent=203 // pred_region
          %1576 = dma.done %s1568, 128
        $region208: #{tpu_custom_call.1} parent=203 // pred_fallthru
          _
        %s1577 = sand.u32 %s124, 1
        %s1578 = scalar_lea.sflag [#allocation6], %s1577
        %s1579 = sand.u32 %s210, 1
        %s1580 = smul.addr %s1579, 8
        %s1581 = scalar_lea.vmem [#allocation5], %s1580
        // Predicated region
        $region209: #{tpu_custom_call.1} parent=203 // pred_check
          %p1582 = pneg %p223
        $region210: #{tpu_custom_call.1} parent=203 // pred_check_branch
          %1584 = sbr.rel (%p1582) target = $region212
        $region211: #{tpu_custom_call.1} parent=203 // pred_region
          %1586 = dma.done %s1578, 128
        $region212: #{tpu_custom_call.1} parent=203 // pred_fallthru
          _
        // Predicated region
        $region213: #{tpu_custom_call.1} parent=203 // pred_check
          %p1587 = pneg %p265
        $region214: #{tpu_custom_call.1} parent=203 // pred_check_branch
          %1589 = sbr.rel (%p1587) target = $region216
        $region215: #{tpu_custom_call.1} parent=203 // pred_region
          %1591 = dma.done [#allocation6], 16
        $region216: #{tpu_custom_call.1} parent=203 // pred_fallthru
          _
        // Predicated region
        $region217: #{tpu_custom_call.1} parent=203 // pred_check
          %p1592 = pneg %p286
        $region218: #{tpu_custom_call.1} parent=203 // pred_check_branch
          %1594 = sbr.rel (%p1592) target = $region220
        $region219: #{tpu_custom_call.1} parent=203 // pred_region
          %1596 = dma.done [#allocation9], 512
        $region220: #{tpu_custom_call.1} parent=203 // pred_fallthru
          _
        // Predicated region
        $region221: #{tpu_custom_call.1} parent=203 // pred_check
          %p1597 = pneg %p307
        $region222: #{tpu_custom_call.1} parent=203 // pred_check_branch
          %1599 = sbr.rel (%p1597) target = $region224
        $region223: #{tpu_custom_call.1} parent=203 // pred_region
          %1601 = dma.done [#allocation9], 16
        $region224: #{tpu_custom_call.1} parent=203 // pred_fallthru
          _
        // Predicated region
        $region225: #{tpu_custom_call.1} parent=203 // pred_check
          %p1602 = pneg %p328
        $region226: #{tpu_custom_call.1} parent=203 // pred_check_branch
          %1604 = sbr.rel (%p1602) target = $region228
        $region227: #{tpu_custom_call.1} parent=203 // pred_region
          %1606 = dma.done [#allocation12], 16
        $region228: #{tpu_custom_call.1} parent=203 // pred_fallthru
          _
        // Predicated region
        $region229: #{tpu_custom_call.1} parent=203 // pred_check
          %p1607 = pneg %p349
        $region230: #{tpu_custom_call.1} parent=203 // pred_check_branch
          %1609 = sbr.rel (%p1607) target = $region232
        $region231: #{tpu_custom_call.1} parent=203 // pred_region
          %1611 = dma.done [#allocation12], 16
        $region232: #{tpu_custom_call.1} parent=203 // pred_fallthru
          _
        // Predicated region
        $region233: #{tpu_custom_call.1} parent=203 // pred_check
          %p1612 = pneg %p370
        $region234: #{tpu_custom_call.1} parent=203 // pred_check_branch
          %1614 = sbr.rel (%p1612) target = $region236
        $region235: #{tpu_custom_call.1} parent=203 // pred_region
          %1616 = dma.done [#allocation15], 16
        $region236: #{tpu_custom_call.1} parent=203 // pred_fallthru
          _
        // Predicated region
        $region237: #{tpu_custom_call.1} parent=203 // pred_check
          %p1617 = pneg %p391
        $region238: #{tpu_custom_call.1} parent=203 // pred_check_branch
          %1619 = sbr.rel (%p1617) target = $region240
        $region239: #{tpu_custom_call.1} parent=203 // pred_region
          %1621 = dma.done [#allocation15], 16
        $region240: #{tpu_custom_call.1} parent=203 // pred_fallthru
          _
        // Predicated region
        $region241: #{tpu_custom_call.1} parent=203 // pred_check
          %p1622 = pneg %p517
        $region242: #{tpu_custom_call.1} parent=203 // pred_check_branch
          %1624 = sbr.rel (%p1622) target = $region244
        $region243: #{tpu_custom_call.1} parent=203 // pred_region
          %1626 = dma.done [#allocation18], 32
        $region244: #{tpu_custom_call.1} parent=203 // pred_fallthru
          _
        // Predicated region
        $region245: #{tpu_custom_call.1} parent=203 // pred_check
          %p1627 = pneg %p538
        $region246: #{tpu_custom_call.1} parent=203 // pred_check_branch
          %1629 = sbr.rel (%p1627) target = $region248
        $region247: #{tpu_custom_call.1} parent=203 // pred_region
          %1631 = dma.done [#allocation18], 32
        $region248: #{tpu_custom_call.1} parent=203 // pred_fallthru
          _
        // Predicated region
        $region249: #{tpu_custom_call.1} parent=203 // pred_check
          %p1632 = pneg %p559
        $region250: #{tpu_custom_call.1} parent=203 // pred_check_branch
          %1634 = sbr.rel (%p1632) target = $region252
        $region251: #{tpu_custom_call.1} parent=203 // pred_region
          %1636 = dma.done [#allocation21], 32
        $region252: #{tpu_custom_call.1} parent=203 // pred_fallthru
          _
        // Predicated region
        $region253: #{tpu_custom_call.1} parent=203 // pred_check
          %p1637 = pneg %p601
        $region254: #{tpu_custom_call.1} parent=203 // pred_check_branch
          %1639 = sbr.rel (%p1637) target = $region256
        $region255: #{tpu_custom_call.1} parent=203 // pred_region
          %1641 = dma.done [#allocation21], 32
        $region256: #{tpu_custom_call.1} parent=203 // pred_fallthru
          _
        // Predicated region
        $region257: #{tpu_custom_call.1} parent=203 // pred_check
          %p1642 = pneg %p643
        $region258: #{tpu_custom_call.1} parent=203 // pred_check_branch
          %1644 = sbr.rel (%p1642) target = $region260
        $region259: #{tpu_custom_call.1} parent=203 // pred_region
          %1646 = dma.done [#allocation24], 32
        $region260: #{tpu_custom_call.1} parent=203 // pred_fallthru
          _
        // Predicated region
        $region261: #{tpu_custom_call.1} parent=203 // pred_check
          %p1647 = pneg %p664
        $region262: #{tpu_custom_call.1} parent=203 // pred_check_branch
          %1649 = sbr.rel (%p1647) target = $region264
        $region263: #{tpu_custom_call.1} parent=203 // pred_region
          %1651 = dma.done [#allocation24], 32
        $region264: #{tpu_custom_call.1} parent=203 // pred_fallthru
          _
        // Predicated region
        $region265: #{tpu_custom_call.1} parent=203 // pred_check
          %p1652 = pneg %p727
        $region266: #{tpu_custom_call.1} parent=203 // pred_check_branch
          %1654 = sbr.rel (%p1652) target = $region268
        $region267: #{tpu_custom_call.1} parent=203 // pred_region
          %1656 = dma.done [#allocation27], 32
        $region268: #{tpu_custom_call.1} parent=203 // pred_fallthru
          _
        // Predicated region
        $region269: #{tpu_custom_call.1} parent=203 // pred_check
          %p1657 = pneg %p769
        $region270: #{tpu_custom_call.1} parent=203 // pred_check_branch
          %1659 = sbr.rel (%p1657) target = $region272
        $region271: #{tpu_custom_call.1} parent=203 // pred_region
          %1661 = dma.done [#allocation27], 32
        $region272: #{tpu_custom_call.1} parent=203 // pred_fallthru
          _
        // Predicated region
        $region273: #{tpu_custom_call.1} parent=203 // pred_check
          %p1662 = pneg %p832
        $region274: #{tpu_custom_call.1} parent=203 // pred_check_branch
          %1664 = sbr.rel (%p1662) target = $region276
        $region275: #{tpu_custom_call.1} parent=203 // pred_region
          %1666 = dma.done [#allocation30], 1024
        $region276: #{tpu_custom_call.1} parent=203 // pred_fallthru
          _
        // Predicated region
        $region277: #{tpu_custom_call.1} parent=203 // pred_check
          %p1667 = pneg %p853
        $region278: #{tpu_custom_call.1} parent=203 // pred_check_branch
          %1669 = sbr.rel (%p1667) target = $region280
        $region279: #{tpu_custom_call.1} parent=203 // pred_region
          %1671 = dma.done [#allocation30], 32
        $region280: #{tpu_custom_call.1} parent=203 // pred_fallthru
          _
        // Predicated region
        $region281: #{tpu_custom_call.1} parent=203 // pred_check
          %p1672 = pneg %p874
        $region282: #{tpu_custom_call.1} parent=203 // pred_check_branch
          %1674 = sbr.rel (%p1672) target = $region284
        $region283: #{tpu_custom_call.1} parent=203 // pred_region
          %1676 = dma.done [#allocation33], 1024
        $region284: #{tpu_custom_call.1} parent=203 // pred_fallthru
          _
        // Predicated region
        $region285: #{tpu_custom_call.1} parent=203 // pred_check
          %p1677 = pneg %p916
        $region286: #{tpu_custom_call.1} parent=203 // pred_check_branch
          %1679 = sbr.rel (%p1677) target = $region288
        $region287: #{tpu_custom_call.1} parent=203 // pred_region
          %1681 = dma.done [#allocation33], 1024
        $region288: #{tpu_custom_call.1} parent=203 // pred_fallthru
          _
        // Predicated region
        $region289: #{tpu_custom_call.1} parent=203 // pred_check
          %p1682 = pneg %p979
        $region290: #{tpu_custom_call.1} parent=203 // pred_check_branch
          %1684 = sbr.rel (%p1682) target = $region292
        $region291: #{tpu_custom_call.1} parent=203 // pred_region
          %1686 = dma.done [#allocation36], 32
        $region292: #{tpu_custom_call.1} parent=203 // pred_fallthru
          _
        // Predicated region
        $region293: #{tpu_custom_call.1} parent=203 // pred_check
          %p1687 = pneg %p1000
        $region294: #{tpu_custom_call.1} parent=203 // pred_check_branch
          %1689 = sbr.rel (%p1687) target = $region296
        $region295: #{tpu_custom_call.1} parent=203 // pred_region
          %1691 = dma.done [#allocation36], 1024
        $region296: #{tpu_custom_call.1} parent=203 // pred_fallthru
          _
        // Predicated region
        $region297: #{tpu_custom_call.1} parent=203 // pred_check
          %p1692 = pneg %p1084
        $region298: #{tpu_custom_call.1} parent=203 // pred_check_branch
          %1694 = sbr.rel (%p1692) target = $region300
        $region299: #{tpu_custom_call.1} parent=203 // pred_region
          %1696 = dma.done [#allocation39], 512
        $region300: #{tpu_custom_call.1} parent=203 // pred_fallthru
          _
        %s1697 = smul.u32 2, %s124
        %p1698 = scmp.lt.s32.totalorder %s1697, 3
        %s1699 = scalar_select %p1698, %s1697, 3
        %s1700 = smul.addr %s1699, 8
        %s1701 = scalar_lea.vmem %s1, %s1700
        %p1702 = pneg %p145
        %p1703 = pneg %p142
        %p1704 = scmp.lt.s32.totalorder %s124, 1
        %s1705 = scalar_select %p1704, %s124, 1
        %s1706 = smul.addr %s1705, 8
        %s1707 = scalar_lea.vmem %s3, %s1706
        %p1708 = pneg %p171
        %p1709 = pneg %p168
        %s1710 = sand.u32 %s184, 1
        %s1711 = scalar_lea.sflag [#allocation3], %s1710
        %s1712 = sand.u32 %s184, 1
        %s1713 = smul.addr %s1712, 8
        %s1714 = scalar_lea.vmem [#allocation2], %s1713
        %p1715 = pneg %p197
        %p1716 = pneg %p194
        %s1717 = sand.u32 %s124, 1
        %s1718 = scalar_lea.sflag [#allocation6], %s1717
        %s1719 = sand.u32 %s210, 1
        %s1720 = smul.addr %s1719, 8
        %s1721 = scalar_lea.vmem [#allocation5], %s1720
        %p1722 = pneg %p223
        %p1723 = pneg %p220
        %p1724 = pneg %p244
        %p1725 = pneg %p241
        %p1726 = pneg %p265
        %p1727 = pneg %p262
        %p1728 = pneg %p286
        %p1729 = pneg %p283
        %p1730 = pneg %p307
        %p1731 = pneg %p304
        %p1732 = pneg %p328
        %p1733 = pneg %p325
        %p1734 = pneg %p349
        %p1735 = pneg %p346
        %p1736 = pneg %p370
        %p1737 = pneg %p367
        %p1738 = pneg %p391
        %p1739 = pneg %p388
        %p1740 = pneg %p412
        %p1741 = pneg %p409
        %p1742 = pneg %p433
        %p1743 = pneg %p430
        %p1744 = pneg %p454
        %p1745 = pneg %p451
        %p1746 = pneg %p475
        %p1747 = pneg %p472
        %p1748 = pneg %p496
        %p1749 = pneg %p493
        %p1750 = pneg %p517
        %p1751 = pneg %p514
        %p1752 = pneg %p538
        %p1753 = pneg %p535
        %p1754 = pneg %p559
        %p1755 = pneg %p556
        %p1756 = pneg %p580
        %p1757 = pneg %p577
        %p1758 = pneg %p601
        %p1759 = pneg %p598
        %p1760 = pneg %p622
        %p1761 = pneg %p619
        %p1762 = pneg %p643
        %p1763 = pneg %p640
        %p1764 = pneg %p664
        %p1765 = pneg %p661
        %p1766 = pneg %p685
        %p1767 = pneg %p682
        %p1768 = pneg %p706
        %p1769 = pneg %p703
        %p1770 = pneg %p727
        %p1771 = pneg %p724
        %p1772 = pneg %p748
        %p1773 = pneg %p745
        %p1774 = pneg %p769
        %p1775 = pneg %p766
        %p1776 = pneg %p790
        %p1777 = pneg %p787
        %p1778 = pneg %p811
        %p1779 = pneg %p808
        %p1780 = pneg %p832
        %p1781 = pneg %p829
        %p1782 = pneg %p853
        %p1783 = pneg %p850
        %p1784 = pneg %p874
        %p1785 = pneg %p871
        %p1786 = pneg %p895
        %p1787 = pneg %p892
        %p1788 = pneg %p916
        %p1789 = pneg %p913
        %p1790 = pneg %p937
        %p1791 = pneg %p934
        %p1792 = pneg %p958
        %p1793 = pneg %p955
        %p1794 = pneg %p979
        %p1795 = pneg %p976
        %p1796 = pneg %p1000
        %p1797 = pneg %p997
        %p1798 = pneg %p1021
        %p1799 = pneg %p1018
        %p1800 = pneg %p1042
        %p1801 = pneg %p1039
        %p1802 = pneg %p1063
        %p1803 = pneg %p1060
        %p1804 = pneg %p1084
        %p1805 = pneg %p1081
        %p1806 = pneg %p1105
        %p1807 = pneg %p1102
        %p1808 = pneg %p1131
        %p1809 = pneg %p1128
        %s1810 = sand.u32 %s1118, 1
        %s1811 = scalar_lea.sflag [#allocation4], %s1810
        %s1812 = sand.u32 %s1118, 1
        %s1813 = smul.addr %s1812, 8
        %s1814 = scalar_lea.vmem [#allocation40], %s1813
        %s1815 = smul.u32 2, %s124
        %p1816 = scmp.lt.s32.totalorder %s1815, 3
        %s1817 = scalar_select %p1816, %s1815, 3
        %s1818 = smul.addr %s1817, 8
        %s1819 = scalar_lea.vmem %s1, %s1818
        %s1820 = smul.u32 2, %s124
        %p1821 = scmp.lt.s32.totalorder %s124, 1
        %s1822 = scalar_select %p1821, %s124, 1
        %s1823 = smul.addr %s1822, 8
        %s1824 = scalar_lea.vmem %s3, %s1823
        %v1825 = vld [vmem:[%s1819] sm:$0xff]
        %v1826 = vld [vmem:[%s1819 + $0x8] sm:$0xff]
        %v1827 = vld [vmem:[%s9] sm:$0xf]
        %v1828 = vld [vmem:[#allocation7] sm:$0x1]
        %v1830 = vperm.slane %v1828, 0
        %vm1832 = vcmask 31744
        %v1834 = vsel %vm1832, %v1825, 0
        %v1837 = vsel %vm1832, %v1826, 0
        %vm1839 = vcmask 1043456
        %v1841 = vsel %vm1839, %v1827, 0
        %1843 = vmatpush.msra.mxu0 0.0
        %1844 = vmatpush.msra.mxu0 0.0
        %1845 = vmatpush.msra.mxu0 0.0
        %1846 = vmatpush.msra.mxu0 0.0
        %1847 = vmatpush.msra.mxu0 0.0
        %1848 = vmatpush.msra.mxu0 0.0
        %1849 = vmatpush.msra.mxu0 0.0
        %1850 = vmatpush.msra.mxu0 0.0
        %1851 = vmatpush.msra.mxu0 0.0
        %1852 = vmatpush.msra.mxu0 0.0
        %1853 = vmatpush.msra.mxu0 0.0
        %1854 = vmatpush.msra.mxu0 0.0
        %1855 = vmatpush.msra.mxu0 0.0
        %1856 = vmatpush.msra.mxu0 0.0
        %1857 = vmatpush.msra.mxu0 0.0
        %1858 = vmatpush.msra.mxu0 %v1841
        %1859 = vmatmul.f32.gmra.mxu0 %v1834
        %v1860 = vpop.f32.mrf.mxu0
        %v1861 = vadd.f32 %v1830, %v1860
        %1862 = vmatmul.f32.gmra.mxu0 %v1837
        %v1863 = vpop.f32.mrf.mxu0
        %v1864 = vadd.f32 %v1830, %v1863
        %1865 = vdwg.mxu0
        %v1866 = vmax.f32 %v1861, 0.0
        %v1867 = vmax.f32 %v1864, 0.0
        %v1868 = vld [vmem:[#allocation8] sm:$0xff]
        %v1869 = vld [vmem:[#allocation8 + $0x8] sm:$0xff]
        %v1870 = vld [vmem:[#allocation8 + $0x10] sm:$0xff]
        %v1871 = vld [vmem:[#allocation8 + $0x18] sm:$0xff]
        %v1872 = vld [vmem:[#allocation10] sm:$0x1]
        %v1874 = vperm.slane %v1872, 0
        %vm1876 = vcmask 261120
        %v1878 = vsel %vm1876, %v1866, 0
        %v1881 = vsel %vm1876, %v1867, 0
        %1883 = vmatpush.msra.mxu0 0.0
        %1884 = vmatpush.msra.mxu0 0.0
        %1885 = vmatpush.msra.mxu0 0.0
        %1886 = vmatpush.msra.mxu0 0.0
        %1887 = vmatpush.msra.mxu0 0.0
        %1888 = vmatpush.msra.mxu0 0.0
        %1889 = vmatpush.msra.mxu0 0.0
        %1890 = vmatpush.msra.mxu0 0.0
        %1891 = vmatpush.msra.mxu0 0.0
        %1892 = vmatpush.msra.mxu0 0.0
        %1893 = vmatpush.msra.mxu0 0.0
        %1894 = vmatpush.msra.mxu0 0.0
        %1895 = vmatpush.msra.mxu0 %v1871
        %1896 = vmatpush.msra.mxu0 %v1870
        %1897 = vmatpush.msra.mxu0 %v1869
        %1898 = vmatpush.msra.mxu0 %v1868
        %1899 = vmatmul.f32.gmra.mxu0 %v1878
        %v1900 = vpop.f32.mrf.mxu0
        %v1901 = vadd.f32 %v1874, %v1900
        %1902 = vmatmul.f32.gmra.mxu0 %v1881
        %v1903 = vpop.f32.mrf.mxu0
        %v1904 = vadd.f32 %v1874, %v1903
        %1905 = vdwg.mxu0
        %v1906 = vld [vmem:[#allocation11] sm:$0x1]
        %v1907 = vld [vmem:[#allocation13] sm:$0x1]
        %v1908 = vsel %vm1876, %v1901, 0.0
        %1909 = vadd.xlane.f32.xlu0 %v1908
        %v1910 = vpop.xlane.xlu0 %1909
        %v1911 = vsel %vm1876, %v1904, 0.0
        %1912 = vadd.xlane.f32.xlu0 %v1911
        %v1913 = vpop.xlane.xlu0 %1912
        %v1914 = vrcp.pop 32.0
        %v1915 = vmul.f32 32.0, %v1914
        %v1916 = vsub.f32 1.0, %v1915
        %v1917 = vmul.f32 %v1914, %v1916
        %v1918 = vadd.f32 %v1914, %v1917
        %vm1919 = vweird.f32 %v1914
        %v1920 = vsel %vm1919, %v1914, %v1918
        %v1921 = vmul.f32 %v1910, %v1920
        %v1922 = vmul.f32 %v1913, %v1920
        %v1923 = vsub.f32 %v1901, %v1921
        %v1924 = vsub.f32 %v1904, %v1922
        %v1925 = vmul.f32 %v1923, %v1923
        %v1926 = vmul.f32 %v1924, %v1924
        %v1927 = vsel %vm1876, %v1925, 0.0
        %1928 = vadd.xlane.f32.xlu0 %v1927
        %v1929 = vpop.xlane.xlu0 %1928
        %v1930 = vsel %vm1876, %v1926, 0.0
        %1931 = vadd.xlane.f32.xlu0 %v1930
        %v1932 = vpop.xlane.xlu0 %1931
        %v1933 = vmul.f32 %v1929, %v1920
        %v1934 = vmul.f32 %v1932, %v1920
        %v1935 = vadd.f32 %v1933, 1e-05
        %v1936 = vadd.f32 %v1934, 1e-05
        %v1937 = vrsqrt.pop %v1935
        %v1938 = vmul.f32 %v1937, %v1935
        %v1939 = vmul.f32 %v1938, %v1937
        %v1940 = vmul.f32 0.5, %v1939
        %v1941 = vsub.f32 1.5, %v1940
        %v1942 = vmul.f32 %v1937, %v1941
        %vm1943 = vweird.f32 %v1935
        %vm1944 = vweird.f32 %v1937
        %vm1945 = vmor %vm1943, %vm1944
        %v1946 = vsel %vm1945, %v1937, %v1942
        %v1947 = vrsqrt.pop %v1936
        %v1948 = vmul.f32 %v1947, %v1936
        %v1949 = vmul.f32 %v1948, %v1947
        %v1950 = vmul.f32 0.5, %v1949
        %v1951 = vsub.f32 1.5, %v1950
        %v1952 = vmul.f32 %v1947, %v1951
        %vm1953 = vweird.f32 %v1936
        %vm1954 = vweird.f32 %v1947
        %vm1955 = vmor %vm1953, %vm1954
        %v1956 = vsel %vm1955, %v1947, %v1952
        %v1957 = vmul.f32 %v1923, %v1946
        %v1958 = vmul.f32 %v1924, %v1956
        %v1960 = vperm.slane %v1906, 0
        %v1962 = vmul.f32 %v1957, %v1960
        %v1963 = vmul.f32 %v1958, %v1960
        %v1965 = vperm.slane %v1907, 0
        %v1967 = vadd.f32 %v1962, %v1965
        %v1968 = vadd.f32 %v1963, %v1965
        %v1969 = vmul.f32 %v1967, 5.656854
        %v1970 = vmul.f32 %v1968, 5.656854
        %v1971 = vld [vmem:[%s1824] sm:$0xff]
        %v1972 = vld [vmem:[#allocation14] sm:$0x1]
        %1974 = vset.pattern.permute.xlu0 0
        %1975 = vperm.xlu0 %1974, %v1971
        %v1976 = vpop.permute.xlu0 %1975
        %v1979 = vperm.slane %v1972, 0
        %v1981 = vmul.f32 %v1976, %v1979
        %v1982 = vld [vmem:[#allocation16] sm:$0x1]
        %v1984 = vperm.slane %v1982, 0
        %v1986 = vadd.f32 %v1981, %v1984
        %v1987 = vadd.f32 %v1969, %v1986
        %v1988 = vld [vmem:[%s1571] sm:$0xff]
        %v1989 = vadd.f32 %v1987, %v1988
        %v1990 = vld [vmem:[%s25] sm:$0x1]
        %v1991 = vld [vmem:[%s27] sm:$0x1]
        %v1992 = vsel %vm1876, %v1989, 0.0
        %1993 = vadd.xlane.f32.xlu0 %v1992
        %v1994 = vpop.xlane.xlu0 %1993
        %v1995 = vmul.f32 %v1994, %v1920
        %v1996 = vsub.f32 %v1989, %v1995
        %v1997 = vmul.f32 %v1996, %v1996
        %v1998 = vsel %vm1876, %v1997, 0.0
        %1999 = vadd.xlane.f32.xlu0 %v1998
        %v2000 = vpop.xlane.xlu0 %1999
        %v2001 = vmul.f32 %v2000, %v1920
        %v2002 = vadd.f32 %v2001, 1e-05
        %v2003 = vrsqrt.pop %v2002
        %v2004 = vmul.f32 %v2003, %v2002
        %v2005 = vmul.f32 %v2004, %v2003
        %v2006 = vmul.f32 0.5, %v2005
        %v2007 = vsub.f32 1.5, %v2006
        %v2008 = vmul.f32 %v2003, %v2007
        %vm2009 = vweird.f32 %v2002
        %vm2010 = vweird.f32 %v2003
        %vm2011 = vmor %vm2009, %vm2010
        %v2012 = vsel %vm2011, %v2003, %v2008
        %v2013 = vmul.f32 %v1996, %v2012
        %v2015 = vperm.slane %v1990, 0
        %v2017 = vmul.f32 %v2013, %v2015
        %v2019 = vperm.slane %v1991, 0
        %v2021 = vadd.f32 %v2017, %v2019
        %v2022 = vld [vmem:[%s29] sm:$0xff]
        %v2023 = vld [vmem:[%s29 + $0x8] sm:$0xff]
        %v2024 = vld [vmem:[%s29 + $0x10] sm:$0xff]
        %v2025 = vld [vmem:[%s29 + $0x18] sm:$0xff]
        %v2026 = vld [vmem:[%s31] sm:$0x1]
        %v2027 = vld [vmem:[%s33] sm:$0xff]
        %v2028 = vld [vmem:[%s33 + $0x8] sm:$0xff]
        %v2029 = vld [vmem:[%s33 + $0x10] sm:$0xff]
        %v2030 = vld [vmem:[%s33 + $0x18] sm:$0xff]
        %v2031 = vld [vmem:[#allocation17] sm:$0x1]
        %v2033 = vperm.slane %v2026, 0
        %v2036 = vsel %vm1876, %v2021, 0
        %2038 = vmatpush.msra.mxu0 0.0
        %2039 = vmatpush.msra.mxu0 0.0
        %2040 = vmatpush.msra.mxu0 0.0
        %2041 = vmatpush.msra.mxu0 0.0
        %2042 = vmatpush.msra.mxu0 0.0
        %2043 = vmatpush.msra.mxu0 0.0
        %2044 = vmatpush.msra.mxu0 0.0
        %2045 = vmatpush.msra.mxu0 0.0
        %2046 = vmatpush.msra.mxu0 0.0
        %2047 = vmatpush.msra.mxu0 0.0
        %2048 = vmatpush.msra.mxu0 0.0
        %2049 = vmatpush.msra.mxu0 0.0
        %2050 = vmatpush.msra.mxu0 %v2025
        %2051 = vmatpush.msra.mxu0 %v2024
        %2052 = vmatpush.msra.mxu0 %v2023
        %2053 = vmatpush.msra.mxu0 %v2022
        %2054 = vmatmul.f32.gmra.mxu0 %v2036
        %v2055 = vpop.f32.mrf.mxu0
        %v2056 = vadd.f32 %v2033, %v2055
        %2057 = vdwg.mxu0
        %2059 = vrot.lane.b32.xlu0 %v2056, 120
        %v2060 = vpop.permute.xlu0 %2059
        %2061 = vrot.lane.b32.xlu0 %v2056, 112
        %v2062 = vpop.permute.xlu0 %2061
        %2063 = vrot.lane.b32.xlu0 %v2056, 104
        %v2064 = vpop.permute.xlu0 %2063
        %2065 = vrot.lane.b32.xlu0 %v2056, 96
        %v2066 = vpop.permute.xlu0 %2065
        %vm2067 = vcmask 64512
        %v2068 = vsel %vm2067, %v2056, 0
        %v2070 = vsel %vm2067, %v2066, 0
        %2072 = vmatpush.xpose.msra.mxu0 0.0
        %2073 = vmatpush.xpose.msra.mxu0 0.0
        %2074 = vmatpush.xpose.msra.mxu0 0.0
        %2075 = vmatpush.xpose.msra.mxu0 0.0
        %2076 = vmatpush.xpose.msra.mxu0 0.0
        %2077 = vmatpush.xpose.msra.mxu0 0.0
        %2078 = vmatpush.xpose.msra.mxu0 0.0
        %2079 = vmatpush.xpose.msra.mxu0 0.0
        %2080 = vmatpush.xpose.msra.mxu0 0.0
        %2081 = vmatpush.xpose.msra.mxu0 0.0
        %2082 = vmatpush.xpose.msra.mxu0 0.0
        %2083 = vmatpush.xpose.msra.mxu0 0.0
        %2084 = vmatpush.xpose.msra.mxu0 0.0
        %2085 = vmatpush.xpose.msra.mxu0 0.0
        %2086 = vmatpush.xpose.msra.mxu0 0.0
        %2087 = vmatpush.xpose.msra.mxu0 %v2070
        %2088 = vmatmul.f32.gmra.mxu0 %v2068
        %v2089 = vpop.f32.mrf.mxu0
        %v2090 = vadd.f32 0.0, %v2089
        %2091 = vdwg.mxu0
        %2092 = vrot.lane.b32.xlu0 %v2060, 96
        %v2093 = vpop.permute.xlu0 %2092
        %v2094 = vsel %vm2067, %v2060, 0
        %v2096 = vsel %vm2067, %v2093, 0
        %2098 = vmatpush.xpose.msra.mxu0 0.0
        %2099 = vmatpush.xpose.msra.mxu0 0.0
        %2100 = vmatpush.xpose.msra.mxu0 0.0
        %2101 = vmatpush.xpose.msra.mxu0 0.0
        %2102 = vmatpush.xpose.msra.mxu0 0.0
        %2103 = vmatpush.xpose.msra.mxu0 0.0
        %2104 = vmatpush.xpose.msra.mxu0 0.0
        %2105 = vmatpush.xpose.msra.mxu0 0.0
        %2106 = vmatpush.xpose.msra.mxu0 0.0
        %2107 = vmatpush.xpose.msra.mxu0 0.0
        %2108 = vmatpush.xpose.msra.mxu0 0.0
        %2109 = vmatpush.xpose.msra.mxu0 0.0
        %2110 = vmatpush.xpose.msra.mxu0 0.0
        %2111 = vmatpush.xpose.msra.mxu0 0.0
        %2112 = vmatpush.xpose.msra.mxu0 0.0
        %2113 = vmatpush.xpose.msra.mxu0 %v2096
        %2114 = vmatmul.f32.gmra.mxu0 %v2094
        %v2115 = vpop.f32.mrf.mxu0
        %v2116 = vadd.f32 0.0, %v2115
        %2117 = vdwg.mxu0
        %2118 = vrot.lane.b32.xlu0 %v2062, 96
        %v2119 = vpop.permute.xlu0 %2118
        %v2120 = vsel %vm2067, %v2062, 0
        %v2122 = vsel %vm2067, %v2119, 0
        %2124 = vmatpush.xpose.msra.mxu0 0.0
        %2125 = vmatpush.xpose.msra.mxu0 0.0
        %2126 = vmatpush.xpose.msra.mxu0 0.0
        %2127 = vmatpush.xpose.msra.mxu0 0.0
        %2128 = vmatpush.xpose.msra.mxu0 0.0
        %2129 = vmatpush.xpose.msra.mxu0 0.0
        %2130 = vmatpush.xpose.msra.mxu0 0.0
        %2131 = vmatpush.xpose.msra.mxu0 0.0
        %2132 = vmatpush.xpose.msra.mxu0 0.0
        %2133 = vmatpush.xpose.msra.mxu0 0.0
        %2134 = vmatpush.xpose.msra.mxu0 0.0
        %2135 = vmatpush.xpose.msra.mxu0 0.0
        %2136 = vmatpush.xpose.msra.mxu0 0.0
        %2137 = vmatpush.xpose.msra.mxu0 0.0
        %2138 = vmatpush.xpose.msra.mxu0 0.0
        %2139 = vmatpush.xpose.msra.mxu0 %v2122
        %2140 = vmatmul.f32.gmra.mxu0 %v2120
        %v2141 = vpop.f32.mrf.mxu0
        %v2142 = vadd.f32 0.0, %v2141
        %2143 = vdwg.mxu0
        %2144 = vrot.lane.b32.xlu0 %v2064, 96
        %v2145 = vpop.permute.xlu0 %2144
        %v2146 = vsel %vm2067, %v2064, 0
        %v2148 = vsel %vm2067, %v2145, 0
        %2150 = vmatpush.xpose.msra.mxu0 0.0
        %2151 = vmatpush.xpose.msra.mxu0 0.0
        %2152 = vmatpush.xpose.msra.mxu0 0.0
        %2153 = vmatpush.xpose.msra.mxu0 0.0
        %2154 = vmatpush.xpose.msra.mxu0 0.0
        %2155 = vmatpush.xpose.msra.mxu0 0.0
        %2156 = vmatpush.xpose.msra.mxu0 0.0
        %2157 = vmatpush.xpose.msra.mxu0 0.0
        %2158 = vmatpush.xpose.msra.mxu0 0.0
        %2159 = vmatpush.xpose.msra.mxu0 0.0
        %2160 = vmatpush.xpose.msra.mxu0 0.0
        %2161 = vmatpush.xpose.msra.mxu0 0.0
        %2162 = vmatpush.xpose.msra.mxu0 0.0
        %2163 = vmatpush.xpose.msra.mxu0 0.0
        %2164 = vmatpush.xpose.msra.mxu0 0.0
        %2165 = vmatpush.xpose.msra.mxu0 %v2148
        %2166 = vmatmul.f32.gmra.mxu0 %v2146
        %v2167 = vpop.f32.mrf.mxu0
        %v2168 = vadd.f32 0.0, %v2167
        %2169 = vdwg.mxu0
        %v2170 = vmul.f32 %v2090, 0.35355338
        %v2171 = vmul.f32 %v2116, 0.35355338
        %v2172 = vmul.f32 %v2142, 0.35355338
        %v2173 = vmul.f32 %v2168, 0.35355338
        %v2174 = vsel %vm2067, %v2170, -inf
        %2175 = vmax.xlane.f32.xlu0 %v2174
        %v2176 = vpop.xlane.xlu0 %2175
        %v2177 = vsel %vm2067, %v2171, -inf
        %2178 = vmax.xlane.f32.xlu0 %v2177
        %v2179 = vpop.xlane.xlu0 %2178
        %v2180 = vsel %vm2067, %v2172, -inf
        %2181 = vmax.xlane.f32.xlu0 %v2180
        %v2182 = vpop.xlane.xlu0 %2181
        %v2183 = vsel %vm2067, %v2173, -inf
        %2184 = vmax.xlane.f32.xlu0 %v2183
        %v2185 = vpop.xlane.xlu0 %2184
        %v2186 = vsub.f32 %v2170, %v2176
        %v2187 = vsub.f32 %v2171, %v2179
        %v2188 = vsub.f32 %v2172, %v2182
        %v2189 = vsub.f32 %v2173, %v2185
        %v2190 = vmul.f32 %v2186, 1.442695
        %v2191 = vpow.pop %v2190
        %v2192 = vmul.f32 %v2187, 1.442695
        %v2193 = vpow.pop %v2192
        %v2194 = vmul.f32 %v2188, 1.442695
        %v2195 = vpow.pop %v2194
        %v2196 = vmul.f32 %v2189, 1.442695
        %v2197 = vpow.pop %v2196
        %v2198 = vsel %vm2067, %v2191, 0.0
        %2199 = vadd.xlane.f32.xlu0 %v2198
        %v2200 = vpop.xlane.xlu0 %2199
        %v2201 = vsel %vm2067, %v2193, 0.0
        %2202 = vadd.xlane.f32.xlu0 %v2201
        %v2203 = vpop.xlane.xlu0 %2202
        %v2204 = vsel %vm2067, %v2195, 0.0
        %2205 = vadd.xlane.f32.xlu0 %v2204
        %v2206 = vpop.xlane.xlu0 %2205
        %v2207 = vsel %vm2067, %v2197, 0.0
        %2208 = vadd.xlane.f32.xlu0 %v2207
        %v2209 = vpop.xlane.xlu0 %2208
        %v2210 = vrcp.pop %v2200
        %v2211 = vmul.f32 %v2200, %v2210
        %v2212 = vsub.f32 1.0, %v2211
        %v2213 = vmul.f32 %v2210, %v2212
        %v2214 = vadd.f32 %v2210, %v2213
        %vm2215 = vweird.f32 %v2200
        %vm2216 = vweird.f32 %v2210
        %vm2217 = vmor %vm2215, %vm2216
        %v2218 = vsel %vm2217, %v2210, %v2214
        %v2219 = vand.u32 2147483647, %v2200
        %vm2220 = vcmp.eq.f32.partialorder %v2219, 8.507059e+37
        %v2221 = vand.u32 %v2200, 2147483648
        %v2222 = vor.u32 1.1754944e-38, %v2221
        %v2223 = vsel %vm2220, %v2222, %v2218
        %v2224 = vmul.f32 %v2191, %v2223
        %v2225 = vrcp.pop %v2203
        %v2226 = vmul.f32 %v2203, %v2225
        %v2227 = vsub.f32 1.0, %v2226
        %v2228 = vmul.f32 %v2225, %v2227
        %v2229 = vadd.f32 %v2225, %v2228
        %vm2230 = vweird.f32 %v2203
        %vm2231 = vweird.f32 %v2225
        %vm2232 = vmor %vm2230, %vm2231
        %v2233 = vsel %vm2232, %v2225, %v2229
        %v2234 = vand.u32 2147483647, %v2203
        %vm2235 = vcmp.eq.f32.partialorder %v2234, 8.507059e+37
        %v2236 = vand.u32 %v2203, 2147483648
        %v2237 = vor.u32 1.1754944e-38, %v2236
        %v2238 = vsel %vm2235, %v2237, %v2233
        %v2239 = vmul.f32 %v2193, %v2238
        %v2240 = vrcp.pop %v2206
        %v2241 = vmul.f32 %v2206, %v2240
        %v2242 = vsub.f32 1.0, %v2241
        %v2243 = vmul.f32 %v2240, %v2242
        %v2244 = vadd.f32 %v2240, %v2243
        %vm2245 = vweird.f32 %v2206
        %vm2246 = vweird.f32 %v2240
        %vm2247 = vmor %vm2245, %vm2246
        %v2248 = vsel %vm2247, %v2240, %v2244
        %v2249 = vand.u32 2147483647, %v2206
        %vm2250 = vcmp.eq.f32.partialorder %v2249, 8.507059e+37
        %v2251 = vand.u32 %v2206, 2147483648
        %v2252 = vor.u32 1.1754944e-38, %v2251
        %v2253 = vsel %vm2250, %v2252, %v2248
        %v2254 = vmul.f32 %v2195, %v2253
        %v2255 = vrcp.pop %v2209
        %v2256 = vmul.f32 %v2209, %v2255
        %v2257 = vsub.f32 1.0, %v2256
        %v2258 = vmul.f32 %v2255, %v2257
        %v2259 = vadd.f32 %v2255, %v2258
        %vm2260 = vweird.f32 %v2209
        %vm2261 = vweird.f32 %v2255
        %vm2262 = vmor %vm2260, %vm2261
        %v2263 = vsel %vm2262, %v2255, %v2259
        %v2264 = vand.u32 2147483647, %v2209
        %vm2265 = vcmp.eq.f32.partialorder %v2264, 8.507059e+37
        %v2266 = vand.u32 %v2209, 2147483648
        %v2267 = vor.u32 1.1754944e-38, %v2266
        %v2268 = vsel %vm2265, %v2267, %v2263
        %v2269 = vmul.f32 %v2197, %v2268
        %2270 = vrot.lane.b32.xlu0 %v2056, 64
        %v2271 = vpop.permute.xlu0 %2270
        %v2274 = vsel %vm2067, %v2224, 0
        %2276 = vmatpush.msra.mxu0 0.0
        %2277 = vmatpush.msra.mxu0 0.0
        %2278 = vmatpush.msra.mxu0 0.0
        %2279 = vmatpush.msra.mxu0 0.0
        %2280 = vmatpush.msra.mxu0 0.0
        %2281 = vmatpush.msra.mxu0 0.0
        %2282 = vmatpush.msra.mxu0 0.0
        %2283 = vmatpush.msra.mxu0 0.0
        %2284 = vmatpush.msra.mxu0 0.0
        %2285 = vmatpush.msra.mxu0 0.0
        %2286 = vmatpush.msra.mxu0 0.0
        %2287 = vmatpush.msra.mxu0 0.0
        %2288 = vmatpush.msra.mxu0 0.0
        %2289 = vmatpush.msra.mxu0 0.0
        %2290 = vmatpush.msra.mxu0 0.0
        %2291 = vmatpush.msra.mxu0 %v2271
        %2292 = vmatmul.f32.gmra.mxu0 %v2274
        %v2293 = vpop.f32.mrf.mxu0
        %v2294 = vadd.f32 0.0, %v2293
        %2295 = vdwg.mxu0
        %2296 = vrot.lane.b32.xlu0 %v2060, 64
        %v2297 = vpop.permute.xlu0 %2296
        %v2300 = vsel %vm2067, %v2239, 0
        %2302 = vmatpush.msra.mxu0 0.0
        %2303 = vmatpush.msra.mxu0 0.0
        %2304 = vmatpush.msra.mxu0 0.0
        %2305 = vmatpush.msra.mxu0 0.0
        %2306 = vmatpush.msra.mxu0 0.0
        %2307 = vmatpush.msra.mxu0 0.0
        %2308 = vmatpush.msra.mxu0 0.0
        %2309 = vmatpush.msra.mxu0 0.0
        %2310 = vmatpush.msra.mxu0 0.0
        %2311 = vmatpush.msra.mxu0 0.0
        %2312 = vmatpush.msra.mxu0 0.0
        %2313 = vmatpush.msra.mxu0 0.0
        %2314 = vmatpush.msra.mxu0 0.0
        %2315 = vmatpush.msra.mxu0 0.0
        %2316 = vmatpush.msra.mxu0 0.0
        %2317 = vmatpush.msra.mxu0 %v2297
        %2318 = vmatmul.f32.gmra.mxu0 %v2300
        %v2319 = vpop.f32.mrf.mxu0
        %v2320 = vadd.f32 0.0, %v2319
        %2321 = vdwg.mxu0
        %2322 = vrot.lane.b32.xlu0 %v2062, 64
        %v2323 = vpop.permute.xlu0 %2322
        %v2326 = vsel %vm2067, %v2254, 0
        %2328 = vmatpush.msra.mxu0 0.0
        %2329 = vmatpush.msra.mxu0 0.0
        %2330 = vmatpush.msra.mxu0 0.0
        %2331 = vmatpush.msra.mxu0 0.0
        %2332 = vmatpush.msra.mxu0 0.0
        %2333 = vmatpush.msra.mxu0 0.0
        %2334 = vmatpush.msra.mxu0 0.0
        %2335 = vmatpush.msra.mxu0 0.0
        %2336 = vmatpush.msra.mxu0 0.0
        %2337 = vmatpush.msra.mxu0 0.0
        %2338 = vmatpush.msra.mxu0 0.0
        %2339 = vmatpush.msra.mxu0 0.0
        %2340 = vmatpush.msra.mxu0 0.0
        %2341 = vmatpush.msra.mxu0 0.0
        %2342 = vmatpush.msra.mxu0 0.0
        %2343 = vmatpush.msra.mxu0 %v2323
        %2344 = vmatmul.f32.gmra.mxu0 %v2326
        %v2345 = vpop.f32.mrf.mxu0
        %v2346 = vadd.f32 0.0, %v2345
        %2347 = vdwg.mxu0
        %2348 = vrot.lane.b32.xlu0 %v2064, 64
        %v2349 = vpop.permute.xlu0 %2348
        %v2352 = vsel %vm2067, %v2269, 0
        %2354 = vmatpush.msra.mxu0 0.0
        %2355 = vmatpush.msra.mxu0 0.0
        %2356 = vmatpush.msra.mxu0 0.0
        %2357 = vmatpush.msra.mxu0 0.0
        %2358 = vmatpush.msra.mxu0 0.0
        %2359 = vmatpush.msra.mxu0 0.0
        %2360 = vmatpush.msra.mxu0 0.0
        %2361 = vmatpush.msra.mxu0 0.0
        %2362 = vmatpush.msra.mxu0 0.0
        %2363 = vmatpush.msra.mxu0 0.0
        %2364 = vmatpush.msra.mxu0 0.0
        %2365 = vmatpush.msra.mxu0 0.0
        %2366 = vmatpush.msra.mxu0 0.0
        %2367 = vmatpush.msra.mxu0 0.0
        %2368 = vmatpush.msra.mxu0 0.0
        %2369 = vmatpush.msra.mxu0 %v2349
        %2370 = vmatmul.f32.gmra.mxu0 %v2352
        %v2371 = vpop.f32.mrf.mxu0
        %v2372 = vadd.f32 0.0, %v2371
        %2373 = vdwg.mxu0
        %2375 = vrot.lane.b32.xlu0 %v2320, 8
        %v2376 = vpop.permute.xlu0 %2375
        %2379 = vrot.lane.b32.xlu0 %v2346, 16
        %v2380 = vpop.permute.xlu0 %2379
        %2383 = vrot.lane.b32.xlu0 %v2372, 24
        %v2384 = vpop.permute.xlu0 %2383
        %v2386 = vsel %vm2067, %v2294, %v2376
        %vm2387 = vcmask 130048
        %v2388 = vsel %vm2387, %v2386, %v2380
        %vm2389 = vcmask 195584
        %v2390 = vsel %vm2389, %v2388, %v2384
        %v2392 = vperm.slane %v2031, 0
        %v2395 = vsel %vm1876, %v2390, 0
        %2397 = vmatpush.msra.mxu0 0.0
        %2398 = vmatpush.msra.mxu0 0.0
        %2399 = vmatpush.msra.mxu0 0.0
        %2400 = vmatpush.msra.mxu0 0.0
        %2401 = vmatpush.msra.mxu0 0.0
        %2402 = vmatpush.msra.mxu0 0.0
        %2403 = vmatpush.msra.mxu0 0.0
        %2404 = vmatpush.msra.mxu0 0.0
        %2405 = vmatpush.msra.mxu0 0.0
        %2406 = vmatpush.msra.mxu0 0.0
        %2407 = vmatpush.msra.mxu0 0.0
        %2408 = vmatpush.msra.mxu0 0.0
        %2409 = vmatpush.msra.mxu0 %v2030
        %2410 = vmatpush.msra.mxu0 %v2029
        %2411 = vmatpush.msra.mxu0 %v2028
        %2412 = vmatpush.msra.mxu0 %v2027
        %2413 = vmatmul.f32.gmra.mxu0 %v2395
        %v2414 = vpop.f32.mrf.mxu0
        %v2415 = vadd.f32 %v2392, %v2414
        %2416 = vdwg.mxu0
        %v2417 = vadd.f32 %v1989, %v2415
        %v2418 = vld [vmem:[#allocation19] sm:$0x1]
        %v2419 = vld [vmem:[#allocation20] sm:$0x1]
        %v2420 = vsel %vm1876, %v2417, 0.0
        %2421 = vadd.xlane.f32.xlu0 %v2420
        %v2422 = vpop.xlane.xlu0 %2421
        %v2423 = vmul.f32 %v2422, %v1920
        %v2424 = vsub.f32 %v2417, %v2423
        %v2425 = vmul.f32 %v2424, %v2424
        %v2426 = vsel %vm1876, %v2425, 0.0
        %2427 = vadd.xlane.f32.xlu0 %v2426
        %v2428 = vpop.xlane.xlu0 %2427
        %v2429 = vmul.f32 %v2428, %v1920
        %v2430 = vadd.f32 %v2429, 1e-05
        %v2431 = vrsqrt.pop %v2430
        %v2432 = vmul.f32 %v2431, %v2430
        %v2433 = vmul.f32 %v2432, %v2431
        %v2434 = vmul.f32 0.5, %v2433
        %v2435 = vsub.f32 1.5, %v2434
        %v2436 = vmul.f32 %v2431, %v2435
        %vm2437 = vweird.f32 %v2430
        %vm2438 = vweird.f32 %v2431
        %vm2439 = vmor %vm2437, %vm2438
        %v2440 = vsel %vm2439, %v2431, %v2436
        %v2441 = vmul.f32 %v2424, %v2440
        %v2443 = vperm.slane %v2418, 0
        %v2445 = vmul.f32 %v2441, %v2443
        %v2447 = vperm.slane %v2419, 0
        %v2449 = vadd.f32 %v2445, %v2447
        %v2450 = vld [vmem:[%s41] sm:$0xff]
        %v2451 = vld [vmem:[%s41 + $0x8] sm:$0xff]
        %v2452 = vld [vmem:[%s41 + $0x10] sm:$0xff]
        %v2453 = vld [vmem:[%s41 + $0x18] sm:$0xff]
        %v2454 = vld [vmem:[#allocation22] sm:$0x1]
        %v2455 = vld [vmem:[%s45] sm:$0xff]
        %v2456 = vld [vmem:[%s45 + $0x8] sm:$0xff]
        %v2457 = vld [vmem:[%s45 + $0x10] sm:$0xff]
        %v2458 = vld [vmem:[%s45 + $0x18] sm:$0xff]
        %v2459 = vld [vmem:[%s45 + $0x20] sm:$0xff]
        %v2460 = vld [vmem:[%s45 + $0x28] sm:$0xff]
        %v2461 = vld [vmem:[%s45 + $0x30] sm:$0xff]
        %v2462 = vld [vmem:[%s45 + $0x38] sm:$0xff]
        %v2463 = vld [vmem:[#allocation23] sm:$0x1]
        %v2465 = vperm.slane %v2454, 0
        %v2468 = vsel %vm1876, %v2449, 0
        %2470 = vmatpush.msra.mxu0 0.0
        %2471 = vmatpush.msra.mxu0 0.0
        %2472 = vmatpush.msra.mxu0 0.0
        %2473 = vmatpush.msra.mxu0 0.0
        %2474 = vmatpush.msra.mxu0 0.0
        %2475 = vmatpush.msra.mxu0 0.0
        %2476 = vmatpush.msra.mxu0 0.0
        %2477 = vmatpush.msra.mxu0 0.0
        %2478 = vmatpush.msra.mxu0 0.0
        %2479 = vmatpush.msra.mxu0 0.0
        %2480 = vmatpush.msra.mxu0 0.0
        %2481 = vmatpush.msra.mxu0 0.0
        %2482 = vmatpush.msra.mxu0 %v2453
        %2483 = vmatpush.msra.mxu0 %v2452
        %2484 = vmatpush.msra.mxu0 %v2451
        %2485 = vmatpush.msra.mxu0 %v2450
        %2486 = vmatmul.f32.gmra.mxu0 %v2468
        %v2487 = vpop.f32.mrf.mxu0
        %v2488 = vadd.f32 %v2465, %v2487
        %2489 = vdwg.mxu0
        %v2490 = vmax.f32 %v2488, 0.0
        %v2492 = vperm.slane %v2463, 0
        %vm2494 = vcmask 523264
        %v2496 = vsel %vm2494, %v2490, 0
        %2498 = vmatpush.msra.mxu0 0.0
        %2499 = vmatpush.msra.mxu0 0.0
        %2500 = vmatpush.msra.mxu0 0.0
        %2501 = vmatpush.msra.mxu0 0.0
        %2502 = vmatpush.msra.mxu0 0.0
        %2503 = vmatpush.msra.mxu0 0.0
        %2504 = vmatpush.msra.mxu0 0.0
        %2505 = vmatpush.msra.mxu0 0.0
        %2506 = vmatpush.msra.mxu0 %v2462
        %2507 = vmatpush.msra.mxu0 %v2461
        %2508 = vmatpush.msra.mxu0 %v2460
        %2509 = vmatpush.msra.mxu0 %v2459
        %2510 = vmatpush.msra.mxu0 %v2458
        %2511 = vmatpush.msra.mxu0 %v2457
        %2512 = vmatpush.msra.mxu0 %v2456
        %2513 = vmatpush.msra.mxu0 %v2455
        %2514 = vmatmul.f32.gmra.mxu0 %v2496
        %v2515 = vpop.f32.mrf.mxu0
        %v2516 = vadd.f32 %v2492, %v2515
        %2517 = vdwg.mxu0
        %v2518 = vadd.f32 %v2417, %v2516
        %s2519 = scalar_lea.vmem %s25, 1
        %v2520 = vld [vmem:[%s2519] sm:$0x1]
        %s2521 = scalar_lea.vmem %s27, 1
        %v2522 = vld [vmem:[%s2521] sm:$0x1]
        %v2523 = vsel %vm1876, %v2518, 0.0
        %2524 = vadd.xlane.f32.xlu0 %v2523
        %v2525 = vpop.xlane.xlu0 %2524
        %v2526 = vmul.f32 %v2525, %v1920
        %v2527 = vsub.f32 %v2518, %v2526
        %v2528 = vmul.f32 %v2527, %v2527
        %v2529 = vsel %vm1876, %v2528, 0.0
        %2530 = vadd.xlane.f32.xlu0 %v2529
        %v2531 = vpop.xlane.xlu0 %2530
        %v2532 = vmul.f32 %v2531, %v1920
        %v2533 = vadd.f32 %v2532, 1e-05
        %v2534 = vrsqrt.pop %v2533
        %v2535 = vmul.f32 %v2534, %v2533
        %v2536 = vmul.f32 %v2535, %v2534
        %v2537 = vmul.f32 0.5, %v2536
        %v2538 = vsub.f32 1.5, %v2537
        %v2539 = vmul.f32 %v2534, %v2538
        %vm2540 = vweird.f32 %v2533
        %vm2541 = vweird.f32 %v2534
        %vm2542 = vmor %vm2540, %vm2541
        %v2543 = vsel %vm2542, %v2534, %v2539
        %v2544 = vmul.f32 %v2527, %v2543
        %v2546 = vperm.slane %v2520, 0
        %v2548 = vmul.f32 %v2544, %v2546
        %v2550 = vperm.slane %v2522, 0
        %v2552 = vadd.f32 %v2548, %v2550
        %s2553 = scalar_lea.vmem %s29, 32
        %v2554 = vld [vmem:[%s2553] sm:$0xff]
        %v2555 = vld [vmem:[%s2553 + $0x8] sm:$0xff]
        %v2556 = vld [vmem:[%s2553 + $0x10] sm:$0xff]
        %v2557 = vld [vmem:[%s2553 + $0x18] sm:$0xff]
        %s2558 = scalar_lea.vmem %s31, 1
        %v2559 = vld [vmem:[%s2558] sm:$0x1]
        %s2560 = scalar_lea.vmem %s33, 32
        %v2561 = vld [vmem:[%s2560] sm:$0xff]
        %v2562 = vld [vmem:[%s2560 + $0x8] sm:$0xff]
        %v2563 = vld [vmem:[%s2560 + $0x10] sm:$0xff]
        %v2564 = vld [vmem:[%s2560 + $0x18] sm:$0xff]
        %s2565 = scalar_lea.vmem [#allocation17], 1
        %v2566 = vld [vmem:[%s2565] sm:$0x1]
        %v2568 = vperm.slane %v2559, 0
        %v2571 = vsel %vm1876, %v2552, 0
        %2573 = vmatpush.msra.mxu0 0.0
        %2574 = vmatpush.msra.mxu0 0.0
        %2575 = vmatpush.msra.mxu0 0.0
        %2576 = vmatpush.msra.mxu0 0.0
        %2577 = vmatpush.msra.mxu0 0.0
        %2578 = vmatpush.msra.mxu0 0.0
        %2579 = vmatpush.msra.mxu0 0.0
        %2580 = vmatpush.msra.mxu0 0.0
        %2581 = vmatpush.msra.mxu0 0.0
        %2582 = vmatpush.msra.mxu0 0.0
        %2583 = vmatpush.msra.mxu0 0.0
        %2584 = vmatpush.msra.mxu0 0.0
        %2585 = vmatpush.msra.mxu0 %v2557
        %2586 = vmatpush.msra.mxu0 %v2556
        %2587 = vmatpush.msra.mxu0 %v2555
        %2588 = vmatpush.msra.mxu0 %v2554
        %2589 = vmatmul.f32.gmra.mxu0 %v2571
        %v2590 = vpop.f32.mrf.mxu0
        %v2591 = vadd.f32 %v2568, %v2590
        %2592 = vdwg.mxu0
        %2594 = vrot.lane.b32.xlu0 %v2591, 120
        %v2595 = vpop.permute.xlu0 %2594
        %2596 = vrot.lane.b32.xlu0 %v2591, 112
        %v2597 = vpop.permute.xlu0 %2596
        %2598 = vrot.lane.b32.xlu0 %v2591, 104
        %v2599 = vpop.permute.xlu0 %2598
        %2600 = vrot.lane.b32.xlu0 %v2591, 96
        %v2601 = vpop.permute.xlu0 %2600
        %v2602 = vsel %vm2067, %v2591, 0
        %v2604 = vsel %vm2067, %v2601, 0
        %2606 = vmatpush.xpose.msra.mxu0 0.0
        %2607 = vmatpush.xpose.msra.mxu0 0.0
        %2608 = vmatpush.xpose.msra.mxu0 0.0
        %2609 = vmatpush.xpose.msra.mxu0 0.0
        %2610 = vmatpush.xpose.msra.mxu0 0.0
        %2611 = vmatpush.xpose.msra.mxu0 0.0
        %2612 = vmatpush.xpose.msra.mxu0 0.0
        %2613 = vmatpush.xpose.msra.mxu0 0.0
        %2614 = vmatpush.xpose.msra.mxu0 0.0
        %2615 = vmatpush.xpose.msra.mxu0 0.0
        %2616 = vmatpush.xpose.msra.mxu0 0.0
        %2617 = vmatpush.xpose.msra.mxu0 0.0
        %2618 = vmatpush.xpose.msra.mxu0 0.0
        %2619 = vmatpush.xpose.msra.mxu0 0.0
        %2620 = vmatpush.xpose.msra.mxu0 0.0
        %2621 = vmatpush.xpose.msra.mxu0 %v2604
        %2622 = vmatmul.f32.gmra.mxu0 %v2602
        %v2623 = vpop.f32.mrf.mxu0
        %v2624 = vadd.f32 0.0, %v2623
        %2625 = vdwg.mxu0
        %2626 = vrot.lane.b32.xlu0 %v2595, 96
        %v2627 = vpop.permute.xlu0 %2626
        %v2628 = vsel %vm2067, %v2595, 0
        %v2630 = vsel %vm2067, %v2627, 0
        %2632 = vmatpush.xpose.msra.mxu0 0.0
        %2633 = vmatpush.xpose.msra.mxu0 0.0
        %2634 = vmatpush.xpose.msra.mxu0 0.0
        %2635 = vmatpush.xpose.msra.mxu0 0.0
        %2636 = vmatpush.xpose.msra.mxu0 0.0
        %2637 = vmatpush.xpose.msra.mxu0 0.0
        %2638 = vmatpush.xpose.msra.mxu0 0.0
        %2639 = vmatpush.xpose.msra.mxu0 0.0
        %2640 = vmatpush.xpose.msra.mxu0 0.0
        %2641 = vmatpush.xpose.msra.mxu0 0.0
        %2642 = vmatpush.xpose.msra.mxu0 0.0
        %2643 = vmatpush.xpose.msra.mxu0 0.0
        %2644 = vmatpush.xpose.msra.mxu0 0.0
        %2645 = vmatpush.xpose.msra.mxu0 0.0
        %2646 = vmatpush.xpose.msra.mxu0 0.0
        %2647 = vmatpush.xpose.msra.mxu0 %v2630
        %2648 = vmatmul.f32.gmra.mxu0 %v2628
        %v2649 = vpop.f32.mrf.mxu0
        %v2650 = vadd.f32 0.0, %v2649
        %2651 = vdwg.mxu0
        %2652 = vrot.lane.b32.xlu0 %v2597, 96
        %v2653 = vpop.permute.xlu0 %2652
        %v2654 = vsel %vm2067, %v2597, 0
        %v2656 = vsel %vm2067, %v2653, 0
        %2658 = vmatpush.xpose.msra.mxu0 0.0
        %2659 = vmatpush.xpose.msra.mxu0 0.0
        %2660 = vmatpush.xpose.msra.mxu0 0.0
        %2661 = vmatpush.xpose.msra.mxu0 0.0
        %2662 = vmatpush.xpose.msra.mxu0 0.0
        %2663 = vmatpush.xpose.msra.mxu0 0.0
        %2664 = vmatpush.xpose.msra.mxu0 0.0
        %2665 = vmatpush.xpose.msra.mxu0 0.0
        %2666 = vmatpush.xpose.msra.mxu0 0.0
        %2667 = vmatpush.xpose.msra.mxu0 0.0
        %2668 = vmatpush.xpose.msra.mxu0 0.0
        %2669 = vmatpush.xpose.msra.mxu0 0.0
        %2670 = vmatpush.xpose.msra.mxu0 0.0
        %2671 = vmatpush.xpose.msra.mxu0 0.0
        %2672 = vmatpush.xpose.msra.mxu0 0.0
        %2673 = vmatpush.xpose.msra.mxu0 %v2656
        %2674 = vmatmul.f32.gmra.mxu0 %v2654
        %v2675 = vpop.f32.mrf.mxu0
        %v2676 = vadd.f32 0.0, %v2675
        %2677 = vdwg.mxu0
        %2678 = vrot.lane.b32.xlu0 %v2599, 96
        %v2679 = vpop.permute.xlu0 %2678
        %v2680 = vsel %vm2067, %v2599, 0
        %v2682 = vsel %vm2067, %v2679, 0
        %2684 = vmatpush.xpose.msra.mxu0 0.0
        %2685 = vmatpush.xpose.msra.mxu0 0.0
        %2686 = vmatpush.xpose.msra.mxu0 0.0
        %2687 = vmatpush.xpose.msra.mxu0 0.0
        %2688 = vmatpush.xpose.msra.mxu0 0.0
        %2689 = vmatpush.xpose.msra.mxu0 0.0
        %2690 = vmatpush.xpose.msra.mxu0 0.0
        %2691 = vmatpush.xpose.msra.mxu0 0.0
        %2692 = vmatpush.xpose.msra.mxu0 0.0
        %2693 = vmatpush.xpose.msra.mxu0 0.0
        %2694 = vmatpush.xpose.msra.mxu0 0.0
        %2695 = vmatpush.xpose.msra.mxu0 0.0
        %2696 = vmatpush.xpose.msra.mxu0 0.0
        %2697 = vmatpush.xpose.msra.mxu0 0.0
        %2698 = vmatpush.xpose.msra.mxu0 0.0
        %2699 = vmatpush.xpose.msra.mxu0 %v2682
        %2700 = vmatmul.f32.gmra.mxu0 %v2680
        %v2701 = vpop.f32.mrf.mxu0
        %v2702 = vadd.f32 0.0, %v2701
        %2703 = vdwg.mxu0
        %v2704 = vmul.f32 %v2624, 0.35355338
        %v2705 = vmul.f32 %v2650, 0.35355338
        %v2706 = vmul.f32 %v2676, 0.35355338
        %v2707 = vmul.f32 %v2702, 0.35355338
        %v2708 = vsel %vm2067, %v2704, -inf
        %2709 = vmax.xlane.f32.xlu0 %v2708
        %v2710 = vpop.xlane.xlu0 %2709
        %v2711 = vsel %vm2067, %v2705, -inf
        %2712 = vmax.xlane.f32.xlu0 %v2711
        %v2713 = vpop.xlane.xlu0 %2712
        %v2714 = vsel %vm2067, %v2706, -inf
        %2715 = vmax.xlane.f32.xlu0 %v2714
        %v2716 = vpop.xlane.xlu0 %2715
        %v2717 = vsel %vm2067, %v2707, -inf
        %2718 = vmax.xlane.f32.xlu0 %v2717
        %v2719 = vpop.xlane.xlu0 %2718
        %v2720 = vsub.f32 %v2704, %v2710
        %v2721 = vsub.f32 %v2705, %v2713
        %v2722 = vsub.f32 %v2706, %v2716
        %v2723 = vsub.f32 %v2707, %v2719
        %v2724 = vmul.f32 %v2720, 1.442695
        %v2725 = vpow.pop %v2724
        %v2726 = vmul.f32 %v2721, 1.442695
        %v2727 = vpow.pop %v2726
        %v2728 = vmul.f32 %v2722, 1.442695
        %v2729 = vpow.pop %v2728
        %v2730 = vmul.f32 %v2723, 1.442695
        %v2731 = vpow.pop %v2730
        %v2732 = vsel %vm2067, %v2725, 0.0
        %2733 = vadd.xlane.f32.xlu0 %v2732
        %v2734 = vpop.xlane.xlu0 %2733
        %v2735 = vsel %vm2067, %v2727, 0.0
        %2736 = vadd.xlane.f32.xlu0 %v2735
        %v2737 = vpop.xlane.xlu0 %2736
        %v2738 = vsel %vm2067, %v2729, 0.0
        %2739 = vadd.xlane.f32.xlu0 %v2738
        %v2740 = vpop.xlane.xlu0 %2739
        %v2741 = vsel %vm2067, %v2731, 0.0
        %2742 = vadd.xlane.f32.xlu0 %v2741
        %v2743 = vpop.xlane.xlu0 %2742
        %v2744 = vrcp.pop %v2734
        %v2745 = vmul.f32 %v2734, %v2744
        %v2746 = vsub.f32 1.0, %v2745
        %v2747 = vmul.f32 %v2744, %v2746
        %v2748 = vadd.f32 %v2744, %v2747
        %vm2749 = vweird.f32 %v2734
        %vm2750 = vweird.f32 %v2744
        %vm2751 = vmor %vm2749, %vm2750
        %v2752 = vsel %vm2751, %v2744, %v2748
        %v2753 = vand.u32 2147483647, %v2734
        %vm2754 = vcmp.eq.f32.partialorder %v2753, 8.507059e+37
        %v2755 = vand.u32 %v2734, 2147483648
        %v2756 = vor.u32 1.1754944e-38, %v2755
        %v2757 = vsel %vm2754, %v2756, %v2752
        %v2758 = vmul.f32 %v2725, %v2757
        %v2759 = vrcp.pop %v2737
        %v2760 = vmul.f32 %v2737, %v2759
        %v2761 = vsub.f32 1.0, %v2760
        %v2762 = vmul.f32 %v2759, %v2761
        %v2763 = vadd.f32 %v2759, %v2762
        %vm2764 = vweird.f32 %v2737
        %vm2765 = vweird.f32 %v2759
        %vm2766 = vmor %vm2764, %vm2765
        %v2767 = vsel %vm2766, %v2759, %v2763
        %v2768 = vand.u32 2147483647, %v2737
        %vm2769 = vcmp.eq.f32.partialorder %v2768, 8.507059e+37
        %v2770 = vand.u32 %v2737, 2147483648
        %v2771 = vor.u32 1.1754944e-38, %v2770
        %v2772 = vsel %vm2769, %v2771, %v2767
        %v2773 = vmul.f32 %v2727, %v2772
        %v2774 = vrcp.pop %v2740
        %v2775 = vmul.f32 %v2740, %v2774
        %v2776 = vsub.f32 1.0, %v2775
        %v2777 = vmul.f32 %v2774, %v2776
        %v2778 = vadd.f32 %v2774, %v2777
        %vm2779 = vweird.f32 %v2740
        %vm2780 = vweird.f32 %v2774
        %vm2781 = vmor %vm2779, %vm2780
        %v2782 = vsel %vm2781, %v2774, %v2778
        %v2783 = vand.u32 2147483647, %v2740
        %vm2784 = vcmp.eq.f32.partialorder %v2783, 8.507059e+37
        %v2785 = vand.u32 %v2740, 2147483648
        %v2786 = vor.u32 1.1754944e-38, %v2785
        %v2787 = vsel %vm2784, %v2786, %v2782
        %v2788 = vmul.f32 %v2729, %v2787
        %v2789 = vrcp.pop %v2743
        %v2790 = vmul.f32 %v2743, %v2789
        %v2791 = vsub.f32 1.0, %v2790
        %v2792 = vmul.f32 %v2789, %v2791
        %v2793 = vadd.f32 %v2789, %v2792
        %vm2794 = vweird.f32 %v2743
        %vm2795 = vweird.f32 %v2789
        %vm2796 = vmor %vm2794, %vm2795
        %v2797 = vsel %vm2796, %v2789, %v2793
        %v2798 = vand.u32 2147483647, %v2743
        %vm2799 = vcmp.eq.f32.partialorder %v2798, 8.507059e+37
        %v2800 = vand.u32 %v2743, 2147483648
        %v2801 = vor.u32 1.1754944e-38, %v2800
        %v2802 = vsel %vm2799, %v2801, %v2797
        %v2803 = vmul.f32 %v2731, %v2802
        %2804 = vrot.lane.b32.xlu0 %v2591, 64
        %v2805 = vpop.permute.xlu0 %2804
        %v2808 = vsel %vm2067, %v2758, 0
        %2810 = vmatpush.msra.mxu0 0.0
        %2811 = vmatpush.msra.mxu0 0.0
        %2812 = vmatpush.msra.mxu0 0.0
        %2813 = vmatpush.msra.mxu0 0.0
        %2814 = vmatpush.msra.mxu0 0.0
        %2815 = vmatpush.msra.mxu0 0.0
        %2816 = vmatpush.msra.mxu0 0.0
        %2817 = vmatpush.msra.mxu0 0.0
        %2818 = vmatpush.msra.mxu0 0.0
        %2819 = vmatpush.msra.mxu0 0.0
        %2820 = vmatpush.msra.mxu0 0.0
        %2821 = vmatpush.msra.mxu0 0.0
        %2822 = vmatpush.msra.mxu0 0.0
        %2823 = vmatpush.msra.mxu0 0.0
        %2824 = vmatpush.msra.mxu0 0.0
        %2825 = vmatpush.msra.mxu0 %v2805
        %2826 = vmatmul.f32.gmra.mxu0 %v2808
        %v2827 = vpop.f32.mrf.mxu0
        %v2828 = vadd.f32 0.0, %v2827
        %2829 = vdwg.mxu0
        %2830 = vrot.lane.b32.xlu0 %v2595, 64
        %v2831 = vpop.permute.xlu0 %2830
        %v2834 = vsel %vm2067, %v2773, 0
        %2836 = vmatpush.msra.mxu0 0.0
        %2837 = vmatpush.msra.mxu0 0.0
        %2838 = vmatpush.msra.mxu0 0.0
        %2839 = vmatpush.msra.mxu0 0.0
        %2840 = vmatpush.msra.mxu0 0.0
        %2841 = vmatpush.msra.mxu0 0.0
        %2842 = vmatpush.msra.mxu0 0.0
        %2843 = vmatpush.msra.mxu0 0.0
        %2844 = vmatpush.msra.mxu0 0.0
        %2845 = vmatpush.msra.mxu0 0.0
        %2846 = vmatpush.msra.mxu0 0.0
        %2847 = vmatpush.msra.mxu0 0.0
        %2848 = vmatpush.msra.mxu0 0.0
        %2849 = vmatpush.msra.mxu0 0.0
        %2850 = vmatpush.msra.mxu0 0.0
        %2851 = vmatpush.msra.mxu0 %v2831
        %2852 = vmatmul.f32.gmra.mxu0 %v2834
        %v2853 = vpop.f32.mrf.mxu0
        %v2854 = vadd.f32 0.0, %v2853
        %2855 = vdwg.mxu0
        %2856 = vrot.lane.b32.xlu0 %v2597, 64
        %v2857 = vpop.permute.xlu0 %2856
        %v2860 = vsel %vm2067, %v2788, 0
        %2862 = vmatpush.msra.mxu0 0.0
        %2863 = vmatpush.msra.mxu0 0.0
        %2864 = vmatpush.msra.mxu0 0.0
        %2865 = vmatpush.msra.mxu0 0.0
        %2866 = vmatpush.msra.mxu0 0.0
        %2867 = vmatpush.msra.mxu0 0.0
        %2868 = vmatpush.msra.mxu0 0.0
        %2869 = vmatpush.msra.mxu0 0.0
        %2870 = vmatpush.msra.mxu0 0.0
        %2871 = vmatpush.msra.mxu0 0.0
        %2872 = vmatpush.msra.mxu0 0.0
        %2873 = vmatpush.msra.mxu0 0.0
        %2874 = vmatpush.msra.mxu0 0.0
        %2875 = vmatpush.msra.mxu0 0.0
        %2876 = vmatpush.msra.mxu0 0.0
        %2877 = vmatpush.msra.mxu0 %v2857
        %2878 = vmatmul.f32.gmra.mxu0 %v2860
        %v2879 = vpop.f32.mrf.mxu0
        %v2880 = vadd.f32 0.0, %v2879
        %2881 = vdwg.mxu0
        %2882 = vrot.lane.b32.xlu0 %v2599, 64
        %v2883 = vpop.permute.xlu0 %2882
        %v2886 = vsel %vm2067, %v2803, 0
        %2888 = vmatpush.msra.mxu0 0.0
        %2889 = vmatpush.msra.mxu0 0.0
        %2890 = vmatpush.msra.mxu0 0.0
        %2891 = vmatpush.msra.mxu0 0.0
        %2892 = vmatpush.msra.mxu0 0.0
        %2893 = vmatpush.msra.mxu0 0.0
        %2894 = vmatpush.msra.mxu0 0.0
        %2895 = vmatpush.msra.mxu0 0.0
        %2896 = vmatpush.msra.mxu0 0.0
        %2897 = vmatpush.msra.mxu0 0.0
        %2898 = vmatpush.msra.mxu0 0.0
        %2899 = vmatpush.msra.mxu0 0.0
        %2900 = vmatpush.msra.mxu0 0.0
        %2901 = vmatpush.msra.mxu0 0.0
        %2902 = vmatpush.msra.mxu0 0.0
        %2903 = vmatpush.msra.mxu0 %v2883
        %2904 = vmatmul.f32.gmra.mxu0 %v2886
        %v2905 = vpop.f32.mrf.mxu0
        %v2906 = vadd.f32 0.0, %v2905
        %2907 = vdwg.mxu0
        %2909 = vrot.lane.b32.xlu0 %v2854, 8
        %v2910 = vpop.permute.xlu0 %2909
        %2913 = vrot.lane.b32.xlu0 %v2880, 16
        %v2914 = vpop.permute.xlu0 %2913
        %2917 = vrot.lane.b32.xlu0 %v2906, 24
        %v2918 = vpop.permute.xlu0 %2917
        %v2920 = vsel %vm2067, %v2828, %v2910
        %v2921 = vsel %vm2387, %v2920, %v2914
        %v2922 = vsel %vm2389, %v2921, %v2918
        %v2924 = vperm.slane %v2566, 0
        %v2927 = vsel %vm1876, %v2922, 0
        %2929 = vmatpush.msra.mxu0 0.0
        %2930 = vmatpush.msra.mxu0 0.0
        %2931 = vmatpush.msra.mxu0 0.0
        %2932 = vmatpush.msra.mxu0 0.0
        %2933 = vmatpush.msra.mxu0 0.0
        %2934 = vmatpush.msra.mxu0 0.0
        %2935 = vmatpush.msra.mxu0 0.0
        %2936 = vmatpush.msra.mxu0 0.0
        %2937 = vmatpush.msra.mxu0 0.0
        %2938 = vmatpush.msra.mxu0 0.0
        %2939 = vmatpush.msra.mxu0 0.0
        %2940 = vmatpush.msra.mxu0 0.0
        %2941 = vmatpush.msra.mxu0 %v2564
        %2942 = vmatpush.msra.mxu0 %v2563
        %2943 = vmatpush.msra.mxu0 %v2562
        %2944 = vmatpush.msra.mxu0 %v2561
        %2945 = vmatmul.f32.gmra.mxu0 %v2927
        %v2946 = vpop.f32.mrf.mxu0
        %v2947 = vadd.f32 %v2924, %v2946
        %2948 = vdwg.mxu0
        %v2949 = vadd.f32 %v2518, %v2947
        %s2950 = scalar_lea.vmem [#allocation19], 1
        %v2951 = vld [vmem:[%s2950] sm:$0x1]
        %s2952 = scalar_lea.vmem [#allocation20], 1
        %v2953 = vld [vmem:[%s2952] sm:$0x1]
        %v2954 = vsel %vm1876, %v2949, 0.0
        %2955 = vadd.xlane.f32.xlu0 %v2954
        %v2956 = vpop.xlane.xlu0 %2955
        %v2957 = vmul.f32 %v2956, %v1920
        %v2958 = vsub.f32 %v2949, %v2957
        %v2959 = vmul.f32 %v2958, %v2958
        %v2960 = vsel %vm1876, %v2959, 0.0
        %2961 = vadd.xlane.f32.xlu0 %v2960
        %v2962 = vpop.xlane.xlu0 %2961
        %v2963 = vmul.f32 %v2962, %v1920
        %v2964 = vadd.f32 %v2963, 1e-05
        %v2965 = vrsqrt.pop %v2964
        %v2966 = vmul.f32 %v2965, %v2964
        %v2967 = vmul.f32 %v2966, %v2965
        %v2968 = vmul.f32 0.5, %v2967
        %v2969 = vsub.f32 1.5, %v2968
        %v2970 = vmul.f32 %v2965, %v2969
        %vm2971 = vweird.f32 %v2964
        %vm2972 = vweird.f32 %v2965
        %vm2973 = vmor %vm2971, %vm2972
        %v2974 = vsel %vm2973, %v2965, %v2970
        %v2975 = vmul.f32 %v2958, %v2974
        %v2977 = vperm.slane %v2951, 0
        %v2979 = vmul.f32 %v2975, %v2977
        %v2981 = vperm.slane %v2953, 0
        %v2983 = vadd.f32 %v2979, %v2981
        %s2984 = scalar_lea.vmem %s41, 32
        %v2985 = vld [vmem:[%s2984] sm:$0xff]
        %v2986 = vld [vmem:[%s2984 + $0x8] sm:$0xff]
        %v2987 = vld [vmem:[%s2984 + $0x10] sm:$0xff]
        %v2988 = vld [vmem:[%s2984 + $0x18] sm:$0xff]
        %s2989 = scalar_lea.vmem [#allocation22], 1
        %v2990 = vld [vmem:[%s2989] sm:$0x1]
        %s2991 = scalar_lea.vmem %s45, 64
        %v2992 = vld [vmem:[%s2991] sm:$0xff]
        %v2993 = vld [vmem:[%s2991 + $0x8] sm:$0xff]
        %v2994 = vld [vmem:[%s2991 + $0x10] sm:$0xff]
        %v2995 = vld [vmem:[%s2991 + $0x18] sm:$0xff]
        %v2996 = vld [vmem:[%s2991 + $0x20] sm:$0xff]
        %v2997 = vld [vmem:[%s2991 + $0x28] sm:$0xff]
        %v2998 = vld [vmem:[%s2991 + $0x30] sm:$0xff]
        %v2999 = vld [vmem:[%s2991 + $0x38] sm:$0xff]
        %s3000 = scalar_lea.vmem [#allocation23], 1
        %v3001 = vld [vmem:[%s3000] sm:$0x1]
        %v3003 = vperm.slane %v2990, 0
        %v3006 = vsel %vm1876, %v2983, 0
        %3008 = vmatpush.msra.mxu0 0.0
        %3009 = vmatpush.msra.mxu0 0.0
        %3010 = vmatpush.msra.mxu0 0.0
        %3011 = vmatpush.msra.mxu0 0.0
        %3012 = vmatpush.msra.mxu0 0.0
        %3013 = vmatpush.msra.mxu0 0.0
        %3014 = vmatpush.msra.mxu0 0.0
        %3015 = vmatpush.msra.mxu0 0.0
        %3016 = vmatpush.msra.mxu0 0.0
        %3017 = vmatpush.msra.mxu0 0.0
        %3018 = vmatpush.msra.mxu0 0.0
        %3019 = vmatpush.msra.mxu0 0.0
        %3020 = vmatpush.msra.mxu0 %v2988
        %3021 = vmatpush.msra.mxu0 %v2987
        %3022 = vmatpush.msra.mxu0 %v2986
        %3023 = vmatpush.msra.mxu0 %v2985
        %3024 = vmatmul.f32.gmra.mxu0 %v3006
        %v3025 = vpop.f32.mrf.mxu0
        %v3026 = vadd.f32 %v3003, %v3025
        %3027 = vdwg.mxu0
        %v3028 = vmax.f32 %v3026, 0.0
        %v3030 = vperm.slane %v3001, 0
        %v3033 = vsel %vm2494, %v3028, 0
        %3035 = vmatpush.msra.mxu0 0.0
        %3036 = vmatpush.msra.mxu0 0.0
        %3037 = vmatpush.msra.mxu0 0.0
        %3038 = vmatpush.msra.mxu0 0.0
        %3039 = vmatpush.msra.mxu0 0.0
        %3040 = vmatpush.msra.mxu0 0.0
        %3041 = vmatpush.msra.mxu0 0.0
        %3042 = vmatpush.msra.mxu0 0.0
        %3043 = vmatpush.msra.mxu0 %v2999
        %3044 = vmatpush.msra.mxu0 %v2998
        %3045 = vmatpush.msra.mxu0 %v2997
        %3046 = vmatpush.msra.mxu0 %v2996
        %3047 = vmatpush.msra.mxu0 %v2995
        %3048 = vmatpush.msra.mxu0 %v2994
        %3049 = vmatpush.msra.mxu0 %v2993
        %3050 = vmatpush.msra.mxu0 %v2992
        %3051 = vmatmul.f32.gmra.mxu0 %v3033
        %v3052 = vpop.f32.mrf.mxu0
        %v3053 = vadd.f32 %v3030, %v3052
        %3054 = vdwg.mxu0
        %v3055 = vadd.f32 %v2949, %v3053
        %v3056 = vld [vmem:[%s1581] sm:$0xff]
        %v3057 = vadd.f32 %v1970, %v3056
        %v3058 = vld [vmem:[#allocation25] sm:$0x1]
        %v3059 = vld [vmem:[%s51] sm:$0x1]
        %v3060 = vsel %vm1876, %v3057, 0.0
        %3061 = vadd.xlane.f32.xlu0 %v3060
        %v3062 = vpop.xlane.xlu0 %3061
        %v3063 = vmul.f32 %v3062, %v1920
        %v3064 = vsub.f32 %v3057, %v3063
        %v3065 = vmul.f32 %v3064, %v3064
        %v3066 = vsel %vm1876, %v3065, 0.0
        %3067 = vadd.xlane.f32.xlu0 %v3066
        %v3068 = vpop.xlane.xlu0 %3067
        %v3069 = vmul.f32 %v3068, %v1920
        %v3070 = vadd.f32 %v3069, 1e-05
        %v3071 = vrsqrt.pop %v3070
        %v3072 = vmul.f32 %v3071, %v3070
        %v3073 = vmul.f32 %v3072, %v3071
        %v3074 = vmul.f32 0.5, %v3073
        %v3075 = vsub.f32 1.5, %v3074
        %v3076 = vmul.f32 %v3071, %v3075
        %vm3077 = vweird.f32 %v3070
        %vm3078 = vweird.f32 %v3071
        %vm3079 = vmor %vm3077, %vm3078
        %v3080 = vsel %vm3079, %v3071, %v3076
        %v3081 = vmul.f32 %v3064, %v3080
        %v3083 = vperm.slane %v3058, 0
        %v3085 = vmul.f32 %v3081, %v3083
        %v3087 = vperm.slane %v3059, 0
        %v3089 = vadd.f32 %v3085, %v3087
        %v3090 = vld [vmem:[%s53] sm:$0xff]
        %v3091 = vld [vmem:[%s53 + $0x8] sm:$0xff]
        %v3092 = vld [vmem:[%s53 + $0x10] sm:$0xff]
        %v3093 = vld [vmem:[%s53 + $0x18] sm:$0xff]
        %v3094 = vld [vmem:[#allocation26] sm:$0x1]
        %v3095 = vld [vmem:[%s57] sm:$0xff]
        %v3096 = vld [vmem:[%s57 + $0x8] sm:$0xff]
        %v3097 = vld [vmem:[%s57 + $0x10] sm:$0xff]
        %v3098 = vld [vmem:[%s57 + $0x18] sm:$0xff]
        %v3099 = vld [vmem:[#allocation28] sm:$0x1]
        %v3101 = vperm.slane %v3094, 0
        %v3104 = vsel %vm1876, %v3089, 0
        %3106 = vmatpush.msra.mxu0 0.0
        %3107 = vmatpush.msra.mxu0 0.0
        %3108 = vmatpush.msra.mxu0 0.0
        %3109 = vmatpush.msra.mxu0 0.0
        %3110 = vmatpush.msra.mxu0 0.0
        %3111 = vmatpush.msra.mxu0 0.0
        %3112 = vmatpush.msra.mxu0 0.0
        %3113 = vmatpush.msra.mxu0 0.0
        %3114 = vmatpush.msra.mxu0 0.0
        %3115 = vmatpush.msra.mxu0 0.0
        %3116 = vmatpush.msra.mxu0 0.0
        %3117 = vmatpush.msra.mxu0 0.0
        %3118 = vmatpush.msra.mxu0 %v3093
        %3119 = vmatpush.msra.mxu0 %v3092
        %3120 = vmatpush.msra.mxu0 %v3091
        %3121 = vmatpush.msra.mxu0 %v3090
        %3122 = vmatmul.f32.gmra.mxu0 %v3104
        %v3123 = vpop.f32.mrf.mxu0
        %v3124 = vadd.f32 %v3101, %v3123
        %3125 = vdwg.mxu0
        %3127 = vrot.lane.b32.xlu0 %v3124, 120
        %v3128 = vpop.permute.xlu0 %3127
        %3129 = vrot.lane.b32.xlu0 %v3124, 112
        %v3130 = vpop.permute.xlu0 %3129
        %3131 = vrot.lane.b32.xlu0 %v3124, 104
        %v3132 = vpop.permute.xlu0 %3131
        %3133 = vrot.lane.b32.xlu0 %v3124, 96
        %v3134 = vpop.permute.xlu0 %3133
        %v3135 = vsel %vm2067, %v3124, 0
        %v3137 = vsel %vm2067, %v3134, 0
        %3139 = vmatpush.xpose.msra.mxu0 0.0
        %3140 = vmatpush.xpose.msra.mxu0 0.0
        %3141 = vmatpush.xpose.msra.mxu0 0.0
        %3142 = vmatpush.xpose.msra.mxu0 0.0
        %3143 = vmatpush.xpose.msra.mxu0 0.0
        %3144 = vmatpush.xpose.msra.mxu0 0.0
        %3145 = vmatpush.xpose.msra.mxu0 0.0
        %3146 = vmatpush.xpose.msra.mxu0 0.0
        %3147 = vmatpush.xpose.msra.mxu0 0.0
        %3148 = vmatpush.xpose.msra.mxu0 0.0
        %3149 = vmatpush.xpose.msra.mxu0 0.0
        %3150 = vmatpush.xpose.msra.mxu0 0.0
        %3151 = vmatpush.xpose.msra.mxu0 0.0
        %3152 = vmatpush.xpose.msra.mxu0 0.0
        %3153 = vmatpush.xpose.msra.mxu0 0.0
        %3154 = vmatpush.xpose.msra.mxu0 %v3137
        %3155 = vmatmul.f32.gmra.mxu0 %v3135
        %v3156 = vpop.f32.mrf.mxu0
        %v3157 = vadd.f32 0.0, %v3156
        %3158 = vdwg.mxu0
        %3159 = vrot.lane.b32.xlu0 %v3128, 96
        %v3160 = vpop.permute.xlu0 %3159
        %v3161 = vsel %vm2067, %v3128, 0
        %v3163 = vsel %vm2067, %v3160, 0
        %3165 = vmatpush.xpose.msra.mxu0 0.0
        %3166 = vmatpush.xpose.msra.mxu0 0.0
        %3167 = vmatpush.xpose.msra.mxu0 0.0
        %3168 = vmatpush.xpose.msra.mxu0 0.0
        %3169 = vmatpush.xpose.msra.mxu0 0.0
        %3170 = vmatpush.xpose.msra.mxu0 0.0
        %3171 = vmatpush.xpose.msra.mxu0 0.0
        %3172 = vmatpush.xpose.msra.mxu0 0.0
        %3173 = vmatpush.xpose.msra.mxu0 0.0
        %3174 = vmatpush.xpose.msra.mxu0 0.0
        %3175 = vmatpush.xpose.msra.mxu0 0.0
        %3176 = vmatpush.xpose.msra.mxu0 0.0
        %3177 = vmatpush.xpose.msra.mxu0 0.0
        %3178 = vmatpush.xpose.msra.mxu0 0.0
        %3179 = vmatpush.xpose.msra.mxu0 0.0
        %3180 = vmatpush.xpose.msra.mxu0 %v3163
        %3181 = vmatmul.f32.gmra.mxu0 %v3161
        %v3182 = vpop.f32.mrf.mxu0
        %v3183 = vadd.f32 0.0, %v3182
        %3184 = vdwg.mxu0
        %3185 = vrot.lane.b32.xlu0 %v3130, 96
        %v3186 = vpop.permute.xlu0 %3185
        %v3187 = vsel %vm2067, %v3130, 0
        %v3189 = vsel %vm2067, %v3186, 0
        %3191 = vmatpush.xpose.msra.mxu0 0.0
        %3192 = vmatpush.xpose.msra.mxu0 0.0
        %3193 = vmatpush.xpose.msra.mxu0 0.0
        %3194 = vmatpush.xpose.msra.mxu0 0.0
        %3195 = vmatpush.xpose.msra.mxu0 0.0
        %3196 = vmatpush.xpose.msra.mxu0 0.0
        %3197 = vmatpush.xpose.msra.mxu0 0.0
        %3198 = vmatpush.xpose.msra.mxu0 0.0
        %3199 = vmatpush.xpose.msra.mxu0 0.0
        %3200 = vmatpush.xpose.msra.mxu0 0.0
        %3201 = vmatpush.xpose.msra.mxu0 0.0
        %3202 = vmatpush.xpose.msra.mxu0 0.0
        %3203 = vmatpush.xpose.msra.mxu0 0.0
        %3204 = vmatpush.xpose.msra.mxu0 0.0
        %3205 = vmatpush.xpose.msra.mxu0 0.0
        %3206 = vmatpush.xpose.msra.mxu0 %v3189
        %3207 = vmatmul.f32.gmra.mxu0 %v3187
        %v3208 = vpop.f32.mrf.mxu0
        %v3209 = vadd.f32 0.0, %v3208
        %3210 = vdwg.mxu0
        %3211 = vrot.lane.b32.xlu0 %v3132, 96
        %v3212 = vpop.permute.xlu0 %3211
        %v3213 = vsel %vm2067, %v3132, 0
        %v3215 = vsel %vm2067, %v3212, 0
        %3217 = vmatpush.xpose.msra.mxu0 0.0
        %3218 = vmatpush.xpose.msra.mxu0 0.0
        %3219 = vmatpush.xpose.msra.mxu0 0.0
        %3220 = vmatpush.xpose.msra.mxu0 0.0
        %3221 = vmatpush.xpose.msra.mxu0 0.0
        %3222 = vmatpush.xpose.msra.mxu0 0.0
        %3223 = vmatpush.xpose.msra.mxu0 0.0
        %3224 = vmatpush.xpose.msra.mxu0 0.0
        %3225 = vmatpush.xpose.msra.mxu0 0.0
        %3226 = vmatpush.xpose.msra.mxu0 0.0
        %3227 = vmatpush.xpose.msra.mxu0 0.0
        %3228 = vmatpush.xpose.msra.mxu0 0.0
        %3229 = vmatpush.xpose.msra.mxu0 0.0
        %3230 = vmatpush.xpose.msra.mxu0 0.0
        %3231 = vmatpush.xpose.msra.mxu0 0.0
        %3232 = vmatpush.xpose.msra.mxu0 %v3215
        %3233 = vmatmul.f32.gmra.mxu0 %v3213
        %v3234 = vpop.f32.mrf.mxu0
        %v3235 = vadd.f32 0.0, %v3234
        %3236 = vdwg.mxu0
        %v3237 = vmul.f32 %v3157, 0.35355338
        %v3238 = vmul.f32 %v3183, 0.35355338
        %v3239 = vmul.f32 %v3209, 0.35355338
        %v3240 = vmul.f32 %v3235, 0.35355338
        %v3241 = vsel %vm2067, %v3237, -inf
        %3242 = vmax.xlane.f32.xlu0 %v3241
        %v3243 = vpop.xlane.xlu0 %3242
        %v3244 = vsel %vm2067, %v3238, -inf
        %3245 = vmax.xlane.f32.xlu0 %v3244
        %v3246 = vpop.xlane.xlu0 %3245
        %v3247 = vsel %vm2067, %v3239, -inf
        %3248 = vmax.xlane.f32.xlu0 %v3247
        %v3249 = vpop.xlane.xlu0 %3248
        %v3250 = vsel %vm2067, %v3240, -inf
        %3251 = vmax.xlane.f32.xlu0 %v3250
        %v3252 = vpop.xlane.xlu0 %3251
        %v3253 = vsub.f32 %v3237, %v3243
        %v3254 = vsub.f32 %v3238, %v3246
        %v3255 = vsub.f32 %v3239, %v3249
        %v3256 = vsub.f32 %v3240, %v3252
        %v3257 = vmul.f32 %v3253, 1.442695
        %v3258 = vpow.pop %v3257
        %v3259 = vmul.f32 %v3254, 1.442695
        %v3260 = vpow.pop %v3259
        %v3261 = vmul.f32 %v3255, 1.442695
        %v3262 = vpow.pop %v3261
        %v3263 = vmul.f32 %v3256, 1.442695
        %v3264 = vpow.pop %v3263
        %v3265 = vsel %vm2067, %v3258, 0.0
        %3266 = vadd.xlane.f32.xlu0 %v3265
        %v3267 = vpop.xlane.xlu0 %3266
        %v3268 = vsel %vm2067, %v3260, 0.0
        %3269 = vadd.xlane.f32.xlu0 %v3268
        %v3270 = vpop.xlane.xlu0 %3269
        %v3271 = vsel %vm2067, %v3262, 0.0
        %3272 = vadd.xlane.f32.xlu0 %v3271
        %v3273 = vpop.xlane.xlu0 %3272
        %v3274 = vsel %vm2067, %v3264, 0.0
        %3275 = vadd.xlane.f32.xlu0 %v3274
        %v3276 = vpop.xlane.xlu0 %3275
        %v3277 = vrcp.pop %v3267
        %v3278 = vmul.f32 %v3267, %v3277
        %v3279 = vsub.f32 1.0, %v3278
        %v3280 = vmul.f32 %v3277, %v3279
        %v3281 = vadd.f32 %v3277, %v3280
        %vm3282 = vweird.f32 %v3267
        %vm3283 = vweird.f32 %v3277
        %vm3284 = vmor %vm3282, %vm3283
        %v3285 = vsel %vm3284, %v3277, %v3281
        %v3286 = vand.u32 2147483647, %v3267
        %vm3287 = vcmp.eq.f32.partialorder %v3286, 8.507059e+37
        %v3288 = vand.u32 %v3267, 2147483648
        %v3289 = vor.u32 1.1754944e-38, %v3288
        %v3290 = vsel %vm3287, %v3289, %v3285
        %v3291 = vmul.f32 %v3258, %v3290
        %v3292 = vrcp.pop %v3270
        %v3293 = vmul.f32 %v3270, %v3292
        %v3294 = vsub.f32 1.0, %v3293
        %v3295 = vmul.f32 %v3292, %v3294
        %v3296 = vadd.f32 %v3292, %v3295
        %vm3297 = vweird.f32 %v3270
        %vm3298 = vweird.f32 %v3292
        %vm3299 = vmor %vm3297, %vm3298
        %v3300 = vsel %vm3299, %v3292, %v3296
        %v3301 = vand.u32 2147483647, %v3270
        %vm3302 = vcmp.eq.f32.partialorder %v3301, 8.507059e+37
        %v3303 = vand.u32 %v3270, 2147483648
        %v3304 = vor.u32 1.1754944e-38, %v3303
        %v3305 = vsel %vm3302, %v3304, %v3300
        %v3306 = vmul.f32 %v3260, %v3305
        %v3307 = vrcp.pop %v3273
        %v3308 = vmul.f32 %v3273, %v3307
        %v3309 = vsub.f32 1.0, %v3308
        %v3310 = vmul.f32 %v3307, %v3309
        %v3311 = vadd.f32 %v3307, %v3310
        %vm3312 = vweird.f32 %v3273
        %vm3313 = vweird.f32 %v3307
        %vm3314 = vmor %vm3312, %vm3313
        %v3315 = vsel %vm3314, %v3307, %v3311
        %v3316 = vand.u32 2147483647, %v3273
        %vm3317 = vcmp.eq.f32.partialorder %v3316, 8.507059e+37
        %v3318 = vand.u32 %v3273, 2147483648
        %v3319 = vor.u32 1.1754944e-38, %v3318
        %v3320 = vsel %vm3317, %v3319, %v3315
        %v3321 = vmul.f32 %v3262, %v3320
        %v3322 = vrcp.pop %v3276
        %v3323 = vmul.f32 %v3276, %v3322
        %v3324 = vsub.f32 1.0, %v3323
        %v3325 = vmul.f32 %v3322, %v3324
        %v3326 = vadd.f32 %v3322, %v3325
        %vm3327 = vweird.f32 %v3276
        %vm3328 = vweird.f32 %v3322
        %vm3329 = vmor %vm3327, %vm3328
        %v3330 = vsel %vm3329, %v3322, %v3326
        %v3331 = vand.u32 2147483647, %v3276
        %vm3332 = vcmp.eq.f32.partialorder %v3331, 8.507059e+37
        %v3333 = vand.u32 %v3276, 2147483648
        %v3334 = vor.u32 1.1754944e-38, %v3333
        %v3335 = vsel %vm3332, %v3334, %v3330
        %v3336 = vmul.f32 %v3264, %v3335
        %3337 = vrot.lane.b32.xlu0 %v3124, 64
        %v3338 = vpop.permute.xlu0 %3337
        %v3341 = vsel %vm2067, %v3291, 0
        %3343 = vmatpush.msra.mxu0 0.0
        %3344 = vmatpush.msra.mxu0 0.0
        %3345 = vmatpush.msra.mxu0 0.0
        %3346 = vmatpush.msra.mxu0 0.0
        %3347 = vmatpush.msra.mxu0 0.0
        %3348 = vmatpush.msra.mxu0 0.0
        %3349 = vmatpush.msra.mxu0 0.0
        %3350 = vmatpush.msra.mxu0 0.0
        %3351 = vmatpush.msra.mxu0 0.0
        %3352 = vmatpush.msra.mxu0 0.0
        %3353 = vmatpush.msra.mxu0 0.0
        %3354 = vmatpush.msra.mxu0 0.0
        %3355 = vmatpush.msra.mxu0 0.0
        %3356 = vmatpush.msra.mxu0 0.0
        %3357 = vmatpush.msra.mxu0 0.0
        %3358 = vmatpush.msra.mxu0 %v3338
        %3359 = vmatmul.f32.gmra.mxu0 %v3341
        %v3360 = vpop.f32.mrf.mxu0
        %v3361 = vadd.f32 0.0, %v3360
        %3362 = vdwg.mxu0
        %3363 = vrot.lane.b32.xlu0 %v3128, 64
        %v3364 = vpop.permute.xlu0 %3363
        %v3367 = vsel %vm2067, %v3306, 0
        %3369 = vmatpush.msra.mxu0 0.0
        %3370 = vmatpush.msra.mxu0 0.0
        %3371 = vmatpush.msra.mxu0 0.0
        %3372 = vmatpush.msra.mxu0 0.0
        %3373 = vmatpush.msra.mxu0 0.0
        %3374 = vmatpush.msra.mxu0 0.0
        %3375 = vmatpush.msra.mxu0 0.0
        %3376 = vmatpush.msra.mxu0 0.0
        %3377 = vmatpush.msra.mxu0 0.0
        %3378 = vmatpush.msra.mxu0 0.0
        %3379 = vmatpush.msra.mxu0 0.0
        %3380 = vmatpush.msra.mxu0 0.0
        %3381 = vmatpush.msra.mxu0 0.0
        %3382 = vmatpush.msra.mxu0 0.0
        %3383 = vmatpush.msra.mxu0 0.0
        %3384 = vmatpush.msra.mxu0 %v3364
        %3385 = vmatmul.f32.gmra.mxu0 %v3367
        %v3386 = vpop.f32.mrf.mxu0
        %v3387 = vadd.f32 0.0, %v3386
        %3388 = vdwg.mxu0
        %3389 = vrot.lane.b32.xlu0 %v3130, 64
        %v3390 = vpop.permute.xlu0 %3389
        %v3393 = vsel %vm2067, %v3321, 0
        %3395 = vmatpush.msra.mxu0 0.0
        %3396 = vmatpush.msra.mxu0 0.0
        %3397 = vmatpush.msra.mxu0 0.0
        %3398 = vmatpush.msra.mxu0 0.0
        %3399 = vmatpush.msra.mxu0 0.0
        %3400 = vmatpush.msra.mxu0 0.0
        %3401 = vmatpush.msra.mxu0 0.0
        %3402 = vmatpush.msra.mxu0 0.0
        %3403 = vmatpush.msra.mxu0 0.0
        %3404 = vmatpush.msra.mxu0 0.0
        %3405 = vmatpush.msra.mxu0 0.0
        %3406 = vmatpush.msra.mxu0 0.0
        %3407 = vmatpush.msra.mxu0 0.0
        %3408 = vmatpush.msra.mxu0 0.0
        %3409 = vmatpush.msra.mxu0 0.0
        %3410 = vmatpush.msra.mxu0 %v3390
        %3411 = vmatmul.f32.gmra.mxu0 %v3393
        %v3412 = vpop.f32.mrf.mxu0
        %v3413 = vadd.f32 0.0, %v3412
        %3414 = vdwg.mxu0
        %3415 = vrot.lane.b32.xlu0 %v3132, 64
        %v3416 = vpop.permute.xlu0 %3415
        %v3419 = vsel %vm2067, %v3336, 0
        %3421 = vmatpush.msra.mxu0 0.0
        %3422 = vmatpush.msra.mxu0 0.0
        %3423 = vmatpush.msra.mxu0 0.0
        %3424 = vmatpush.msra.mxu0 0.0
        %3425 = vmatpush.msra.mxu0 0.0
        %3426 = vmatpush.msra.mxu0 0.0
        %3427 = vmatpush.msra.mxu0 0.0
        %3428 = vmatpush.msra.mxu0 0.0
        %3429 = vmatpush.msra.mxu0 0.0
        %3430 = vmatpush.msra.mxu0 0.0
        %3431 = vmatpush.msra.mxu0 0.0
        %3432 = vmatpush.msra.mxu0 0.0
        %3433 = vmatpush.msra.mxu0 0.0
        %3434 = vmatpush.msra.mxu0 0.0
        %3435 = vmatpush.msra.mxu0 0.0
        %3436 = vmatpush.msra.mxu0 %v3416
        %3437 = vmatmul.f32.gmra.mxu0 %v3419
        %v3438 = vpop.f32.mrf.mxu0
        %v3439 = vadd.f32 0.0, %v3438
        %3440 = vdwg.mxu0
        %3442 = vrot.lane.b32.xlu0 %v3387, 8
        %v3443 = vpop.permute.xlu0 %3442
        %3446 = vrot.lane.b32.xlu0 %v3413, 16
        %v3447 = vpop.permute.xlu0 %3446
        %3450 = vrot.lane.b32.xlu0 %v3439, 24
        %v3451 = vpop.permute.xlu0 %3450
        %v3453 = vsel %vm2067, %v3361, %v3443
        %v3454 = vsel %vm2387, %v3453, %v3447
        %v3455 = vsel %vm2389, %v3454, %v3451
        %v3457 = vperm.slane %v3099, 0
        %v3460 = vsel %vm1876, %v3455, 0
        %3462 = vmatpush.msra.mxu0 0.0
        %3463 = vmatpush.msra.mxu0 0.0
        %3464 = vmatpush.msra.mxu0 0.0
        %3465 = vmatpush.msra.mxu0 0.0
        %3466 = vmatpush.msra.mxu0 0.0
        %3467 = vmatpush.msra.mxu0 0.0
        %3468 = vmatpush.msra.mxu0 0.0
        %3469 = vmatpush.msra.mxu0 0.0
        %3470 = vmatpush.msra.mxu0 0.0
        %3471 = vmatpush.msra.mxu0 0.0
        %3472 = vmatpush.msra.mxu0 0.0
        %3473 = vmatpush.msra.mxu0 0.0
        %3474 = vmatpush.msra.mxu0 %v3098
        %3475 = vmatpush.msra.mxu0 %v3097
        %3476 = vmatpush.msra.mxu0 %v3096
        %3477 = vmatpush.msra.mxu0 %v3095
        %3478 = vmatmul.f32.gmra.mxu0 %v3460
        %v3479 = vpop.f32.mrf.mxu0
        %v3480 = vadd.f32 %v3457, %v3479
        %3481 = vdwg.mxu0
        %v3482 = vadd.f32 %v3057, %v3480
        %v3483 = vld [vmem:[%s61] sm:$0x1]
        %v3484 = vld [vmem:[%s63] sm:$0x1]
        %v3485 = vsel %vm1876, %v3482, 0.0
        %3486 = vadd.xlane.f32.xlu0 %v3485
        %v3487 = vpop.xlane.xlu0 %3486
        %v3488 = vmul.f32 %v3487, %v1920
        %v3489 = vsub.f32 %v3482, %v3488
        %v3490 = vmul.f32 %v3489, %v3489
        %v3491 = vsel %vm1876, %v3490, 0.0
        %3492 = vadd.xlane.f32.xlu0 %v3491
        %v3493 = vpop.xlane.xlu0 %3492
        %v3494 = vmul.f32 %v3493, %v1920
        %v3495 = vadd.f32 %v3494, 1e-05
        %v3496 = vrsqrt.pop %v3495
        %v3497 = vmul.f32 %v3496, %v3495
        %v3498 = vmul.f32 %v3497, %v3496
        %v3499 = vmul.f32 0.5, %v3498
        %v3500 = vsub.f32 1.5, %v3499
        %v3501 = vmul.f32 %v3496, %v3500
        %vm3502 = vweird.f32 %v3495
        %vm3503 = vweird.f32 %v3496
        %vm3504 = vmor %vm3502, %vm3503
        %v3505 = vsel %vm3504, %v3496, %v3501
        %v3506 = vmul.f32 %v3489, %v3505
        %v3508 = vperm.slane %v3483, 0
        %v3510 = vmul.f32 %v3506, %v3508
        %v3512 = vperm.slane %v3484, 0
        %v3514 = vadd.f32 %v3510, %v3512
        %v3515 = vld [vmem:[#allocation29] sm:$0xff]
        %v3516 = vld [vmem:[#allocation29 + $0x8] sm:$0xff]
        %v3517 = vld [vmem:[#allocation29 + $0x10] sm:$0xff]
        %v3518 = vld [vmem:[#allocation29 + $0x18] sm:$0xff]
        %v3519 = vld [vmem:[#allocation31] sm:$0x1]
        %v3520 = vld [vmem:[#allocation32] sm:$0xff]
        %v3521 = vld [vmem:[#allocation32 + $0x8] sm:$0xff]
        %v3522 = vld [vmem:[#allocation32 + $0x10] sm:$0xff]
        %v3523 = vld [vmem:[#allocation32 + $0x18] sm:$0xff]
        %v3524 = vld [vmem:[%s71] sm:$0x1]
        %v3525 = vld [vmem:[#allocation34] sm:$0xff]
        %v3526 = vld [vmem:[#allocation34 + $0x8] sm:$0xff]
        %v3527 = vld [vmem:[#allocation34 + $0x10] sm:$0xff]
        %v3528 = vld [vmem:[#allocation34 + $0x18] sm:$0xff]
        %v3529 = vld [vmem:[%s75] sm:$0x1]
        %v3531 = vperm.slane %v3519, 0
        %v3534 = vsel %vm1876, %v3514, 0
        %3536 = vmatpush.msra.mxu0 0.0
        %3537 = vmatpush.msra.mxu0 0.0
        %3538 = vmatpush.msra.mxu0 0.0
        %3539 = vmatpush.msra.mxu0 0.0
        %3540 = vmatpush.msra.mxu0 0.0
        %3541 = vmatpush.msra.mxu0 0.0
        %3542 = vmatpush.msra.mxu0 0.0
        %3543 = vmatpush.msra.mxu0 0.0
        %3544 = vmatpush.msra.mxu0 0.0
        %3545 = vmatpush.msra.mxu0 0.0
        %3546 = vmatpush.msra.mxu0 0.0
        %3547 = vmatpush.msra.mxu0 0.0
        %3548 = vmatpush.msra.mxu0 %v3518
        %3549 = vmatpush.msra.mxu0 %v3517
        %3550 = vmatpush.msra.mxu0 %v3516
        %3551 = vmatpush.msra.mxu0 %v3515
        %3552 = vmatmul.f32.gmra.mxu0 %v3534
        %v3553 = vpop.f32.mrf.mxu0
        %v3554 = vadd.f32 %v3531, %v3553
        %3555 = vdwg.mxu0
        %v3557 = vperm.slane %v3524, 0
        %v3560 = vsel %vm1876, %v3055, 0
        %3562 = vmatpush.msra.mxu0 0.0
        %3563 = vmatpush.msra.mxu0 0.0
        %3564 = vmatpush.msra.mxu0 0.0
        %3565 = vmatpush.msra.mxu0 0.0
        %3566 = vmatpush.msra.mxu0 0.0
        %3567 = vmatpush.msra.mxu0 0.0
        %3568 = vmatpush.msra.mxu0 0.0
        %3569 = vmatpush.msra.mxu0 0.0
        %3570 = vmatpush.msra.mxu0 0.0
        %3571 = vmatpush.msra.mxu0 0.0
        %3572 = vmatpush.msra.mxu0 0.0
        %3573 = vmatpush.msra.mxu0 0.0
        %3574 = vmatpush.msra.mxu0 %v3523
        %3575 = vmatpush.msra.mxu0 %v3522
        %3576 = vmatpush.msra.mxu0 %v3521
        %3577 = vmatpush.msra.mxu0 %v3520
        %3578 = vmatmul.f32.gmra.mxu0 %v3560
        %v3579 = vpop.f32.mrf.mxu0
        %v3580 = vadd.f32 %v3557, %v3579
        %3581 = vdwg.mxu0
        %3583 = vrot.lane.b32.xlu0 %v3554, 120
        %v3584 = vpop.permute.xlu0 %3583
        %3585 = vrot.lane.b32.xlu0 %v3554, 112
        %v3586 = vpop.permute.xlu0 %3585
        %3587 = vrot.lane.b32.xlu0 %v3554, 104
        %v3588 = vpop.permute.xlu0 %3587
        %3590 = vrot.lane.b32.xlu0 %v3580, 120
        %v3591 = vpop.permute.xlu0 %3590
        %3592 = vrot.lane.b32.xlu0 %v3580, 112
        %v3593 = vpop.permute.xlu0 %3592
        %3594 = vrot.lane.b32.xlu0 %v3580, 104
        %v3595 = vpop.permute.xlu0 %3594
        %v3596 = vsel %vm2067, %v3554, 0
        %v3598 = vsel %vm2067, %v3580, 0
        %3600 = vmatpush.xpose.msra.mxu0 0.0
        %3601 = vmatpush.xpose.msra.mxu0 0.0
        %3602 = vmatpush.xpose.msra.mxu0 0.0
        %3603 = vmatpush.xpose.msra.mxu0 0.0
        %3604 = vmatpush.xpose.msra.mxu0 0.0
        %3605 = vmatpush.xpose.msra.mxu0 0.0
        %3606 = vmatpush.xpose.msra.mxu0 0.0
        %3607 = vmatpush.xpose.msra.mxu0 0.0
        %3608 = vmatpush.xpose.msra.mxu0 0.0
        %3609 = vmatpush.xpose.msra.mxu0 0.0
        %3610 = vmatpush.xpose.msra.mxu0 0.0
        %3611 = vmatpush.xpose.msra.mxu0 0.0
        %3612 = vmatpush.xpose.msra.mxu0 0.0
        %3613 = vmatpush.xpose.msra.mxu0 0.0
        %3614 = vmatpush.xpose.msra.mxu0 0.0
        %3615 = vmatpush.xpose.msra.mxu0 %v3598
        %3616 = vmatmul.f32.gmra.mxu0 %v3596
        %v3617 = vpop.f32.mrf.mxu0
        %v3618 = vadd.f32 0.0, %v3617
        %3619 = vdwg.mxu0
        %v3620 = vsel %vm2067, %v3584, 0
        %v3622 = vsel %vm2067, %v3591, 0
        %3624 = vmatpush.xpose.msra.mxu0 0.0
        %3625 = vmatpush.xpose.msra.mxu0 0.0
        %3626 = vmatpush.xpose.msra.mxu0 0.0
        %3627 = vmatpush.xpose.msra.mxu0 0.0
        %3628 = vmatpush.xpose.msra.mxu0 0.0
        %3629 = vmatpush.xpose.msra.mxu0 0.0
        %3630 = vmatpush.xpose.msra.mxu0 0.0
        %3631 = vmatpush.xpose.msra.mxu0 0.0
        %3632 = vmatpush.xpose.msra.mxu0 0.0
        %3633 = vmatpush.xpose.msra.mxu0 0.0
        %3634 = vmatpush.xpose.msra.mxu0 0.0
        %3635 = vmatpush.xpose.msra.mxu0 0.0
        %3636 = vmatpush.xpose.msra.mxu0 0.0
        %3637 = vmatpush.xpose.msra.mxu0 0.0
        %3638 = vmatpush.xpose.msra.mxu0 0.0
        %3639 = vmatpush.xpose.msra.mxu0 %v3622
        %3640 = vmatmul.f32.gmra.mxu0 %v3620
        %v3641 = vpop.f32.mrf.mxu0
        %v3642 = vadd.f32 0.0, %v3641
        %3643 = vdwg.mxu0
        %v3644 = vsel %vm2067, %v3586, 0
        %v3646 = vsel %vm2067, %v3593, 0
        %3648 = vmatpush.xpose.msra.mxu0 0.0
        %3649 = vmatpush.xpose.msra.mxu0 0.0
        %3650 = vmatpush.xpose.msra.mxu0 0.0
        %3651 = vmatpush.xpose.msra.mxu0 0.0
        %3652 = vmatpush.xpose.msra.mxu0 0.0
        %3653 = vmatpush.xpose.msra.mxu0 0.0
        %3654 = vmatpush.xpose.msra.mxu0 0.0
        %3655 = vmatpush.xpose.msra.mxu0 0.0
        %3656 = vmatpush.xpose.msra.mxu0 0.0
        %3657 = vmatpush.xpose.msra.mxu0 0.0
        %3658 = vmatpush.xpose.msra.mxu0 0.0
        %3659 = vmatpush.xpose.msra.mxu0 0.0
        %3660 = vmatpush.xpose.msra.mxu0 0.0
        %3661 = vmatpush.xpose.msra.mxu0 0.0
        %3662 = vmatpush.xpose.msra.mxu0 0.0
        %3663 = vmatpush.xpose.msra.mxu0 %v3646
        %3664 = vmatmul.f32.gmra.mxu0 %v3644
        %v3665 = vpop.f32.mrf.mxu0
        %v3666 = vadd.f32 0.0, %v3665
        %3667 = vdwg.mxu0
        %v3668 = vsel %vm2067, %v3588, 0
        %v3670 = vsel %vm2067, %v3595, 0
        %3672 = vmatpush.xpose.msra.mxu0 0.0
        %3673 = vmatpush.xpose.msra.mxu0 0.0
        %3674 = vmatpush.xpose.msra.mxu0 0.0
        %3675 = vmatpush.xpose.msra.mxu0 0.0
        %3676 = vmatpush.xpose.msra.mxu0 0.0
        %3677 = vmatpush.xpose.msra.mxu0 0.0
        %3678 = vmatpush.xpose.msra.mxu0 0.0
        %3679 = vmatpush.xpose.msra.mxu0 0.0
        %3680 = vmatpush.xpose.msra.mxu0 0.0
        %3681 = vmatpush.xpose.msra.mxu0 0.0
        %3682 = vmatpush.xpose.msra.mxu0 0.0
        %3683 = vmatpush.xpose.msra.mxu0 0.0
        %3684 = vmatpush.xpose.msra.mxu0 0.0
        %3685 = vmatpush.xpose.msra.mxu0 0.0
        %3686 = vmatpush.xpose.msra.mxu0 0.0
        %3687 = vmatpush.xpose.msra.mxu0 %v3670
        %3688 = vmatmul.f32.gmra.mxu0 %v3668
        %v3689 = vpop.f32.mrf.mxu0
        %v3690 = vadd.f32 0.0, %v3689
        %3691 = vdwg.mxu0
        %v3692 = vmul.f32 %v3618, 0.35355338
        %v3693 = vmul.f32 %v3642, 0.35355338
        %v3694 = vmul.f32 %v3666, 0.35355338
        %v3695 = vmul.f32 %v3690, 0.35355338
        %v3696 = vsel %vm2067, %v3692, -inf
        %3697 = vmax.xlane.f32.xlu0 %v3696
        %v3698 = vpop.xlane.xlu0 %3697
        %v3699 = vsel %vm2067, %v3693, -inf
        %3700 = vmax.xlane.f32.xlu0 %v3699
        %v3701 = vpop.xlane.xlu0 %3700
        %v3702 = vsel %vm2067, %v3694, -inf
        %3703 = vmax.xlane.f32.xlu0 %v3702
        %v3704 = vpop.xlane.xlu0 %3703
        %v3705 = vsel %vm2067, %v3695, -inf
        %3706 = vmax.xlane.f32.xlu0 %v3705
        %v3707 = vpop.xlane.xlu0 %3706
        %v3708 = vsub.f32 %v3692, %v3698
        %v3709 = vsub.f32 %v3693, %v3701
        %v3710 = vsub.f32 %v3694, %v3704
        %v3711 = vsub.f32 %v3695, %v3707
        %v3712 = vmul.f32 %v3708, 1.442695
        %v3713 = vpow.pop %v3712
        %v3714 = vmul.f32 %v3709, 1.442695
        %v3715 = vpow.pop %v3714
        %v3716 = vmul.f32 %v3710, 1.442695
        %v3717 = vpow.pop %v3716
        %v3718 = vmul.f32 %v3711, 1.442695
        %v3719 = vpow.pop %v3718
        %v3720 = vsel %vm2067, %v3713, 0.0
        %3721 = vadd.xlane.f32.xlu0 %v3720
        %v3722 = vpop.xlane.xlu0 %3721
        %v3723 = vsel %vm2067, %v3715, 0.0
        %3724 = vadd.xlane.f32.xlu0 %v3723
        %v3725 = vpop.xlane.xlu0 %3724
        %v3726 = vsel %vm2067, %v3717, 0.0
        %3727 = vadd.xlane.f32.xlu0 %v3726
        %v3728 = vpop.xlane.xlu0 %3727
        %v3729 = vsel %vm2067, %v3719, 0.0
        %3730 = vadd.xlane.f32.xlu0 %v3729
        %v3731 = vpop.xlane.xlu0 %3730
        %v3732 = vrcp.pop %v3722
        %v3733 = vmul.f32 %v3722, %v3732
        %v3734 = vsub.f32 1.0, %v3733
        %v3735 = vmul.f32 %v3732, %v3734
        %v3736 = vadd.f32 %v3732, %v3735
        %vm3737 = vweird.f32 %v3722
        %vm3738 = vweird.f32 %v3732
        %vm3739 = vmor %vm3737, %vm3738
        %v3740 = vsel %vm3739, %v3732, %v3736
        %v3741 = vand.u32 2147483647, %v3722
        %vm3742 = vcmp.eq.f32.partialorder %v3741, 8.507059e+37
        %v3743 = vand.u32 %v3722, 2147483648
        %v3744 = vor.u32 1.1754944e-38, %v3743
        %v3745 = vsel %vm3742, %v3744, %v3740
        %v3746 = vmul.f32 %v3713, %v3745
        %v3747 = vrcp.pop %v3725
        %v3748 = vmul.f32 %v3725, %v3747
        %v3749 = vsub.f32 1.0, %v3748
        %v3750 = vmul.f32 %v3747, %v3749
        %v3751 = vadd.f32 %v3747, %v3750
        %vm3752 = vweird.f32 %v3725
        %vm3753 = vweird.f32 %v3747
        %vm3754 = vmor %vm3752, %vm3753
        %v3755 = vsel %vm3754, %v3747, %v3751
        %v3756 = vand.u32 2147483647, %v3725
        %vm3757 = vcmp.eq.f32.partialorder %v3756, 8.507059e+37
        %v3758 = vand.u32 %v3725, 2147483648
        %v3759 = vor.u32 1.1754944e-38, %v3758
        %v3760 = vsel %vm3757, %v3759, %v3755
        %v3761 = vmul.f32 %v3715, %v3760
        %v3762 = vrcp.pop %v3728
        %v3763 = vmul.f32 %v3728, %v3762
        %v3764 = vsub.f32 1.0, %v3763
        %v3765 = vmul.f32 %v3762, %v3764
        %v3766 = vadd.f32 %v3762, %v3765
        %vm3767 = vweird.f32 %v3728
        %vm3768 = vweird.f32 %v3762
        %vm3769 = vmor %vm3767, %vm3768
        %v3770 = vsel %vm3769, %v3762, %v3766
        %v3771 = vand.u32 2147483647, %v3728
        %vm3772 = vcmp.eq.f32.partialorder %v3771, 8.507059e+37
        %v3773 = vand.u32 %v3728, 2147483648
        %v3774 = vor.u32 1.1754944e-38, %v3773
        %v3775 = vsel %vm3772, %v3774, %v3770
        %v3776 = vmul.f32 %v3717, %v3775
        %v3777 = vrcp.pop %v3731
        %v3778 = vmul.f32 %v3731, %v3777
        %v3779 = vsub.f32 1.0, %v3778
        %v3780 = vmul.f32 %v3777, %v3779
        %v3781 = vadd.f32 %v3777, %v3780
        %vm3782 = vweird.f32 %v3731
        %vm3783 = vweird.f32 %v3777
        %vm3784 = vmor %vm3782, %vm3783
        %v3785 = vsel %vm3784, %v3777, %v3781
        %v3786 = vand.u32 2147483647, %v3731
        %vm3787 = vcmp.eq.f32.partialorder %v3786, 8.507059e+37
        %v3788 = vand.u32 %v3731, 2147483648
        %v3789 = vor.u32 1.1754944e-38, %v3788
        %v3790 = vsel %vm3787, %v3789, %v3785
        %v3791 = vmul.f32 %v3719, %v3790
        %3792 = vrot.lane.b32.xlu0 %v3580, 96
        %v3793 = vpop.permute.xlu0 %3792
        %v3796 = vsel %vm2067, %v3746, 0
        %3798 = vmatpush.msra.mxu0 0.0
        %3799 = vmatpush.msra.mxu0 0.0
        %3800 = vmatpush.msra.mxu0 0.0
        %3801 = vmatpush.msra.mxu0 0.0
        %3802 = vmatpush.msra.mxu0 0.0
        %3803 = vmatpush.msra.mxu0 0.0
        %3804 = vmatpush.msra.mxu0 0.0
        %3805 = vmatpush.msra.mxu0 0.0
        %3806 = vmatpush.msra.mxu0 0.0
        %3807 = vmatpush.msra.mxu0 0.0
        %3808 = vmatpush.msra.mxu0 0.0
        %3809 = vmatpush.msra.mxu0 0.0
        %3810 = vmatpush.msra.mxu0 0.0
        %3811 = vmatpush.msra.mxu0 0.0
        %3812 = vmatpush.msra.mxu0 0.0
        %3813 = vmatpush.msra.mxu0 %v3793
        %3814 = vmatmul.f32.gmra.mxu0 %v3796
        %v3815 = vpop.f32.mrf.mxu0
        %v3816 = vadd.f32 0.0, %v3815
        %3817 = vdwg.mxu0
        %3818 = vrot.lane.b32.xlu0 %v3591, 96
        %v3819 = vpop.permute.xlu0 %3818
        %v3822 = vsel %vm2067, %v3761, 0
        %3824 = vmatpush.msra.mxu0 0.0
        %3825 = vmatpush.msra.mxu0 0.0
        %3826 = vmatpush.msra.mxu0 0.0
        %3827 = vmatpush.msra.mxu0 0.0
        %3828 = vmatpush.msra.mxu0 0.0
        %3829 = vmatpush.msra.mxu0 0.0
        %3830 = vmatpush.msra.mxu0 0.0
        %3831 = vmatpush.msra.mxu0 0.0
        %3832 = vmatpush.msra.mxu0 0.0
        %3833 = vmatpush.msra.mxu0 0.0
        %3834 = vmatpush.msra.mxu0 0.0
        %3835 = vmatpush.msra.mxu0 0.0
        %3836 = vmatpush.msra.mxu0 0.0
        %3837 = vmatpush.msra.mxu0 0.0
        %3838 = vmatpush.msra.mxu0 0.0
        %3839 = vmatpush.msra.mxu0 %v3819
        %3840 = vmatmul.f32.gmra.mxu0 %v3822
        %v3841 = vpop.f32.mrf.mxu0
        %v3842 = vadd.f32 0.0, %v3841
        %3843 = vdwg.mxu0
        %3844 = vrot.lane.b32.xlu0 %v3593, 96
        %v3845 = vpop.permute.xlu0 %3844
        %v3848 = vsel %vm2067, %v3776, 0
        %3850 = vmatpush.msra.mxu0 0.0
        %3851 = vmatpush.msra.mxu0 0.0
        %3852 = vmatpush.msra.mxu0 0.0
        %3853 = vmatpush.msra.mxu0 0.0
        %3854 = vmatpush.msra.mxu0 0.0
        %3855 = vmatpush.msra.mxu0 0.0
        %3856 = vmatpush.msra.mxu0 0.0
        %3857 = vmatpush.msra.mxu0 0.0
        %3858 = vmatpush.msra.mxu0 0.0
        %3859 = vmatpush.msra.mxu0 0.0
        %3860 = vmatpush.msra.mxu0 0.0
        %3861 = vmatpush.msra.mxu0 0.0
        %3862 = vmatpush.msra.mxu0 0.0
        %3863 = vmatpush.msra.mxu0 0.0
        %3864 = vmatpush.msra.mxu0 0.0
        %3865 = vmatpush.msra.mxu0 %v3845
        %3866 = vmatmul.f32.gmra.mxu0 %v3848
        %v3867 = vpop.f32.mrf.mxu0
        %v3868 = vadd.f32 0.0, %v3867
        %3869 = vdwg.mxu0
        %3870 = vrot.lane.b32.xlu0 %v3595, 96
        %v3871 = vpop.permute.xlu0 %3870
        %v3874 = vsel %vm2067, %v3791, 0
        %3876 = vmatpush.msra.mxu0 0.0
        %3877 = vmatpush.msra.mxu0 0.0
        %3878 = vmatpush.msra.mxu0 0.0
        %3879 = vmatpush.msra.mxu0 0.0
        %3880 = vmatpush.msra.mxu0 0.0
        %3881 = vmatpush.msra.mxu0 0.0
        %3882 = vmatpush.msra.mxu0 0.0
        %3883 = vmatpush.msra.mxu0 0.0
        %3884 = vmatpush.msra.mxu0 0.0
        %3885 = vmatpush.msra.mxu0 0.0
        %3886 = vmatpush.msra.mxu0 0.0
        %3887 = vmatpush.msra.mxu0 0.0
        %3888 = vmatpush.msra.mxu0 0.0
        %3889 = vmatpush.msra.mxu0 0.0
        %3890 = vmatpush.msra.mxu0 0.0
        %3891 = vmatpush.msra.mxu0 %v3871
        %3892 = vmatmul.f32.gmra.mxu0 %v3874
        %v3893 = vpop.f32.mrf.mxu0
        %v3894 = vadd.f32 0.0, %v3893
        %3895 = vdwg.mxu0
        %3897 = vrot.lane.b32.xlu0 %v3842, 8
        %v3898 = vpop.permute.xlu0 %3897
        %3901 = vrot.lane.b32.xlu0 %v3868, 16
        %v3902 = vpop.permute.xlu0 %3901
        %3905 = vrot.lane.b32.xlu0 %v3894, 24
        %v3906 = vpop.permute.xlu0 %3905
        %v3908 = vsel %vm2067, %v3816, %v3898
        %v3909 = vsel %vm2387, %v3908, %v3902
        %v3910 = vsel %vm2389, %v3909, %v3906
        %v3912 = vperm.slane %v3529, 0
        %v3915 = vsel %vm1876, %v3910, 0
        %3917 = vmatpush.msra.mxu0 0.0
        %3918 = vmatpush.msra.mxu0 0.0
        %3919 = vmatpush.msra.mxu0 0.0
        %3920 = vmatpush.msra.mxu0 0.0
        %3921 = vmatpush.msra.mxu0 0.0
        %3922 = vmatpush.msra.mxu0 0.0
        %3923 = vmatpush.msra.mxu0 0.0
        %3924 = vmatpush.msra.mxu0 0.0
        %3925 = vmatpush.msra.mxu0 0.0
        %3926 = vmatpush.msra.mxu0 0.0
        %3927 = vmatpush.msra.mxu0 0.0
        %3928 = vmatpush.msra.mxu0 0.0
        %3929 = vmatpush.msra.mxu0 %v3528
        %3930 = vmatpush.msra.mxu0 %v3527
        %3931 = vmatpush.msra.mxu0 %v3526
        %3932 = vmatpush.msra.mxu0 %v3525
        %3933 = vmatmul.f32.gmra.mxu0 %v3915
        %v3934 = vpop.f32.mrf.mxu0
        %v3935 = vadd.f32 %v3912, %v3934
        %3936 = vdwg.mxu0
        %v3937 = vadd.f32 %v3482, %v3935
        %v3938 = vld [vmem:[%s77] sm:$0x1]
        %v3939 = vld [vmem:[#allocation35] sm:$0x1]
        %v3940 = vsel %vm1876, %v3937, 0.0
        %3941 = vadd.xlane.f32.xlu0 %v3940
        %v3942 = vpop.xlane.xlu0 %3941
        %v3943 = vmul.f32 %v3942, %v1920
        %v3944 = vsub.f32 %v3937, %v3943
        %v3945 = vmul.f32 %v3944, %v3944
        %v3946 = vsel %vm1876, %v3945, 0.0
        %3947 = vadd.xlane.f32.xlu0 %v3946
        %v3948 = vpop.xlane.xlu0 %3947
        %v3949 = vmul.f32 %v3948, %v1920
        %v3950 = vadd.f32 %v3949, 1e-05
        %v3951 = vrsqrt.pop %v3950
        %v3952 = vmul.f32 %v3951, %v3950
        %v3953 = vmul.f32 %v3952, %v3951
        %v3954 = vmul.f32 0.5, %v3953
        %v3955 = vsub.f32 1.5, %v3954
        %v3956 = vmul.f32 %v3951, %v3955
        %vm3957 = vweird.f32 %v3950
        %vm3958 = vweird.f32 %v3951
        %vm3959 = vmor %vm3957, %vm3958
        %v3960 = vsel %vm3959, %v3951, %v3956
        %v3961 = vmul.f32 %v3944, %v3960
        %v3963 = vperm.slane %v3938, 0
        %v3965 = vmul.f32 %v3961, %v3963
        %v3967 = vperm.slane %v3939, 0
        %v3969 = vadd.f32 %v3965, %v3967
        %v3970 = vld [vmem:[#allocation37] sm:$0xff]
        %v3971 = vld [vmem:[#allocation37 + $0x8] sm:$0xff]
        %v3972 = vld [vmem:[#allocation37 + $0x10] sm:$0xff]
        %v3973 = vld [vmem:[#allocation37 + $0x18] sm:$0xff]
        %v3974 = vld [vmem:[%s83] sm:$0x1]
        %v3975 = vld [vmem:[%s85] sm:$0xff]
        %v3976 = vld [vmem:[%s85 + $0x8] sm:$0xff]
        %v3977 = vld [vmem:[%s85 + $0x10] sm:$0xff]
        %v3978 = vld [vmem:[%s85 + $0x18] sm:$0xff]
        %v3979 = vld [vmem:[%s85 + $0x20] sm:$0xff]
        %v3980 = vld [vmem:[%s85 + $0x28] sm:$0xff]
        %v3981 = vld [vmem:[%s85 + $0x30] sm:$0xff]
        %v3982 = vld [vmem:[%s85 + $0x38] sm:$0xff]
        %v3983 = vld [vmem:[%s87] sm:$0x1]
        %v3985 = vperm.slane %v3974, 0
        %v3988 = vsel %vm1876, %v3969, 0
        %3990 = vmatpush.msra.mxu0 0.0
        %3991 = vmatpush.msra.mxu0 0.0
        %3992 = vmatpush.msra.mxu0 0.0
        %3993 = vmatpush.msra.mxu0 0.0
        %3994 = vmatpush.msra.mxu0 0.0
        %3995 = vmatpush.msra.mxu0 0.0
        %3996 = vmatpush.msra.mxu0 0.0
        %3997 = vmatpush.msra.mxu0 0.0
        %3998 = vmatpush.msra.mxu0 0.0
        %3999 = vmatpush.msra.mxu0 0.0
        %4000 = vmatpush.msra.mxu0 0.0
        %4001 = vmatpush.msra.mxu0 0.0
        %4002 = vmatpush.msra.mxu0 %v3973
        %4003 = vmatpush.msra.mxu0 %v3972
        %4004 = vmatpush.msra.mxu0 %v3971
        %4005 = vmatpush.msra.mxu0 %v3970
        %4006 = vmatmul.f32.gmra.mxu0 %v3988
        %v4007 = vpop.f32.mrf.mxu0
        %v4008 = vadd.f32 %v3985, %v4007
        %4009 = vdwg.mxu0
        %v4010 = vmax.f32 %v4008, 0.0
        %v4012 = vperm.slane %v3983, 0
        %v4015 = vsel %vm2494, %v4010, 0
        %4017 = vmatpush.msra.mxu0 0.0
        %4018 = vmatpush.msra.mxu0 0.0
        %4019 = vmatpush.msra.mxu0 0.0
        %4020 = vmatpush.msra.mxu0 0.0
        %4021 = vmatpush.msra.mxu0 0.0
        %4022 = vmatpush.msra.mxu0 0.0
        %4023 = vmatpush.msra.mxu0 0.0
        %4024 = vmatpush.msra.mxu0 0.0
        %4025 = vmatpush.msra.mxu0 %v3982
        %4026 = vmatpush.msra.mxu0 %v3981
        %4027 = vmatpush.msra.mxu0 %v3980
        %4028 = vmatpush.msra.mxu0 %v3979
        %4029 = vmatpush.msra.mxu0 %v3978
        %4030 = vmatpush.msra.mxu0 %v3977
        %4031 = vmatpush.msra.mxu0 %v3976
        %4032 = vmatpush.msra.mxu0 %v3975
        %4033 = vmatmul.f32.gmra.mxu0 %v4015
        %v4034 = vpop.f32.mrf.mxu0
        %v4035 = vadd.f32 %v4012, %v4034
        %4036 = vdwg.mxu0
        %v4037 = vadd.f32 %v3937, %v4035
        %s4038 = scalar_lea.vmem [#allocation25], 1
        %v4039 = vld [vmem:[%s4038] sm:$0x1]
        %s4040 = scalar_lea.vmem %s51, 1
        %v4041 = vld [vmem:[%s4040] sm:$0x1]
        %v4042 = vsel %vm1876, %v4037, 0.0
        %4043 = vadd.xlane.f32.xlu0 %v4042
        %v4044 = vpop.xlane.xlu0 %4043
        %v4045 = vmul.f32 %v4044, %v1920
        %v4046 = vsub.f32 %v4037, %v4045
        %v4047 = vmul.f32 %v4046, %v4046
        %v4048 = vsel %vm1876, %v4047, 0.0
        %4049 = vadd.xlane.f32.xlu0 %v4048
        %v4050 = vpop.xlane.xlu0 %4049
        %v4051 = vmul.f32 %v4050, %v1920
        %v4052 = vadd.f32 %v4051, 1e-05
        %v4053 = vrsqrt.pop %v4052
        %v4054 = vmul.f32 %v4053, %v4052
        %v4055 = vmul.f32 %v4054, %v4053
        %v4056 = vmul.f32 0.5, %v4055
        %v4057 = vsub.f32 1.5, %v4056
        %v4058 = vmul.f32 %v4053, %v4057
        %vm4059 = vweird.f32 %v4052
        %vm4060 = vweird.f32 %v4053
        %vm4061 = vmor %vm4059, %vm4060
        %v4062 = vsel %vm4061, %v4053, %v4058
        %v4063 = vmul.f32 %v4046, %v4062
        %v4065 = vperm.slane %v4039, 0
        %v4067 = vmul.f32 %v4063, %v4065
        %v4069 = vperm.slane %v4041, 0
        %v4071 = vadd.f32 %v4067, %v4069
        %s4072 = scalar_lea.vmem %s53, 32
        %v4073 = vld [vmem:[%s4072] sm:$0xff]
        %v4074 = vld [vmem:[%s4072 + $0x8] sm:$0xff]
        %v4075 = vld [vmem:[%s4072 + $0x10] sm:$0xff]
        %v4076 = vld [vmem:[%s4072 + $0x18] sm:$0xff]
        %s4077 = scalar_lea.vmem [#allocation26], 1
        %v4078 = vld [vmem:[%s4077] sm:$0x1]
        %s4079 = scalar_lea.vmem %s57, 32
        %v4080 = vld [vmem:[%s4079] sm:$0xff]
        %v4081 = vld [vmem:[%s4079 + $0x8] sm:$0xff]
        %v4082 = vld [vmem:[%s4079 + $0x10] sm:$0xff]
        %v4083 = vld [vmem:[%s4079 + $0x18] sm:$0xff]
        %s4084 = scalar_lea.vmem [#allocation28], 1
        %v4085 = vld [vmem:[%s4084] sm:$0x1]
        %v4087 = vperm.slane %v4078, 0
        %v4090 = vsel %vm1876, %v4071, 0
        %4092 = vmatpush.msra.mxu0 0.0
        %4093 = vmatpush.msra.mxu0 0.0
        %4094 = vmatpush.msra.mxu0 0.0
        %4095 = vmatpush.msra.mxu0 0.0
        %4096 = vmatpush.msra.mxu0 0.0
        %4097 = vmatpush.msra.mxu0 0.0
        %4098 = vmatpush.msra.mxu0 0.0
        %4099 = vmatpush.msra.mxu0 0.0
        %4100 = vmatpush.msra.mxu0 0.0
        %4101 = vmatpush.msra.mxu0 0.0
        %4102 = vmatpush.msra.mxu0 0.0
        %4103 = vmatpush.msra.mxu0 0.0
        %4104 = vmatpush.msra.mxu0 %v4076
        %4105 = vmatpush.msra.mxu0 %v4075
        %4106 = vmatpush.msra.mxu0 %v4074
        %4107 = vmatpush.msra.mxu0 %v4073
        %4108 = vmatmul.f32.gmra.mxu0 %v4090
        %v4109 = vpop.f32.mrf.mxu0
        %v4110 = vadd.f32 %v4087, %v4109
        %4111 = vdwg.mxu0
        %4113 = vrot.lane.b32.xlu0 %v4110, 120
        %v4114 = vpop.permute.xlu0 %4113
        %4115 = vrot.lane.b32.xlu0 %v4110, 112
        %v4116 = vpop.permute.xlu0 %4115
        %4117 = vrot.lane.b32.xlu0 %v4110, 104
        %v4118 = vpop.permute.xlu0 %4117
        %4119 = vrot.lane.b32.xlu0 %v4110, 96
        %v4120 = vpop.permute.xlu0 %4119
        %v4121 = vsel %vm2067, %v4110, 0
        %v4123 = vsel %vm2067, %v4120, 0
        %4125 = vmatpush.xpose.msra.mxu0 0.0
        %4126 = vmatpush.xpose.msra.mxu0 0.0
        %4127 = vmatpush.xpose.msra.mxu0 0.0
        %4128 = vmatpush.xpose.msra.mxu0 0.0
        %4129 = vmatpush.xpose.msra.mxu0 0.0
        %4130 = vmatpush.xpose.msra.mxu0 0.0
        %4131 = vmatpush.xpose.msra.mxu0 0.0
        %4132 = vmatpush.xpose.msra.mxu0 0.0
        %4133 = vmatpush.xpose.msra.mxu0 0.0
        %4134 = vmatpush.xpose.msra.mxu0 0.0
        %4135 = vmatpush.xpose.msra.mxu0 0.0
        %4136 = vmatpush.xpose.msra.mxu0 0.0
        %4137 = vmatpush.xpose.msra.mxu0 0.0
        %4138 = vmatpush.xpose.msra.mxu0 0.0
        %4139 = vmatpush.xpose.msra.mxu0 0.0
        %4140 = vmatpush.xpose.msra.mxu0 %v4123
        %4141 = vmatmul.f32.gmra.mxu0 %v4121
        %v4142 = vpop.f32.mrf.mxu0
        %v4143 = vadd.f32 0.0, %v4142
        %4144 = vdwg.mxu0
        %4145 = vrot.lane.b32.xlu0 %v4114, 96
        %v4146 = vpop.permute.xlu0 %4145
        %v4147 = vsel %vm2067, %v4114, 0
        %v4149 = vsel %vm2067, %v4146, 0
        %4151 = vmatpush.xpose.msra.mxu0 0.0
        %4152 = vmatpush.xpose.msra.mxu0 0.0
        %4153 = vmatpush.xpose.msra.mxu0 0.0
        %4154 = vmatpush.xpose.msra.mxu0 0.0
        %4155 = vmatpush.xpose.msra.mxu0 0.0
        %4156 = vmatpush.xpose.msra.mxu0 0.0
        %4157 = vmatpush.xpose.msra.mxu0 0.0
        %4158 = vmatpush.xpose.msra.mxu0 0.0
        %4159 = vmatpush.xpose.msra.mxu0 0.0
        %4160 = vmatpush.xpose.msra.mxu0 0.0
        %4161 = vmatpush.xpose.msra.mxu0 0.0
        %4162 = vmatpush.xpose.msra.mxu0 0.0
        %4163 = vmatpush.xpose.msra.mxu0 0.0
        %4164 = vmatpush.xpose.msra.mxu0 0.0
        %4165 = vmatpush.xpose.msra.mxu0 0.0
        %4166 = vmatpush.xpose.msra.mxu0 %v4149
        %4167 = vmatmul.f32.gmra.mxu0 %v4147
        %v4168 = vpop.f32.mrf.mxu0
        %v4169 = vadd.f32 0.0, %v4168
        %4170 = vdwg.mxu0
        %4171 = vrot.lane.b32.xlu0 %v4116, 96
        %v4172 = vpop.permute.xlu0 %4171
        %v4173 = vsel %vm2067, %v4116, 0
        %v4175 = vsel %vm2067, %v4172, 0
        %4177 = vmatpush.xpose.msra.mxu0 0.0
        %4178 = vmatpush.xpose.msra.mxu0 0.0
        %4179 = vmatpush.xpose.msra.mxu0 0.0
        %4180 = vmatpush.xpose.msra.mxu0 0.0
        %4181 = vmatpush.xpose.msra.mxu0 0.0
        %4182 = vmatpush.xpose.msra.mxu0 0.0
        %4183 = vmatpush.xpose.msra.mxu0 0.0
        %4184 = vmatpush.xpose.msra.mxu0 0.0
        %4185 = vmatpush.xpose.msra.mxu0 0.0
        %4186 = vmatpush.xpose.msra.mxu0 0.0
        %4187 = vmatpush.xpose.msra.mxu0 0.0
        %4188 = vmatpush.xpose.msra.mxu0 0.0
        %4189 = vmatpush.xpose.msra.mxu0 0.0
        %4190 = vmatpush.xpose.msra.mxu0 0.0
        %4191 = vmatpush.xpose.msra.mxu0 0.0
        %4192 = vmatpush.xpose.msra.mxu0 %v4175
        %4193 = vmatmul.f32.gmra.mxu0 %v4173
        %v4194 = vpop.f32.mrf.mxu0
        %v4195 = vadd.f32 0.0, %v4194
        %4196 = vdwg.mxu0
        %4197 = vrot.lane.b32.xlu0 %v4118, 96
        %v4198 = vpop.permute.xlu0 %4197
        %v4199 = vsel %vm2067, %v4118, 0
        %v4201 = vsel %vm2067, %v4198, 0
        %4203 = vmatpush.xpose.msra.mxu0 0.0
        %4204 = vmatpush.xpose.msra.mxu0 0.0
        %4205 = vmatpush.xpose.msra.mxu0 0.0
        %4206 = vmatpush.xpose.msra.mxu0 0.0
        %4207 = vmatpush.xpose.msra.mxu0 0.0
        %4208 = vmatpush.xpose.msra.mxu0 0.0
        %4209 = vmatpush.xpose.msra.mxu0 0.0
        %4210 = vmatpush.xpose.msra.mxu0 0.0
        %4211 = vmatpush.xpose.msra.mxu0 0.0
        %4212 = vmatpush.xpose.msra.mxu0 0.0
        %4213 = vmatpush.xpose.msra.mxu0 0.0
        %4214 = vmatpush.xpose.msra.mxu0 0.0
        %4215 = vmatpush.xpose.msra.mxu0 0.0
        %4216 = vmatpush.xpose.msra.mxu0 0.0
        %4217 = vmatpush.xpose.msra.mxu0 0.0
        %4218 = vmatpush.xpose.msra.mxu0 %v4201
        %4219 = vmatmul.f32.gmra.mxu0 %v4199
        %v4220 = vpop.f32.mrf.mxu0
        %v4221 = vadd.f32 0.0, %v4220
        %4222 = vdwg.mxu0
        %v4223 = vmul.f32 %v4143, 0.35355338
        %v4224 = vmul.f32 %v4169, 0.35355338
        %v4225 = vmul.f32 %v4195, 0.35355338
        %v4226 = vmul.f32 %v4221, 0.35355338
        %v4227 = vsel %vm2067, %v4223, -inf
        %4228 = vmax.xlane.f32.xlu0 %v4227
        %v4229 = vpop.xlane.xlu0 %4228
        %v4230 = vsel %vm2067, %v4224, -inf
        %4231 = vmax.xlane.f32.xlu0 %v4230
        %v4232 = vpop.xlane.xlu0 %4231
        %v4233 = vsel %vm2067, %v4225, -inf
        %4234 = vmax.xlane.f32.xlu0 %v4233
        %v4235 = vpop.xlane.xlu0 %4234
        %v4236 = vsel %vm2067, %v4226, -inf
        %4237 = vmax.xlane.f32.xlu0 %v4236
        %v4238 = vpop.xlane.xlu0 %4237
        %v4239 = vsub.f32 %v4223, %v4229
        %v4240 = vsub.f32 %v4224, %v4232
        %v4241 = vsub.f32 %v4225, %v4235
        %v4242 = vsub.f32 %v4226, %v4238
        %v4243 = vmul.f32 %v4239, 1.442695
        %v4244 = vpow.pop %v4243
        %v4245 = vmul.f32 %v4240, 1.442695
        %v4246 = vpow.pop %v4245
        %v4247 = vmul.f32 %v4241, 1.442695
        %v4248 = vpow.pop %v4247
        %v4249 = vmul.f32 %v4242, 1.442695
        %v4250 = vpow.pop %v4249
        %v4251 = vsel %vm2067, %v4244, 0.0
        %4252 = vadd.xlane.f32.xlu0 %v4251
        %v4253 = vpop.xlane.xlu0 %4252
        %v4254 = vsel %vm2067, %v4246, 0.0
        %4255 = vadd.xlane.f32.xlu0 %v4254
        %v4256 = vpop.xlane.xlu0 %4255
        %v4257 = vsel %vm2067, %v4248, 0.0
        %4258 = vadd.xlane.f32.xlu0 %v4257
        %v4259 = vpop.xlane.xlu0 %4258
        %v4260 = vsel %vm2067, %v4250, 0.0
        %4261 = vadd.xlane.f32.xlu0 %v4260
        %v4262 = vpop.xlane.xlu0 %4261
        %v4263 = vrcp.pop %v4253
        %v4264 = vmul.f32 %v4253, %v4263
        %v4265 = vsub.f32 1.0, %v4264
        %v4266 = vmul.f32 %v4263, %v4265
        %v4267 = vadd.f32 %v4263, %v4266
        %vm4268 = vweird.f32 %v4253
        %vm4269 = vweird.f32 %v4263
        %vm4270 = vmor %vm4268, %vm4269
        %v4271 = vsel %vm4270, %v4263, %v4267
        %v4272 = vand.u32 2147483647, %v4253
        %vm4273 = vcmp.eq.f32.partialorder %v4272, 8.507059e+37
        %v4274 = vand.u32 %v4253, 2147483648
        %v4275 = vor.u32 1.1754944e-38, %v4274
        %v4276 = vsel %vm4273, %v4275, %v4271
        %v4277 = vmul.f32 %v4244, %v4276
        %v4278 = vrcp.pop %v4256
        %v4279 = vmul.f32 %v4256, %v4278
        %v4280 = vsub.f32 1.0, %v4279
        %v4281 = vmul.f32 %v4278, %v4280
        %v4282 = vadd.f32 %v4278, %v4281
        %vm4283 = vweird.f32 %v4256
        %vm4284 = vweird.f32 %v4278
        %vm4285 = vmor %vm4283, %vm4284
        %v4286 = vsel %vm4285, %v4278, %v4282
        %v4287 = vand.u32 2147483647, %v4256
        %vm4288 = vcmp.eq.f32.partialorder %v4287, 8.507059e+37
        %v4289 = vand.u32 %v4256, 2147483648
        %v4290 = vor.u32 1.1754944e-38, %v4289
        %v4291 = vsel %vm4288, %v4290, %v4286
        %v4292 = vmul.f32 %v4246, %v4291
        %v4293 = vrcp.pop %v4259
        %v4294 = vmul.f32 %v4259, %v4293
        %v4295 = vsub.f32 1.0, %v4294
        %v4296 = vmul.f32 %v4293, %v4295
        %v4297 = vadd.f32 %v4293, %v4296
        %vm4298 = vweird.f32 %v4259
        %vm4299 = vweird.f32 %v4293
        %vm4300 = vmor %vm4298, %vm4299
        %v4301 = vsel %vm4300, %v4293, %v4297
        %v4302 = vand.u32 2147483647, %v4259
        %vm4303 = vcmp.eq.f32.partialorder %v4302, 8.507059e+37
        %v4304 = vand.u32 %v4259, 2147483648
        %v4305 = vor.u32 1.1754944e-38, %v4304
        %v4306 = vsel %vm4303, %v4305, %v4301
        %v4307 = vmul.f32 %v4248, %v4306
        %v4308 = vrcp.pop %v4262
        %v4309 = vmul.f32 %v4262, %v4308
        %v4310 = vsub.f32 1.0, %v4309
        %v4311 = vmul.f32 %v4308, %v4310
        %v4312 = vadd.f32 %v4308, %v4311
        %vm4313 = vweird.f32 %v4262
        %vm4314 = vweird.f32 %v4308
        %vm4315 = vmor %vm4313, %vm4314
        %v4316 = vsel %vm4315, %v4308, %v4312
        %v4317 = vand.u32 2147483647, %v4262
        %vm4318 = vcmp.eq.f32.partialorder %v4317, 8.507059e+37
        %v4319 = vand.u32 %v4262, 2147483648
        %v4320 = vor.u32 1.1754944e-38, %v4319
        %v4321 = vsel %vm4318, %v4320, %v4316
        %v4322 = vmul.f32 %v4250, %v4321
        %4323 = vrot.lane.b32.xlu0 %v4110, 64
        %v4324 = vpop.permute.xlu0 %4323
        %v4327 = vsel %vm2067, %v4277, 0
        %4329 = vmatpush.msra.mxu0 0.0
        %4330 = vmatpush.msra.mxu0 0.0
        %4331 = vmatpush.msra.mxu0 0.0
        %4332 = vmatpush.msra.mxu0 0.0
        %4333 = vmatpush.msra.mxu0 0.0
        %4334 = vmatpush.msra.mxu0 0.0
        %4335 = vmatpush.msra.mxu0 0.0
        %4336 = vmatpush.msra.mxu0 0.0
        %4337 = vmatpush.msra.mxu0 0.0
        %4338 = vmatpush.msra.mxu0 0.0
        %4339 = vmatpush.msra.mxu0 0.0
        %4340 = vmatpush.msra.mxu0 0.0
        %4341 = vmatpush.msra.mxu0 0.0
        %4342 = vmatpush.msra.mxu0 0.0
        %4343 = vmatpush.msra.mxu0 0.0
        %4344 = vmatpush.msra.mxu0 %v4324
        %4345 = vmatmul.f32.gmra.mxu0 %v4327
        %v4346 = vpop.f32.mrf.mxu0
        %v4347 = vadd.f32 0.0, %v4346
        %4348 = vdwg.mxu0
        %4349 = vrot.lane.b32.xlu0 %v4114, 64
        %v4350 = vpop.permute.xlu0 %4349
        %v4353 = vsel %vm2067, %v4292, 0
        %4355 = vmatpush.msra.mxu0 0.0
        %4356 = vmatpush.msra.mxu0 0.0
        %4357 = vmatpush.msra.mxu0 0.0
        %4358 = vmatpush.msra.mxu0 0.0
        %4359 = vmatpush.msra.mxu0 0.0
        %4360 = vmatpush.msra.mxu0 0.0
        %4361 = vmatpush.msra.mxu0 0.0
        %4362 = vmatpush.msra.mxu0 0.0
        %4363 = vmatpush.msra.mxu0 0.0
        %4364 = vmatpush.msra.mxu0 0.0
        %4365 = vmatpush.msra.mxu0 0.0
        %4366 = vmatpush.msra.mxu0 0.0
        %4367 = vmatpush.msra.mxu0 0.0
        %4368 = vmatpush.msra.mxu0 0.0
        %4369 = vmatpush.msra.mxu0 0.0
        %4370 = vmatpush.msra.mxu0 %v4350
        %4371 = vmatmul.f32.gmra.mxu0 %v4353
        %v4372 = vpop.f32.mrf.mxu0
        %v4373 = vadd.f32 0.0, %v4372
        %4374 = vdwg.mxu0
        %4375 = vrot.lane.b32.xlu0 %v4116, 64
        %v4376 = vpop.permute.xlu0 %4375
        %v4379 = vsel %vm2067, %v4307, 0
        %4381 = vmatpush.msra.mxu0 0.0
        %4382 = vmatpush.msra.mxu0 0.0
        %4383 = vmatpush.msra.mxu0 0.0
        %4384 = vmatpush.msra.mxu0 0.0
        %4385 = vmatpush.msra.mxu0 0.0
        %4386 = vmatpush.msra.mxu0 0.0
        %4387 = vmatpush.msra.mxu0 0.0
        %4388 = vmatpush.msra.mxu0 0.0
        %4389 = vmatpush.msra.mxu0 0.0
        %4390 = vmatpush.msra.mxu0 0.0
        %4391 = vmatpush.msra.mxu0 0.0
        %4392 = vmatpush.msra.mxu0 0.0
        %4393 = vmatpush.msra.mxu0 0.0
        %4394 = vmatpush.msra.mxu0 0.0
        %4395 = vmatpush.msra.mxu0 0.0
        %4396 = vmatpush.msra.mxu0 %v4376
        %4397 = vmatmul.f32.gmra.mxu0 %v4379
        %v4398 = vpop.f32.mrf.mxu0
        %v4399 = vadd.f32 0.0, %v4398
        %4400 = vdwg.mxu0
        %4401 = vrot.lane.b32.xlu0 %v4118, 64
        %v4402 = vpop.permute.xlu0 %4401
        %v4405 = vsel %vm2067, %v4322, 0
        %4407 = vmatpush.msra.mxu0 0.0
        %4408 = vmatpush.msra.mxu0 0.0
        %4409 = vmatpush.msra.mxu0 0.0
        %4410 = vmatpush.msra.mxu0 0.0
        %4411 = vmatpush.msra.mxu0 0.0
        %4412 = vmatpush.msra.mxu0 0.0
        %4413 = vmatpush.msra.mxu0 0.0
        %4414 = vmatpush.msra.mxu0 0.0
        %4415 = vmatpush.msra.mxu0 0.0
        %4416 = vmatpush.msra.mxu0 0.0
        %4417 = vmatpush.msra.mxu0 0.0
        %4418 = vmatpush.msra.mxu0 0.0
        %4419 = vmatpush.msra.mxu0 0.0
        %4420 = vmatpush.msra.mxu0 0.0
        %4421 = vmatpush.msra.mxu0 0.0
        %4422 = vmatpush.msra.mxu0 %v4402
        %4423 = vmatmul.f32.gmra.mxu0 %v4405
        %v4424 = vpop.f32.mrf.mxu0
        %v4425 = vadd.f32 0.0, %v4424
        %4426 = vdwg.mxu0
        %4428 = vrot.lane.b32.xlu0 %v4373, 8
        %v4429 = vpop.permute.xlu0 %4428
        %4432 = vrot.lane.b32.xlu0 %v4399, 16
        %v4433 = vpop.permute.xlu0 %4432
        %4436 = vrot.lane.b32.xlu0 %v4425, 24
        %v4437 = vpop.permute.xlu0 %4436
        %v4439 = vsel %vm2067, %v4347, %v4429
        %v4440 = vsel %vm2387, %v4439, %v4433
        %v4441 = vsel %vm2389, %v4440, %v4437
        %v4443 = vperm.slane %v4085, 0
        %v4446 = vsel %vm1876, %v4441, 0
        %4448 = vmatpush.msra.mxu0 0.0
        %4449 = vmatpush.msra.mxu0 0.0
        %4450 = vmatpush.msra.mxu0 0.0
        %4451 = vmatpush.msra.mxu0 0.0
        %4452 = vmatpush.msra.mxu0 0.0
        %4453 = vmatpush.msra.mxu0 0.0
        %4454 = vmatpush.msra.mxu0 0.0
        %4455 = vmatpush.msra.mxu0 0.0
        %4456 = vmatpush.msra.mxu0 0.0
        %4457 = vmatpush.msra.mxu0 0.0
        %4458 = vmatpush.msra.mxu0 0.0
        %4459 = vmatpush.msra.mxu0 0.0
        %4460 = vmatpush.msra.mxu0 %v4083
        %4461 = vmatpush.msra.mxu0 %v4082
        %4462 = vmatpush.msra.mxu0 %v4081
        %4463 = vmatpush.msra.mxu0 %v4080
        %4464 = vmatmul.f32.gmra.mxu0 %v4446
        %v4465 = vpop.f32.mrf.mxu0
        %v4466 = vadd.f32 %v4443, %v4465
        %4467 = vdwg.mxu0
        %v4468 = vadd.f32 %v4037, %v4466
        %s4469 = scalar_lea.vmem %s61, 1
        %v4470 = vld [vmem:[%s4469] sm:$0x1]
        %s4471 = scalar_lea.vmem %s63, 1
        %v4472 = vld [vmem:[%s4471] sm:$0x1]
        %v4473 = vsel %vm1876, %v4468, 0.0
        %4474 = vadd.xlane.f32.xlu0 %v4473
        %v4475 = vpop.xlane.xlu0 %4474
        %v4476 = vmul.f32 %v4475, %v1920
        %v4477 = vsub.f32 %v4468, %v4476
        %v4478 = vmul.f32 %v4477, %v4477
        %v4479 = vsel %vm1876, %v4478, 0.0
        %4480 = vadd.xlane.f32.xlu0 %v4479
        %v4481 = vpop.xlane.xlu0 %4480
        %v4482 = vmul.f32 %v4481, %v1920
        %v4483 = vadd.f32 %v4482, 1e-05
        %v4484 = vrsqrt.pop %v4483
        %v4485 = vmul.f32 %v4484, %v4483
        %v4486 = vmul.f32 %v4485, %v4484
        %v4487 = vmul.f32 0.5, %v4486
        %v4488 = vsub.f32 1.5, %v4487
        %v4489 = vmul.f32 %v4484, %v4488
        %vm4490 = vweird.f32 %v4483
        %vm4491 = vweird.f32 %v4484
        %vm4492 = vmor %vm4490, %vm4491
        %v4493 = vsel %vm4492, %v4484, %v4489
        %v4494 = vmul.f32 %v4477, %v4493
        %v4496 = vperm.slane %v4470, 0
        %v4498 = vmul.f32 %v4494, %v4496
        %v4500 = vperm.slane %v4472, 0
        %v4502 = vadd.f32 %v4498, %v4500
        %s4503 = scalar_lea.vmem [#allocation29], 32
        %v4504 = vld [vmem:[%s4503] sm:$0xff]
        %v4505 = vld [vmem:[%s4503 + $0x8] sm:$0xff]
        %v4506 = vld [vmem:[%s4503 + $0x10] sm:$0xff]
        %v4507 = vld [vmem:[%s4503 + $0x18] sm:$0xff]
        %s4508 = scalar_lea.vmem [#allocation31], 1
        %v4509 = vld [vmem:[%s4508] sm:$0x1]
        %s4510 = scalar_lea.vmem [#allocation32], 32
        %v4511 = vld [vmem:[%s4510] sm:$0xff]
        %v4512 = vld [vmem:[%s4510 + $0x8] sm:$0xff]
        %v4513 = vld [vmem:[%s4510 + $0x10] sm:$0xff]
        %v4514 = vld [vmem:[%s4510 + $0x18] sm:$0xff]
        %s4515 = scalar_lea.vmem %s71, 1
        %v4516 = vld [vmem:[%s4515] sm:$0x1]
        %s4517 = scalar_lea.vmem [#allocation34], 32
        %v4518 = vld [vmem:[%s4517] sm:$0xff]
        %v4519 = vld [vmem:[%s4517 + $0x8] sm:$0xff]
        %v4520 = vld [vmem:[%s4517 + $0x10] sm:$0xff]
        %v4521 = vld [vmem:[%s4517 + $0x18] sm:$0xff]
        %s4522 = scalar_lea.vmem %s75, 1
        %v4523 = vld [vmem:[%s4522] sm:$0x1]
        %v4525 = vperm.slane %v4509, 0
        %v4528 = vsel %vm1876, %v4502, 0
        %4530 = vmatpush.msra.mxu0 0.0
        %4531 = vmatpush.msra.mxu0 0.0
        %4532 = vmatpush.msra.mxu0 0.0
        %4533 = vmatpush.msra.mxu0 0.0
        %4534 = vmatpush.msra.mxu0 0.0
        %4535 = vmatpush.msra.mxu0 0.0
        %4536 = vmatpush.msra.mxu0 0.0
        %4537 = vmatpush.msra.mxu0 0.0
        %4538 = vmatpush.msra.mxu0 0.0
        %4539 = vmatpush.msra.mxu0 0.0
        %4540 = vmatpush.msra.mxu0 0.0
        %4541 = vmatpush.msra.mxu0 0.0
        %4542 = vmatpush.msra.mxu0 %v4507
        %4543 = vmatpush.msra.mxu0 %v4506
        %4544 = vmatpush.msra.mxu0 %v4505
        %4545 = vmatpush.msra.mxu0 %v4504
        %4546 = vmatmul.f32.gmra.mxu0 %v4528
        %v4547 = vpop.f32.mrf.mxu0
        %v4548 = vadd.f32 %v4525, %v4547
        %4549 = vdwg.mxu0
        %v4551 = vperm.slane %v4516, 0
        %4553 = vmatpush.msra.mxu0 0.0
        %4554 = vmatpush.msra.mxu0 0.0
        %4555 = vmatpush.msra.mxu0 0.0
        %4556 = vmatpush.msra.mxu0 0.0
        %4557 = vmatpush.msra.mxu0 0.0
        %4558 = vmatpush.msra.mxu0 0.0
        %4559 = vmatpush.msra.mxu0 0.0
        %4560 = vmatpush.msra.mxu0 0.0
        %4561 = vmatpush.msra.mxu0 0.0
        %4562 = vmatpush.msra.mxu0 0.0
        %4563 = vmatpush.msra.mxu0 0.0
        %4564 = vmatpush.msra.mxu0 0.0
        %4565 = vmatpush.msra.mxu0 %v4514
        %4566 = vmatpush.msra.mxu0 %v4513
        %4567 = vmatpush.msra.mxu0 %v4512
        %4568 = vmatpush.msra.mxu0 %v4511
        %4569 = vmatmul.f32.gmra.mxu0 %v3560
        %v4570 = vpop.f32.mrf.mxu0
        %v4571 = vadd.f32 %v4551, %v4570
        %4572 = vdwg.mxu0
        %4574 = vrot.lane.b32.xlu0 %v4548, 120
        %v4575 = vpop.permute.xlu0 %4574
        %4576 = vrot.lane.b32.xlu0 %v4548, 112
        %v4577 = vpop.permute.xlu0 %4576
        %4578 = vrot.lane.b32.xlu0 %v4548, 104
        %v4579 = vpop.permute.xlu0 %4578
        %4581 = vrot.lane.b32.xlu0 %v4571, 120
        %v4582 = vpop.permute.xlu0 %4581
        %4583 = vrot.lane.b32.xlu0 %v4571, 112
        %v4584 = vpop.permute.xlu0 %4583
        %4585 = vrot.lane.b32.xlu0 %v4571, 104
        %v4586 = vpop.permute.xlu0 %4585
        %v4587 = vsel %vm2067, %v4548, 0
        %v4589 = vsel %vm2067, %v4571, 0
        %4591 = vmatpush.xpose.msra.mxu0 0.0
        %4592 = vmatpush.xpose.msra.mxu0 0.0
        %4593 = vmatpush.xpose.msra.mxu0 0.0
        %4594 = vmatpush.xpose.msra.mxu0 0.0
        %4595 = vmatpush.xpose.msra.mxu0 0.0
        %4596 = vmatpush.xpose.msra.mxu0 0.0
        %4597 = vmatpush.xpose.msra.mxu0 0.0
        %4598 = vmatpush.xpose.msra.mxu0 0.0
        %4599 = vmatpush.xpose.msra.mxu0 0.0
        %4600 = vmatpush.xpose.msra.mxu0 0.0
        %4601 = vmatpush.xpose.msra.mxu0 0.0
        %4602 = vmatpush.xpose.msra.mxu0 0.0
        %4603 = vmatpush.xpose.msra.mxu0 0.0
        %4604 = vmatpush.xpose.msra.mxu0 0.0
        %4605 = vmatpush.xpose.msra.mxu0 0.0
        %4606 = vmatpush.xpose.msra.mxu0 %v4589
        %4607 = vmatmul.f32.gmra.mxu0 %v4587
        %v4608 = vpop.f32.mrf.mxu0
        %v4609 = vadd.f32 0.0, %v4608
        %4610 = vdwg.mxu0
        %v4611 = vsel %vm2067, %v4575, 0
        %v4613 = vsel %vm2067, %v4582, 0
        %4615 = vmatpush.xpose.msra.mxu0 0.0
        %4616 = vmatpush.xpose.msra.mxu0 0.0
        %4617 = vmatpush.xpose.msra.mxu0 0.0
        %4618 = vmatpush.xpose.msra.mxu0 0.0
        %4619 = vmatpush.xpose.msra.mxu0 0.0
        %4620 = vmatpush.xpose.msra.mxu0 0.0
        %4621 = vmatpush.xpose.msra.mxu0 0.0
        %4622 = vmatpush.xpose.msra.mxu0 0.0
        %4623 = vmatpush.xpose.msra.mxu0 0.0
        %4624 = vmatpush.xpose.msra.mxu0 0.0
        %4625 = vmatpush.xpose.msra.mxu0 0.0
        %4626 = vmatpush.xpose.msra.mxu0 0.0
        %4627 = vmatpush.xpose.msra.mxu0 0.0
        %4628 = vmatpush.xpose.msra.mxu0 0.0
        %4629 = vmatpush.xpose.msra.mxu0 0.0
        %4630 = vmatpush.xpose.msra.mxu0 %v4613
        %4631 = vmatmul.f32.gmra.mxu0 %v4611
        %v4632 = vpop.f32.mrf.mxu0
        %v4633 = vadd.f32 0.0, %v4632
        %4634 = vdwg.mxu0
        %v4635 = vsel %vm2067, %v4577, 0
        %v4637 = vsel %vm2067, %v4584, 0
        %4639 = vmatpush.xpose.msra.mxu0 0.0
        %4640 = vmatpush.xpose.msra.mxu0 0.0
        %4641 = vmatpush.xpose.msra.mxu0 0.0
        %4642 = vmatpush.xpose.msra.mxu0 0.0
        %4643 = vmatpush.xpose.msra.mxu0 0.0
        %4644 = vmatpush.xpose.msra.mxu0 0.0
        %4645 = vmatpush.xpose.msra.mxu0 0.0
        %4646 = vmatpush.xpose.msra.mxu0 0.0
        %4647 = vmatpush.xpose.msra.mxu0 0.0
        %4648 = vmatpush.xpose.msra.mxu0 0.0
        %4649 = vmatpush.xpose.msra.mxu0 0.0
        %4650 = vmatpush.xpose.msra.mxu0 0.0
        %4651 = vmatpush.xpose.msra.mxu0 0.0
        %4652 = vmatpush.xpose.msra.mxu0 0.0
        %4653 = vmatpush.xpose.msra.mxu0 0.0
        %4654 = vmatpush.xpose.msra.mxu0 %v4637
        %4655 = vmatmul.f32.gmra.mxu0 %v4635
        %v4656 = vpop.f32.mrf.mxu0
        %v4657 = vadd.f32 0.0, %v4656
        %4658 = vdwg.mxu0
        %v4659 = vsel %vm2067, %v4579, 0
        %v4661 = vsel %vm2067, %v4586, 0
        %4663 = vmatpush.xpose.msra.mxu0 0.0
        %4664 = vmatpush.xpose.msra.mxu0 0.0
        %4665 = vmatpush.xpose.msra.mxu0 0.0
        %4666 = vmatpush.xpose.msra.mxu0 0.0
        %4667 = vmatpush.xpose.msra.mxu0 0.0
        %4668 = vmatpush.xpose.msra.mxu0 0.0
        %4669 = vmatpush.xpose.msra.mxu0 0.0
        %4670 = vmatpush.xpose.msra.mxu0 0.0
        %4671 = vmatpush.xpose.msra.mxu0 0.0
        %4672 = vmatpush.xpose.msra.mxu0 0.0
        %4673 = vmatpush.xpose.msra.mxu0 0.0
        %4674 = vmatpush.xpose.msra.mxu0 0.0
        %4675 = vmatpush.xpose.msra.mxu0 0.0
        %4676 = vmatpush.xpose.msra.mxu0 0.0
        %4677 = vmatpush.xpose.msra.mxu0 0.0
        %4678 = vmatpush.xpose.msra.mxu0 %v4661
        %4679 = vmatmul.f32.gmra.mxu0 %v4659
        %v4680 = vpop.f32.mrf.mxu0
        %v4681 = vadd.f32 0.0, %v4680
        %4682 = vdwg.mxu0
        %v4683 = vmul.f32 %v4609, 0.35355338
        %v4684 = vmul.f32 %v4633, 0.35355338
        %v4685 = vmul.f32 %v4657, 0.35355338
        %v4686 = vmul.f32 %v4681, 0.35355338
        %v4687 = vsel %vm2067, %v4683, -inf
        %4688 = vmax.xlane.f32.xlu0 %v4687
        %v4689 = vpop.xlane.xlu0 %4688
        %v4690 = vsel %vm2067, %v4684, -inf
        %4691 = vmax.xlane.f32.xlu0 %v4690
        %v4692 = vpop.xlane.xlu0 %4691
        %v4693 = vsel %vm2067, %v4685, -inf
        %4694 = vmax.xlane.f32.xlu0 %v4693
        %v4695 = vpop.xlane.xlu0 %4694
        %v4696 = vsel %vm2067, %v4686, -inf
        %4697 = vmax.xlane.f32.xlu0 %v4696
        %v4698 = vpop.xlane.xlu0 %4697
        %v4699 = vsub.f32 %v4683, %v4689
        %v4700 = vsub.f32 %v4684, %v4692
        %v4701 = vsub.f32 %v4685, %v4695
        %v4702 = vsub.f32 %v4686, %v4698
        %v4703 = vmul.f32 %v4699, 1.442695
        %v4704 = vpow.pop %v4703
        %v4705 = vmul.f32 %v4700, 1.442695
        %v4706 = vpow.pop %v4705
        %v4707 = vmul.f32 %v4701, 1.442695
        %v4708 = vpow.pop %v4707
        %v4709 = vmul.f32 %v4702, 1.442695
        %v4710 = vpow.pop %v4709
        %v4711 = vsel %vm2067, %v4704, 0.0
        %4712 = vadd.xlane.f32.xlu0 %v4711
        %v4713 = vpop.xlane.xlu0 %4712
        %v4714 = vsel %vm2067, %v4706, 0.0
        %4715 = vadd.xlane.f32.xlu0 %v4714
        %v4716 = vpop.xlane.xlu0 %4715
        %v4717 = vsel %vm2067, %v4708, 0.0
        %4718 = vadd.xlane.f32.xlu0 %v4717
        %v4719 = vpop.xlane.xlu0 %4718
        %v4720 = vsel %vm2067, %v4710, 0.0
        %4721 = vadd.xlane.f32.xlu0 %v4720
        %v4722 = vpop.xlane.xlu0 %4721
        %v4723 = vrcp.pop %v4713
        %v4724 = vmul.f32 %v4713, %v4723
        %v4725 = vsub.f32 1.0, %v4724
        %v4726 = vmul.f32 %v4723, %v4725
        %v4727 = vadd.f32 %v4723, %v4726
        %vm4728 = vweird.f32 %v4713
        %vm4729 = vweird.f32 %v4723
        %vm4730 = vmor %vm4728, %vm4729
        %v4731 = vsel %vm4730, %v4723, %v4727
        %v4732 = vand.u32 2147483647, %v4713
        %vm4733 = vcmp.eq.f32.partialorder %v4732, 8.507059e+37
        %v4734 = vand.u32 %v4713, 2147483648
        %v4735 = vor.u32 1.1754944e-38, %v4734
        %v4736 = vsel %vm4733, %v4735, %v4731
        %v4737 = vmul.f32 %v4704, %v4736
        %v4738 = vrcp.pop %v4716
        %v4739 = vmul.f32 %v4716, %v4738
        %v4740 = vsub.f32 1.0, %v4739
        %v4741 = vmul.f32 %v4738, %v4740
        %v4742 = vadd.f32 %v4738, %v4741
        %vm4743 = vweird.f32 %v4716
        %vm4744 = vweird.f32 %v4738
        %vm4745 = vmor %vm4743, %vm4744
        %v4746 = vsel %vm4745, %v4738, %v4742
        %v4747 = vand.u32 2147483647, %v4716
        %vm4748 = vcmp.eq.f32.partialorder %v4747, 8.507059e+37
        %v4749 = vand.u32 %v4716, 2147483648
        %v4750 = vor.u32 1.1754944e-38, %v4749
        %v4751 = vsel %vm4748, %v4750, %v4746
        %v4752 = vmul.f32 %v4706, %v4751
        %v4753 = vrcp.pop %v4719
        %v4754 = vmul.f32 %v4719, %v4753
        %v4755 = vsub.f32 1.0, %v4754
        %v4756 = vmul.f32 %v4753, %v4755
        %v4757 = vadd.f32 %v4753, %v4756
        %vm4758 = vweird.f32 %v4719
        %vm4759 = vweird.f32 %v4753
        %vm4760 = vmor %vm4758, %vm4759
        %v4761 = vsel %vm4760, %v4753, %v4757
        %v4762 = vand.u32 2147483647, %v4719
        %vm4763 = vcmp.eq.f32.partialorder %v4762, 8.507059e+37
        %v4764 = vand.u32 %v4719, 2147483648
        %v4765 = vor.u32 1.1754944e-38, %v4764
        %v4766 = vsel %vm4763, %v4765, %v4761
        %v4767 = vmul.f32 %v4708, %v4766
        %v4768 = vrcp.pop %v4722
        %v4769 = vmul.f32 %v4722, %v4768
        %v4770 = vsub.f32 1.0, %v4769
        %v4771 = vmul.f32 %v4768, %v4770
        %v4772 = vadd.f32 %v4768, %v4771
        %vm4773 = vweird.f32 %v4722
        %vm4774 = vweird.f32 %v4768
        %vm4775 = vmor %vm4773, %vm4774
        %v4776 = vsel %vm4775, %v4768, %v4772
        %v4777 = vand.u32 2147483647, %v4722
        %vm4778 = vcmp.eq.f32.partialorder %v4777, 8.507059e+37
        %v4779 = vand.u32 %v4722, 2147483648
        %v4780 = vor.u32 1.1754944e-38, %v4779
        %v4781 = vsel %vm4778, %v4780, %v4776
        %v4782 = vmul.f32 %v4710, %v4781
        %4783 = vrot.lane.b32.xlu0 %v4571, 96
        %v4784 = vpop.permute.xlu0 %4783
        %v4787 = vsel %vm2067, %v4737, 0
        %4789 = vmatpush.msra.mxu0 0.0
        %4790 = vmatpush.msra.mxu0 0.0
        %4791 = vmatpush.msra.mxu0 0.0
        %4792 = vmatpush.msra.mxu0 0.0
        %4793 = vmatpush.msra.mxu0 0.0
        %4794 = vmatpush.msra.mxu0 0.0
        %4795 = vmatpush.msra.mxu0 0.0
        %4796 = vmatpush.msra.mxu0 0.0
        %4797 = vmatpush.msra.mxu0 0.0
        %4798 = vmatpush.msra.mxu0 0.0
        %4799 = vmatpush.msra.mxu0 0.0
        %4800 = vmatpush.msra.mxu0 0.0
        %4801 = vmatpush.msra.mxu0 0.0
        %4802 = vmatpush.msra.mxu0 0.0
        %4803 = vmatpush.msra.mxu0 0.0
        %4804 = vmatpush.msra.mxu0 %v4784
        %4805 = vmatmul.f32.gmra.mxu0 %v4787
        %v4806 = vpop.f32.mrf.mxu0
        %v4807 = vadd.f32 0.0, %v4806
        %4808 = vdwg.mxu0
        %4809 = vrot.lane.b32.xlu0 %v4582, 96
        %v4810 = vpop.permute.xlu0 %4809
        %v4813 = vsel %vm2067, %v4752, 0
        %4815 = vmatpush.msra.mxu0 0.0
        %4816 = vmatpush.msra.mxu0 0.0
        %4817 = vmatpush.msra.mxu0 0.0
        %4818 = vmatpush.msra.mxu0 0.0
        %4819 = vmatpush.msra.mxu0 0.0
        %4820 = vmatpush.msra.mxu0 0.0
        %4821 = vmatpush.msra.mxu0 0.0
        %4822 = vmatpush.msra.mxu0 0.0
        %4823 = vmatpush.msra.mxu0 0.0
        %4824 = vmatpush.msra.mxu0 0.0
        %4825 = vmatpush.msra.mxu0 0.0
        %4826 = vmatpush.msra.mxu0 0.0
        %4827 = vmatpush.msra.mxu0 0.0
        %4828 = vmatpush.msra.mxu0 0.0
        %4829 = vmatpush.msra.mxu0 0.0
        %4830 = vmatpush.msra.mxu0 %v4810
        %4831 = vmatmul.f32.gmra.mxu0 %v4813
        %v4832 = vpop.f32.mrf.mxu0
        %v4833 = vadd.f32 0.0, %v4832
        %4834 = vdwg.mxu0
        %4835 = vrot.lane.b32.xlu0 %v4584, 96
        %v4836 = vpop.permute.xlu0 %4835
        %v4839 = vsel %vm2067, %v4767, 0
        %4841 = vmatpush.msra.mxu0 0.0
        %4842 = vmatpush.msra.mxu0 0.0
        %4843 = vmatpush.msra.mxu0 0.0
        %4844 = vmatpush.msra.mxu0 0.0
        %4845 = vmatpush.msra.mxu0 0.0
        %4846 = vmatpush.msra.mxu0 0.0
        %4847 = vmatpush.msra.mxu0 0.0
        %4848 = vmatpush.msra.mxu0 0.0
        %4849 = vmatpush.msra.mxu0 0.0
        %4850 = vmatpush.msra.mxu0 0.0
        %4851 = vmatpush.msra.mxu0 0.0
        %4852 = vmatpush.msra.mxu0 0.0
        %4853 = vmatpush.msra.mxu0 0.0
        %4854 = vmatpush.msra.mxu0 0.0
        %4855 = vmatpush.msra.mxu0 0.0
        %4856 = vmatpush.msra.mxu0 %v4836
        %4857 = vmatmul.f32.gmra.mxu0 %v4839
        %v4858 = vpop.f32.mrf.mxu0
        %v4859 = vadd.f32 0.0, %v4858
        %4860 = vdwg.mxu0
        %4861 = vrot.lane.b32.xlu0 %v4586, 96
        %v4862 = vpop.permute.xlu0 %4861
        %v4865 = vsel %vm2067, %v4782, 0
        %4867 = vmatpush.msra.mxu0 0.0
        %4868 = vmatpush.msra.mxu0 0.0
        %4869 = vmatpush.msra.mxu0 0.0
        %4870 = vmatpush.msra.mxu0 0.0
        %4871 = vmatpush.msra.mxu0 0.0
        %4872 = vmatpush.msra.mxu0 0.0
        %4873 = vmatpush.msra.mxu0 0.0
        %4874 = vmatpush.msra.mxu0 0.0
        %4875 = vmatpush.msra.mxu0 0.0
        %4876 = vmatpush.msra.mxu0 0.0
        %4877 = vmatpush.msra.mxu0 0.0
        %4878 = vmatpush.msra.mxu0 0.0
        %4879 = vmatpush.msra.mxu0 0.0
        %4880 = vmatpush.msra.mxu0 0.0
        %4881 = vmatpush.msra.mxu0 0.0
        %4882 = vmatpush.msra.mxu0 %v4862
        %4883 = vmatmul.f32.gmra.mxu0 %v4865
        %v4884 = vpop.f32.mrf.mxu0
        %v4885 = vadd.f32 0.0, %v4884
        %4886 = vdwg.mxu0
        %4888 = vrot.lane.b32.xlu0 %v4833, 8
        %v4889 = vpop.permute.xlu0 %4888
        %4892 = vrot.lane.b32.xlu0 %v4859, 16
        %v4893 = vpop.permute.xlu0 %4892
        %4896 = vrot.lane.b32.xlu0 %v4885, 24
        %v4897 = vpop.permute.xlu0 %4896
        %v4899 = vsel %vm2067, %v4807, %v4889
        %v4900 = vsel %vm2387, %v4899, %v4893
        %v4901 = vsel %vm2389, %v4900, %v4897
        %v4903 = vperm.slane %v4523, 0
        %v4906 = vsel %vm1876, %v4901, 0
        %4908 = vmatpush.msra.mxu0 0.0
        %4909 = vmatpush.msra.mxu0 0.0
        %4910 = vmatpush.msra.mxu0 0.0
        %4911 = vmatpush.msra.mxu0 0.0
        %4912 = vmatpush.msra.mxu0 0.0
        %4913 = vmatpush.msra.mxu0 0.0
        %4914 = vmatpush.msra.mxu0 0.0
        %4915 = vmatpush.msra.mxu0 0.0
        %4916 = vmatpush.msra.mxu0 0.0
        %4917 = vmatpush.msra.mxu0 0.0
        %4918 = vmatpush.msra.mxu0 0.0
        %4919 = vmatpush.msra.mxu0 0.0
        %4920 = vmatpush.msra.mxu0 %v4521
        %4921 = vmatpush.msra.mxu0 %v4520
        %4922 = vmatpush.msra.mxu0 %v4519
        %4923 = vmatpush.msra.mxu0 %v4518
        %4924 = vmatmul.f32.gmra.mxu0 %v4906
        %v4925 = vpop.f32.mrf.mxu0
        %v4926 = vadd.f32 %v4903, %v4925
        %4927 = vdwg.mxu0
        %v4928 = vadd.f32 %v4468, %v4926
        %s4929 = scalar_lea.vmem %s77, 1
        %v4930 = vld [vmem:[%s4929] sm:$0x1]
        %s4931 = scalar_lea.vmem [#allocation35], 1
        %v4932 = vld [vmem:[%s4931] sm:$0x1]
        %v4933 = vsel %vm1876, %v4928, 0.0
        %4934 = vadd.xlane.f32.xlu0 %v4933
        %v4935 = vpop.xlane.xlu0 %4934
        %v4936 = vmul.f32 %v4935, %v1920
        %v4937 = vsub.f32 %v4928, %v4936
        %v4938 = vmul.f32 %v4937, %v4937
        %v4939 = vsel %vm1876, %v4938, 0.0
        %4940 = vadd.xlane.f32.xlu0 %v4939
        %v4941 = vpop.xlane.xlu0 %4940
        %v4942 = vmul.f32 %v4941, %v1920
        %v4943 = vadd.f32 %v4942, 1e-05
        %v4944 = vrsqrt.pop %v4943
        %v4945 = vmul.f32 %v4944, %v4943
        %v4946 = vmul.f32 %v4945, %v4944
        %v4947 = vmul.f32 0.5, %v4946
        %v4948 = vsub.f32 1.5, %v4947
        %v4949 = vmul.f32 %v4944, %v4948
        %vm4950 = vweird.f32 %v4943
        %vm4951 = vweird.f32 %v4944
        %vm4952 = vmor %vm4950, %vm4951
        %v4953 = vsel %vm4952, %v4944, %v4949
        %v4954 = vmul.f32 %v4937, %v4953
        %v4956 = vperm.slane %v4930, 0
        %v4958 = vmul.f32 %v4954, %v4956
        %v4960 = vperm.slane %v4932, 0
        %v4962 = vadd.f32 %v4958, %v4960
        %s4963 = scalar_lea.vmem [#allocation37], 32
        %v4964 = vld [vmem:[%s4963] sm:$0xff]
        %v4965 = vld [vmem:[%s4963 + $0x8] sm:$0xff]
        %v4966 = vld [vmem:[%s4963 + $0x10] sm:$0xff]
        %v4967 = vld [vmem:[%s4963 + $0x18] sm:$0xff]
        %s4968 = scalar_lea.vmem %s83, 1
        %v4969 = vld [vmem:[%s4968] sm:$0x1]
        %s4970 = scalar_lea.vmem %s85, 64
        %v4971 = vld [vmem:[%s4970] sm:$0xff]
        %v4972 = vld [vmem:[%s4970 + $0x8] sm:$0xff]
        %v4973 = vld [vmem:[%s4970 + $0x10] sm:$0xff]
        %v4974 = vld [vmem:[%s4970 + $0x18] sm:$0xff]
        %v4975 = vld [vmem:[%s4970 + $0x20] sm:$0xff]
        %v4976 = vld [vmem:[%s4970 + $0x28] sm:$0xff]
        %v4977 = vld [vmem:[%s4970 + $0x30] sm:$0xff]
        %v4978 = vld [vmem:[%s4970 + $0x38] sm:$0xff]
        %s4979 = scalar_lea.vmem %s87, 1
        %v4980 = vld [vmem:[%s4979] sm:$0x1]
        %v4982 = vperm.slane %v4969, 0
        %v4985 = vsel %vm1876, %v4962, 0
        %4987 = vmatpush.msra.mxu0 0.0
        %4988 = vmatpush.msra.mxu0 0.0
        %4989 = vmatpush.msra.mxu0 0.0
        %4990 = vmatpush.msra.mxu0 0.0
        %4991 = vmatpush.msra.mxu0 0.0
        %4992 = vmatpush.msra.mxu0 0.0
        %4993 = vmatpush.msra.mxu0 0.0
        %4994 = vmatpush.msra.mxu0 0.0
        %4995 = vmatpush.msra.mxu0 0.0
        %4996 = vmatpush.msra.mxu0 0.0
        %4997 = vmatpush.msra.mxu0 0.0
        %4998 = vmatpush.msra.mxu0 0.0
        %4999 = vmatpush.msra.mxu0 %v4967
        %5000 = vmatpush.msra.mxu0 %v4966
        %5001 = vmatpush.msra.mxu0 %v4965
        %5002 = vmatpush.msra.mxu0 %v4964
        %5003 = vmatmul.f32.gmra.mxu0 %v4985
        %v5004 = vpop.f32.mrf.mxu0
        %v5005 = vadd.f32 %v4982, %v5004
        %5006 = vdwg.mxu0
        %v5007 = vmax.f32 %v5005, 0.0
        %v5009 = vperm.slane %v4980, 0
        %v5012 = vsel %vm2494, %v5007, 0
        %5014 = vmatpush.msra.mxu0 0.0
        %5015 = vmatpush.msra.mxu0 0.0
        %5016 = vmatpush.msra.mxu0 0.0
        %5017 = vmatpush.msra.mxu0 0.0
        %5018 = vmatpush.msra.mxu0 0.0
        %5019 = vmatpush.msra.mxu0 0.0
        %5020 = vmatpush.msra.mxu0 0.0
        %5021 = vmatpush.msra.mxu0 0.0
        %5022 = vmatpush.msra.mxu0 %v4978
        %5023 = vmatpush.msra.mxu0 %v4977
        %5024 = vmatpush.msra.mxu0 %v4976
        %5025 = vmatpush.msra.mxu0 %v4975
        %5026 = vmatpush.msra.mxu0 %v4974
        %5027 = vmatpush.msra.mxu0 %v4973
        %5028 = vmatpush.msra.mxu0 %v4972
        %5029 = vmatpush.msra.mxu0 %v4971
        %5030 = vmatmul.f32.gmra.mxu0 %v5012
        %v5031 = vpop.f32.mrf.mxu0
        %v5032 = vadd.f32 %v5009, %v5031
        %5033 = vdwg.mxu0
        %v5034 = vadd.f32 %v4928, %v5032
        %v5035 = vld [vmem:[#allocation38] sm:$0xff]
        %v5036 = vld [vmem:[#allocation38 + $0x8] sm:$0xff]
        %v5037 = vld [vmem:[#allocation38 + $0x10] sm:$0xff]
        %v5038 = vld [vmem:[#allocation38 + $0x18] sm:$0xff]
        %v5039 = vld [vmem:[%s91] sm:$0x1]
        %v5041 = vperm.slane %v5039, 0
        %v5044 = vsel %vm1876, %v5034, 0
        %5046 = vmatpush.msra.mxu0 0.0
        %5047 = vmatpush.msra.mxu0 0.0
        %5048 = vmatpush.msra.mxu0 0.0
        %5049 = vmatpush.msra.mxu0 0.0
        %5050 = vmatpush.msra.mxu0 0.0
        %5051 = vmatpush.msra.mxu0 0.0
        %5052 = vmatpush.msra.mxu0 0.0
        %5053 = vmatpush.msra.mxu0 0.0
        %5054 = vmatpush.msra.mxu0 0.0
        %5055 = vmatpush.msra.mxu0 0.0
        %5056 = vmatpush.msra.mxu0 0.0
        %5057 = vmatpush.msra.mxu0 0.0
        %5058 = vmatpush.msra.mxu0 %v5038
        %5059 = vmatpush.msra.mxu0 %v5037
        %5060 = vmatpush.msra.mxu0 %v5036
        %5061 = vmatpush.msra.mxu0 %v5035
        %5062 = vmatmul.f32.gmra.mxu0 %v5044
        %v5063 = vpop.f32.mrf.mxu0
        %v5064 = vadd.f32 %v5041, %v5063
        %5065 = vdwg.mxu0
        %5066 = vst [vmem:[%s1814] sm:$0xff] %v5064
        %s5067 = sand.u32 %s1118, 1
        %s5068 = scalar_lea.sflag [#allocation4], %s5067
        %s5069 = sand.u32 %s1118, 1
        %s5070 = smul.addr %s5069, 8
        %s5071 = scalar_lea.vmem [#allocation40], %s5070
        // Predicated region
        $region301: #{tpu_custom_call.1} parent=203 // pred_check
          %p5072 = pneg %p1128
        $region302: #{tpu_custom_call.1} parent=203 // pred_check_branch
          %5074 = sbr.rel (%p5072) target = $region304
        $region303: #{tpu_custom_call.1} parent=203 // pred_region
          %5076 = vsyncadd %s5068, 0
          %s5077 = smul.addr %s124, 8
          %s5078 = scalar_lea.hbm %s93, %s5077
          %s5080 = sshll.u32 %s5071, 4
          %s5081 = int_to_ptr.vmem [resolvable:$true] %s5080
          %s5082 = sshll.u32 %s5078, 4
          %s5083 = int_to_ptr.hbm [resolvable:$true] %s5082
          %5085 = dma.vmem_to_hbm [thread:$0]  %s5081, 128, %s5083, %s5068
        $region304: #{tpu_custom_call.1} parent=203 // pred_fallthru
          _
      $region204: #{tpu_custom_call.1} parent=5 // pred_fallthru
        _
      %p5086 = scmp.le.s32.totalorder 2, %s119
      // Predicated region
      $region305: #{tpu_custom_call.1} parent=5 // pred_check
        %p5087 = pneg %p5086
      $region306: #{tpu_custom_call.1} parent=5 // pred_check_branch
        %5089 = sbr.rel (%p5087) target = $region308
      $region307: #{tpu_custom_call.1} parent=5 // pred_region
        %s5090 = ssub.s32 %s119, 2
        // Predicated region
        $region309: #{tpu_custom_call.1} parent=307 // pred_check
          %p5091 = pneg %p1134
        $region310: #{tpu_custom_call.1} parent=307 // pred_check_branch
          %5093 = sbr.rel (%p5091) target = $region312
        $region311: #{tpu_custom_call.1} parent=307 // pred_region
          %s5094 = sand.u32 %s1119, 1
          %s5095 = scalar_lea.sflag [#allocation4], %s5094
          %s5096 = sand.u32 %s1119, 1
          %s5097 = smul.addr %s5096, 8
          %s5098 = scalar_lea.vmem [#allocation40], %s5097
          %5100 = dma.done %s5095, 128
        $region312: #{tpu_custom_call.1} parent=307 // pred_fallthru
          _
      $region308: #{tpu_custom_call.1} parent=5 // pred_fallthru
        _
    $region6: #{tpu_custom_call.1} parent=1 // loop_footer
      %s123 = sadd.s32 1, %s119
    $region7: #{tpu_custom_call.1} parent=1 // loop_footer_branch
      %118 = sbr.rel target = $region3
    $region8: #{tpu_custom_call.1} parent=1 // loop_exit
      _
    %5101 = vsyncpa [#allocation3], 1
    %s5102 = scalar_lea.sflag [#allocation3], 1
    %5103 = vsyncpa %s5102, 1
    %5104 = vsyncpa [#allocation6], 1
    %s5105 = scalar_lea.sflag [#allocation6], 1
    %5106 = vsyncpa %s5105, 1
    %5107 = vsyncpa [#allocation9], 1
    %5108 = vsyncpa [#allocation12], 1
    %5109 = vsyncpa [#allocation15], 1
    %5110 = vsyncpa [#allocation18], 1
    %5111 = vsyncpa [#allocation21], 1
    %5112 = vsyncpa [#allocation24], 1
    %5113 = vsyncpa [#allocation27], 1
    %5114 = vsyncpa [#allocation30], 1
    %5115 = vsyncpa [#allocation33], 1
    %5116 = vsyncpa [#allocation36], 1
    %5117 = vsyncpa [#allocation39], 1
    %5118 = vsyncpa [#allocation4], 1
    %s5119 = scalar_lea.sflag [#allocation4], 1
    %5120 = vsyncpa %s5119, 1

</llo_original>
